<compile_context>
chip_gen: v6e
topology: v6e:2x2x1
jax: 0.10.0
libtpu: 0.0.40
codegen_flags: <defaults>
</compile_context>

<pallas_src>
import jax
import jax.numpy as jnp
from jax.experimental import pallas as pl
from jax.experimental.pallas import tpu as pltpu

# Layer widths from the module definition.
HIDDEN_DIMS = [1024, 728, 640, 512, 256, 128, 64, 32]

_LANE = 128
_SUBLANE_BF16 = 16                 # bf16 packs 16 rows per vreg sublane group


def _round_up(n, m):
    return ((n + m - 1) // m) * m


# --------------------------------------------------------------------------
# Kernel
# --------------------------------------------------------------------------
def _mlp_kernel(x_ref, *refs):
    """Fused MLP: 9 Linear layers, tanh after all but the last.

    refs = (w1..w9, b1..b9, out_ref).
    Weights are [in_pad, out_pad] in the matmul dtype (bf16 by default) and are
    VMEM-resident across the whole grid (constant index_map). Biases are f32
    (1, out_pad). Matmuls accumulate in f32 on the MXU; bias add and tanh stay
    in f32 (EUP), then the activation is packed back to the matmul dtype.
    """
    n_layers = (len(refs) - 1) // 2
    w_refs = refs[:n_layers]
    b_refs = refs[n_layers:2 * n_layers]
    out_ref = refs[-1]

    h = x_ref[...]                                     # already in matmul dtype
    for li in range(n_layers):
        w = w_refs[li][...]
        b = b_refs[li][...]                            # (1, out_pad) f32, broadcasts
        acc = jnp.dot(h, w, preferred_element_type=jnp.float32) + b
        if li < n_layers - 1:
            h = jnp.tanh(acc).astype(w.dtype)          # f32 tanh -> matmul dtype
        else:
            h = acc
    out_ref[...] = h.astype(out_ref.dtype)


# --------------------------------------------------------------------------
# Parameter preparation (done ONCE, outside the forward hot path)
# --------------------------------------------------------------------------
def prepare_params(weights, biases, *, param_dtype=jnp.bfloat16):
    """Pad layer dims to lane multiples (except layer-1's input dim) and cast.

    Zero padding is numerically neutral: padded weight columns + zero bias give
    exactly-zero activations, tanh(0) = 0, and the next layer's padded (zero)
    rows contribute nothing.
    """
    w_p, b_p = [], []
    for li, (w, b) in enumerate(zip(weights, biases)):
        di, do = w.shape
        # Layer 0 keeps its (small) input dim un-lane-padded; only round to the
        # 8-sublane granule so the x BlockSpec stays legal for any feature count.
        dip = _round_up(di, 8) if li == 0 else _round_up(di, _LANE)
        dop = _round_up(do, _LANE)
        wp = jnp.zeros((dip, dop), param_dtype).at[:di, :do].set(w.astype(param_dtype))
        bp = jnp.zeros((1, dop), jnp.float32).at[0, :do].set(b.astype(jnp.float32))
        w_p.append(wp)
        b_p.append(bp)
    return w_p, b_p


# --------------------------------------------------------------------------
# Forward
# --------------------------------------------------------------------------
def _pick_batch_tile(batch):
    if batch <= 256:
        # Single tile, sublane-dense for bf16 packing.
        return _round_up(batch, _SUBLANE_BF16)
    # Aim for >= 8 grid steps (>= 4 per TensorCore on v7x) while keeping the
    # tile a multiple of 256 (matches 2x256x256 MXU) and capped at 1024.
    tile = _round_up(pl.cdiv(batch, 8), 256)
    return int(max(256, min(1024, tile)))


def _vmem_limit_bytes(w_p, b_p, batch_tile, f_in, out_pad):
    param_bytes = sum(int(a.size) * a.dtype.itemsize for a in (*w_p, *b_p))
    widest = max(w.shape[1] for w in w_p)
    est = (2 * param_bytes                                # double-buffered param blocks
           + 4 * batch_tile * widest * 4                  # a few live f32 activation tiles
           + 2 * batch_tile * (f_in * 2 + out_pad * 4))   # x (bf16) / out (f32) double buffers
    # Generous headroom, clamped inside every generation's physical VMEM
    # (v7x: 64 MiB per TensorCore).
    return int(min(max(est * 3 // 2, 32 << 20), 48 << 20))


def _forward_impl(x, w_p, b_p, num_outputs, param_dtype):
    B, F = x.shape
    f_in = w_p[0].shape[0]
    out_pad = w_p[-1].shape[1]

    batch_tile = _pick_batch_tile(B)
    b_padded = _round_up(B, batch_tile)
    grid = (b_padded // batch_tile,)

    # Cast to the matmul dtype once (the first matmul would downcast anyway);
    # pad only the batch dim (and feature dim up to the 8-granule if needed).
    xb = x.astype(param_dtype)
    if b_padded != B or f_in != F:
        xb = jnp.zeros((b_padded, f_in), param_dtype).at[:B, :F].set(xb)

    in_specs = [pl.BlockSpec((batch_tile, f_in), lambda i: (i, 0))]
    for w in w_p:
        in_specs.append(pl.BlockSpec(w.shape, lambda i: (0, 0)))
    for b in b_p:
        in_specs.append(pl.BlockSpec(b.shape, lambda i: (0, 0)))
    out_spec = pl.BlockSpec((batch_tile, out_pad), lambda i: (i, 0))

    out = pl.pallas_call(
        _mlp_kernel,
        out_shape=jax.ShapeDtypeStruct((b_padded, out_pad), jnp.float32),
        grid_spec=pltpu.PrefetchScalarGridSpec(
            num_scalar_prefetch=0,
            grid=grid,
            in_specs=in_specs,
            out_specs=out_spec,
        ),
        compiler_params=pltpu.CompilerParams(
            dimension_semantics=("parallel",),
            vmem_limit_bytes=_vmem_limit_bytes(w_p, b_p, batch_tile, f_in, out_pad),
        ),
    )(xb, *w_p, *b_p)

    return out[:B, :num_outputs]


def make_pinn_forward(weights, biases, *, param_dtype=jnp.bfloat16):
    """Pad/cast params once and return a jitted forward(x) -> [B, num_outputs].

    NOTE: param_dtype=jnp.bfloat16 gives MXU-native throughput with f32
    accumulation; pass jnp.float32 for full-f32 PINN fidelity (slower matmuls).
    """
    w_p, b_p = prepare_params(weights, biases, param_dtype=param_dtype)
    num_outputs = int(weights[-1].shape[1])

    @jax.jit
    def _jitted(x, w_list, b_list):
        return _forward_impl(x, w_list, b_list, num_outputs, param_dtype)

    return lambda x: _jitted(x, w_p, b_p)


# Convenience single-shot API (prepares params internally; prefer
# make_pinn_forward in loops so preparation is paid once).
def extra_large_pinn_net(x, weights, biases, *, param_dtype=jnp.bfloat16):
    return make_pinn_forward(weights, biases, param_dtype=param_dtype)(x)


# --------------------------------------------------------------------------
# Init + reference
# --------------------------------------------------------------------------
def init_params(key, num_features, num_outputs):
    """Deterministic parameter init matching the nn.Linear shapes."""
    dims = [num_features] + HIDDEN_DIMS + [num_outputs]
    weights, biases = [], []
    for li in range(len(dims) - 1):
        key, kw, kb = jax.random.split(key, 3)
        fan_in = dims[li]
        bound = 1.0 / float(fan_in) ** 0.5
        # stored as [in, out] (transpose of PyTorch's [out, in])
        w = jax.random.uniform(kw, (dims[li], dims[li + 1]), jnp.float32,
                               minval=-bound, maxval=bound)
        b = jax.random.uniform(kb, (dims[li + 1],), jnp.float32,
                               minval=-bound, maxval=bound)
        weights.append(w)
        biases.append(b)
    return weights, biases


def reference_forward(x, weights, biases, *, param_dtype=jnp.bfloat16):
    """Pure-JAX reference mimicking the kernel math (bf16 matmul, f32 accum/tanh)."""
    h = x.astype(param_dtype)
    n = len(weights)
    for li in range(n):
        w = weights[li].astype(param_dtype)
        h = jnp.dot(h, w, preferred_element_type=jnp.float32)
        h = h + biases[li].astype(jnp.float32)
        if li < n - 1:
            h = jnp.tanh(h).astype(param_dtype)
    return h.astype(jnp.float32)


if __name__ == "__main__":
    num_features = 16
    num_outputs = 8
    batch = 8

    key = jax.random.PRNGKey(0)
    key, kx = jax.random.split(key)
    x = jax.random.normal(kx, (batch, num_features), dtype=jnp.float32)

    weights, biases = init_params(key, num_features, num_outputs)

    forward = make_pinn_forward(weights, biases)   # params prepared once here
    out = jax.block_until_ready(forward(x))

    ref = reference_forward(x, weights, biases)
    assert out.shape == (batch, num_outputs)
    assert jnp.allclose(out, ref, atol=1e-2, rtol=1e-2), "mismatch vs reference"

    print("KERNEL_OK")
</pallas_src>

<mosaic_0001>
module attributes {stable_mosaic.version = 11 : i64} {
  func.func @_mlp_kernel(%arg0: i32, %arg1: memref<16x16xbf16, #tpu.memory_space<vmem>>, %arg2: memref<16x1024xbf16, #tpu.memory_space<vmem>>, %arg3: memref<1024x768xbf16, #tpu.memory_space<vmem>>, %arg4: memref<768x640xbf16, #tpu.memory_space<vmem>>, %arg5: memref<640x512xbf16, #tpu.memory_space<vmem>>, %arg6: memref<512x256xbf16, #tpu.memory_space<vmem>>, %arg7: memref<256x128xbf16, #tpu.memory_space<vmem>>, %arg8: memref<128x128xbf16, #tpu.memory_space<vmem>>, %arg9: memref<128x128xbf16, #tpu.memory_space<vmem>>, %arg10: memref<128x128xbf16, #tpu.memory_space<vmem>>, %arg11: memref<1x1024xf32, #tpu.memory_space<vmem>>, %arg12: memref<1x768xf32, #tpu.memory_space<vmem>>, %arg13: memref<1x640xf32, #tpu.memory_space<vmem>>, %arg14: memref<1x512xf32, #tpu.memory_space<vmem>>, %arg15: memref<1x256xf32, #tpu.memory_space<vmem>>, %arg16: memref<1x128xf32, #tpu.memory_space<vmem>>, %arg17: memref<1x128xf32, #tpu.memory_space<vmem>>, %arg18: memref<1x128xf32, #tpu.memory_space<vmem>>, %arg19: memref<1x128xf32, #tpu.memory_space<vmem>>, %arg20: memref<16x128xf32, #tpu.memory_space<vmem>>) attributes {dimension_semantics = [#tpu.dimension_semantics<parallel>], iteration_bounds = array<i64: 1>, scalar_prefetch = 0 : i64, scratch_operands = 0 : i64, tpu.core_type = #tpu.core_type<tc>, window_params = [{transform_indices = @transform_0, window_bounds = array<i64: 16, 16>}, {pipeline_mode = #tpu.pipeline_mode<synchronous>, transform_indices = @transform_1, window_bounds = array<i64: 16, 1024>}, {pipeline_mode = #tpu.pipeline_mode<synchronous>, transform_indices = @transform_2, window_bounds = array<i64: 1024, 768>}, {pipeline_mode = #tpu.pipeline_mode<synchronous>, transform_indices = @transform_3, window_bounds = array<i64: 768, 640>}, {pipeline_mode = #tpu.pipeline_mode<synchronous>, transform_indices = @transform_4, window_bounds = array<i64: 640, 512>}, {pipeline_mode = #tpu.pipeline_mode<synchronous>, transform_indices = @transform_5, window_bounds = array<i64: 512, 256>}, {pipeline_mode = #tpu.pipeline_mode<synchronous>, transform_indices = @transform_6, window_bounds = array<i64: 256, 128>}, {pipeline_mode = #tpu.pipeline_mode<synchronous>, transform_indices = @transform_7, window_bounds = array<i64: 128, 128>}, {pipeline_mode = #tpu.pipeline_mode<synchronous>, transform_indices = @transform_8, window_bounds = array<i64: 128, 128>}, {pipeline_mode = #tpu.pipeline_mode<synchronous>, transform_indices = @transform_9, window_bounds = array<i64: 128, 128>}, {pipeline_mode = #tpu.pipeline_mode<synchronous>, transform_indices = @transform_10, window_bounds = array<i64: 1, 1024>}, {pipeline_mode = #tpu.pipeline_mode<synchronous>, transform_indices = @transform_11, window_bounds = array<i64: 1, 768>}, {pipeline_mode = #tpu.pipeline_mode<synchronous>, transform_indices = @transform_12, window_bounds = array<i64: 1, 640>}, {pipeline_mode = #tpu.pipeline_mode<synchronous>, transform_indices = @transform_13, window_bounds = array<i64: 1, 512>}, {pipeline_mode = #tpu.pipeline_mode<synchronous>, transform_indices = @transform_14, window_bounds = array<i64: 1, 256>}, {pipeline_mode = #tpu.pipeline_mode<synchronous>, transform_indices = @transform_15, window_bounds = array<i64: 1, 128>}, {pipeline_mode = #tpu.pipeline_mode<synchronous>, transform_indices = @transform_16, window_bounds = array<i64: 1, 128>}, {pipeline_mode = #tpu.pipeline_mode<synchronous>, transform_indices = @transform_17, window_bounds = array<i64: 1, 128>}, {pipeline_mode = #tpu.pipeline_mode<synchronous>, transform_indices = @transform_18, window_bounds = array<i64: 1, 128>}, {transform_indices = @transform_19, window_bounds = array<i64: 16, 128>}]} {
    %c0 = arith.constant 0 : index
    %c0_0 = arith.constant 0 : index
    %0 = vector.load %arg1[%c0, %c0_0] : memref<16x16xbf16, #tpu.memory_space<vmem>>, vector<16x16xbf16>
    %c0_1 = arith.constant 0 : index
    %c0_2 = arith.constant 0 : index
    %1 = vector.load %arg2[%c0_1, %c0_2] : memref<16x1024xbf16, #tpu.memory_space<vmem>>, vector<16x1024xbf16>
    %c0_3 = arith.constant 0 : index
    %c0_4 = arith.constant 0 : index
    %2 = vector.load %arg11[%c0_3, %c0_4] : memref<1x1024xf32, #tpu.memory_space<vmem>>, vector<1x1024xf32>
    %cst = arith.constant dense<0.000000e+00> : vector<16x1024xf32>
    %3 = tpu.matmul %0, %1, %cst {dimension_numbers = #tpu.dot_dimension_numbers<[1], [0], [0], [1], [0, 0, 1, 1], [], []>} : vector<16x16xbf16>, vector<16x1024xbf16>, vector<16x1024xf32> -> vector<16x1024xf32>
    %4 = vector.broadcast %2 : vector<1x1024xf32> to vector<16x1024xf32>
    %5 = arith.addf %3, %4 : vector<16x1024xf32>
    %6 = math.tanh %5 : vector<16x1024xf32>
    %7 = arith.truncf %6 : vector<16x1024xf32> to vector<16x1024xbf16>
    %c0_5 = arith.constant 0 : index
    %c0_6 = arith.constant 0 : index
    %8 = vector.load %arg3[%c0_5, %c0_6] : memref<1024x768xbf16, #tpu.memory_space<vmem>>, vector<1024x768xbf16>
    %c0_7 = arith.constant 0 : index
    %c0_8 = arith.constant 0 : index
    %9 = vector.load %arg12[%c0_7, %c0_8] : memref<1x768xf32, #tpu.memory_space<vmem>>, vector<1x768xf32>
    %cst_9 = arith.constant dense<0.000000e+00> : vector<16x768xf32>
    %10 = tpu.matmul %7, %8, %cst_9 {dimension_numbers = #tpu.dot_dimension_numbers<[1], [0], [0], [1], [0, 0, 1, 1], [], []>} : vector<16x1024xbf16>, vector<1024x768xbf16>, vector<16x768xf32> -> vector<16x768xf32>
    %11 = vector.broadcast %9 : vector<1x768xf32> to vector<16x768xf32>
    %12 = arith.addf %10, %11 : vector<16x768xf32>
    %13 = math.tanh %12 : vector<16x768xf32>
    %14 = arith.truncf %13 : vector<16x768xf32> to vector<16x768xbf16>
    %c0_10 = arith.constant 0 : index
    %c0_11 = arith.constant 0 : index
    %15 = vector.load %arg4[%c0_10, %c0_11] : memref<768x640xbf16, #tpu.memory_space<vmem>>, vector<768x640xbf16>
    %c0_12 = arith.constant 0 : index
    %c0_13 = arith.constant 0 : index
    %16 = vector.load %arg13[%c0_12, %c0_13] : memref<1x640xf32, #tpu.memory_space<vmem>>, vector<1x640xf32>
    %cst_14 = arith.constant dense<0.000000e+00> : vector<16x640xf32>
    %17 = tpu.matmul %14, %15, %cst_14 {dimension_numbers = #tpu.dot_dimension_numbers<[1], [0], [0], [1], [0, 0, 1, 1], [], []>} : vector<16x768xbf16>, vector<768x640xbf16>, vector<16x640xf32> -> vector<16x640xf32>
    %18 = vector.broadcast %16 : vector<1x640xf32> to vector<16x640xf32>
    %19 = arith.addf %17, %18 : vector<16x640xf32>
    %20 = math.tanh %19 : vector<16x640xf32>
    %21 = arith.truncf %20 : vector<16x640xf32> to vector<16x640xbf16>
    %c0_15 = arith.constant 0 : index
    %c0_16 = arith.constant 0 : index
    %22 = vector.load %arg5[%c0_15, %c0_16] : memref<640x512xbf16, #tpu.memory_space<vmem>>, vector<640x512xbf16>
    %c0_17 = arith.constant 0 : index
    %c0_18 = arith.constant 0 : index
    %23 = vector.load %arg14[%c0_17, %c0_18] : memref<1x512xf32, #tpu.memory_space<vmem>>, vector<1x512xf32>
    %cst_19 = arith.constant dense<0.000000e+00> : vector<16x512xf32>
    %24 = tpu.matmul %21, %22, %cst_19 {dimension_numbers = #tpu.dot_dimension_numbers<[1], [0], [0], [1], [0, 0, 1, 1], [], []>} : vector<16x640xbf16>, vector<640x512xbf16>, vector<16x512xf32> -> vector<16x512xf32>
    %25 = vector.broadcast %23 : vector<1x512xf32> to vector<16x512xf32>
    %26 = arith.addf %24, %25 : vector<16x512xf32>
    %27 = math.tanh %26 : vector<16x512xf32>
    %28 = arith.truncf %27 : vector<16x512xf32> to vector<16x512xbf16>
    %c0_20 = arith.constant 0 : index
    %c0_21 = arith.constant 0 : index
    %29 = vector.load %arg6[%c0_20, %c0_21] : memref<512x256xbf16, #tpu.memory_space<vmem>>, vector<512x256xbf16>
    %c0_22 = arith.constant 0 : index
    %c0_23 = arith.constant 0 : index
    %30 = vector.load %arg15[%c0_22, %c0_23] : memref<1x256xf32, #tpu.memory_space<vmem>>, vector<1x256xf32>
    %cst_24 = arith.constant dense<0.000000e+00> : vector<16x256xf32>
    %31 = tpu.matmul %28, %29, %cst_24 {dimension_numbers = #tpu.dot_dimension_numbers<[1], [0], [0], [1], [0, 0, 1, 1], [], []>} : vector<16x512xbf16>, vector<512x256xbf16>, vector<16x256xf32> -> vector<16x256xf32>
    %32 = vector.broadcast %30 : vector<1x256xf32> to vector<16x256xf32>
    %33 = arith.addf %31, %32 : vector<16x256xf32>
    %34 = math.tanh %33 : vector<16x256xf32>
    %35 = arith.truncf %34 : vector<16x256xf32> to vector<16x256xbf16>
    %c0_25 = arith.constant 0 : index
    %c0_26 = arith.constant 0 : index
    %36 = vector.load %arg7[%c0_25, %c0_26] : memref<256x128xbf16, #tpu.memory_space<vmem>>, vector<256x128xbf16>
    %c0_27 = arith.constant 0 : index
    %c0_28 = arith.constant 0 : index
    %37 = vector.load %arg16[%c0_27, %c0_28] : memref<1x128xf32, #tpu.memory_space<vmem>>, vector<1x128xf32>
    %cst_29 = arith.constant dense<0.000000e+00> : vector<16x128xf32>
    %38 = tpu.matmul %35, %36, %cst_29 {dimension_numbers = #tpu.dot_dimension_numbers<[1], [0], [0], [1], [0, 0, 1, 1], [], []>} : vector<16x256xbf16>, vector<256x128xbf16>, vector<16x128xf32> -> vector<16x128xf32>
    %39 = vector.broadcast %37 : vector<1x128xf32> to vector<16x128xf32>
    %40 = arith.addf %38, %39 : vector<16x128xf32>
    %41 = math.tanh %40 : vector<16x128xf32>
    %42 = arith.truncf %41 : vector<16x128xf32> to vector<16x128xbf16>
    %c0_30 = arith.constant 0 : index
    %c0_31 = arith.constant 0 : index
    %43 = vector.load %arg8[%c0_30, %c0_31] : memref<128x128xbf16, #tpu.memory_space<vmem>>, vector<128x128xbf16>
    %c0_32 = arith.constant 0 : index
    %c0_33 = arith.constant 0 : index
    %44 = vector.load %arg17[%c0_32, %c0_33] : memref<1x128xf32, #tpu.memory_space<vmem>>, vector<1x128xf32>
    %cst_34 = arith.constant dense<0.000000e+00> : vector<16x128xf32>
    %45 = tpu.matmul %42, %43, %cst_34 {dimension_numbers = #tpu.dot_dimension_numbers<[1], [0], [0], [1], [0, 0, 1, 1], [], []>} : vector<16x128xbf16>, vector<128x128xbf16>, vector<16x128xf32> -> vector<16x128xf32>
    %46 = vector.broadcast %44 : vector<1x128xf32> to vector<16x128xf32>
    %47 = arith.addf %45, %46 : vector<16x128xf32>
    %48 = math.tanh %47 : vector<16x128xf32>
    %49 = arith.truncf %48 : vector<16x128xf32> to vector<16x128xbf16>
    %c0_35 = arith.constant 0 : index
    %c0_36 = arith.constant 0 : index
    %50 = vector.load %arg9[%c0_35, %c0_36] : memref<128x128xbf16, #tpu.memory_space<vmem>>, vector<128x128xbf16>
    %c0_37 = arith.constant 0 : index
    %c0_38 = arith.constant 0 : index
    %51 = vector.load %arg18[%c0_37, %c0_38] : memref<1x128xf32, #tpu.memory_space<vmem>>, vector<1x128xf32>
    %cst_39 = arith.constant dense<0.000000e+00> : vector<16x128xf32>
    %52 = tpu.matmul %49, %50, %cst_39 {dimension_numbers = #tpu.dot_dimension_numbers<[1], [0], [0], [1], [0, 0, 1, 1], [], []>} : vector<16x128xbf16>, vector<128x128xbf16>, vector<16x128xf32> -> vector<16x128xf32>
    %53 = vector.broadcast %51 : vector<1x128xf32> to vector<16x128xf32>
    %54 = arith.addf %52, %53 : vector<16x128xf32>
    %55 = math.tanh %54 : vector<16x128xf32>
    %56 = arith.truncf %55 : vector<16x128xf32> to vector<16x128xbf16>
    %c0_40 = arith.constant 0 : index
    %c0_41 = arith.constant 0 : index
    %57 = vector.load %arg10[%c0_40, %c0_41] : memref<128x128xbf16, #tpu.memory_space<vmem>>, vector<128x128xbf16>
    %c0_42 = arith.constant 0 : index
    %c0_43 = arith.constant 0 : index
    %58 = vector.load %arg19[%c0_42, %c0_43] : memref<1x128xf32, #tpu.memory_space<vmem>>, vector<1x128xf32>
    %cst_44 = arith.constant dense<0.000000e+00> : vector<16x128xf32>
    %59 = tpu.matmul %56, %57, %cst_44 {dimension_numbers = #tpu.dot_dimension_numbers<[1], [0], [0], [1], [0, 0, 1, 1], [], []>} : vector<16x128xbf16>, vector<128x128xbf16>, vector<16x128xf32> -> vector<16x128xf32>
    %60 = vector.broadcast %58 : vector<1x128xf32> to vector<16x128xf32>
    %61 = arith.addf %59, %60 : vector<16x128xf32>
    %c0_45 = arith.constant 0 : index
    %c0_46 = arith.constant 0 : index
    %62 = vector.load %arg20[%c0_45, %c0_46] : memref<16x128xf32, #tpu.memory_space<vmem>>, vector<16x128xf32>
    tpu.vector_store %arg20[%c0_45, %c0_46], %61 {strides = array<i32>} : memref<16x128xf32, #tpu.memory_space<vmem>>, vector<16x128xf32>,
    return
  }
  func.func @transform_0(%arg0: i32) -> (i32, i32) {
    %c0_i32 = arith.constant 0 : i32
    %c0_i32_0 = arith.constant 0 : i32
    return %arg0, %c0_i32 : i32, i32
  }
  func.func @transform_1(%arg0: i32) -> (i32, i32) {
    %c0_i32 = arith.constant 0 : i32
    %c0_i32_0 = arith.constant 0 : i32
    %c0_i32_1 = arith.constant 0 : i32
    return %c0_i32, %c0_i32_0 : i32, i32
  }
  func.func @transform_2(%arg0: i32) -> (i32, i32) {
    %c0_i32 = arith.constant 0 : i32
    %c0_i32_0 = arith.constant 0 : i32
    %c0_i32_1 = arith.constant 0 : i32
    return %c0_i32, %c0_i32_0 : i32, i32
  }
  func.func @transform_3(%arg0: i32) -> (i32, i32) {
    %c0_i32 = arith.constant 0 : i32
    %c0_i32_0 = arith.constant 0 : i32
    %c0_i32_1 = arith.constant 0 : i32
    return %c0_i32, %c0_i32_0 : i32, i32
  }
  func.func @transform_4(%arg0: i32) -> (i32, i32) {
    %c0_i32 = arith.constant 0 : i32
    %c0_i32_0 = arith.constant 0 : i32
    %c0_i32_1 = arith.constant 0 : i32
    return %c0_i32, %c0_i32_0 : i32, i32
  }
  func.func @transform_5(%arg0: i32) -> (i32, i32) {
    %c0_i32 = arith.constant 0 : i32
    %c0_i32_0 = arith.constant 0 : i32
    %c0_i32_1 = arith.constant 0 : i32
    return %c0_i32, %c0_i32_0 : i32, i32
  }
  func.func @transform_6(%arg0: i32) -> (i32, i32) {
    %c0_i32 = arith.constant 0 : i32
    %c0_i32_0 = arith.constant 0 : i32
    %c0_i32_1 = arith.constant 0 : i32
    return %c0_i32, %c0_i32_0 : i32, i32
  }
  func.func @transform_7(%arg0: i32) -> (i32, i32) {
    %c0_i32 = arith.constant 0 : i32
    %c0_i32_0 = arith.constant 0 : i32
    %c0_i32_1 = arith.constant 0 : i32
    return %c0_i32, %c0_i32_0 : i32, i32
  }
  func.func @transform_8(%arg0: i32) -> (i32, i32) {
    %c0_i32 = arith.constant 0 : i32
    %c0_i32_0 = arith.constant 0 : i32
    %c0_i32_1 = arith.constant 0 : i32
    return %c0_i32, %c0_i32_0 : i32, i32
  }
  func.func @transform_9(%arg0: i32) -> (i32, i32) {
    %c0_i32 = arith.constant 0 : i32
    %c0_i32_0 = arith.constant 0 : i32
    %c0_i32_1 = arith.constant 0 : i32
    return %c0_i32, %c0_i32_0 : i32, i32
  }
  func.func @transform_10(%arg0: i32) -> (i32, i32) {
    %c0_i32 = arith.constant 0 : i32
    %c0_i32_0 = arith.constant 0 : i32
    %c0_i32_1 = arith.constant 0 : i32
    return %c0_i32, %c0_i32_0 : i32, i32
  }
  func.func @transform_11(%arg0: i32) -> (i32, i32) {
    %c0_i32 = arith.constant 0 : i32
    %c0_i32_0 = arith.constant 0 : i32
    %c0_i32_1 = arith.constant 0 : i32
    return %c0_i32, %c0_i32_0 : i32, i32
  }
  func.func @transform_12(%arg0: i32) -> (i32, i32) {
    %c0_i32 = arith.constant 0 : i32
    %c0_i32_0 = arith.constant 0 : i32
    %c0_i32_1 = arith.constant 0 : i32
    return %c0_i32, %c0_i32_0 : i32, i32
  }
  func.func @transform_13(%arg0: i32) -> (i32, i32) {
    %c0_i32 = arith.constant 0 : i32
    %c0_i32_0 = arith.constant 0 : i32
    %c0_i32_1 = arith.constant 0 : i32
    return %c0_i32, %c0_i32_0 : i32, i32
  }
  func.func @transform_14(%arg0: i32) -> (i32, i32) {
    %c0_i32 = arith.constant 0 : i32
    %c0_i32_0 = arith.constant 0 : i32
    %c0_i32_1 = arith.constant 0 : i32
    return %c0_i32, %c0_i32_0 : i32, i32
  }
  func.func @transform_15(%arg0: i32) -> (i32, i32) {
    %c0_i32 = arith.constant 0 : i32
    %c0_i32_0 = arith.constant 0 : i32
    %c0_i32_1 = arith.constant 0 : i32
    return %c0_i32, %c0_i32_0 : i32, i32
  }
  func.func @transform_16(%arg0: i32) -> (i32, i32) {
    %c0_i32 = arith.constant 0 : i32
    %c0_i32_0 = arith.constant 0 : i32
    %c0_i32_1 = arith.constant 0 : i32
    return %c0_i32, %c0_i32_0 : i32, i32
  }
  func.func @transform_17(%arg0: i32) -> (i32, i32) {
    %c0_i32 = arith.constant 0 : i32
    %c0_i32_0 = arith.constant 0 : i32
    %c0_i32_1 = arith.constant 0 : i32
    return %c0_i32, %c0_i32_0 : i32, i32
  }
  func.func @transform_18(%arg0: i32) -> (i32, i32) {
    %c0_i32 = arith.constant 0 : i32
    %c0_i32_0 = arith.constant 0 : i32
    %c0_i32_1 = arith.constant 0 : i32
    return %c0_i32, %c0_i32_0 : i32, i32
  }
  func.func @transform_19(%arg0: i32) -> (i32, i32) {
    %c0_i32 = arith.constant 0 : i32
    %c0_i32_0 = arith.constant 0 : i32
    return %arg0, %c0_i32 : i32, i32
  }
}

</mosaic_0001>

<llo_original>
// kernel: _jitted.1
$region0: #{_jitted.1}
  #allocation0 [shape = 'u32[]', space=smem, size = 0x4, offset = 0x4, fixed_abs, tag = 'smem constant byte address 0x4 - core index']
  #allocation1 [shape = 'u32[144,128]{1,0:T(1,128)}', space=vmem, size = 0x12000, scoped, tag = 'internal scratch']
  %s0 = inlined_call_operand.vmem [shape: bf16[16,16], index: 0, kind: input, shape index: {}]
  %s1 = inlined_call_operand.hbm [shape: bf16[16,1024], index: 1, kind: input, shape index: {}]
  %s2 = inlined_call_operand.hbm [shape: bf16[1024,768], index: 2, kind: input, shape index: {}]
  %s3 = inlined_call_operand.hbm [shape: bf16[768,640], index: 3, kind: input, shape index: {}]
  %s4 = inlined_call_operand.hbm [shape: bf16[640,512], index: 4, kind: input, shape index: {}]
  %s5 = inlined_call_operand.hbm [shape: bf16[512,256], index: 5, kind: input, shape index: {}]
  %s6 = inlined_call_operand.hbm [shape: bf16[256,128], index: 6, kind: input, shape index: {}]
  %s7 = inlined_call_operand.hbm [shape: bf16[128,128], index: 7, kind: input, shape index: {}]
  %s8 = inlined_call_operand.hbm [shape: bf16[128,128], index: 8, kind: input, shape index: {}]
  %s9 = inlined_call_operand.hbm [shape: bf16[128,128], index: 9, kind: input, shape index: {}]
  %s10 = inlined_call_operand.hbm [shape: f32[1,1024], index: 10, kind: input, shape index: {}]
  %s11 = inlined_call_operand.hbm [shape: f32[1,768], index: 11, kind: input, shape index: {}]
  %s12 = inlined_call_operand.hbm [shape: f32[1,640], index: 12, kind: input, shape index: {}]
  %s13 = inlined_call_operand.hbm [shape: f32[1,512], index: 13, kind: input, shape index: {}]
  %s14 = inlined_call_operand.hbm [shape: f32[1,256], index: 14, kind: input, shape index: {}]
  %s15 = inlined_call_operand.hbm [shape: f32[1,128], index: 15, kind: input, shape index: {}]
  %s16 = inlined_call_operand.hbm [shape: f32[1,128], index: 16, kind: input, shape index: {}]
  %s17 = inlined_call_operand.hbm [shape: f32[1,128], index: 17, kind: input, shape index: {}]
  %s18 = inlined_call_operand.hbm [shape: f32[1,128], index: 18, kind: input, shape index: {}]
  %s19 = inlined_call_operand.vmem [shape: f32[16,128], index: 19, kind: output, shape index: {}]
  %s20 = sld [smem:[#allocation0]]
  $region158: #{_jitted.1} parent=0
    _
  %s22 = ssub.s32 1, %s20
  %s23 = scalar_select 0, %s22, %s20
  $region1: #{_jitted.1} parent=0
    #allocation2 [shape = 'u8[32768]{0}', space=vmem, size = 0x8000, scoped, tag = 'input window, operand 1, single buffered']
    #allocation3 [shape = 's32[1]{0}', space=sflag, size = 0x4, scoped, tag = 'scoped memory for _jitted.1']
    #allocation4 [shape = 'u8[1572864]{0}', space=vmem, size = 0x180000, scoped, tag = 'input window, operand 2, single buffered']
    #allocation5 [shape = 's32[1]{0}', space=sflag, size = 0x4, scoped, tag = 'scoped memory for _jitted.1']
    #allocation6 [shape = 'u8[983040]{0}', space=vmem, size = 0xf0000, scoped, tag = 'input window, operand 3, single buffered']
    #allocation7 [shape = 'u8[655360]{0}', space=vmem, size = 0xa0000, scoped, tag = 'input window, operand 4, single buffered']
    #allocation8 [shape = 's32[1]{0}', space=sflag, size = 0x4, scoped, tag = 'scoped memory for _jitted.1']
    #allocation9 [shape = 'u8[262144]{0}', space=vmem, size = 0x40000, scoped, tag = 'input window, operand 5, single buffered']
    #allocation10 [shape = 'u8[65536]{0}', space=vmem, size = 0x10000, scoped, tag = 'input window, operand 6, single buffered']
    #allocation11 [shape = 's32[1]{0}', space=sflag, size = 0x4, scoped, tag = 'scoped memory for _jitted.1']
    #allocation12 [shape = 'u8[32768]{0}', space=vmem, size = 0x8000, scoped, tag = 'input window, operand 7, single buffered']
    #allocation13 [shape = 'u8[32768]{0}', space=vmem, size = 0x8000, scoped, tag = 'input window, operand 8, single buffered']
    #allocation14 [shape = 's32[1]{0}', space=sflag, size = 0x4, scoped, tag = 'scoped memory for _jitted.1']
    #allocation15 [shape = 'u8[32768]{0}', space=vmem, size = 0x8000, scoped, tag = 'input window, operand 9, single buffered']
    #allocation16 [shape = 'u8[4096]{0}', space=vmem, size = 0x1000, scoped, tag = 'input window, operand 10, single buffered']
    #allocation17 [shape = 's32[1]{0}', space=sflag, size = 0x4, scoped, tag = 'scoped memory for _jitted.1']
    #allocation18 [shape = 'u8[3072]{0}', space=vmem, size = 0xc00, scoped, tag = 'input window, operand 11, single buffered']
    #allocation19 [shape = 'u8[2560]{0}', space=vmem, size = 0xc00, scoped, tag = 'input window, operand 12, single buffered']
    #allocation20 [shape = 's32[1]{0}', space=sflag, size = 0x4, scoped, tag = 'scoped memory for _jitted.1']
    #allocation21 [shape = 'u8[2048]{0}', space=vmem, size = 0x800, scoped, tag = 'input window, operand 13, single buffered']
    #allocation22 [shape = 'u8[1024]{0}', space=vmem, size = 0x400, scoped, tag = 'input window, operand 14, single buffered']
    #allocation23 [shape = 's32[1]{0}', space=sflag, size = 0x4, scoped, tag = 'scoped memory for _jitted.1']
    #allocation24 [shape = 'u8[512]{0}', space=vmem, size = 0x400, scoped, tag = 'input window, operand 15, single buffered']
    #allocation25 [shape = 'u8[512]{0}', space=vmem, size = 0x400, scoped, tag = 'input window, operand 16, single buffered']
    #allocation26 [shape = 's32[1]{0}', space=sflag, size = 0x4, scoped, tag = 'scoped memory for _jitted.1']
    #allocation27 [shape = 'u8[512]{0}', space=vmem, size = 0x400, scoped, tag = 'input window, operand 17, single buffered']
    #allocation28 [shape = 'u8[512]{0}', space=vmem, size = 0x400, scoped, tag = 'input window, operand 18, single buffered']
    #allocation29 [shape = 's32[1]{0}', space=sflag, size = 0x4, scoped, tag = 'scoped memory for _jitted.1']
    %24 = vsyncpa [#allocation3], 0
    %25 = vsyncpa [#allocation5], 0
    %26 = vsyncpa [#allocation8], 0
    %27 = vsyncpa [#allocation11], 0
    %28 = vsyncpa [#allocation14], 0
    %29 = vsyncpa [#allocation17], 0
    %30 = vsyncpa [#allocation20], 0
    %31 = vsyncpa [#allocation23], 0
    %32 = vsyncpa [#allocation26], 0
    %33 = vsyncpa [#allocation29], 0
    // Predicated region
    $region2: #{_jitted.1} parent=1 // pred_check
      _
    $region3: #{_jitted.1} parent=1 // pred_check_branch
      %35 = sbr.rel (0) target = $region5
    $region4: #{_jitted.1} parent=1 // pred_region
      _
    $region5: #{_jitted.1} parent=1 // pred_fallthru
      _
    // Predicated region
    $region6: #{_jitted.1} parent=1 // pred_check
      _
    $region7: #{_jitted.1} parent=1 // pred_check_branch
      %37 = sbr.rel (0) target = $region9
    $region8: #{_jitted.1} parent=1 // pred_region
      %s39 = ssub.s32 1024, 1024
      %40 = vsyncadd [#allocation3], %s39
      %s41 = sshll.u32 [#allocation2], 4
      %s42 = int_to_ptr.vmem [resolvable:$true] %s41
      %47 = dma.hbm_to_vmem [thread:$0]  %s1, 1024, %s42, [#allocation3], 512, 512, 32
    $region9: #{_jitted.1} parent=1 // pred_fallthru
      _
    // Predicated region
    $region10: #{_jitted.1} parent=1 // pred_check
      _
    $region11: #{_jitted.1} parent=1 // pred_check_branch
      %49 = sbr.rel (0) target = $region13
    $region12: #{_jitted.1} parent=1 // pred_region
      %s51 = ssub.s32 49152, 49152
      %52 = vsyncadd [#allocation5], %s51
      %s53 = sshll.u32 [#allocation4], 4
      %s54 = int_to_ptr.vmem [resolvable:$true] %s53
      %59 = dma.hbm_to_vmem [thread:$0]  %s2, 49152, %s54, [#allocation5], 384, 384, 24
    $region13: #{_jitted.1} parent=1 // pred_fallthru
      _
    // Predicated region
    $region14: #{_jitted.1} parent=1 // pred_check
      _
    $region15: #{_jitted.1} parent=1 // pred_check_branch
      %61 = sbr.rel (0) target = $region17
    $region16: #{_jitted.1} parent=1 // pred_region
      %s63 = ssub.s32 30720, 30720
      %64 = vsyncadd [#allocation5], %s63
      %s65 = sshll.u32 [#allocation6], 4
      %s66 = int_to_ptr.vmem [resolvable:$true] %s65
      %71 = dma.hbm_to_vmem [thread:$0]  %s3, 30720, %s66, [#allocation5], 320, 320, 20
    $region17: #{_jitted.1} parent=1 // pred_fallthru
      _
    // Predicated region
    $region18: #{_jitted.1} parent=1 // pred_check
      _
    $region19: #{_jitted.1} parent=1 // pred_check_branch
      %73 = sbr.rel (0) target = $region21
    $region20: #{_jitted.1} parent=1 // pred_region
      %s75 = ssub.s32 20480, 20480
      %76 = vsyncadd [#allocation8], %s75
      %s77 = sshll.u32 [#allocation7], 4
      %s78 = int_to_ptr.vmem [resolvable:$true] %s77
      %83 = dma.hbm_to_vmem [thread:$0]  %s4, 20480, %s78, [#allocation8], 256, 256, 16
    $region21: #{_jitted.1} parent=1 // pred_fallthru
      _
    // Predicated region
    $region22: #{_jitted.1} parent=1 // pred_check
      _
    $region23: #{_jitted.1} parent=1 // pred_check_branch
      %85 = sbr.rel (0) target = $region25
    $region24: #{_jitted.1} parent=1 // pred_region
      %s87 = ssub.s32 8192, 8192
      %88 = vsyncadd [#allocation8], %s87
      %s89 = sshll.u32 [#allocation9], 4
      %s90 = int_to_ptr.vmem [resolvable:$true] %s89
      %95 = dma.hbm_to_vmem [thread:$0]  %s5, 8192, %s90, [#allocation8], 128, 128, 8
    $region25: #{_jitted.1} parent=1 // pred_fallthru
      _
    // Predicated region
    $region26: #{_jitted.1} parent=1 // pred_check
      _
    $region27: #{_jitted.1} parent=1 // pred_check_branch
      %97 = sbr.rel (0) target = $region29
    $region28: #{_jitted.1} parent=1 // pred_region
      %s99 = ssub.s32 2048, 2048
      %100 = vsyncadd [#allocation11], %s99
      %s101 = sshll.u32 [#allocation10], 4
      %s102 = int_to_ptr.vmem [resolvable:$true] %s101
      %107 = dma.hbm_to_vmem [thread:$0]  %s6, 2048, %s102, [#allocation11], 64, 64, 4
    $region29: #{_jitted.1} parent=1 // pred_fallthru
      _
    // Predicated region
    $region30: #{_jitted.1} parent=1 // pred_check
      _
    $region31: #{_jitted.1} parent=1 // pred_check_branch
      %109 = sbr.rel (0) target = $region33
    $region32: #{_jitted.1} parent=1 // pred_region
      %s111 = ssub.s32 1024, 1024
      %112 = vsyncadd [#allocation11], %s111
      %s113 = sshll.u32 [#allocation12], 4
      %s114 = int_to_ptr.vmem [resolvable:$true] %s113
      %119 = dma.hbm_to_vmem [thread:$0]  %s7, 1024, %s114, [#allocation11], 64, 64, 4
    $region33: #{_jitted.1} parent=1 // pred_fallthru
      _
    // Predicated region
    $region34: #{_jitted.1} parent=1 // pred_check
      _
    $region35: #{_jitted.1} parent=1 // pred_check_branch
      %121 = sbr.rel (0) target = $region37
    $region36: #{_jitted.1} parent=1 // pred_region
      %s123 = ssub.s32 1024, 1024
      %124 = vsyncadd [#allocation14], %s123
      %s125 = sshll.u32 [#allocation13], 4
      %s126 = int_to_ptr.vmem [resolvable:$true] %s125
      %131 = dma.hbm_to_vmem [thread:$0]  %s8, 1024, %s126, [#allocation14], 64, 64, 4
    $region37: #{_jitted.1} parent=1 // pred_fallthru
      _
    // Predicated region
    $region38: #{_jitted.1} parent=1 // pred_check
      _
    $region39: #{_jitted.1} parent=1 // pred_check_branch
      %133 = sbr.rel (0) target = $region41
    $region40: #{_jitted.1} parent=1 // pred_region
      %s135 = ssub.s32 1024, 1024
      %136 = vsyncadd [#allocation14], %s135
      %s137 = sshll.u32 [#allocation15], 4
      %s138 = int_to_ptr.vmem [resolvable:$true] %s137
      %143 = dma.hbm_to_vmem [thread:$0]  %s9, 1024, %s138, [#allocation14], 64, 64, 4
    $region41: #{_jitted.1} parent=1 // pred_fallthru
      _
    // Predicated region
    $region42: #{_jitted.1} parent=1 // pred_check
      _
    $region43: #{_jitted.1} parent=1 // pred_check_branch
      %145 = sbr.rel (0) target = $region45
    $region44: #{_jitted.1} parent=1 // pred_region
      %s147 = ssub.s32 128, 128
      %148 = vsyncadd [#allocation17], %s147
      %s150 = sshll.u32 [#allocation16], 4
      %s151 = int_to_ptr.vmem [resolvable:$true] %s150
      %153 = dma.hbm_to_vmem [thread:$0]  %s10, 128, %s151, [#allocation17]
    $region45: #{_jitted.1} parent=1 // pred_fallthru
      _
    // Predicated region
    $region46: #{_jitted.1} parent=1 // pred_check
      _
    $region47: #{_jitted.1} parent=1 // pred_check_branch
      %155 = sbr.rel (0) target = $region49
    $region48: #{_jitted.1} parent=1 // pred_region
      %s157 = ssub.s32 96, 96
      %158 = vsyncadd [#allocation17], %s157
      %s160 = sshll.u32 [#allocation18], 4
      %s161 = int_to_ptr.vmem [resolvable:$true] %s160
      %163 = dma.hbm_to_vmem [thread:$0]  %s11, 96, %s161, [#allocation17]
    $region49: #{_jitted.1} parent=1 // pred_fallthru
      _
    // Predicated region
    $region50: #{_jitted.1} parent=1 // pred_check
      _
    $region51: #{_jitted.1} parent=1 // pred_check_branch
      %165 = sbr.rel (0) target = $region53
    $region52: #{_jitted.1} parent=1 // pred_region
      %s167 = ssub.s32 80, 80
      %168 = vsyncadd [#allocation20], %s167
      %s170 = sshll.u32 [#allocation19], 4
      %s171 = int_to_ptr.vmem [resolvable:$true] %s170
      %173 = dma.hbm_to_vmem [thread:$0]  %s12, 80, %s171, [#allocation20]
    $region53: #{_jitted.1} parent=1 // pred_fallthru
      _
    // Predicated region
    $region54: #{_jitted.1} parent=1 // pred_check
      _
    $region55: #{_jitted.1} parent=1 // pred_check_branch
      %175 = sbr.rel (0) target = $region57
    $region56: #{_jitted.1} parent=1 // pred_region
      %s177 = ssub.s32 64, 64
      %178 = vsyncadd [#allocation20], %s177
      %s180 = sshll.u32 [#allocation21], 4
      %s181 = int_to_ptr.vmem [resolvable:$true] %s180
      %183 = dma.hbm_to_vmem [thread:$0]  %s13, 64, %s181, [#allocation20]
    $region57: #{_jitted.1} parent=1 // pred_fallthru
      _
    // Predicated region
    $region58: #{_jitted.1} parent=1 // pred_check
      _
    $region59: #{_jitted.1} parent=1 // pred_check_branch
      %185 = sbr.rel (0) target = $region61
    $region60: #{_jitted.1} parent=1 // pred_region
      %s187 = ssub.s32 32, 32
      %188 = vsyncadd [#allocation23], %s187
      %s190 = sshll.u32 [#allocation22], 4
      %s191 = int_to_ptr.vmem [resolvable:$true] %s190
      %193 = dma.hbm_to_vmem [thread:$0]  %s14, 32, %s191, [#allocation23]
    $region61: #{_jitted.1} parent=1 // pred_fallthru
      _
    // Predicated region
    $region62: #{_jitted.1} parent=1 // pred_check
      _
    $region63: #{_jitted.1} parent=1 // pred_check_branch
      %195 = sbr.rel (0) target = $region65
    $region64: #{_jitted.1} parent=1 // pred_region
      %s197 = ssub.s32 16, 16
      %198 = vsyncadd [#allocation23], %s197
      %s200 = sshll.u32 [#allocation24], 4
      %s201 = int_to_ptr.vmem [resolvable:$true] %s200
      %203 = dma.hbm_to_vmem [thread:$0]  %s15, 16, %s201, [#allocation23]
    $region65: #{_jitted.1} parent=1 // pred_fallthru
      _
    // Predicated region
    $region66: #{_jitted.1} parent=1 // pred_check
      _
    $region67: #{_jitted.1} parent=1 // pred_check_branch
      %205 = sbr.rel (0) target = $region69
    $region68: #{_jitted.1} parent=1 // pred_region
      %s207 = ssub.s32 16, 16
      %208 = vsyncadd [#allocation26], %s207
      %s210 = sshll.u32 [#allocation25], 4
      %s211 = int_to_ptr.vmem [resolvable:$true] %s210
      %213 = dma.hbm_to_vmem [thread:$0]  %s16, 16, %s211, [#allocation26]
    $region69: #{_jitted.1} parent=1 // pred_fallthru
      _
    // Predicated region
    $region70: #{_jitted.1} parent=1 // pred_check
      _
    $region71: #{_jitted.1} parent=1 // pred_check_branch
      %215 = sbr.rel (0) target = $region73
    $region72: #{_jitted.1} parent=1 // pred_region
      %s217 = ssub.s32 16, 16
      %218 = vsyncadd [#allocation26], %s217
      %s220 = sshll.u32 [#allocation27], 4
      %s221 = int_to_ptr.vmem [resolvable:$true] %s220
      %223 = dma.hbm_to_vmem [thread:$0]  %s17, 16, %s221, [#allocation26]
    $region73: #{_jitted.1} parent=1 // pred_fallthru
      _
    // Predicated region
    $region74: #{_jitted.1} parent=1 // pred_check
      _
    $region75: #{_jitted.1} parent=1 // pred_check_branch
      %225 = sbr.rel (0) target = $region77
    $region76: #{_jitted.1} parent=1 // pred_region
      %s227 = ssub.s32 16, 16
      %228 = vsyncadd [#allocation29], %s227
      %s230 = sshll.u32 [#allocation28], 4
      %s231 = int_to_ptr.vmem [resolvable:$true] %s230
      %233 = dma.hbm_to_vmem [thread:$0]  %s18, 16, %s231, [#allocation29]
    $region77: #{_jitted.1} parent=1 // pred_fallthru
      _
    // Predicated region
    $region78: #{_jitted.1} parent=1 // pred_check
      _
    $region79: #{_jitted.1} parent=1 // pred_check_branch
      %235 = sbr.rel (0) target = $region81
    $region80: #{_jitted.1} parent=1 // pred_region
      %236 = dma.done [#allocation3], 1024
    $region81: #{_jitted.1} parent=1 // pred_fallthru
      _
    // Predicated region
    $region82: #{_jitted.1} parent=1 // pred_check
      _
    $region83: #{_jitted.1} parent=1 // pred_check_branch
      %238 = sbr.rel (0) target = $region85
    $region84: #{_jitted.1} parent=1 // pred_region
      %239 = dma.done [#allocation5], 49152
    $region85: #{_jitted.1} parent=1 // pred_fallthru
      _
    // Predicated region
    $region86: #{_jitted.1} parent=1 // pred_check
      _
    $region87: #{_jitted.1} parent=1 // pred_check_branch
      %241 = sbr.rel (0) target = $region89
    $region88: #{_jitted.1} parent=1 // pred_region
      %242 = dma.done [#allocation5], 30720
    $region89: #{_jitted.1} parent=1 // pred_fallthru
      _
    // Predicated region
    $region90: #{_jitted.1} parent=1 // pred_check
      _
    $region91: #{_jitted.1} parent=1 // pred_check_branch
      %244 = sbr.rel (0) target = $region93
    $region92: #{_jitted.1} parent=1 // pred_region
      %245 = dma.done [#allocation8], 20480
    $region93: #{_jitted.1} parent=1 // pred_fallthru
      _
    // Predicated region
    $region94: #{_jitted.1} parent=1 // pred_check
      _
    $region95: #{_jitted.1} parent=1 // pred_check_branch
      %247 = sbr.rel (0) target = $region97
    $region96: #{_jitted.1} parent=1 // pred_region
      %248 = dma.done [#allocation8], 8192
    $region97: #{_jitted.1} parent=1 // pred_fallthru
      _
    // Predicated region
    $region98: #{_jitted.1} parent=1 // pred_check
      _
    $region99: #{_jitted.1} parent=1 // pred_check_branch
      %250 = sbr.rel (0) target = $region101
    $region100: #{_jitted.1} parent=1 // pred_region
      %251 = dma.done [#allocation11], 2048
    $region101: #{_jitted.1} parent=1 // pred_fallthru
      _
    // Predicated region
    $region102: #{_jitted.1} parent=1 // pred_check
      _
    $region103: #{_jitted.1} parent=1 // pred_check_branch
      %253 = sbr.rel (0) target = $region105
    $region104: #{_jitted.1} parent=1 // pred_region
      %254 = dma.done [#allocation11], 1024
    $region105: #{_jitted.1} parent=1 // pred_fallthru
      _
    // Predicated region
    $region106: #{_jitted.1} parent=1 // pred_check
      _
    $region107: #{_jitted.1} parent=1 // pred_check_branch
      %256 = sbr.rel (0) target = $region109
    $region108: #{_jitted.1} parent=1 // pred_region
      %257 = dma.done [#allocation14], 1024
    $region109: #{_jitted.1} parent=1 // pred_fallthru
      _
    // Predicated region
    $region110: #{_jitted.1} parent=1 // pred_check
      _
    $region111: #{_jitted.1} parent=1 // pred_check_branch
      %259 = sbr.rel (0) target = $region113
    $region112: #{_jitted.1} parent=1 // pred_region
      %260 = dma.done [#allocation14], 1024
    $region113: #{_jitted.1} parent=1 // pred_fallthru
      _
    // Predicated region
    $region114: #{_jitted.1} parent=1 // pred_check
      _
    $region115: #{_jitted.1} parent=1 // pred_check_branch
      %262 = sbr.rel (0) target = $region117
    $region116: #{_jitted.1} parent=1 // pred_region
      %263 = dma.done [#allocation17], 128
    $region117: #{_jitted.1} parent=1 // pred_fallthru
      _
    // Predicated region
    $region118: #{_jitted.1} parent=1 // pred_check
      _
    $region119: #{_jitted.1} parent=1 // pred_check_branch
      %265 = sbr.rel (0) target = $region121
    $region120: #{_jitted.1} parent=1 // pred_region
      %266 = dma.done [#allocation17], 96
    $region121: #{_jitted.1} parent=1 // pred_fallthru
      _
    // Predicated region
    $region122: #{_jitted.1} parent=1 // pred_check
      _
    $region123: #{_jitted.1} parent=1 // pred_check_branch
      %268 = sbr.rel (0) target = $region125
    $region124: #{_jitted.1} parent=1 // pred_region
      %269 = dma.done [#allocation20], 80
    $region125: #{_jitted.1} parent=1 // pred_fallthru
      _
    // Predicated region
    $region126: #{_jitted.1} parent=1 // pred_check
      _
    $region127: #{_jitted.1} parent=1 // pred_check_branch
      %271 = sbr.rel (0) target = $region129
    $region128: #{_jitted.1} parent=1 // pred_region
      %272 = dma.done [#allocation20], 64
    $region129: #{_jitted.1} parent=1 // pred_fallthru
      _
    // Predicated region
    $region130: #{_jitted.1} parent=1 // pred_check
      _
    $region131: #{_jitted.1} parent=1 // pred_check_branch
      %274 = sbr.rel (0) target = $region133
    $region132: #{_jitted.1} parent=1 // pred_region
      %275 = dma.done [#allocation23], 32
    $region133: #{_jitted.1} parent=1 // pred_fallthru
      _
    // Predicated region
    $region134: #{_jitted.1} parent=1 // pred_check
      _
    $region135: #{_jitted.1} parent=1 // pred_check_branch
      %277 = sbr.rel (0) target = $region137
    $region136: #{_jitted.1} parent=1 // pred_region
      %278 = dma.done [#allocation23], 16
    $region137: #{_jitted.1} parent=1 // pred_fallthru
      _
    // Predicated region
    $region138: #{_jitted.1} parent=1 // pred_check
      _
    $region139: #{_jitted.1} parent=1 // pred_check_branch
      %280 = sbr.rel (0) target = $region141
    $region140: #{_jitted.1} parent=1 // pred_region
      %281 = dma.done [#allocation26], 16
    $region141: #{_jitted.1} parent=1 // pred_fallthru
      _
    // Predicated region
    $region142: #{_jitted.1} parent=1 // pred_check
      _
    $region143: #{_jitted.1} parent=1 // pred_check_branch
      %283 = sbr.rel (0) target = $region145
    $region144: #{_jitted.1} parent=1 // pred_region
      %284 = dma.done [#allocation26], 16
    $region145: #{_jitted.1} parent=1 // pred_fallthru
      _
    // Predicated region
    $region146: #{_jitted.1} parent=1 // pred_check
      _
    $region147: #{_jitted.1} parent=1 // pred_check_branch
      %286 = sbr.rel (0) target = $region149
    $region148: #{_jitted.1} parent=1 // pred_region
      %287 = dma.done [#allocation29], 16
    $region149: #{_jitted.1} parent=1 // pred_fallthru
      _
    %v289 = vld [vmem:[%s0] sm:$0xf]
    %v290 = vld [vmem:[%s0 + $0x4] sm:$0xf]
    %v291 = vld [vmem:[#allocation2] sm:$0xff]
    %v292 = vld [vmem:[#allocation2 + $0x8] sm:$0xff]
    %v293 = vld [vmem:[#allocation2 + $0x10] sm:$0xff]
    %v294 = vld [vmem:[#allocation2 + $0x18] sm:$0xff]
    %v295 = vld [vmem:[#allocation2 + $0x20] sm:$0xff]
    %v296 = vld [vmem:[#allocation2 + $0x28] sm:$0xff]
    %v297 = vld [vmem:[#allocation2 + $0x30] sm:$0xff]
    %v298 = vld [vmem:[#allocation2 + $0x38] sm:$0xff]
    %v299 = vld [vmem:[#allocation16] sm:$0xff]
    %v301 = vlaneseq
    %v302 = vshrl.u32 %v301, 7
    %v303 = vsub.s32 0, %v302
    %v304 = vrot.slane %v299, %v303
    %v305 = vlaneseq
    %v306 = vshrl.u32 %v305, 7
    %v307 = vsub.s32 1, %v306
    %v308 = vrot.slane %v299, %v307
    %v309 = vlaneseq
    %v310 = vshrl.u32 %v309, 7
    %v311 = vsub.s32 2, %v310
    %v312 = vrot.slane %v299, %v311
    %v313 = vlaneseq
    %v314 = vshrl.u32 %v313, 7
    %v315 = vsub.s32 3, %v314
    %v316 = vrot.slane %v299, %v315
    %v317 = vlaneseq
    %v318 = vshrl.u32 %v317, 7
    %v319 = vsub.s32 4, %v318
    %v320 = vrot.slane %v299, %v319
    %v321 = vlaneseq
    %v322 = vshrl.u32 %v321, 7
    %v323 = vsub.s32 5, %v322
    %v324 = vrot.slane %v299, %v323
    %v325 = vlaneseq
    %v326 = vshrl.u32 %v325, 7
    %v327 = vsub.s32 6, %v326
    %v328 = vrot.slane %v299, %v327
    %v329 = vlaneseq
    %v330 = vshrl.u32 %v329, 7
    %v331 = vsub.s32 7, %v330
    %v332 = vrot.slane %v299, %v331
    %v343 = vunpack.c.l.b16 %v289
    %v344 = vunpack.c.l.b16 %v290
    %v345 = vpack.c.b16 %v344, %v343
    %v354 = vunpack.c.l.b16 %v291
    %v355 = vunpack.c.h.b16 %v291
    %v356 = vunpack.c.l.b16 %v292
    %v357 = vunpack.c.h.b16 %v292
    %v358 = vunpack.c.l.b16 %v293
    %v359 = vunpack.c.h.b16 %v293
    %v360 = vunpack.c.l.b16 %v294
    %v361 = vunpack.c.h.b16 %v294
    %v362 = vunpack.c.l.b16 %v295
    %v363 = vunpack.c.h.b16 %v295
    %v364 = vunpack.c.l.b16 %v296
    %v365 = vunpack.c.h.b16 %v296
    %v366 = vunpack.c.l.b16 %v297
    %v367 = vunpack.c.h.b16 %v297
    %v368 = vunpack.c.l.b16 %v298
    %v369 = vunpack.c.h.b16 %v298
    %v370 = vpack.c.b16 %v362, %v354
    %v371 = vpack.c.b16 %v363, %v355
    %v372 = vpack.c.b16 %v364, %v356
    %v373 = vpack.c.b16 %v365, %v357
    %v374 = vpack.c.b16 %v366, %v358
    %v375 = vpack.c.b16 %v367, %v359
    %v376 = vpack.c.b16 %v368, %v360
    %v377 = vpack.c.b16 %v369, %v361
    %vm386 = vcmask 130048
    %v388 = vsel %vm386, %v345, 0
    %390 = vmatprep.subr.bf16.mxu0 0
    %391 = vmatpush1.bf16.msra.mxu0 0
    %392 = vmatprep.subr.bf16.mxu0 0
    %393 = vmatpush1.bf16.msra.mxu0 0
    %394 = vmatprep.subr.bf16.mxu0 0
    %395 = vmatpush1.bf16.msra.mxu0 0
    %396 = vmatprep.subr.bf16.mxu0 0
    %397 = vmatpush1.bf16.msra.mxu0 0
    %398 = vmatprep.subr.bf16.mxu0 0
    %399 = vmatpush1.bf16.msra.mxu0 0
    %400 = vmatprep.subr.bf16.mxu0 0
    %401 = vmatpush1.bf16.msra.mxu0 0
    %402 = vmatprep.subr.bf16.mxu0 0
    %403 = vmatpush1.bf16.msra.mxu0 0
    %404 = vmatprep.subr.bf16.mxu0 %v371
    %405 = vmatpush1.bf16.msra.mxu0 %v370
    %406 = vmatprep.subr.bf16.mxu0 0
    %407 = vmatpush2.bf16.msra.mxu0 0
    %408 = vmatprep.subr.bf16.mxu0 0
    %409 = vmatpush2.bf16.msra.mxu0 0
    %410 = vmatprep.subr.bf16.mxu0 0
    %411 = vmatpush2.bf16.msra.mxu0 0
    %412 = vmatprep.subr.bf16.mxu0 0
    %413 = vmatpush2.bf16.msra.mxu0 0
    %414 = vmatprep.subr.bf16.mxu0 0
    %415 = vmatpush2.bf16.msra.mxu0 0
    %416 = vmatprep.subr.bf16.mxu0 0
    %417 = vmatpush2.bf16.msra.mxu0 0
    %418 = vmatprep.subr.bf16.mxu0 0
    %419 = vmatpush2.bf16.msra.mxu0 0
    %420 = vmatprep.subr.bf16.mxu0 0
    %421 = vmatpush2.bf16.msra.mxu0 0
    %422 = vmatprep.mubr.bf16.mxu0 0
    %423 = vmatmul.mubr.bf16.gmra.mxu0 %v388
    %v424 = vpop.f32.mrf.mxu0
    %v425 = vadd.f32 %v304, %v424
    %v426 = vpop.f32.mrf.mxu0
    %v427 = vadd.f32 %v308, %v426
    %v428 = vpop.f32.mrf.mxu0
    %v429 = vadd.f32 %v304, %v428
    %v430 = vpop.f32.mrf.mxu0
    %v431 = vadd.f32 %v308, %v430
    %432 = vdwg.mxu0
    %433 = vmatprep.subr.bf16.mxu0 0
    %434 = vmatpush1.bf16.msra.mxu0 0
    %435 = vmatprep.subr.bf16.mxu0 0
    %436 = vmatpush1.bf16.msra.mxu0 0
    %437 = vmatprep.subr.bf16.mxu0 0
    %438 = vmatpush1.bf16.msra.mxu0 0
    %439 = vmatprep.subr.bf16.mxu0 0
    %440 = vmatpush1.bf16.msra.mxu0 0
    %441 = vmatprep.subr.bf16.mxu0 0
    %442 = vmatpush1.bf16.msra.mxu0 0
    %443 = vmatprep.subr.bf16.mxu0 0
    %444 = vmatpush1.bf16.msra.mxu0 0
    %445 = vmatprep.subr.bf16.mxu0 0
    %446 = vmatpush1.bf16.msra.mxu0 0
    %447 = vmatprep.subr.bf16.mxu0 %v373
    %448 = vmatpush1.bf16.msra.mxu0 %v372
    %449 = vmatprep.subr.bf16.mxu0 0
    %450 = vmatpush2.bf16.msra.mxu0 0
    %451 = vmatprep.subr.bf16.mxu0 0
    %452 = vmatpush2.bf16.msra.mxu0 0
    %453 = vmatprep.subr.bf16.mxu0 0
    %454 = vmatpush2.bf16.msra.mxu0 0
    %455 = vmatprep.subr.bf16.mxu0 0
    %456 = vmatpush2.bf16.msra.mxu0 0
    %457 = vmatprep.subr.bf16.mxu0 0
    %458 = vmatpush2.bf16.msra.mxu0 0
    %459 = vmatprep.subr.bf16.mxu0 0
    %460 = vmatpush2.bf16.msra.mxu0 0
    %461 = vmatprep.subr.bf16.mxu0 0
    %462 = vmatpush2.bf16.msra.mxu0 0
    %463 = vmatprep.subr.bf16.mxu0 0
    %464 = vmatpush2.bf16.msra.mxu0 0
    %465 = vmatprep.mubr.bf16.mxu0 0
    %466 = vmatmul.mubr.bf16.gmra.mxu0 %v388
    %v467 = vpop.f32.mrf.mxu0
    %v468 = vadd.f32 %v312, %v467
    %v469 = vpop.f32.mrf.mxu0
    %v470 = vadd.f32 %v316, %v469
    %v471 = vpop.f32.mrf.mxu0
    %v472 = vadd.f32 %v312, %v471
    %v473 = vpop.f32.mrf.mxu0
    %v474 = vadd.f32 %v316, %v473
    %475 = vdwg.mxu0
    %476 = vmatprep.subr.bf16.mxu0 0
    %477 = vmatpush1.bf16.msra.mxu0 0
    %478 = vmatprep.subr.bf16.mxu0 0
    %479 = vmatpush1.bf16.msra.mxu0 0
    %480 = vmatprep.subr.bf16.mxu0 0
    %481 = vmatpush1.bf16.msra.mxu0 0
    %482 = vmatprep.subr.bf16.mxu0 0
    %483 = vmatpush1.bf16.msra.mxu0 0
    %484 = vmatprep.subr.bf16.mxu0 0
    %485 = vmatpush1.bf16.msra.mxu0 0
    %486 = vmatprep.subr.bf16.mxu0 0
    %487 = vmatpush1.bf16.msra.mxu0 0
    %488 = vmatprep.subr.bf16.mxu0 0
    %489 = vmatpush1.bf16.msra.mxu0 0
    %490 = vmatprep.subr.bf16.mxu0 %v375
    %491 = vmatpush1.bf16.msra.mxu0 %v374
    %492 = vmatprep.subr.bf16.mxu0 0
    %493 = vmatpush2.bf16.msra.mxu0 0
    %494 = vmatprep.subr.bf16.mxu0 0
    %495 = vmatpush2.bf16.msra.mxu0 0
    %496 = vmatprep.subr.bf16.mxu0 0
    %497 = vmatpush2.bf16.msra.mxu0 0
    %498 = vmatprep.subr.bf16.mxu0 0
    %499 = vmatpush2.bf16.msra.mxu0 0
    %500 = vmatprep.subr.bf16.mxu0 0
    %501 = vmatpush2.bf16.msra.mxu0 0
    %502 = vmatprep.subr.bf16.mxu0 0
    %503 = vmatpush2.bf16.msra.mxu0 0
    %504 = vmatprep.subr.bf16.mxu0 0
    %505 = vmatpush2.bf16.msra.mxu0 0
    %506 = vmatprep.subr.bf16.mxu0 0
    %507 = vmatpush2.bf16.msra.mxu0 0
    %508 = vmatprep.mubr.bf16.mxu0 0
    %509 = vmatmul.mubr.bf16.gmra.mxu0 %v388
    %v510 = vpop.f32.mrf.mxu0
    %v511 = vadd.f32 %v320, %v510
    %v512 = vpop.f32.mrf.mxu0
    %v513 = vadd.f32 %v324, %v512
    %v514 = vpop.f32.mrf.mxu0
    %v515 = vadd.f32 %v320, %v514
    %v516 = vpop.f32.mrf.mxu0
    %v517 = vadd.f32 %v324, %v516
    %518 = vdwg.mxu0
    %519 = vmatprep.subr.bf16.mxu0 0
    %520 = vmatpush1.bf16.msra.mxu0 0
    %521 = vmatprep.subr.bf16.mxu0 0
    %522 = vmatpush1.bf16.msra.mxu0 0
    %523 = vmatprep.subr.bf16.mxu0 0
    %524 = vmatpush1.bf16.msra.mxu0 0
    %525 = vmatprep.subr.bf16.mxu0 0
    %526 = vmatpush1.bf16.msra.mxu0 0
    %527 = vmatprep.subr.bf16.mxu0 0
    %528 = vmatpush1.bf16.msra.mxu0 0
    %529 = vmatprep.subr.bf16.mxu0 0
    %530 = vmatpush1.bf16.msra.mxu0 0
    %531 = vmatprep.subr.bf16.mxu0 0
    %532 = vmatpush1.bf16.msra.mxu0 0
    %533 = vmatprep.subr.bf16.mxu0 %v377
    %534 = vmatpush1.bf16.msra.mxu0 %v376
    %535 = vmatprep.subr.bf16.mxu0 0
    %536 = vmatpush2.bf16.msra.mxu0 0
    %537 = vmatprep.subr.bf16.mxu0 0
    %538 = vmatpush2.bf16.msra.mxu0 0
    %539 = vmatprep.subr.bf16.mxu0 0
    %540 = vmatpush2.bf16.msra.mxu0 0
    %541 = vmatprep.subr.bf16.mxu0 0
    %542 = vmatpush2.bf16.msra.mxu0 0
    %543 = vmatprep.subr.bf16.mxu0 0
    %544 = vmatpush2.bf16.msra.mxu0 0
    %545 = vmatprep.subr.bf16.mxu0 0
    %546 = vmatpush2.bf16.msra.mxu0 0
    %547 = vmatprep.subr.bf16.mxu0 0
    %548 = vmatpush2.bf16.msra.mxu0 0
    %549 = vmatprep.subr.bf16.mxu0 0
    %550 = vmatpush2.bf16.msra.mxu0 0
    %551 = vmatprep.mubr.bf16.mxu0 0
    %552 = vmatmul.mubr.bf16.gmra.mxu0 %v388
    %v553 = vpop.f32.mrf.mxu0
    %v554 = vadd.f32 %v328, %v553
    %v555 = vpop.f32.mrf.mxu0
    %v556 = vadd.f32 %v332, %v555
    %v557 = vpop.f32.mrf.mxu0
    %v558 = vadd.f32 %v328, %v557
    %v559 = vpop.f32.mrf.mxu0
    %v560 = vadd.f32 %v332, %v559
    %561 = vdwg.mxu0
    %v562 = vtanh.pop %v425
    %v563 = vtanh.pop %v427
    %v564 = vtanh.pop %v468
    %v565 = vtanh.pop %v470
    %v566 = vtanh.pop %v511
    %v567 = vtanh.pop %v513
    %v568 = vtanh.pop %v554
    %v569 = vtanh.pop %v556
    %v570 = vtanh.pop %v429
    %v571 = vtanh.pop %v431
    %v572 = vtanh.pop %v472
    %v573 = vtanh.pop %v474
    %v574 = vtanh.pop %v515
    %v575 = vtanh.pop %v517
    %v576 = vtanh.pop %v558
    %v577 = vtanh.pop %v560
    %v578 = vpack.c.bf16 %v570, %v562
    %v579 = vpack.c.bf16 %v571, %v563
    %v580 = vpack.c.bf16 %v572, %v564
    %v581 = vpack.c.bf16 %v573, %v565
    %v582 = vpack.c.bf16 %v574, %v566
    %v583 = vpack.c.bf16 %v575, %v567
    %v584 = vpack.c.bf16 %v576, %v568
    %v585 = vpack.c.bf16 %v577, %v569
    %v586 = vld [vmem:[#allocation4] sm:$0xff]
    %v587 = vld [vmem:[#allocation4 + $0x8] sm:$0xff]
    %v588 = vld [vmem:[#allocation4 + $0x10] sm:$0xff]
    %v589 = vld [vmem:[#allocation4 + $0x18] sm:$0xff]
    %v590 = vld [vmem:[#allocation4 + $0x20] sm:$0xff]
    %v591 = vld [vmem:[#allocation4 + $0x28] sm:$0xff]
    %v592 = vld [vmem:[#allocation4 + $0x30] sm:$0xff]
    %v593 = vld [vmem:[#allocation4 + $0x38] sm:$0xff]
    %v594 = vld [vmem:[#allocation4 + $0x40] sm:$0xff]
    %v595 = vld [vmem:[#allocation4 + $0x48] sm:$0xff]
    %v596 = vld [vmem:[#allocation4 + $0x50] sm:$0xff]
    %v597 = vld [vmem:[#allocation4 + $0x58] sm:$0xff]
    %v598 = vld [vmem:[#allocation4 + $0x60] sm:$0xff]
    %v599 = vld [vmem:[#allocation4 + $0x68] sm:$0xff]
    %v600 = vld [vmem:[#allocation4 + $0x70] sm:$0xff]
    %v601 = vld [vmem:[#allocation4 + $0x78] sm:$0xff]
    %v602 = vld [vmem:[#allocation4 + $0x80] sm:$0xff]
    %v603 = vld [vmem:[#allocation4 + $0x88] sm:$0xff]
    %v604 = vld [vmem:[#allocation4 + $0x90] sm:$0xff]
    %v605 = vld [vmem:[#allocation4 + $0x98] sm:$0xff]
    %v606 = vld [vmem:[#allocation4 + $0xa0] sm:$0xff]
    %v607 = vld [vmem:[#allocation4 + $0xa8] sm:$0xff]
    %v608 = vld [vmem:[#allocation4 + $0xb0] sm:$0xff]
    %v609 = vld [vmem:[#allocation4 + $0xb8] sm:$0xff]
    %v610 = vld [vmem:[#allocation4 + $0xc0] sm:$0xff]
    %v611 = vld [vmem:[#allocation4 + $0xc8] sm:$0xff]
    %v612 = vld [vmem:[#allocation4 + $0xd0] sm:$0xff]
    %v613 = vld [vmem:[#allocation4 + $0xd8] sm:$0xff]
    %v614 = vld [vmem:[#allocation4 + $0xe0] sm:$0xff]
    %v615 = vld [vmem:[#allocation4 + $0xe8] sm:$0xff]
    %v616 = vld [vmem:[#allocation4 + $0xf0] sm:$0xff]
    %v617 = vld [vmem:[#allocation4 + $0xf8] sm:$0xff]
    %v618 = vld [vmem:[#allocation4 + $0x100] sm:$0xff]
    %v619 = vld [vmem:[#allocation4 + $0x108] sm:$0xff]
    %v620 = vld [vmem:[#allocation4 + $0x110] sm:$0xff]
    %v621 = vld [vmem:[#allocation4 + $0x118] sm:$0xff]
    %v622 = vld [vmem:[#allocation4 + $0x120] sm:$0xff]
    %v623 = vld [vmem:[#allocation4 + $0x128] sm:$0xff]
    %v624 = vld [vmem:[#allocation4 + $0x130] sm:$0xff]
    %v625 = vld [vmem:[#allocation4 + $0x138] sm:$0xff]
    %v626 = vld [vmem:[#allocation4 + $0x140] sm:$0xff]
    %v627 = vld [vmem:[#allocation4 + $0x148] sm:$0xff]
    %v628 = vld [vmem:[#allocation4 + $0x150] sm:$0xff]
    %v629 = vld [vmem:[#allocation4 + $0x158] sm:$0xff]
    %v630 = vld [vmem:[#allocation4 + $0x160] sm:$0xff]
    %v631 = vld [vmem:[#allocation4 + $0x168] sm:$0xff]
    %v632 = vld [vmem:[#allocation4 + $0x170] sm:$0xff]
    %v633 = vld [vmem:[#allocation4 + $0x178] sm:$0xff]
    %v634 = vld [vmem:[#allocation4 + $0x180] sm:$0xff]
    %v635 = vld [vmem:[#allocation4 + $0x188] sm:$0xff]
    %v636 = vld [vmem:[#allocation4 + $0x190] sm:$0xff]
    %v637 = vld [vmem:[#allocation4 + $0x198] sm:$0xff]
    %v638 = vld [vmem:[#allocation4 + $0x1a0] sm:$0xff]
    %v639 = vld [vmem:[#allocation4 + $0x1a8] sm:$0xff]
    %v640 = vld [vmem:[#allocation4 + $0x1b0] sm:$0xff]
    %v641 = vld [vmem:[#allocation4 + $0x1b8] sm:$0xff]
    %v642 = vld [vmem:[#allocation4 + $0x1c0] sm:$0xff]
    %v643 = vld [vmem:[#allocation4 + $0x1c8] sm:$0xff]
    %v644 = vld [vmem:[#allocation4 + $0x1d0] sm:$0xff]
    %v645 = vld [vmem:[#allocation4 + $0x1d8] sm:$0xff]
    %v646 = vld [vmem:[#allocation4 + $0x1e0] sm:$0xff]
    %v647 = vld [vmem:[#allocation4 + $0x1e8] sm:$0xff]
    %v648 = vld [vmem:[#allocation4 + $0x1f0] sm:$0xff]
    %v649 = vld [vmem:[#allocation4 + $0x1f8] sm:$0xff]
    %v650 = vld [vmem:[#allocation4 + $0x200] sm:$0xff]
    %v651 = vld [vmem:[#allocation4 + $0x208] sm:$0xff]
    %v652 = vld [vmem:[#allocation4 + $0x210] sm:$0xff]
    %v653 = vld [vmem:[#allocation4 + $0x218] sm:$0xff]
    %v654 = vld [vmem:[#allocation4 + $0x220] sm:$0xff]
    %v655 = vld [vmem:[#allocation4 + $0x228] sm:$0xff]
    %v656 = vld [vmem:[#allocation4 + $0x230] sm:$0xff]
    %v657 = vld [vmem:[#allocation4 + $0x238] sm:$0xff]
    %v658 = vld [vmem:[#allocation4 + $0x240] sm:$0xff]
    %v659 = vld [vmem:[#allocation4 + $0x248] sm:$0xff]
    %v660 = vld [vmem:[#allocation4 + $0x250] sm:$0xff]
    %v661 = vld [vmem:[#allocation4 + $0x258] sm:$0xff]
    %v662 = vld [vmem:[#allocation4 + $0x260] sm:$0xff]
    %v663 = vld [vmem:[#allocation4 + $0x268] sm:$0xff]
    %v664 = vld [vmem:[#allocation4 + $0x270] sm:$0xff]
    %v665 = vld [vmem:[#allocation4 + $0x278] sm:$0xff]
    %v666 = vld [vmem:[#allocation4 + $0x280] sm:$0xff]
    %v667 = vld [vmem:[#allocation4 + $0x288] sm:$0xff]
    %v668 = vld [vmem:[#allocation4 + $0x290] sm:$0xff]
    %v669 = vld [vmem:[#allocation4 + $0x298] sm:$0xff]
    %v670 = vld [vmem:[#allocation4 + $0x2a0] sm:$0xff]
    %v671 = vld [vmem:[#allocation4 + $0x2a8] sm:$0xff]
    %v672 = vld [vmem:[#allocation4 + $0x2b0] sm:$0xff]
    %v673 = vld [vmem:[#allocation4 + $0x2b8] sm:$0xff]
    %v674 = vld [vmem:[#allocation4 + $0x2c0] sm:$0xff]
    %v675 = vld [vmem:[#allocation4 + $0x2c8] sm:$0xff]
    %v676 = vld [vmem:[#allocation4 + $0x2d0] sm:$0xff]
    %v677 = vld [vmem:[#allocation4 + $0x2d8] sm:$0xff]
    %v678 = vld [vmem:[#allocation4 + $0x2e0] sm:$0xff]
    %v679 = vld [vmem:[#allocation4 + $0x2e8] sm:$0xff]
    %v680 = vld [vmem:[#allocation4 + $0x2f0] sm:$0xff]
    %v681 = vld [vmem:[#allocation4 + $0x2f8] sm:$0xff]
    %v682 = vld [vmem:[#allocation4 + $0x300] sm:$0xff]
    %v683 = vld [vmem:[#allocation4 + $0x308] sm:$0xff]
    %v684 = vld [vmem:[#allocation4 + $0x310] sm:$0xff]
    %v685 = vld [vmem:[#allocation4 + $0x318] sm:$0xff]
    %v686 = vld [vmem:[#allocation4 + $0x320] sm:$0xff]
    %v687 = vld [vmem:[#allocation4 + $0x328] sm:$0xff]
    %v688 = vld [vmem:[#allocation4 + $0x330] sm:$0xff]
    %v689 = vld [vmem:[#allocation4 + $0x338] sm:$0xff]
    %v690 = vld [vmem:[#allocation4 + $0x340] sm:$0xff]
    %v691 = vld [vmem:[#allocation4 + $0x348] sm:$0xff]
    %v692 = vld [vmem:[#allocation4 + $0x350] sm:$0xff]
    %v693 = vld [vmem:[#allocation4 + $0x358] sm:$0xff]
    %v694 = vld [vmem:[#allocation4 + $0x360] sm:$0xff]
    %v695 = vld [vmem:[#allocation4 + $0x368] sm:$0xff]
    %v696 = vld [vmem:[#allocation4 + $0x370] sm:$0xff]
    %v697 = vld [vmem:[#allocation4 + $0x378] sm:$0xff]
    %v698 = vld [vmem:[#allocation4 + $0x380] sm:$0xff]
    %v699 = vld [vmem:[#allocation4 + $0x388] sm:$0xff]
    %v700 = vld [vmem:[#allocation4 + $0x390] sm:$0xff]
    %v701 = vld [vmem:[#allocation4 + $0x398] sm:$0xff]
    %v702 = vld [vmem:[#allocation4 + $0x3a0] sm:$0xff]
    %v703 = vld [vmem:[#allocation4 + $0x3a8] sm:$0xff]
    %v704 = vld [vmem:[#allocation4 + $0x3b0] sm:$0xff]
    %v705 = vld [vmem:[#allocation4 + $0x3b8] sm:$0xff]
    %v706 = vld [vmem:[#allocation4 + $0x3c0] sm:$0xff]
    %v707 = vld [vmem:[#allocation4 + $0x3c8] sm:$0xff]
    %v708 = vld [vmem:[#allocation4 + $0x3d0] sm:$0xff]
    %v709 = vld [vmem:[#allocation4 + $0x3d8] sm:$0xff]
    %v710 = vld [vmem:[#allocation4 + $0x3e0] sm:$0xff]
    %v711 = vld [vmem:[#allocation4 + $0x3e8] sm:$0xff]
    %v712 = vld [vmem:[#allocation4 + $0x3f0] sm:$0xff]
    %v713 = vld [vmem:[#allocation4 + $0x3f8] sm:$0xff]
    %v714 = vld [vmem:[#allocation4 + $0x400] sm:$0xff]
    %v715 = vld [vmem:[#allocation4 + $0x408] sm:$0xff]
    %v716 = vld [vmem:[#allocation4 + $0x410] sm:$0xff]
    %v717 = vld [vmem:[#allocation4 + $0x418] sm:$0xff]
    %v718 = vld [vmem:[#allocation4 + $0x420] sm:$0xff]
    %v719 = vld [vmem:[#allocation4 + $0x428] sm:$0xff]
    %v720 = vld [vmem:[#allocation4 + $0x430] sm:$0xff]
    %v721 = vld [vmem:[#allocation4 + $0x438] sm:$0xff]
    %v722 = vld [vmem:[#allocation4 + $0x440] sm:$0xff]
    %v723 = vld [vmem:[#allocation4 + $0x448] sm:$0xff]
    %v724 = vld [vmem:[#allocation4 + $0x450] sm:$0xff]
    %v725 = vld [vmem:[#allocation4 + $0x458] sm:$0xff]
    %v726 = vld [vmem:[#allocation4 + $0x460] sm:$0xff]
    %v727 = vld [vmem:[#allocation4 + $0x468] sm:$0xff]
    %v728 = vld [vmem:[#allocation4 + $0x470] sm:$0xff]
    %v729 = vld [vmem:[#allocation4 + $0x478] sm:$0xff]
    %v730 = vld [vmem:[#allocation4 + $0x480] sm:$0xff]
    %v731 = vld [vmem:[#allocation4 + $0x488] sm:$0xff]
    %v732 = vld [vmem:[#allocation4 + $0x490] sm:$0xff]
    %v733 = vld [vmem:[#allocation4 + $0x498] sm:$0xff]
    %v734 = vld [vmem:[#allocation4 + $0x4a0] sm:$0xff]
    %v735 = vld [vmem:[#allocation4 + $0x4a8] sm:$0xff]
    %v736 = vld [vmem:[#allocation4 + $0x4b0] sm:$0xff]
    %v737 = vld [vmem:[#allocation4 + $0x4b8] sm:$0xff]
    %v738 = vld [vmem:[#allocation4 + $0x4c0] sm:$0xff]
    %v739 = vld [vmem:[#allocation4 + $0x4c8] sm:$0xff]
    %v740 = vld [vmem:[#allocation4 + $0x4d0] sm:$0xff]
    %v741 = vld [vmem:[#allocation4 + $0x4d8] sm:$0xff]
    %v742 = vld [vmem:[#allocation4 + $0x4e0] sm:$0xff]
    %v743 = vld [vmem:[#allocation4 + $0x4e8] sm:$0xff]
    %v744 = vld [vmem:[#allocation4 + $0x4f0] sm:$0xff]
    %v745 = vld [vmem:[#allocation4 + $0x4f8] sm:$0xff]
    %v746 = vld [vmem:[#allocation4 + $0x500] sm:$0xff]
    %v747 = vld [vmem:[#allocation4 + $0x508] sm:$0xff]
    %v748 = vld [vmem:[#allocation4 + $0x510] sm:$0xff]
    %v749 = vld [vmem:[#allocation4 + $0x518] sm:$0xff]
    %v750 = vld [vmem:[#allocation4 + $0x520] sm:$0xff]
    %v751 = vld [vmem:[#allocation4 + $0x528] sm:$0xff]
    %v752 = vld [vmem:[#allocation4 + $0x530] sm:$0xff]
    %v753 = vld [vmem:[#allocation4 + $0x538] sm:$0xff]
    %v754 = vld [vmem:[#allocation4 + $0x540] sm:$0xff]
    %v755 = vld [vmem:[#allocation4 + $0x548] sm:$0xff]
    %v756 = vld [vmem:[#allocation4 + $0x550] sm:$0xff]
    %v757 = vld [vmem:[#allocation4 + $0x558] sm:$0xff]
    %v758 = vld [vmem:[#allocation4 + $0x560] sm:$0xff]
    %v759 = vld [vmem:[#allocation4 + $0x568] sm:$0xff]
    %v760 = vld [vmem:[#allocation4 + $0x570] sm:$0xff]
    %v761 = vld [vmem:[#allocation4 + $0x578] sm:$0xff]
    %v762 = vld [vmem:[#allocation4 + $0x580] sm:$0xff]
    %v763 = vld [vmem:[#allocation4 + $0x588] sm:$0xff]
    %v764 = vld [vmem:[#allocation4 + $0x590] sm:$0xff]
    %v765 = vld [vmem:[#allocation4 + $0x598] sm:$0xff]
    %v766 = vld [vmem:[#allocation4 + $0x5a0] sm:$0xff]
    %v767 = vld [vmem:[#allocation4 + $0x5a8] sm:$0xff]
    %v768 = vld [vmem:[#allocation4 + $0x5b0] sm:$0xff]
    %v769 = vld [vmem:[#allocation4 + $0x5b8] sm:$0xff]
    %v770 = vld [vmem:[#allocation4 + $0x5c0] sm:$0xff]
    %v771 = vld [vmem:[#allocation4 + $0x5c8] sm:$0xff]
    %v772 = vld [vmem:[#allocation4 + $0x5d0] sm:$0xff]
    %v773 = vld [vmem:[#allocation4 + $0x5d8] sm:$0xff]
    %v774 = vld [vmem:[#allocation4 + $0x5e0] sm:$0xff]
    %v775 = vld [vmem:[#allocation4 + $0x5e8] sm:$0xff]
    %v776 = vld [vmem:[#allocation4 + $0x5f0] sm:$0xff]
    %v777 = vld [vmem:[#allocation4 + $0x5f8] sm:$0xff]
    %v778 = vld [vmem:[#allocation4 + $0x600] sm:$0xff]
    %v779 = vld [vmem:[#allocation4 + $0x608] sm:$0xff]
    %v780 = vld [vmem:[#allocation4 + $0x610] sm:$0xff]
    %v781 = vld [vmem:[#allocation4 + $0x618] sm:$0xff]
    %v782 = vld [vmem:[#allocation4 + $0x620] sm:$0xff]
    %v783 = vld [vmem:[#allocation4 + $0x628] sm:$0xff]
    %v784 = vld [vmem:[#allocation4 + $0x630] sm:$0xff]
    %v785 = vld [vmem:[#allocation4 + $0x638] sm:$0xff]
    %v786 = vld [vmem:[#allocation4 + $0x640] sm:$0xff]
    %v787 = vld [vmem:[#allocation4 + $0x648] sm:$0xff]
    %v788 = vld [vmem:[#allocation4 + $0x650] sm:$0xff]
    %v789 = vld [vmem:[#allocation4 + $0x658] sm:$0xff]
    %v790 = vld [vmem:[#allocation4 + $0x660] sm:$0xff]
    %v791 = vld [vmem:[#allocation4 + $0x668] sm:$0xff]
    %v792 = vld [vmem:[#allocation4 + $0x670] sm:$0xff]
    %v793 = vld [vmem:[#allocation4 + $0x678] sm:$0xff]
    %v794 = vld [vmem:[#allocation4 + $0x680] sm:$0xff]
    %v795 = vld [vmem:[#allocation4 + $0x688] sm:$0xff]
    %v796 = vld [vmem:[#allocation4 + $0x690] sm:$0xff]
    %v797 = vld [vmem:[#allocation4 + $0x698] sm:$0xff]
    %v798 = vld [vmem:[#allocation4 + $0x6a0] sm:$0xff]
    %v799 = vld [vmem:[#allocation4 + $0x6a8] sm:$0xff]
    %v800 = vld [vmem:[#allocation4 + $0x6b0] sm:$0xff]
    %v801 = vld [vmem:[#allocation4 + $0x6b8] sm:$0xff]
    %v802 = vld [vmem:[#allocation4 + $0x6c0] sm:$0xff]
    %v803 = vld [vmem:[#allocation4 + $0x6c8] sm:$0xff]
    %v804 = vld [vmem:[#allocation4 + $0x6d0] sm:$0xff]
    %v805 = vld [vmem:[#allocation4 + $0x6d8] sm:$0xff]
    %v806 = vld [vmem:[#allocation4 + $0x6e0] sm:$0xff]
    %v807 = vld [vmem:[#allocation4 + $0x6e8] sm:$0xff]
    %v808 = vld [vmem:[#allocation4 + $0x6f0] sm:$0xff]
    %v809 = vld [vmem:[#allocation4 + $0x6f8] sm:$0xff]
    %v810 = vld [vmem:[#allocation4 + $0x700] sm:$0xff]
    %v811 = vld [vmem:[#allocation4 + $0x708] sm:$0xff]
    %v812 = vld [vmem:[#allocation4 + $0x710] sm:$0xff]
    %v813 = vld [vmem:[#allocation4 + $0x718] sm:$0xff]
    %v814 = vld [vmem:[#allocation4 + $0x720] sm:$0xff]
    %v815 = vld [vmem:[#allocation4 + $0x728] sm:$0xff]
    %v816 = vld [vmem:[#allocation4 + $0x730] sm:$0xff]
    %v817 = vld [vmem:[#allocation4 + $0x738] sm:$0xff]
    %v818 = vld [vmem:[#allocation4 + $0x740] sm:$0xff]
    %v819 = vld [vmem:[#allocation4 + $0x748] sm:$0xff]
    %v820 = vld [vmem:[#allocation4 + $0x750] sm:$0xff]
    %v821 = vld [vmem:[#allocation4 + $0x758] sm:$0xff]
    %v822 = vld [vmem:[#allocation4 + $0x760] sm:$0xff]
    %v823 = vld [vmem:[#allocation4 + $0x768] sm:$0xff]
    %v824 = vld [vmem:[#allocation4 + $0x770] sm:$0xff]
    %v825 = vld [vmem:[#allocation4 + $0x778] sm:$0xff]
    %v826 = vld [vmem:[#allocation4 + $0x780] sm:$0xff]
    %v827 = vld [vmem:[#allocation4 + $0x788] sm:$0xff]
    %v828 = vld [vmem:[#allocation4 + $0x790] sm:$0xff]
    %v829 = vld [vmem:[#allocation4 + $0x798] sm:$0xff]
    %v830 = vld [vmem:[#allocation4 + $0x7a0] sm:$0xff]
    %v831 = vld [vmem:[#allocation4 + $0x7a8] sm:$0xff]
    %v832 = vld [vmem:[#allocation4 + $0x7b0] sm:$0xff]
    %v833 = vld [vmem:[#allocation4 + $0x7b8] sm:$0xff]
    %v834 = vld [vmem:[#allocation4 + $0x7c0] sm:$0xff]
    %v835 = vld [vmem:[#allocation4 + $0x7c8] sm:$0xff]
    %v836 = vld [vmem:[#allocation4 + $0x7d0] sm:$0xff]
    %v837 = vld [vmem:[#allocation4 + $0x7d8] sm:$0xff]
    %v838 = vld [vmem:[#allocation4 + $0x7e0] sm:$0xff]
    %v839 = vld [vmem:[#allocation4 + $0x7e8] sm:$0xff]
    %v840 = vld [vmem:[#allocation4 + $0x7f0] sm:$0xff]
    %v841 = vld [vmem:[#allocation4 + $0x7f8] sm:$0xff]
    %v842 = vld [vmem:[#allocation4 + $0x800] sm:$0xff]
    %v843 = vld [vmem:[#allocation4 + $0x808] sm:$0xff]
    %v844 = vld [vmem:[#allocation4 + $0x810] sm:$0xff]
    %v845 = vld [vmem:[#allocation4 + $0x818] sm:$0xff]
    %v846 = vld [vmem:[#allocation4 + $0x820] sm:$0xff]
    %v847 = vld [vmem:[#allocation4 + $0x828] sm:$0xff]
    %v848 = vld [vmem:[#allocation4 + $0x830] sm:$0xff]
    %v849 = vld [vmem:[#allocation4 + $0x838] sm:$0xff]
    %v850 = vld [vmem:[#allocation4 + $0x840] sm:$0xff]
    %v851 = vld [vmem:[#allocation4 + $0x848] sm:$0xff]
    %v852 = vld [vmem:[#allocation4 + $0x850] sm:$0xff]
    %v853 = vld [vmem:[#allocation4 + $0x858] sm:$0xff]
    %v854 = vld [vmem:[#allocation4 + $0x860] sm:$0xff]
    %v855 = vld [vmem:[#allocation4 + $0x868] sm:$0xff]
    %v856 = vld [vmem:[#allocation4 + $0x870] sm:$0xff]
    %v857 = vld [vmem:[#allocation4 + $0x878] sm:$0xff]
    %v858 = vld [vmem:[#allocation4 + $0x880] sm:$0xff]
    %v859 = vld [vmem:[#allocation4 + $0x888] sm:$0xff]
    %v860 = vld [vmem:[#allocation4 + $0x890] sm:$0xff]
    %v861 = vld [vmem:[#allocation4 + $0x898] sm:$0xff]
    %v862 = vld [vmem:[#allocation4 + $0x8a0] sm:$0xff]
    %v863 = vld [vmem:[#allocation4 + $0x8a8] sm:$0xff]
    %v864 = vld [vmem:[#allocation4 + $0x8b0] sm:$0xff]
    %v865 = vld [vmem:[#allocation4 + $0x8b8] sm:$0xff]
    %v866 = vld [vmem:[#allocation4 + $0x8c0] sm:$0xff]
    %v867 = vld [vmem:[#allocation4 + $0x8c8] sm:$0xff]
    %v868 = vld [vmem:[#allocation4 + $0x8d0] sm:$0xff]
    %v869 = vld [vmem:[#allocation4 + $0x8d8] sm:$0xff]
    %v870 = vld [vmem:[#allocation4 + $0x8e0] sm:$0xff]
    %v871 = vld [vmem:[#allocation4 + $0x8e8] sm:$0xff]
    %v872 = vld [vmem:[#allocation4 + $0x8f0] sm:$0xff]
    %v873 = vld [vmem:[#allocation4 + $0x8f8] sm:$0xff]
    %v874 = vld [vmem:[#allocation4 + $0x900] sm:$0xff]
    %v875 = vld [vmem:[#allocation4 + $0x908] sm:$0xff]
    %v876 = vld [vmem:[#allocation4 + $0x910] sm:$0xff]
    %v877 = vld [vmem:[#allocation4 + $0x918] sm:$0xff]
    %v878 = vld [vmem:[#allocation4 + $0x920] sm:$0xff]
    %v879 = vld [vmem:[#allocation4 + $0x928] sm:$0xff]
    %v880 = vld [vmem:[#allocation4 + $0x930] sm:$0xff]
    %v881 = vld [vmem:[#allocation4 + $0x938] sm:$0xff]
    %v882 = vld [vmem:[#allocation4 + $0x940] sm:$0xff]
    %v883 = vld [vmem:[#allocation4 + $0x948] sm:$0xff]
    %v884 = vld [vmem:[#allocation4 + $0x950] sm:$0xff]
    %v885 = vld [vmem:[#allocation4 + $0x958] sm:$0xff]
    %v886 = vld [vmem:[#allocation4 + $0x960] sm:$0xff]
    %v887 = vld [vmem:[#allocation4 + $0x968] sm:$0xff]
    %v888 = vld [vmem:[#allocation4 + $0x970] sm:$0xff]
    %v889 = vld [vmem:[#allocation4 + $0x978] sm:$0xff]
    %v890 = vld [vmem:[#allocation4 + $0x980] sm:$0xff]
    %v891 = vld [vmem:[#allocation4 + $0x988] sm:$0xff]
    %v892 = vld [vmem:[#allocation4 + $0x990] sm:$0xff]
    %v893 = vld [vmem:[#allocation4 + $0x998] sm:$0xff]
    %v894 = vld [vmem:[#allocation4 + $0x9a0] sm:$0xff]
    %v895 = vld [vmem:[#allocation4 + $0x9a8] sm:$0xff]
    %v896 = vld [vmem:[#allocation4 + $0x9b0] sm:$0xff]
    %v897 = vld [vmem:[#allocation4 + $0x9b8] sm:$0xff]
    %v898 = vld [vmem:[#allocation4 + $0x9c0] sm:$0xff]
    %v899 = vld [vmem:[#allocation4 + $0x9c8] sm:$0xff]
    %v900 = vld [vmem:[#allocation4 + $0x9d0] sm:$0xff]
    %v901 = vld [vmem:[#allocation4 + $0x9d8] sm:$0xff]
    %v902 = vld [vmem:[#allocation4 + $0x9e0] sm:$0xff]
    %v903 = vld [vmem:[#allocation4 + $0x9e8] sm:$0xff]
    %v904 = vld [vmem:[#allocation4 + $0x9f0] sm:$0xff]
    %v905 = vld [vmem:[#allocation4 + $0x9f8] sm:$0xff]
    %v906 = vld [vmem:[#allocation4 + $0xa00] sm:$0xff]
    %v907 = vld [vmem:[#allocation4 + $0xa08] sm:$0xff]
    %v908 = vld [vmem:[#allocation4 + $0xa10] sm:$0xff]
    %v909 = vld [vmem:[#allocation4 + $0xa18] sm:$0xff]
    %v910 = vld [vmem:[#allocation4 + $0xa20] sm:$0xff]
    %v911 = vld [vmem:[#allocation4 + $0xa28] sm:$0xff]
    %v912 = vld [vmem:[#allocation4 + $0xa30] sm:$0xff]
    %v913 = vld [vmem:[#allocation4 + $0xa38] sm:$0xff]
    %v914 = vld [vmem:[#allocation4 + $0xa40] sm:$0xff]
    %v915 = vld [vmem:[#allocation4 + $0xa48] sm:$0xff]
    %v916 = vld [vmem:[#allocation4 + $0xa50] sm:$0xff]
    %v917 = vld [vmem:[#allocation4 + $0xa58] sm:$0xff]
    %v918 = vld [vmem:[#allocation4 + $0xa60] sm:$0xff]
    %v919 = vld [vmem:[#allocation4 + $0xa68] sm:$0xff]
    %v920 = vld [vmem:[#allocation4 + $0xa70] sm:$0xff]
    %v921 = vld [vmem:[#allocation4 + $0xa78] sm:$0xff]
    %v922 = vld [vmem:[#allocation4 + $0xa80] sm:$0xff]
    %v923 = vld [vmem:[#allocation4 + $0xa88] sm:$0xff]
    %v924 = vld [vmem:[#allocation4 + $0xa90] sm:$0xff]
    %v925 = vld [vmem:[#allocation4 + $0xa98] sm:$0xff]
    %v926 = vld [vmem:[#allocation4 + $0xaa0] sm:$0xff]
    %v927 = vld [vmem:[#allocation4 + $0xaa8] sm:$0xff]
    %v928 = vld [vmem:[#allocation4 + $0xab0] sm:$0xff]
    %v929 = vld [vmem:[#allocation4 + $0xab8] sm:$0xff]
    %v930 = vld [vmem:[#allocation4 + $0xac0] sm:$0xff]
    %v931 = vld [vmem:[#allocation4 + $0xac8] sm:$0xff]
    %v932 = vld [vmem:[#allocation4 + $0xad0] sm:$0xff]
    %v933 = vld [vmem:[#allocation4 + $0xad8] sm:$0xff]
    %v934 = vld [vmem:[#allocation4 + $0xae0] sm:$0xff]
    %v935 = vld [vmem:[#allocation4 + $0xae8] sm:$0xff]
    %v936 = vld [vmem:[#allocation4 + $0xaf0] sm:$0xff]
    %v937 = vld [vmem:[#allocation4 + $0xaf8] sm:$0xff]
    %v938 = vld [vmem:[#allocation4 + $0xb00] sm:$0xff]
    %v939 = vld [vmem:[#allocation4 + $0xb08] sm:$0xff]
    %v940 = vld [vmem:[#allocation4 + $0xb10] sm:$0xff]
    %v941 = vld [vmem:[#allocation4 + $0xb18] sm:$0xff]
    %v942 = vld [vmem:[#allocation4 + $0xb20] sm:$0xff]
    %v943 = vld [vmem:[#allocation4 + $0xb28] sm:$0xff]
    %v944 = vld [vmem:[#allocation4 + $0xb30] sm:$0xff]
    %v945 = vld [vmem:[#allocation4 + $0xb38] sm:$0xff]
    %v946 = vld [vmem:[#allocation4 + $0xb40] sm:$0xff]
    %v947 = vld [vmem:[#allocation4 + $0xb48] sm:$0xff]
    %v948 = vld [vmem:[#allocation4 + $0xb50] sm:$0xff]
    %v949 = vld [vmem:[#allocation4 + $0xb58] sm:$0xff]
    %v950 = vld [vmem:[#allocation4 + $0xb60] sm:$0xff]
    %v951 = vld [vmem:[#allocation4 + $0xb68] sm:$0xff]
    %v952 = vld [vmem:[#allocation4 + $0xb70] sm:$0xff]
    %v953 = vld [vmem:[#allocation4 + $0xb78] sm:$0xff]
    %v954 = vld [vmem:[#allocation4 + $0xb80] sm:$0xff]
    %v955 = vld [vmem:[#allocation4 + $0xb88] sm:$0xff]
    %v956 = vld [vmem:[#allocation4 + $0xb90] sm:$0xff]
    %v957 = vld [vmem:[#allocation4 + $0xb98] sm:$0xff]
    %v958 = vld [vmem:[#allocation4 + $0xba0] sm:$0xff]
    %v959 = vld [vmem:[#allocation4 + $0xba8] sm:$0xff]
    %v960 = vld [vmem:[#allocation4 + $0xbb0] sm:$0xff]
    %v961 = vld [vmem:[#allocation4 + $0xbb8] sm:$0xff]
    %v962 = vld [vmem:[#allocation4 + $0xbc0] sm:$0xff]
    %v963 = vld [vmem:[#allocation4 + $0xbc8] sm:$0xff]
    %v964 = vld [vmem:[#allocation4 + $0xbd0] sm:$0xff]
    %v965 = vld [vmem:[#allocation4 + $0xbd8] sm:$0xff]
    %v966 = vld [vmem:[#allocation4 + $0xbe0] sm:$0xff]
    %v967 = vld [vmem:[#allocation4 + $0xbe8] sm:$0xff]
    %v968 = vld [vmem:[#allocation4 + $0xbf0] sm:$0xff]
    %v969 = vld [vmem:[#allocation4 + $0xbf8] sm:$0xff]
    %v970 = vld [vmem:[#allocation18] sm:$0x3f]
    %v972 = vlaneseq
    %v973 = vshrl.u32 %v972, 7
    %v974 = vsub.s32 0, %v973
    %v975 = vrot.slane %v970, %v974
    %v976 = vlaneseq
    %v977 = vshrl.u32 %v976, 7
    %v978 = vsub.s32 1, %v977
    %v979 = vrot.slane %v970, %v978
    %v980 = vlaneseq
    %v981 = vshrl.u32 %v980, 7
    %v982 = vsub.s32 2, %v981
    %v983 = vrot.slane %v970, %v982
    %v984 = vlaneseq
    %v985 = vshrl.u32 %v984, 7
    %v986 = vsub.s32 3, %v985
    %v987 = vrot.slane %v970, %v986
    %v988 = vlaneseq
    %v989 = vshrl.u32 %v988, 7
    %v990 = vsub.s32 4, %v989
    %v991 = vrot.slane %v970, %v990
    %v992 = vlaneseq
    %v993 = vshrl.u32 %v992, 7
    %v994 = vsub.s32 5, %v993
    %v995 = vrot.slane %v970, %v994
    %v1386 = vunpack.c.l.b16 %v586
    %v1387 = vunpack.c.h.b16 %v586
    %v1388 = vunpack.c.l.b16 %v587
    %v1389 = vunpack.c.h.b16 %v587
    %v1390 = vunpack.c.l.b16 %v588
    %v1391 = vunpack.c.h.b16 %v588
    %v1392 = vunpack.c.l.b16 %v589
    %v1393 = vunpack.c.h.b16 %v589
    %v1394 = vunpack.c.l.b16 %v590
    %v1395 = vunpack.c.h.b16 %v590
    %v1396 = vunpack.c.l.b16 %v591
    %v1397 = vunpack.c.h.b16 %v591
    %v1398 = vunpack.c.l.b16 %v592
    %v1399 = vunpack.c.h.b16 %v592
    %v1400 = vunpack.c.l.b16 %v593
    %v1401 = vunpack.c.h.b16 %v593
    %v1402 = vunpack.c.l.b16 %v594
    %v1403 = vunpack.c.h.b16 %v594
    %v1404 = vunpack.c.l.b16 %v595
    %v1405 = vunpack.c.h.b16 %v595
    %v1406 = vunpack.c.l.b16 %v596
    %v1407 = vunpack.c.h.b16 %v596
    %v1408 = vunpack.c.l.b16 %v597
    %v1409 = vunpack.c.h.b16 %v597
    %v1410 = vunpack.c.l.b16 %v598
    %v1411 = vunpack.c.h.b16 %v598
    %v1412 = vunpack.c.l.b16 %v599
    %v1413 = vunpack.c.h.b16 %v599
    %v1414 = vunpack.c.l.b16 %v600
    %v1415 = vunpack.c.h.b16 %v600
    %v1416 = vunpack.c.l.b16 %v601
    %v1417 = vunpack.c.h.b16 %v601
    %v1418 = vunpack.c.l.b16 %v602
    %v1419 = vunpack.c.h.b16 %v602
    %v1420 = vunpack.c.l.b16 %v603
    %v1421 = vunpack.c.h.b16 %v603
    %v1422 = vunpack.c.l.b16 %v604
    %v1423 = vunpack.c.h.b16 %v604
    %v1424 = vunpack.c.l.b16 %v605
    %v1425 = vunpack.c.h.b16 %v605
    %v1426 = vunpack.c.l.b16 %v606
    %v1427 = vunpack.c.h.b16 %v606
    %v1428 = vunpack.c.l.b16 %v607
    %v1429 = vunpack.c.h.b16 %v607
    %v1430 = vunpack.c.l.b16 %v608
    %v1431 = vunpack.c.h.b16 %v608
    %v1432 = vunpack.c.l.b16 %v609
    %v1433 = vunpack.c.h.b16 %v609
    %v1434 = vunpack.c.l.b16 %v610
    %v1435 = vunpack.c.h.b16 %v610
    %v1436 = vunpack.c.l.b16 %v611
    %v1437 = vunpack.c.h.b16 %v611
    %v1438 = vunpack.c.l.b16 %v612
    %v1439 = vunpack.c.h.b16 %v612
    %v1440 = vunpack.c.l.b16 %v613
    %v1441 = vunpack.c.h.b16 %v613
    %v1442 = vunpack.c.l.b16 %v614
    %v1443 = vunpack.c.h.b16 %v614
    %v1444 = vunpack.c.l.b16 %v615
    %v1445 = vunpack.c.h.b16 %v615
    %v1446 = vunpack.c.l.b16 %v616
    %v1447 = vunpack.c.h.b16 %v616
    %v1448 = vunpack.c.l.b16 %v617
    %v1449 = vunpack.c.h.b16 %v617
    %v1450 = vunpack.c.l.b16 %v618
    %v1451 = vunpack.c.h.b16 %v618
    %v1452 = vunpack.c.l.b16 %v619
    %v1453 = vunpack.c.h.b16 %v619
    %v1454 = vunpack.c.l.b16 %v620
    %v1455 = vunpack.c.h.b16 %v620
    %v1456 = vunpack.c.l.b16 %v621
    %v1457 = vunpack.c.h.b16 %v621
    %v1458 = vunpack.c.l.b16 %v622
    %v1459 = vunpack.c.h.b16 %v622
    %v1460 = vunpack.c.l.b16 %v623
    %v1461 = vunpack.c.h.b16 %v623
    %v1462 = vunpack.c.l.b16 %v624
    %v1463 = vunpack.c.h.b16 %v624
    %v1464 = vunpack.c.l.b16 %v625
    %v1465 = vunpack.c.h.b16 %v625
    %v1466 = vunpack.c.l.b16 %v626
    %v1467 = vunpack.c.h.b16 %v626
    %v1468 = vunpack.c.l.b16 %v627
    %v1469 = vunpack.c.h.b16 %v627
    %v1470 = vunpack.c.l.b16 %v628
    %v1471 = vunpack.c.h.b16 %v628
    %v1472 = vunpack.c.l.b16 %v629
    %v1473 = vunpack.c.h.b16 %v629
    %v1474 = vunpack.c.l.b16 %v630
    %v1475 = vunpack.c.h.b16 %v630
    %v1476 = vunpack.c.l.b16 %v631
    %v1477 = vunpack.c.h.b16 %v631
    %v1478 = vunpack.c.l.b16 %v632
    %v1479 = vunpack.c.h.b16 %v632
    %v1480 = vunpack.c.l.b16 %v633
    %v1481 = vunpack.c.h.b16 %v633
    %v1482 = vunpack.c.l.b16 %v634
    %v1483 = vunpack.c.h.b16 %v634
    %v1484 = vunpack.c.l.b16 %v635
    %v1485 = vunpack.c.h.b16 %v635
    %v1486 = vunpack.c.l.b16 %v636
    %v1487 = vunpack.c.h.b16 %v636
    %v1488 = vunpack.c.l.b16 %v637
    %v1489 = vunpack.c.h.b16 %v637
    %v1490 = vunpack.c.l.b16 %v638
    %v1491 = vunpack.c.h.b16 %v638
    %v1492 = vunpack.c.l.b16 %v639
    %v1493 = vunpack.c.h.b16 %v639
    %v1494 = vunpack.c.l.b16 %v640
    %v1495 = vunpack.c.h.b16 %v640
    %v1496 = vunpack.c.l.b16 %v641
    %v1497 = vunpack.c.h.b16 %v641
    %v1498 = vunpack.c.l.b16 %v642
    %v1499 = vunpack.c.h.b16 %v642
    %v1500 = vunpack.c.l.b16 %v643
    %v1501 = vunpack.c.h.b16 %v643
    %v1502 = vunpack.c.l.b16 %v644
    %v1503 = vunpack.c.h.b16 %v644
    %v1504 = vunpack.c.l.b16 %v645
    %v1505 = vunpack.c.h.b16 %v645
    %v1506 = vunpack.c.l.b16 %v646
    %v1507 = vunpack.c.h.b16 %v646
    %v1508 = vunpack.c.l.b16 %v647
    %v1509 = vunpack.c.h.b16 %v647
    %v1510 = vunpack.c.l.b16 %v648
    %v1511 = vunpack.c.h.b16 %v648
    %v1512 = vunpack.c.l.b16 %v649
    %v1513 = vunpack.c.h.b16 %v649
    %v1514 = vunpack.c.l.b16 %v650
    %v1515 = vunpack.c.h.b16 %v650
    %v1516 = vunpack.c.l.b16 %v651
    %v1517 = vunpack.c.h.b16 %v651
    %v1518 = vunpack.c.l.b16 %v652
    %v1519 = vunpack.c.h.b16 %v652
    %v1520 = vunpack.c.l.b16 %v653
    %v1521 = vunpack.c.h.b16 %v653
    %v1522 = vunpack.c.l.b16 %v654
    %v1523 = vunpack.c.h.b16 %v654
    %v1524 = vunpack.c.l.b16 %v655
    %v1525 = vunpack.c.h.b16 %v655
    %v1526 = vunpack.c.l.b16 %v656
    %v1527 = vunpack.c.h.b16 %v656
    %v1528 = vunpack.c.l.b16 %v657
    %v1529 = vunpack.c.h.b16 %v657
    %v1530 = vunpack.c.l.b16 %v658
    %v1531 = vunpack.c.h.b16 %v658
    %v1532 = vunpack.c.l.b16 %v659
    %v1533 = vunpack.c.h.b16 %v659
    %v1534 = vunpack.c.l.b16 %v660
    %v1535 = vunpack.c.h.b16 %v660
    %v1536 = vunpack.c.l.b16 %v661
    %v1537 = vunpack.c.h.b16 %v661
    %v1538 = vunpack.c.l.b16 %v662
    %v1539 = vunpack.c.h.b16 %v662
    %v1540 = vunpack.c.l.b16 %v663
    %v1541 = vunpack.c.h.b16 %v663
    %v1542 = vunpack.c.l.b16 %v664
    %v1543 = vunpack.c.h.b16 %v664
    %v1544 = vunpack.c.l.b16 %v665
    %v1545 = vunpack.c.h.b16 %v665
    %v1546 = vunpack.c.l.b16 %v666
    %v1547 = vunpack.c.h.b16 %v666
    %v1548 = vunpack.c.l.b16 %v667
    %v1549 = vunpack.c.h.b16 %v667
    %v1550 = vunpack.c.l.b16 %v668
    %v1551 = vunpack.c.h.b16 %v668
    %v1552 = vunpack.c.l.b16 %v669
    %v1553 = vunpack.c.h.b16 %v669
    %v1554 = vunpack.c.l.b16 %v670
    %v1555 = vunpack.c.h.b16 %v670
    %v1556 = vunpack.c.l.b16 %v671
    %v1557 = vunpack.c.h.b16 %v671
    %v1558 = vunpack.c.l.b16 %v672
    %v1559 = vunpack.c.h.b16 %v672
    %v1560 = vunpack.c.l.b16 %v673
    %v1561 = vunpack.c.h.b16 %v673
    %v1562 = vunpack.c.l.b16 %v674
    %v1563 = vunpack.c.h.b16 %v674
    %v1564 = vunpack.c.l.b16 %v675
    %v1565 = vunpack.c.h.b16 %v675
    %v1566 = vunpack.c.l.b16 %v676
    %v1567 = vunpack.c.h.b16 %v676
    %v1568 = vunpack.c.l.b16 %v677
    %v1569 = vunpack.c.h.b16 %v677
    %v1570 = vunpack.c.l.b16 %v678
    %v1571 = vunpack.c.h.b16 %v678
    %v1572 = vunpack.c.l.b16 %v679
    %v1573 = vunpack.c.h.b16 %v679
    %v1574 = vunpack.c.l.b16 %v680
    %v1575 = vunpack.c.h.b16 %v680
    %v1576 = vunpack.c.l.b16 %v681
    %v1577 = vunpack.c.h.b16 %v681
    %v1578 = vunpack.c.l.b16 %v682
    %v1579 = vunpack.c.h.b16 %v682
    %v1580 = vunpack.c.l.b16 %v683
    %v1581 = vunpack.c.h.b16 %v683
    %v1582 = vunpack.c.l.b16 %v684
    %v1583 = vunpack.c.h.b16 %v684
    %v1584 = vunpack.c.l.b16 %v685
    %v1585 = vunpack.c.h.b16 %v685
    %v1586 = vunpack.c.l.b16 %v686
    %v1587 = vunpack.c.h.b16 %v686
    %v1588 = vunpack.c.l.b16 %v687
    %v1589 = vunpack.c.h.b16 %v687
    %v1590 = vunpack.c.l.b16 %v688
    %v1591 = vunpack.c.h.b16 %v688
    %v1592 = vunpack.c.l.b16 %v689
    %v1593 = vunpack.c.h.b16 %v689
    %v1594 = vunpack.c.l.b16 %v690
    %v1595 = vunpack.c.h.b16 %v690
    %v1596 = vunpack.c.l.b16 %v691
    %v1597 = vunpack.c.h.b16 %v691
    %v1598 = vunpack.c.l.b16 %v692
    %v1599 = vunpack.c.h.b16 %v692
    %v1600 = vunpack.c.l.b16 %v693
    %v1601 = vunpack.c.h.b16 %v693
    %v1602 = vunpack.c.l.b16 %v694
    %v1603 = vunpack.c.h.b16 %v694
    %v1604 = vunpack.c.l.b16 %v695
    %v1605 = vunpack.c.h.b16 %v695
    %v1606 = vunpack.c.l.b16 %v696
    %v1607 = vunpack.c.h.b16 %v696
    %v1608 = vunpack.c.l.b16 %v697
    %v1609 = vunpack.c.h.b16 %v697
    %v1610 = vunpack.c.l.b16 %v698
    %v1611 = vunpack.c.h.b16 %v698
    %v1612 = vunpack.c.l.b16 %v699
    %v1613 = vunpack.c.h.b16 %v699
    %v1614 = vunpack.c.l.b16 %v700
    %v1615 = vunpack.c.h.b16 %v700
    %v1616 = vunpack.c.l.b16 %v701
    %v1617 = vunpack.c.h.b16 %v701
    %v1618 = vunpack.c.l.b16 %v702
    %v1619 = vunpack.c.h.b16 %v702
    %v1620 = vunpack.c.l.b16 %v703
    %v1621 = vunpack.c.h.b16 %v703
    %v1622 = vunpack.c.l.b16 %v704
    %v1623 = vunpack.c.h.b16 %v704
    %v1624 = vunpack.c.l.b16 %v705
    %v1625 = vunpack.c.h.b16 %v705
    %v1626 = vunpack.c.l.b16 %v706
    %v1627 = vunpack.c.h.b16 %v706
    %v1628 = vunpack.c.l.b16 %v707
    %v1629 = vunpack.c.h.b16 %v707
    %v1630 = vunpack.c.l.b16 %v708
    %v1631 = vunpack.c.h.b16 %v708
    %v1632 = vunpack.c.l.b16 %v709
    %v1633 = vunpack.c.h.b16 %v709
    %v1634 = vunpack.c.l.b16 %v710
    %v1635 = vunpack.c.h.b16 %v710
    %v1636 = vunpack.c.l.b16 %v711
    %v1637 = vunpack.c.h.b16 %v711
    %v1638 = vunpack.c.l.b16 %v712
    %v1639 = vunpack.c.h.b16 %v712
    %v1640 = vunpack.c.l.b16 %v713
    %v1641 = vunpack.c.h.b16 %v713
    %v1642 = vunpack.c.l.b16 %v714
    %v1643 = vunpack.c.h.b16 %v714
    %v1644 = vunpack.c.l.b16 %v715
    %v1645 = vunpack.c.h.b16 %v715
    %v1646 = vunpack.c.l.b16 %v716
    %v1647 = vunpack.c.h.b16 %v716
    %v1648 = vunpack.c.l.b16 %v717
    %v1649 = vunpack.c.h.b16 %v717
    %v1650 = vunpack.c.l.b16 %v718
    %v1651 = vunpack.c.h.b16 %v718
    %v1652 = vunpack.c.l.b16 %v719
    %v1653 = vunpack.c.h.b16 %v719
    %v1654 = vunpack.c.l.b16 %v720
    %v1655 = vunpack.c.h.b16 %v720
    %v1656 = vunpack.c.l.b16 %v721
    %v1657 = vunpack.c.h.b16 %v721
    %v1658 = vunpack.c.l.b16 %v722
    %v1659 = vunpack.c.h.b16 %v722
    %v1660 = vunpack.c.l.b16 %v723
    %v1661 = vunpack.c.h.b16 %v723
    %v1662 = vunpack.c.l.b16 %v724
    %v1663 = vunpack.c.h.b16 %v724
    %v1664 = vunpack.c.l.b16 %v725
    %v1665 = vunpack.c.h.b16 %v725
    %v1666 = vunpack.c.l.b16 %v726
    %v1667 = vunpack.c.h.b16 %v726
    %v1668 = vunpack.c.l.b16 %v727
    %v1669 = vunpack.c.h.b16 %v727
    %v1670 = vunpack.c.l.b16 %v728
    %v1671 = vunpack.c.h.b16 %v728
    %v1672 = vunpack.c.l.b16 %v729
    %v1673 = vunpack.c.h.b16 %v729
    %v1674 = vunpack.c.l.b16 %v730
    %v1675 = vunpack.c.h.b16 %v730
    %v1676 = vunpack.c.l.b16 %v731
    %v1677 = vunpack.c.h.b16 %v731
    %v1678 = vunpack.c.l.b16 %v732
    %v1679 = vunpack.c.h.b16 %v732
    %v1680 = vunpack.c.l.b16 %v733
    %v1681 = vunpack.c.h.b16 %v733
    %v1682 = vunpack.c.l.b16 %v734
    %v1683 = vunpack.c.h.b16 %v734
    %v1684 = vunpack.c.l.b16 %v735
    %v1685 = vunpack.c.h.b16 %v735
    %v1686 = vunpack.c.l.b16 %v736
    %v1687 = vunpack.c.h.b16 %v736
    %v1688 = vunpack.c.l.b16 %v737
    %v1689 = vunpack.c.h.b16 %v737
    %v1690 = vunpack.c.l.b16 %v738
    %v1691 = vunpack.c.h.b16 %v738
    %v1692 = vunpack.c.l.b16 %v739
    %v1693 = vunpack.c.h.b16 %v739
    %v1694 = vunpack.c.l.b16 %v740
    %v1695 = vunpack.c.h.b16 %v740
    %v1696 = vunpack.c.l.b16 %v741
    %v1697 = vunpack.c.h.b16 %v741
    %v1698 = vunpack.c.l.b16 %v742
    %v1699 = vunpack.c.h.b16 %v742
    %v1700 = vunpack.c.l.b16 %v743
    %v1701 = vunpack.c.h.b16 %v743
    %v1702 = vunpack.c.l.b16 %v744
    %v1703 = vunpack.c.h.b16 %v744
    %v1704 = vunpack.c.l.b16 %v745
    %v1705 = vunpack.c.h.b16 %v745
    %v1706 = vunpack.c.l.b16 %v746
    %v1707 = vunpack.c.h.b16 %v746
    %v1708 = vunpack.c.l.b16 %v747
    %v1709 = vunpack.c.h.b16 %v747
    %v1710 = vunpack.c.l.b16 %v748
    %v1711 = vunpack.c.h.b16 %v748
    %v1712 = vunpack.c.l.b16 %v749
    %v1713 = vunpack.c.h.b16 %v749
    %v1714 = vunpack.c.l.b16 %v750
    %v1715 = vunpack.c.h.b16 %v750
    %v1716 = vunpack.c.l.b16 %v751
    %v1717 = vunpack.c.h.b16 %v751
    %v1718 = vunpack.c.l.b16 %v752
    %v1719 = vunpack.c.h.b16 %v752
    %v1720 = vunpack.c.l.b16 %v753
    %v1721 = vunpack.c.h.b16 %v753
    %v1722 = vunpack.c.l.b16 %v754
    %v1723 = vunpack.c.h.b16 %v754
    %v1724 = vunpack.c.l.b16 %v755
    %v1725 = vunpack.c.h.b16 %v755
    %v1726 = vunpack.c.l.b16 %v756
    %v1727 = vunpack.c.h.b16 %v756
    %v1728 = vunpack.c.l.b16 %v757
    %v1729 = vunpack.c.h.b16 %v757
    %v1730 = vunpack.c.l.b16 %v758
    %v1731 = vunpack.c.h.b16 %v758
    %v1732 = vunpack.c.l.b16 %v759
    %v1733 = vunpack.c.h.b16 %v759
    %v1734 = vunpack.c.l.b16 %v760
    %v1735 = vunpack.c.h.b16 %v760
    %v1736 = vunpack.c.l.b16 %v761
    %v1737 = vunpack.c.h.b16 %v761
    %v1738 = vunpack.c.l.b16 %v762
    %v1739 = vunpack.c.h.b16 %v762
    %v1740 = vunpack.c.l.b16 %v763
    %v1741 = vunpack.c.h.b16 %v763
    %v1742 = vunpack.c.l.b16 %v764
    %v1743 = vunpack.c.h.b16 %v764
    %v1744 = vunpack.c.l.b16 %v765
    %v1745 = vunpack.c.h.b16 %v765
    %v1746 = vunpack.c.l.b16 %v766
    %v1747 = vunpack.c.h.b16 %v766
    %v1748 = vunpack.c.l.b16 %v767
    %v1749 = vunpack.c.h.b16 %v767
    %v1750 = vunpack.c.l.b16 %v768
    %v1751 = vunpack.c.h.b16 %v768
    %v1752 = vunpack.c.l.b16 %v769
    %v1753 = vunpack.c.h.b16 %v769
    %v1754 = vunpack.c.l.b16 %v770
    %v1755 = vunpack.c.h.b16 %v770
    %v1756 = vunpack.c.l.b16 %v771
    %v1757 = vunpack.c.h.b16 %v771
    %v1758 = vunpack.c.l.b16 %v772
    %v1759 = vunpack.c.h.b16 %v772
    %v1760 = vunpack.c.l.b16 %v773
    %v1761 = vunpack.c.h.b16 %v773
    %v1762 = vunpack.c.l.b16 %v774
    %v1763 = vunpack.c.h.b16 %v774
    %v1764 = vunpack.c.l.b16 %v775
    %v1765 = vunpack.c.h.b16 %v775
    %v1766 = vunpack.c.l.b16 %v776
    %v1767 = vunpack.c.h.b16 %v776
    %v1768 = vunpack.c.l.b16 %v777
    %v1769 = vunpack.c.h.b16 %v777
    %v1770 = vunpack.c.l.b16 %v778
    %v1771 = vunpack.c.h.b16 %v778
    %v1772 = vunpack.c.l.b16 %v779
    %v1773 = vunpack.c.h.b16 %v779
    %v1774 = vunpack.c.l.b16 %v780
    %v1775 = vunpack.c.h.b16 %v780
    %v1776 = vunpack.c.l.b16 %v781
    %v1777 = vunpack.c.h.b16 %v781
    %v1778 = vunpack.c.l.b16 %v782
    %v1779 = vunpack.c.h.b16 %v782
    %v1780 = vunpack.c.l.b16 %v783
    %v1781 = vunpack.c.h.b16 %v783
    %v1782 = vunpack.c.l.b16 %v784
    %v1783 = vunpack.c.h.b16 %v784
    %v1784 = vunpack.c.l.b16 %v785
    %v1785 = vunpack.c.h.b16 %v785
    %v1786 = vunpack.c.l.b16 %v786
    %v1787 = vunpack.c.h.b16 %v786
    %v1788 = vunpack.c.l.b16 %v787
    %v1789 = vunpack.c.h.b16 %v787
    %v1790 = vunpack.c.l.b16 %v788
    %v1791 = vunpack.c.h.b16 %v788
    %v1792 = vunpack.c.l.b16 %v789
    %v1793 = vunpack.c.h.b16 %v789
    %v1794 = vunpack.c.l.b16 %v790
    %v1795 = vunpack.c.h.b16 %v790
    %v1796 = vunpack.c.l.b16 %v791
    %v1797 = vunpack.c.h.b16 %v791
    %v1798 = vunpack.c.l.b16 %v792
    %v1799 = vunpack.c.h.b16 %v792
    %v1800 = vunpack.c.l.b16 %v793
    %v1801 = vunpack.c.h.b16 %v793
    %v1802 = vunpack.c.l.b16 %v794
    %v1803 = vunpack.c.h.b16 %v794
    %v1804 = vunpack.c.l.b16 %v795
    %v1805 = vunpack.c.h.b16 %v795
    %v1806 = vunpack.c.l.b16 %v796
    %v1807 = vunpack.c.h.b16 %v796
    %v1808 = vunpack.c.l.b16 %v797
    %v1809 = vunpack.c.h.b16 %v797
    %v1810 = vunpack.c.l.b16 %v798
    %v1811 = vunpack.c.h.b16 %v798
    %v1812 = vunpack.c.l.b16 %v799
    %v1813 = vunpack.c.h.b16 %v799
    %v1814 = vunpack.c.l.b16 %v800
    %v1815 = vunpack.c.h.b16 %v800
    %v1816 = vunpack.c.l.b16 %v801
    %v1817 = vunpack.c.h.b16 %v801
    %v1818 = vunpack.c.l.b16 %v802
    %v1819 = vunpack.c.h.b16 %v802
    %v1820 = vunpack.c.l.b16 %v803
    %v1821 = vunpack.c.h.b16 %v803
    %v1822 = vunpack.c.l.b16 %v804
    %v1823 = vunpack.c.h.b16 %v804
    %v1824 = vunpack.c.l.b16 %v805
    %v1825 = vunpack.c.h.b16 %v805
    %v1826 = vunpack.c.l.b16 %v806
    %v1827 = vunpack.c.h.b16 %v806
    %v1828 = vunpack.c.l.b16 %v807
    %v1829 = vunpack.c.h.b16 %v807
    %v1830 = vunpack.c.l.b16 %v808
    %v1831 = vunpack.c.h.b16 %v808
    %v1832 = vunpack.c.l.b16 %v809
    %v1833 = vunpack.c.h.b16 %v809
    %v1834 = vunpack.c.l.b16 %v810
    %v1835 = vunpack.c.h.b16 %v810
    %v1836 = vunpack.c.l.b16 %v811
    %v1837 = vunpack.c.h.b16 %v811
    %v1838 = vunpack.c.l.b16 %v812
    %v1839 = vunpack.c.h.b16 %v812
    %v1840 = vunpack.c.l.b16 %v813
    %v1841 = vunpack.c.h.b16 %v813
    %v1842 = vunpack.c.l.b16 %v814
    %v1843 = vunpack.c.h.b16 %v814
    %v1844 = vunpack.c.l.b16 %v815
    %v1845 = vunpack.c.h.b16 %v815
    %v1846 = vunpack.c.l.b16 %v816
    %v1847 = vunpack.c.h.b16 %v816
    %v1848 = vunpack.c.l.b16 %v817
    %v1849 = vunpack.c.h.b16 %v817
    %v1850 = vunpack.c.l.b16 %v818
    %v1851 = vunpack.c.h.b16 %v818
    %v1852 = vunpack.c.l.b16 %v819
    %v1853 = vunpack.c.h.b16 %v819
    %v1854 = vunpack.c.l.b16 %v820
    %v1855 = vunpack.c.h.b16 %v820
    %v1856 = vunpack.c.l.b16 %v821
    %v1857 = vunpack.c.h.b16 %v821
    %v1858 = vunpack.c.l.b16 %v822
    %v1859 = vunpack.c.h.b16 %v822
    %v1860 = vunpack.c.l.b16 %v823
    %v1861 = vunpack.c.h.b16 %v823
    %v1862 = vunpack.c.l.b16 %v824
    %v1863 = vunpack.c.h.b16 %v824
    %v1864 = vunpack.c.l.b16 %v825
    %v1865 = vunpack.c.h.b16 %v825
    %v1866 = vunpack.c.l.b16 %v826
    %v1867 = vunpack.c.h.b16 %v826
    %v1868 = vunpack.c.l.b16 %v827
    %v1869 = vunpack.c.h.b16 %v827
    %v1870 = vunpack.c.l.b16 %v828
    %v1871 = vunpack.c.h.b16 %v828
    %v1872 = vunpack.c.l.b16 %v829
    %v1873 = vunpack.c.h.b16 %v829
    %v1874 = vunpack.c.l.b16 %v830
    %v1875 = vunpack.c.h.b16 %v830
    %v1876 = vunpack.c.l.b16 %v831
    %v1877 = vunpack.c.h.b16 %v831
    %v1878 = vunpack.c.l.b16 %v832
    %v1879 = vunpack.c.h.b16 %v832
    %v1880 = vunpack.c.l.b16 %v833
    %v1881 = vunpack.c.h.b16 %v833
    %v1882 = vunpack.c.l.b16 %v834
    %v1883 = vunpack.c.h.b16 %v834
    %v1884 = vunpack.c.l.b16 %v835
    %v1885 = vunpack.c.h.b16 %v835
    %v1886 = vunpack.c.l.b16 %v836
    %v1887 = vunpack.c.h.b16 %v836
    %v1888 = vunpack.c.l.b16 %v837
    %v1889 = vunpack.c.h.b16 %v837
    %v1890 = vunpack.c.l.b16 %v838
    %v1891 = vunpack.c.h.b16 %v838
    %v1892 = vunpack.c.l.b16 %v839
    %v1893 = vunpack.c.h.b16 %v839
    %v1894 = vunpack.c.l.b16 %v840
    %v1895 = vunpack.c.h.b16 %v840
    %v1896 = vunpack.c.l.b16 %v841
    %v1897 = vunpack.c.h.b16 %v841
    %v1898 = vunpack.c.l.b16 %v842
    %v1899 = vunpack.c.h.b16 %v842
    %v1900 = vunpack.c.l.b16 %v843
    %v1901 = vunpack.c.h.b16 %v843
    %v1902 = vunpack.c.l.b16 %v844
    %v1903 = vunpack.c.h.b16 %v844
    %v1904 = vunpack.c.l.b16 %v845
    %v1905 = vunpack.c.h.b16 %v845
    %v1906 = vunpack.c.l.b16 %v846
    %v1907 = vunpack.c.h.b16 %v846
    %v1908 = vunpack.c.l.b16 %v847
    %v1909 = vunpack.c.h.b16 %v847
    %v1910 = vunpack.c.l.b16 %v848
    %v1911 = vunpack.c.h.b16 %v848
    %v1912 = vunpack.c.l.b16 %v849
    %v1913 = vunpack.c.h.b16 %v849
    %v1914 = vunpack.c.l.b16 %v850
    %v1915 = vunpack.c.h.b16 %v850
    %v1916 = vunpack.c.l.b16 %v851
    %v1917 = vunpack.c.h.b16 %v851
    %v1918 = vunpack.c.l.b16 %v852
    %v1919 = vunpack.c.h.b16 %v852
    %v1920 = vunpack.c.l.b16 %v853
    %v1921 = vunpack.c.h.b16 %v853
    %v1922 = vunpack.c.l.b16 %v854
    %v1923 = vunpack.c.h.b16 %v854
    %v1924 = vunpack.c.l.b16 %v855
    %v1925 = vunpack.c.h.b16 %v855
    %v1926 = vunpack.c.l.b16 %v856
    %v1927 = vunpack.c.h.b16 %v856
    %v1928 = vunpack.c.l.b16 %v857
    %v1929 = vunpack.c.h.b16 %v857
    %v1930 = vunpack.c.l.b16 %v858
    %v1931 = vunpack.c.h.b16 %v858
    %v1932 = vunpack.c.l.b16 %v859
    %v1933 = vunpack.c.h.b16 %v859
    %v1934 = vunpack.c.l.b16 %v860
    %v1935 = vunpack.c.h.b16 %v860
    %v1936 = vunpack.c.l.b16 %v861
    %v1937 = vunpack.c.h.b16 %v861
    %v1938 = vunpack.c.l.b16 %v862
    %v1939 = vunpack.c.h.b16 %v862
    %v1940 = vunpack.c.l.b16 %v863
    %v1941 = vunpack.c.h.b16 %v863
    %v1942 = vunpack.c.l.b16 %v864
    %v1943 = vunpack.c.h.b16 %v864
    %v1944 = vunpack.c.l.b16 %v865
    %v1945 = vunpack.c.h.b16 %v865
    %v1946 = vunpack.c.l.b16 %v866
    %v1947 = vunpack.c.h.b16 %v866
    %v1948 = vunpack.c.l.b16 %v867
    %v1949 = vunpack.c.h.b16 %v867
    %v1950 = vunpack.c.l.b16 %v868
    %v1951 = vunpack.c.h.b16 %v868
    %v1952 = vunpack.c.l.b16 %v869
    %v1953 = vunpack.c.h.b16 %v869
    %v1954 = vunpack.c.l.b16 %v870
    %v1955 = vunpack.c.h.b16 %v870
    %v1956 = vunpack.c.l.b16 %v871
    %v1957 = vunpack.c.h.b16 %v871
    %v1958 = vunpack.c.l.b16 %v872
    %v1959 = vunpack.c.h.b16 %v872
    %v1960 = vunpack.c.l.b16 %v873
    %v1961 = vunpack.c.h.b16 %v873
    %v1962 = vunpack.c.l.b16 %v874
    %v1963 = vunpack.c.h.b16 %v874
    %v1964 = vunpack.c.l.b16 %v875
    %v1965 = vunpack.c.h.b16 %v875
    %v1966 = vunpack.c.l.b16 %v876
    %v1967 = vunpack.c.h.b16 %v876
    %v1968 = vunpack.c.l.b16 %v877
    %v1969 = vunpack.c.h.b16 %v877
    %v1970 = vunpack.c.l.b16 %v878
    %v1971 = vunpack.c.h.b16 %v878
    %v1972 = vunpack.c.l.b16 %v879
    %v1973 = vunpack.c.h.b16 %v879
    %v1974 = vunpack.c.l.b16 %v880
    %v1975 = vunpack.c.h.b16 %v880
    %v1976 = vunpack.c.l.b16 %v881
    %v1977 = vunpack.c.h.b16 %v881
    %v1978 = vunpack.c.l.b16 %v882
    %v1979 = vunpack.c.h.b16 %v882
    %v1980 = vunpack.c.l.b16 %v883
    %v1981 = vunpack.c.h.b16 %v883
    %v1982 = vunpack.c.l.b16 %v884
    %v1983 = vunpack.c.h.b16 %v884
    %v1984 = vunpack.c.l.b16 %v885
    %v1985 = vunpack.c.h.b16 %v885
    %v1986 = vunpack.c.l.b16 %v886
    %v1987 = vunpack.c.h.b16 %v886
    %v1988 = vunpack.c.l.b16 %v887
    %v1989 = vunpack.c.h.b16 %v887
    %v1990 = vunpack.c.l.b16 %v888
    %v1991 = vunpack.c.h.b16 %v888
    %v1992 = vunpack.c.l.b16 %v889
    %v1993 = vunpack.c.h.b16 %v889
    %v1994 = vunpack.c.l.b16 %v890
    %v1995 = vunpack.c.h.b16 %v890
    %v1996 = vunpack.c.l.b16 %v891
    %v1997 = vunpack.c.h.b16 %v891
    %v1998 = vunpack.c.l.b16 %v892
    %v1999 = vunpack.c.h.b16 %v892
    %v2000 = vunpack.c.l.b16 %v893
    %v2001 = vunpack.c.h.b16 %v893
    %v2002 = vunpack.c.l.b16 %v894
    %v2003 = vunpack.c.h.b16 %v894
    %v2004 = vunpack.c.l.b16 %v895
    %v2005 = vunpack.c.h.b16 %v895
    %v2006 = vunpack.c.l.b16 %v896
    %v2007 = vunpack.c.h.b16 %v896
    %v2008 = vunpack.c.l.b16 %v897
    %v2009 = vunpack.c.h.b16 %v897
    %v2010 = vunpack.c.l.b16 %v898
    %v2011 = vunpack.c.h.b16 %v898
    %v2012 = vunpack.c.l.b16 %v899
    %v2013 = vunpack.c.h.b16 %v899
    %v2014 = vunpack.c.l.b16 %v900
    %v2015 = vunpack.c.h.b16 %v900
    %v2016 = vunpack.c.l.b16 %v901
    %v2017 = vunpack.c.h.b16 %v901
    %v2018 = vunpack.c.l.b16 %v902
    %v2019 = vunpack.c.h.b16 %v902
    %v2020 = vunpack.c.l.b16 %v903
    %v2021 = vunpack.c.h.b16 %v903
    %v2022 = vunpack.c.l.b16 %v904
    %v2023 = vunpack.c.h.b16 %v904
    %v2024 = vunpack.c.l.b16 %v905
    %v2025 = vunpack.c.h.b16 %v905
    %v2026 = vunpack.c.l.b16 %v906
    %v2027 = vunpack.c.h.b16 %v906
    %v2028 = vunpack.c.l.b16 %v907
    %v2029 = vunpack.c.h.b16 %v907
    %v2030 = vunpack.c.l.b16 %v908
    %v2031 = vunpack.c.h.b16 %v908
    %v2032 = vunpack.c.l.b16 %v909
    %v2033 = vunpack.c.h.b16 %v909
    %v2034 = vunpack.c.l.b16 %v910
    %v2035 = vunpack.c.h.b16 %v910
    %v2036 = vunpack.c.l.b16 %v911
    %v2037 = vunpack.c.h.b16 %v911
    %v2038 = vunpack.c.l.b16 %v912
    %v2039 = vunpack.c.h.b16 %v912
    %v2040 = vunpack.c.l.b16 %v913
    %v2041 = vunpack.c.h.b16 %v913
    %v2042 = vunpack.c.l.b16 %v914
    %v2043 = vunpack.c.h.b16 %v914
    %v2044 = vunpack.c.l.b16 %v915
    %v2045 = vunpack.c.h.b16 %v915
    %v2046 = vunpack.c.l.b16 %v916
    %v2047 = vunpack.c.h.b16 %v916
    %v2048 = vunpack.c.l.b16 %v917
    %v2049 = vunpack.c.h.b16 %v917
    %v2050 = vunpack.c.l.b16 %v918
    %v2051 = vunpack.c.h.b16 %v918
    %v2052 = vunpack.c.l.b16 %v919
    %v2053 = vunpack.c.h.b16 %v919
    %v2054 = vunpack.c.l.b16 %v920
    %v2055 = vunpack.c.h.b16 %v920
    %v2056 = vunpack.c.l.b16 %v921
    %v2057 = vunpack.c.h.b16 %v921
    %v2058 = vunpack.c.l.b16 %v922
    %v2059 = vunpack.c.h.b16 %v922
    %v2060 = vunpack.c.l.b16 %v923
    %v2061 = vunpack.c.h.b16 %v923
    %v2062 = vunpack.c.l.b16 %v924
    %v2063 = vunpack.c.h.b16 %v924
    %v2064 = vunpack.c.l.b16 %v925
    %v2065 = vunpack.c.h.b16 %v925
    %v2066 = vunpack.c.l.b16 %v926
    %v2067 = vunpack.c.h.b16 %v926
    %v2068 = vunpack.c.l.b16 %v927
    %v2069 = vunpack.c.h.b16 %v927
    %v2070 = vunpack.c.l.b16 %v928
    %v2071 = vunpack.c.h.b16 %v928
    %v2072 = vunpack.c.l.b16 %v929
    %v2073 = vunpack.c.h.b16 %v929
    %v2074 = vunpack.c.l.b16 %v930
    %v2075 = vunpack.c.h.b16 %v930
    %v2076 = vunpack.c.l.b16 %v931
    %v2077 = vunpack.c.h.b16 %v931
    %v2078 = vunpack.c.l.b16 %v932
    %v2079 = vunpack.c.h.b16 %v932
    %v2080 = vunpack.c.l.b16 %v933
    %v2081 = vunpack.c.h.b16 %v933
    %v2082 = vunpack.c.l.b16 %v934
    %v2083 = vunpack.c.h.b16 %v934
    %v2084 = vunpack.c.l.b16 %v935
    %v2085 = vunpack.c.h.b16 %v935
    %v2086 = vunpack.c.l.b16 %v936
    %v2087 = vunpack.c.h.b16 %v936
    %v2088 = vunpack.c.l.b16 %v937
    %v2089 = vunpack.c.h.b16 %v937
    %v2090 = vunpack.c.l.b16 %v938
    %v2091 = vunpack.c.h.b16 %v938
    %v2092 = vunpack.c.l.b16 %v939
    %v2093 = vunpack.c.h.b16 %v939
    %v2094 = vunpack.c.l.b16 %v940
    %v2095 = vunpack.c.h.b16 %v940
    %v2096 = vunpack.c.l.b16 %v941
    %v2097 = vunpack.c.h.b16 %v941
    %v2098 = vunpack.c.l.b16 %v942
    %v2099 = vunpack.c.h.b16 %v942
    %v2100 = vunpack.c.l.b16 %v943
    %v2101 = vunpack.c.h.b16 %v943
    %v2102 = vunpack.c.l.b16 %v944
    %v2103 = vunpack.c.h.b16 %v944
    %v2104 = vunpack.c.l.b16 %v945
    %v2105 = vunpack.c.h.b16 %v945
    %v2106 = vunpack.c.l.b16 %v946
    %v2107 = vunpack.c.h.b16 %v946
    %v2108 = vunpack.c.l.b16 %v947
    %v2109 = vunpack.c.h.b16 %v947
    %v2110 = vunpack.c.l.b16 %v948
    %v2111 = vunpack.c.h.b16 %v948
    %v2112 = vunpack.c.l.b16 %v949
    %v2113 = vunpack.c.h.b16 %v949
    %v2114 = vunpack.c.l.b16 %v950
    %v2115 = vunpack.c.h.b16 %v950
    %v2116 = vunpack.c.l.b16 %v951
    %v2117 = vunpack.c.h.b16 %v951
    %v2118 = vunpack.c.l.b16 %v952
    %v2119 = vunpack.c.h.b16 %v952
    %v2120 = vunpack.c.l.b16 %v953
    %v2121 = vunpack.c.h.b16 %v953
    %v2122 = vunpack.c.l.b16 %v954
    %v2123 = vunpack.c.h.b16 %v954
    %v2124 = vunpack.c.l.b16 %v955
    %v2125 = vunpack.c.h.b16 %v955
    %v2126 = vunpack.c.l.b16 %v956
    %v2127 = vunpack.c.h.b16 %v956
    %v2128 = vunpack.c.l.b16 %v957
    %v2129 = vunpack.c.h.b16 %v957
    %v2130 = vunpack.c.l.b16 %v958
    %v2131 = vunpack.c.h.b16 %v958
    %v2132 = vunpack.c.l.b16 %v959
    %v2133 = vunpack.c.h.b16 %v959
    %v2134 = vunpack.c.l.b16 %v960
    %v2135 = vunpack.c.h.b16 %v960
    %v2136 = vunpack.c.l.b16 %v961
    %v2137 = vunpack.c.h.b16 %v961
    %v2138 = vunpack.c.l.b16 %v962
    %v2139 = vunpack.c.h.b16 %v962
    %v2140 = vunpack.c.l.b16 %v963
    %v2141 = vunpack.c.h.b16 %v963
    %v2142 = vunpack.c.l.b16 %v964
    %v2143 = vunpack.c.h.b16 %v964
    %v2144 = vunpack.c.l.b16 %v965
    %v2145 = vunpack.c.h.b16 %v965
    %v2146 = vunpack.c.l.b16 %v966
    %v2147 = vunpack.c.h.b16 %v966
    %v2148 = vunpack.c.l.b16 %v967
    %v2149 = vunpack.c.h.b16 %v967
    %v2150 = vunpack.c.l.b16 %v968
    %v2151 = vunpack.c.h.b16 %v968
    %v2152 = vunpack.c.l.b16 %v969
    %v2153 = vunpack.c.h.b16 %v969
    %v2154 = vpack.c.b16 %v1392, %v1386
    %v2155 = vpack.c.b16 %v1393, %v1387
    %v2156 = vpack.c.b16 %v1394, %v1388
    %v2157 = vpack.c.b16 %v1395, %v1389
    %v2158 = vpack.c.b16 %v1396, %v1390
    %v2159 = vpack.c.b16 %v1397, %v1391
    %v2160 = vpack.c.b16 %v1404, %v1398
    %v2161 = vpack.c.b16 %v1405, %v1399
    %v2162 = vpack.c.b16 %v1406, %v1400
    %v2163 = vpack.c.b16 %v1407, %v1401
    %v2164 = vpack.c.b16 %v1408, %v1402
    %v2165 = vpack.c.b16 %v1409, %v1403
    %v2166 = vpack.c.b16 %v1416, %v1410
    %v2167 = vpack.c.b16 %v1417, %v1411
    %v2168 = vpack.c.b16 %v1418, %v1412
    %v2169 = vpack.c.b16 %v1419, %v1413
    %v2170 = vpack.c.b16 %v1420, %v1414
    %v2171 = vpack.c.b16 %v1421, %v1415
    %v2172 = vpack.c.b16 %v1428, %v1422
    %v2173 = vpack.c.b16 %v1429, %v1423
    %v2174 = vpack.c.b16 %v1430, %v1424
    %v2175 = vpack.c.b16 %v1431, %v1425
    %v2176 = vpack.c.b16 %v1432, %v1426
    %v2177 = vpack.c.b16 %v1433, %v1427
    %v2178 = vpack.c.b16 %v1440, %v1434
    %v2179 = vpack.c.b16 %v1441, %v1435
    %v2180 = vpack.c.b16 %v1442, %v1436
    %v2181 = vpack.c.b16 %v1443, %v1437
    %v2182 = vpack.c.b16 %v1444, %v1438
    %v2183 = vpack.c.b16 %v1445, %v1439
    %v2184 = vpack.c.b16 %v1452, %v1446
    %v2185 = vpack.c.b16 %v1453, %v1447
    %v2186 = vpack.c.b16 %v1454, %v1448
    %v2187 = vpack.c.b16 %v1455, %v1449
    %v2188 = vpack.c.b16 %v1456, %v1450
    %v2189 = vpack.c.b16 %v1457, %v1451
    %v2190 = vpack.c.b16 %v1464, %v1458
    %v2191 = vpack.c.b16 %v1465, %v1459
    %v2192 = vpack.c.b16 %v1466, %v1460
    %v2193 = vpack.c.b16 %v1467, %v1461
    %v2194 = vpack.c.b16 %v1468, %v1462
    %v2195 = vpack.c.b16 %v1469, %v1463
    %v2196 = vpack.c.b16 %v1476, %v1470
    %v2197 = vpack.c.b16 %v1477, %v1471
    %v2198 = vpack.c.b16 %v1478, %v1472
    %v2199 = vpack.c.b16 %v1479, %v1473
    %v2200 = vpack.c.b16 %v1480, %v1474
    %v2201 = vpack.c.b16 %v1481, %v1475
    %v2202 = vpack.c.b16 %v1488, %v1482
    %v2203 = vpack.c.b16 %v1489, %v1483
    %v2204 = vpack.c.b16 %v1490, %v1484
    %v2205 = vpack.c.b16 %v1491, %v1485
    %v2206 = vpack.c.b16 %v1492, %v1486
    %v2207 = vpack.c.b16 %v1493, %v1487
    %v2208 = vpack.c.b16 %v1500, %v1494
    %v2209 = vpack.c.b16 %v1501, %v1495
    %v2210 = vpack.c.b16 %v1502, %v1496
    %v2211 = vpack.c.b16 %v1503, %v1497
    %v2212 = vpack.c.b16 %v1504, %v1498
    %v2213 = vpack.c.b16 %v1505, %v1499
    %v2214 = vpack.c.b16 %v1512, %v1506
    %v2215 = vpack.c.b16 %v1513, %v1507
    %v2216 = vpack.c.b16 %v1514, %v1508
    %v2217 = vpack.c.b16 %v1515, %v1509
    %v2218 = vpack.c.b16 %v1516, %v1510
    %v2219 = vpack.c.b16 %v1517, %v1511
    %v2220 = vpack.c.b16 %v1524, %v1518
    %v2221 = vpack.c.b16 %v1525, %v1519
    %v2222 = vpack.c.b16 %v1526, %v1520
    %v2223 = vpack.c.b16 %v1527, %v1521
    %v2224 = vpack.c.b16 %v1528, %v1522
    %v2225 = vpack.c.b16 %v1529, %v1523
    %v2226 = vpack.c.b16 %v1536, %v1530
    %v2227 = vpack.c.b16 %v1537, %v1531
    %v2228 = vpack.c.b16 %v1538, %v1532
    %v2229 = vpack.c.b16 %v1539, %v1533
    %v2230 = vpack.c.b16 %v1540, %v1534
    %v2231 = vpack.c.b16 %v1541, %v1535
    %v2232 = vpack.c.b16 %v1548, %v1542
    %v2233 = vpack.c.b16 %v1549, %v1543
    %v2234 = vpack.c.b16 %v1550, %v1544
    %v2235 = vpack.c.b16 %v1551, %v1545
    %v2236 = vpack.c.b16 %v1552, %v1546
    %v2237 = vpack.c.b16 %v1553, %v1547
    %v2238 = vpack.c.b16 %v1560, %v1554
    %v2239 = vpack.c.b16 %v1561, %v1555
    %v2240 = vpack.c.b16 %v1562, %v1556
    %v2241 = vpack.c.b16 %v1563, %v1557
    %v2242 = vpack.c.b16 %v1564, %v1558
    %v2243 = vpack.c.b16 %v1565, %v1559
    %v2244 = vpack.c.b16 %v1572, %v1566
    %v2245 = vpack.c.b16 %v1573, %v1567
    %v2246 = vpack.c.b16 %v1574, %v1568
    %v2247 = vpack.c.b16 %v1575, %v1569
    %v2248 = vpack.c.b16 %v1576, %v1570
    %v2249 = vpack.c.b16 %v1577, %v1571
    %v2250 = vpack.c.b16 %v1584, %v1578
    %v2251 = vpack.c.b16 %v1585, %v1579
    %v2252 = vpack.c.b16 %v1586, %v1580
    %v2253 = vpack.c.b16 %v1587, %v1581
    %v2254 = vpack.c.b16 %v1588, %v1582
    %v2255 = vpack.c.b16 %v1589, %v1583
    %v2256 = vpack.c.b16 %v1596, %v1590
    %v2257 = vpack.c.b16 %v1597, %v1591
    %v2258 = vpack.c.b16 %v1598, %v1592
    %v2259 = vpack.c.b16 %v1599, %v1593
    %v2260 = vpack.c.b16 %v1600, %v1594
    %v2261 = vpack.c.b16 %v1601, %v1595
    %v2262 = vpack.c.b16 %v1608, %v1602
    %v2263 = vpack.c.b16 %v1609, %v1603
    %v2264 = vpack.c.b16 %v1610, %v1604
    %v2265 = vpack.c.b16 %v1611, %v1605
    %v2266 = vpack.c.b16 %v1612, %v1606
    %v2267 = vpack.c.b16 %v1613, %v1607
    %v2268 = vpack.c.b16 %v1620, %v1614
    %v2269 = vpack.c.b16 %v1621, %v1615
    %v2270 = vpack.c.b16 %v1622, %v1616
    %v2271 = vpack.c.b16 %v1623, %v1617
    %v2272 = vpack.c.b16 %v1624, %v1618
    %v2273 = vpack.c.b16 %v1625, %v1619
    %v2274 = vpack.c.b16 %v1632, %v1626
    %v2275 = vpack.c.b16 %v1633, %v1627
    %v2276 = vpack.c.b16 %v1634, %v1628
    %v2277 = vpack.c.b16 %v1635, %v1629
    %v2278 = vpack.c.b16 %v1636, %v1630
    %v2279 = vpack.c.b16 %v1637, %v1631
    %v2280 = vpack.c.b16 %v1644, %v1638
    %v2281 = vpack.c.b16 %v1645, %v1639
    %v2282 = vpack.c.b16 %v1646, %v1640
    %v2283 = vpack.c.b16 %v1647, %v1641
    %v2284 = vpack.c.b16 %v1648, %v1642
    %v2285 = vpack.c.b16 %v1649, %v1643
    %v2286 = vpack.c.b16 %v1656, %v1650
    %v2287 = vpack.c.b16 %v1657, %v1651
    %v2288 = vpack.c.b16 %v1658, %v1652
    %v2289 = vpack.c.b16 %v1659, %v1653
    %v2290 = vpack.c.b16 %v1660, %v1654
    %v2291 = vpack.c.b16 %v1661, %v1655
    %v2292 = vpack.c.b16 %v1668, %v1662
    %v2293 = vpack.c.b16 %v1669, %v1663
    %v2294 = vpack.c.b16 %v1670, %v1664
    %v2295 = vpack.c.b16 %v1671, %v1665
    %v2296 = vpack.c.b16 %v1672, %v1666
    %v2297 = vpack.c.b16 %v1673, %v1667
    %v2298 = vpack.c.b16 %v1680, %v1674
    %v2299 = vpack.c.b16 %v1681, %v1675
    %v2300 = vpack.c.b16 %v1682, %v1676
    %v2301 = vpack.c.b16 %v1683, %v1677
    %v2302 = vpack.c.b16 %v1684, %v1678
    %v2303 = vpack.c.b16 %v1685, %v1679
    %v2304 = vpack.c.b16 %v1692, %v1686
    %v2305 = vpack.c.b16 %v1693, %v1687
    %v2306 = vpack.c.b16 %v1694, %v1688
    %v2307 = vpack.c.b16 %v1695, %v1689
    %v2308 = vpack.c.b16 %v1696, %v1690
    %v2309 = vpack.c.b16 %v1697, %v1691
    %v2310 = vpack.c.b16 %v1704, %v1698
    %v2311 = vpack.c.b16 %v1705, %v1699
    %v2312 = vpack.c.b16 %v1706, %v1700
    %v2313 = vpack.c.b16 %v1707, %v1701
    %v2314 = vpack.c.b16 %v1708, %v1702
    %v2315 = vpack.c.b16 %v1709, %v1703
    %v2316 = vpack.c.b16 %v1716, %v1710
    %v2317 = vpack.c.b16 %v1717, %v1711
    %v2318 = vpack.c.b16 %v1718, %v1712
    %v2319 = vpack.c.b16 %v1719, %v1713
    %v2320 = vpack.c.b16 %v1720, %v1714
    %v2321 = vpack.c.b16 %v1721, %v1715
    %v2322 = vpack.c.b16 %v1728, %v1722
    %v2323 = vpack.c.b16 %v1729, %v1723
    %v2324 = vpack.c.b16 %v1730, %v1724
    %v2325 = vpack.c.b16 %v1731, %v1725
    %v2326 = vpack.c.b16 %v1732, %v1726
    %v2327 = vpack.c.b16 %v1733, %v1727
    %v2328 = vpack.c.b16 %v1740, %v1734
    %v2329 = vpack.c.b16 %v1741, %v1735
    %v2330 = vpack.c.b16 %v1742, %v1736
    %v2331 = vpack.c.b16 %v1743, %v1737
    %v2332 = vpack.c.b16 %v1744, %v1738
    %v2333 = vpack.c.b16 %v1745, %v1739
    %v2334 = vpack.c.b16 %v1752, %v1746
    %v2335 = vpack.c.b16 %v1753, %v1747
    %v2336 = vpack.c.b16 %v1754, %v1748
    %v2337 = vpack.c.b16 %v1755, %v1749
    %v2338 = vpack.c.b16 %v1756, %v1750
    %v2339 = vpack.c.b16 %v1757, %v1751
    %v2340 = vpack.c.b16 %v1764, %v1758
    %v2341 = vpack.c.b16 %v1765, %v1759
    %v2342 = vpack.c.b16 %v1766, %v1760
    %v2343 = vpack.c.b16 %v1767, %v1761
    %v2344 = vpack.c.b16 %v1768, %v1762
    %v2345 = vpack.c.b16 %v1769, %v1763
    %v2346 = vpack.c.b16 %v1776, %v1770
    %v2347 = vpack.c.b16 %v1777, %v1771
    %v2348 = vpack.c.b16 %v1778, %v1772
    %v2349 = vpack.c.b16 %v1779, %v1773
    %v2350 = vpack.c.b16 %v1780, %v1774
    %v2351 = vpack.c.b16 %v1781, %v1775
    %v2352 = vpack.c.b16 %v1788, %v1782
    %v2353 = vpack.c.b16 %v1789, %v1783
    %v2354 = vpack.c.b16 %v1790, %v1784
    %v2355 = vpack.c.b16 %v1791, %v1785
    %v2356 = vpack.c.b16 %v1792, %v1786
    %v2357 = vpack.c.b16 %v1793, %v1787
    %v2358 = vpack.c.b16 %v1800, %v1794
    %v2359 = vpack.c.b16 %v1801, %v1795
    %v2360 = vpack.c.b16 %v1802, %v1796
    %v2361 = vpack.c.b16 %v1803, %v1797
    %v2362 = vpack.c.b16 %v1804, %v1798
    %v2363 = vpack.c.b16 %v1805, %v1799
    %v2364 = vpack.c.b16 %v1812, %v1806
    %v2365 = vpack.c.b16 %v1813, %v1807
    %v2366 = vpack.c.b16 %v1814, %v1808
    %v2367 = vpack.c.b16 %v1815, %v1809
    %v2368 = vpack.c.b16 %v1816, %v1810
    %v2369 = vpack.c.b16 %v1817, %v1811
    %v2370 = vpack.c.b16 %v1824, %v1818
    %v2371 = vpack.c.b16 %v1825, %v1819
    %v2372 = vpack.c.b16 %v1826, %v1820
    %v2373 = vpack.c.b16 %v1827, %v1821
    %v2374 = vpack.c.b16 %v1828, %v1822
    %v2375 = vpack.c.b16 %v1829, %v1823
    %v2376 = vpack.c.b16 %v1836, %v1830
    %v2377 = vpack.c.b16 %v1837, %v1831
    %v2378 = vpack.c.b16 %v1838, %v1832
    %v2379 = vpack.c.b16 %v1839, %v1833
    %v2380 = vpack.c.b16 %v1840, %v1834
    %v2381 = vpack.c.b16 %v1841, %v1835
    %v2382 = vpack.c.b16 %v1848, %v1842
    %v2383 = vpack.c.b16 %v1849, %v1843
    %v2384 = vpack.c.b16 %v1850, %v1844
    %v2385 = vpack.c.b16 %v1851, %v1845
    %v2386 = vpack.c.b16 %v1852, %v1846
    %v2387 = vpack.c.b16 %v1853, %v1847
    %v2388 = vpack.c.b16 %v1860, %v1854
    %v2389 = vpack.c.b16 %v1861, %v1855
    %v2390 = vpack.c.b16 %v1862, %v1856
    %v2391 = vpack.c.b16 %v1863, %v1857
    %v2392 = vpack.c.b16 %v1864, %v1858
    %v2393 = vpack.c.b16 %v1865, %v1859
    %v2394 = vpack.c.b16 %v1872, %v1866
    %v2395 = vpack.c.b16 %v1873, %v1867
    %v2396 = vpack.c.b16 %v1874, %v1868
    %v2397 = vpack.c.b16 %v1875, %v1869
    %v2398 = vpack.c.b16 %v1876, %v1870
    %v2399 = vpack.c.b16 %v1877, %v1871
    %v2400 = vpack.c.b16 %v1884, %v1878
    %v2401 = vpack.c.b16 %v1885, %v1879
    %v2402 = vpack.c.b16 %v1886, %v1880
    %v2403 = vpack.c.b16 %v1887, %v1881
    %v2404 = vpack.c.b16 %v1888, %v1882
    %v2405 = vpack.c.b16 %v1889, %v1883
    %v2406 = vpack.c.b16 %v1896, %v1890
    %v2407 = vpack.c.b16 %v1897, %v1891
    %v2408 = vpack.c.b16 %v1898, %v1892
    %v2409 = vpack.c.b16 %v1899, %v1893
    %v2410 = vpack.c.b16 %v1900, %v1894
    %v2411 = vpack.c.b16 %v1901, %v1895
    %v2412 = vpack.c.b16 %v1908, %v1902
    %v2413 = vpack.c.b16 %v1909, %v1903
    %v2414 = vpack.c.b16 %v1910, %v1904
    %v2415 = vpack.c.b16 %v1911, %v1905
    %v2416 = vpack.c.b16 %v1912, %v1906
    %v2417 = vpack.c.b16 %v1913, %v1907
    %v2418 = vpack.c.b16 %v1920, %v1914
    %v2419 = vpack.c.b16 %v1921, %v1915
    %v2420 = vpack.c.b16 %v1922, %v1916
    %v2421 = vpack.c.b16 %v1923, %v1917
    %v2422 = vpack.c.b16 %v1924, %v1918
    %v2423 = vpack.c.b16 %v1925, %v1919
    %v2424 = vpack.c.b16 %v1932, %v1926
    %v2425 = vpack.c.b16 %v1933, %v1927
    %v2426 = vpack.c.b16 %v1934, %v1928
    %v2427 = vpack.c.b16 %v1935, %v1929
    %v2428 = vpack.c.b16 %v1936, %v1930
    %v2429 = vpack.c.b16 %v1937, %v1931
    %v2430 = vpack.c.b16 %v1944, %v1938
    %v2431 = vpack.c.b16 %v1945, %v1939
    %v2432 = vpack.c.b16 %v1946, %v1940
    %v2433 = vpack.c.b16 %v1947, %v1941
    %v2434 = vpack.c.b16 %v1948, %v1942
    %v2435 = vpack.c.b16 %v1949, %v1943
    %v2436 = vpack.c.b16 %v1956, %v1950
    %v2437 = vpack.c.b16 %v1957, %v1951
    %v2438 = vpack.c.b16 %v1958, %v1952
    %v2439 = vpack.c.b16 %v1959, %v1953
    %v2440 = vpack.c.b16 %v1960, %v1954
    %v2441 = vpack.c.b16 %v1961, %v1955
    %v2442 = vpack.c.b16 %v1968, %v1962
    %v2443 = vpack.c.b16 %v1969, %v1963
    %v2444 = vpack.c.b16 %v1970, %v1964
    %v2445 = vpack.c.b16 %v1971, %v1965
    %v2446 = vpack.c.b16 %v1972, %v1966
    %v2447 = vpack.c.b16 %v1973, %v1967
    %v2448 = vpack.c.b16 %v1980, %v1974
    %v2449 = vpack.c.b16 %v1981, %v1975
    %v2450 = vpack.c.b16 %v1982, %v1976
    %v2451 = vpack.c.b16 %v1983, %v1977
    %v2452 = vpack.c.b16 %v1984, %v1978
    %v2453 = vpack.c.b16 %v1985, %v1979
    %v2454 = vpack.c.b16 %v1992, %v1986
    %v2455 = vpack.c.b16 %v1993, %v1987
    %v2456 = vpack.c.b16 %v1994, %v1988
    %v2457 = vpack.c.b16 %v1995, %v1989
    %v2458 = vpack.c.b16 %v1996, %v1990
    %v2459 = vpack.c.b16 %v1997, %v1991
    %v2460 = vpack.c.b16 %v2004, %v1998
    %v2461 = vpack.c.b16 %v2005, %v1999
    %v2462 = vpack.c.b16 %v2006, %v2000
    %v2463 = vpack.c.b16 %v2007, %v2001
    %v2464 = vpack.c.b16 %v2008, %v2002
    %v2465 = vpack.c.b16 %v2009, %v2003
    %v2466 = vpack.c.b16 %v2016, %v2010
    %v2467 = vpack.c.b16 %v2017, %v2011
    %v2468 = vpack.c.b16 %v2018, %v2012
    %v2469 = vpack.c.b16 %v2019, %v2013
    %v2470 = vpack.c.b16 %v2020, %v2014
    %v2471 = vpack.c.b16 %v2021, %v2015
    %v2472 = vpack.c.b16 %v2028, %v2022
    %v2473 = vpack.c.b16 %v2029, %v2023
    %v2474 = vpack.c.b16 %v2030, %v2024
    %v2475 = vpack.c.b16 %v2031, %v2025
    %v2476 = vpack.c.b16 %v2032, %v2026
    %v2477 = vpack.c.b16 %v2033, %v2027
    %v2478 = vpack.c.b16 %v2040, %v2034
    %v2479 = vpack.c.b16 %v2041, %v2035
    %v2480 = vpack.c.b16 %v2042, %v2036
    %v2481 = vpack.c.b16 %v2043, %v2037
    %v2482 = vpack.c.b16 %v2044, %v2038
    %v2483 = vpack.c.b16 %v2045, %v2039
    %v2484 = vpack.c.b16 %v2052, %v2046
    %v2485 = vpack.c.b16 %v2053, %v2047
    %v2486 = vpack.c.b16 %v2054, %v2048
    %v2487 = vpack.c.b16 %v2055, %v2049
    %v2488 = vpack.c.b16 %v2056, %v2050
    %v2489 = vpack.c.b16 %v2057, %v2051
    %v2490 = vpack.c.b16 %v2064, %v2058
    %v2491 = vpack.c.b16 %v2065, %v2059
    %v2492 = vpack.c.b16 %v2066, %v2060
    %v2493 = vpack.c.b16 %v2067, %v2061
    %v2494 = vpack.c.b16 %v2068, %v2062
    %v2495 = vpack.c.b16 %v2069, %v2063
    %v2496 = vpack.c.b16 %v2076, %v2070
    %v2497 = vpack.c.b16 %v2077, %v2071
    %v2498 = vpack.c.b16 %v2078, %v2072
    %v2499 = vpack.c.b16 %v2079, %v2073
    %v2500 = vpack.c.b16 %v2080, %v2074
    %v2501 = vpack.c.b16 %v2081, %v2075
    %v2502 = vpack.c.b16 %v2088, %v2082
    %v2503 = vpack.c.b16 %v2089, %v2083
    %v2504 = vpack.c.b16 %v2090, %v2084
    %v2505 = vpack.c.b16 %v2091, %v2085
    %v2506 = vpack.c.b16 %v2092, %v2086
    %v2507 = vpack.c.b16 %v2093, %v2087
    %v2508 = vpack.c.b16 %v2100, %v2094
    %v2509 = vpack.c.b16 %v2101, %v2095
    %v2510 = vpack.c.b16 %v2102, %v2096
    %v2511 = vpack.c.b16 %v2103, %v2097
    %v2512 = vpack.c.b16 %v2104, %v2098
    %v2513 = vpack.c.b16 %v2105, %v2099
    %v2514 = vpack.c.b16 %v2112, %v2106
    %v2515 = vpack.c.b16 %v2113, %v2107
    %v2516 = vpack.c.b16 %v2114, %v2108
    %v2517 = vpack.c.b16 %v2115, %v2109
    %v2518 = vpack.c.b16 %v2116, %v2110
    %v2519 = vpack.c.b16 %v2117, %v2111
    %v2520 = vpack.c.b16 %v2124, %v2118
    %v2521 = vpack.c.b16 %v2125, %v2119
    %v2522 = vpack.c.b16 %v2126, %v2120
    %v2523 = vpack.c.b16 %v2127, %v2121
    %v2524 = vpack.c.b16 %v2128, %v2122
    %v2525 = vpack.c.b16 %v2129, %v2123
    %v2526 = vpack.c.b16 %v2136, %v2130
    %v2527 = vpack.c.b16 %v2137, %v2131
    %v2528 = vpack.c.b16 %v2138, %v2132
    %v2529 = vpack.c.b16 %v2139, %v2133
    %v2530 = vpack.c.b16 %v2140, %v2134
    %v2531 = vpack.c.b16 %v2141, %v2135
    %v2532 = vpack.c.b16 %v2148, %v2142
    %v2533 = vpack.c.b16 %v2149, %v2143
    %v2534 = vpack.c.b16 %v2150, %v2144
    %v2535 = vpack.c.b16 %v2151, %v2145
    %v2536 = vpack.c.b16 %v2152, %v2146
    %v2537 = vpack.c.b16 %v2153, %v2147
    %2922 = vmatprep.subr.bf16.mxu0 %v2197
    %2923 = vmatpush1.bf16.msra.mxu0 %v2196
    %2924 = vmatprep.subr.bf16.mxu0 %v2191
    %2925 = vmatpush1.bf16.msra.mxu0 %v2190
    %2926 = vmatprep.subr.bf16.mxu0 %v2185
    %2927 = vmatpush1.bf16.msra.mxu0 %v2184
    %2928 = vmatprep.subr.bf16.mxu0 %v2179
    %2929 = vmatpush1.bf16.msra.mxu0 %v2178
    %2930 = vmatprep.subr.bf16.mxu0 %v2173
    %2931 = vmatpush1.bf16.msra.mxu0 %v2172
    %2932 = vmatprep.subr.bf16.mxu0 %v2167
    %2933 = vmatpush1.bf16.msra.mxu0 %v2166
    %2934 = vmatprep.subr.bf16.mxu0 %v2161
    %2935 = vmatpush1.bf16.msra.mxu0 %v2160
    %2936 = vmatprep.subr.bf16.mxu0 %v2155
    %2937 = vmatpush1.bf16.msra.mxu0 %v2154
    %2938 = vmatprep.subr.bf16.mxu0 %v2245
    %2939 = vmatpush2.bf16.msra.mxu0 %v2244
    %2940 = vmatprep.subr.bf16.mxu0 %v2239
    %2941 = vmatpush2.bf16.msra.mxu0 %v2238
    %2942 = vmatprep.subr.bf16.mxu0 %v2233
    %2943 = vmatpush2.bf16.msra.mxu0 %v2232
    %2944 = vmatprep.subr.bf16.mxu0 %v2227
    %2945 = vmatpush2.bf16.msra.mxu0 %v2226
    %2946 = vmatprep.subr.bf16.mxu0 %v2221
    %2947 = vmatpush2.bf16.msra.mxu0 %v2220
    %2948 = vmatprep.subr.bf16.mxu0 %v2215
    %2949 = vmatpush2.bf16.msra.mxu0 %v2214
    %2950 = vmatprep.subr.bf16.mxu0 %v2209
    %2951 = vmatpush2.bf16.msra.mxu0 %v2208
    %2952 = vmatprep.subr.bf16.mxu0 %v2203
    %2953 = vmatpush2.bf16.msra.mxu0 %v2202
    %2954 = vmatprep.mubr.bf16.mxu0 %v579
    %2955 = vmatmul.mubr.bf16.gmra.mxu0 %v578
    %v2956 = vpop.f32.mrf.mxu0
    %v2957 = vadd.f32 %v975, %v2956
    %v2958 = vpop.f32.mrf.mxu0
    %v2959 = vadd.f32 %v979, %v2958
    %v2960 = vpop.f32.mrf.mxu0
    %v2961 = vadd.f32 %v975, %v2960
    %v2962 = vpop.f32.mrf.mxu0
    %v2963 = vadd.f32 %v979, %v2962
    %2964 = vdwg.mxu0
    %2965 = vmatprep.subr.bf16.mxu0 %v2293
    %2966 = vmatpush1.bf16.msra.mxu0 %v2292
    %2967 = vmatprep.subr.bf16.mxu0 %v2287
    %2968 = vmatpush1.bf16.msra.mxu0 %v2286
    %2969 = vmatprep.subr.bf16.mxu0 %v2281
    %2970 = vmatpush1.bf16.msra.mxu0 %v2280
    %2971 = vmatprep.subr.bf16.mxu0 %v2275
    %2972 = vmatpush1.bf16.msra.mxu0 %v2274
    %2973 = vmatprep.subr.bf16.mxu0 %v2269
    %2974 = vmatpush1.bf16.msra.mxu0 %v2268
    %2975 = vmatprep.subr.bf16.mxu0 %v2263
    %2976 = vmatpush1.bf16.msra.mxu0 %v2262
    %2977 = vmatprep.subr.bf16.mxu0 %v2257
    %2978 = vmatpush1.bf16.msra.mxu0 %v2256
    %2979 = vmatprep.subr.bf16.mxu0 %v2251
    %2980 = vmatpush1.bf16.msra.mxu0 %v2250
    %2981 = vmatprep.subr.bf16.mxu0 %v2341
    %2982 = vmatpush2.bf16.msra.mxu0 %v2340
    %2983 = vmatprep.subr.bf16.mxu0 %v2335
    %2984 = vmatpush2.bf16.msra.mxu0 %v2334
    %2985 = vmatprep.subr.bf16.mxu0 %v2329
    %2986 = vmatpush2.bf16.msra.mxu0 %v2328
    %2987 = vmatprep.subr.bf16.mxu0 %v2323
    %2988 = vmatpush2.bf16.msra.mxu0 %v2322
    %2989 = vmatprep.subr.bf16.mxu0 %v2317
    %2990 = vmatpush2.bf16.msra.mxu0 %v2316
    %2991 = vmatprep.subr.bf16.mxu0 %v2311
    %2992 = vmatpush2.bf16.msra.mxu0 %v2310
    %2993 = vmatprep.subr.bf16.mxu0 %v2305
    %2994 = vmatpush2.bf16.msra.mxu0 %v2304
    %2995 = vmatprep.subr.bf16.mxu0 %v2299
    %2996 = vmatpush2.bf16.msra.mxu0 %v2298
    %2997 = vmatprep.mubr.bf16.mxu0 %v581
    %2998 = vmatmul.mubr.bf16.gmra.mxu0 %v580
    %v2999 = vpop.f32.mrf.mxu0
    %v3000 = vadd.f32 %v2957, %v2999
    %v3001 = vpop.f32.mrf.mxu0
    %v3002 = vadd.f32 %v2959, %v3001
    %v3003 = vpop.f32.mrf.mxu0
    %v3004 = vadd.f32 %v2961, %v3003
    %v3005 = vpop.f32.mrf.mxu0
    %v3006 = vadd.f32 %v2963, %v3005
    %3007 = vdwg.mxu0
    %3008 = vmatprep.subr.bf16.mxu0 %v2389
    %3009 = vmatpush1.bf16.msra.mxu0 %v2388
    %3010 = vmatprep.subr.bf16.mxu0 %v2383
    %3011 = vmatpush1.bf16.msra.mxu0 %v2382
    %3012 = vmatprep.subr.bf16.mxu0 %v2377
    %3013 = vmatpush1.bf16.msra.mxu0 %v2376
    %3014 = vmatprep.subr.bf16.mxu0 %v2371
    %3015 = vmatpush1.bf16.msra.mxu0 %v2370
    %3016 = vmatprep.subr.bf16.mxu0 %v2365
    %3017 = vmatpush1.bf16.msra.mxu0 %v2364
    %3018 = vmatprep.subr.bf16.mxu0 %v2359
    %3019 = vmatpush1.bf16.msra.mxu0 %v2358
    %3020 = vmatprep.subr.bf16.mxu0 %v2353
    %3021 = vmatpush1.bf16.msra.mxu0 %v2352
    %3022 = vmatprep.subr.bf16.mxu0 %v2347
    %3023 = vmatpush1.bf16.msra.mxu0 %v2346
    %3024 = vmatprep.subr.bf16.mxu0 %v2437
    %3025 = vmatpush2.bf16.msra.mxu0 %v2436
    %3026 = vmatprep.subr.bf16.mxu0 %v2431
    %3027 = vmatpush2.bf16.msra.mxu0 %v2430
    %3028 = vmatprep.subr.bf16.mxu0 %v2425
    %3029 = vmatpush2.bf16.msra.mxu0 %v2424
    %3030 = vmatprep.subr.bf16.mxu0 %v2419
    %3031 = vmatpush2.bf16.msra.mxu0 %v2418
    %3032 = vmatprep.subr.bf16.mxu0 %v2413
    %3033 = vmatpush2.bf16.msra.mxu0 %v2412
    %3034 = vmatprep.subr.bf16.mxu0 %v2407
    %3035 = vmatpush2.bf16.msra.mxu0 %v2406
    %3036 = vmatprep.subr.bf16.mxu0 %v2401
    %3037 = vmatpush2.bf16.msra.mxu0 %v2400
    %3038 = vmatprep.subr.bf16.mxu0 %v2395
    %3039 = vmatpush2.bf16.msra.mxu0 %v2394
    %3040 = vmatprep.mubr.bf16.mxu0 %v583
    %3041 = vmatmul.mubr.bf16.gmra.mxu0 %v582
    %v3042 = vpop.f32.mrf.mxu0
    %v3043 = vadd.f32 %v3000, %v3042
    %v3044 = vpop.f32.mrf.mxu0
    %v3045 = vadd.f32 %v3002, %v3044
    %v3046 = vpop.f32.mrf.mxu0
    %v3047 = vadd.f32 %v3004, %v3046
    %v3048 = vpop.f32.mrf.mxu0
    %v3049 = vadd.f32 %v3006, %v3048
    %3050 = vdwg.mxu0
    %3051 = vmatprep.subr.bf16.mxu0 %v2485
    %3052 = vmatpush1.bf16.msra.mxu0 %v2484
    %3053 = vmatprep.subr.bf16.mxu0 %v2479
    %3054 = vmatpush1.bf16.msra.mxu0 %v2478
    %3055 = vmatprep.subr.bf16.mxu0 %v2473
    %3056 = vmatpush1.bf16.msra.mxu0 %v2472
    %3057 = vmatprep.subr.bf16.mxu0 %v2467
    %3058 = vmatpush1.bf16.msra.mxu0 %v2466
    %3059 = vmatprep.subr.bf16.mxu0 %v2461
    %3060 = vmatpush1.bf16.msra.mxu0 %v2460
    %3061 = vmatprep.subr.bf16.mxu0 %v2455
    %3062 = vmatpush1.bf16.msra.mxu0 %v2454
    %3063 = vmatprep.subr.bf16.mxu0 %v2449
    %3064 = vmatpush1.bf16.msra.mxu0 %v2448
    %3065 = vmatprep.subr.bf16.mxu0 %v2443
    %3066 = vmatpush1.bf16.msra.mxu0 %v2442
    %3067 = vmatprep.subr.bf16.mxu0 %v2533
    %3068 = vmatpush2.bf16.msra.mxu0 %v2532
    %3069 = vmatprep.subr.bf16.mxu0 %v2527
    %3070 = vmatpush2.bf16.msra.mxu0 %v2526
    %3071 = vmatprep.subr.bf16.mxu0 %v2521
    %3072 = vmatpush2.bf16.msra.mxu0 %v2520
    %3073 = vmatprep.subr.bf16.mxu0 %v2515
    %3074 = vmatpush2.bf16.msra.mxu0 %v2514
    %3075 = vmatprep.subr.bf16.mxu0 %v2509
    %3076 = vmatpush2.bf16.msra.mxu0 %v2508
    %3077 = vmatprep.subr.bf16.mxu0 %v2503
    %3078 = vmatpush2.bf16.msra.mxu0 %v2502
    %3079 = vmatprep.subr.bf16.mxu0 %v2497
    %3080 = vmatpush2.bf16.msra.mxu0 %v2496
    %3081 = vmatprep.subr.bf16.mxu0 %v2491
    %3082 = vmatpush2.bf16.msra.mxu0 %v2490
    %3083 = vmatprep.mubr.bf16.mxu0 %v585
    %3084 = vmatmul.mubr.bf16.gmra.mxu0 %v584
    %v3085 = vpop.f32.mrf.mxu0
    %v3086 = vadd.f32 %v3043, %v3085
    %v3087 = vpop.f32.mrf.mxu0
    %v3088 = vadd.f32 %v3045, %v3087
    %v3089 = vpop.f32.mrf.mxu0
    %v3090 = vadd.f32 %v3047, %v3089
    %v3091 = vpop.f32.mrf.mxu0
    %v3092 = vadd.f32 %v3049, %v3091
    %3093 = vdwg.mxu0
    %3094 = vmatprep.subr.bf16.mxu0 %v2199
    %3095 = vmatpush1.bf16.msra.mxu0 %v2198
    %3096 = vmatprep.subr.bf16.mxu0 %v2193
    %3097 = vmatpush1.bf16.msra.mxu0 %v2192
    %3098 = vmatprep.subr.bf16.mxu0 %v2187
    %3099 = vmatpush1.bf16.msra.mxu0 %v2186
    %3100 = vmatprep.subr.bf16.mxu0 %v2181
    %3101 = vmatpush1.bf16.msra.mxu0 %v2180
    %3102 = vmatprep.subr.bf16.mxu0 %v2175
    %3103 = vmatpush1.bf16.msra.mxu0 %v2174
    %3104 = vmatprep.subr.bf16.mxu0 %v2169
    %3105 = vmatpush1.bf16.msra.mxu0 %v2168
    %3106 = vmatprep.subr.bf16.mxu0 %v2163
    %3107 = vmatpush1.bf16.msra.mxu0 %v2162
    %3108 = vmatprep.subr.bf16.mxu0 %v2157
    %3109 = vmatpush1.bf16.msra.mxu0 %v2156
    %3110 = vmatprep.subr.bf16.mxu0 %v2247
    %3111 = vmatpush2.bf16.msra.mxu0 %v2246
    %3112 = vmatprep.subr.bf16.mxu0 %v2241
    %3113 = vmatpush2.bf16.msra.mxu0 %v2240
    %3114 = vmatprep.subr.bf16.mxu0 %v2235
    %3115 = vmatpush2.bf16.msra.mxu0 %v2234
    %3116 = vmatprep.subr.bf16.mxu0 %v2229
    %3117 = vmatpush2.bf16.msra.mxu0 %v2228
    %3118 = vmatprep.subr.bf16.mxu0 %v2223
    %3119 = vmatpush2.bf16.msra.mxu0 %v2222
    %3120 = vmatprep.subr.bf16.mxu0 %v2217
    %3121 = vmatpush2.bf16.msra.mxu0 %v2216
    %3122 = vmatprep.subr.bf16.mxu0 %v2211
    %3123 = vmatpush2.bf16.msra.mxu0 %v2210
    %3124 = vmatprep.subr.bf16.mxu0 %v2205
    %3125 = vmatpush2.bf16.msra.mxu0 %v2204
    %3126 = vmatprep.mubr.bf16.mxu0 %v579
    %3127 = vmatmul.mubr.bf16.gmra.mxu0 %v578
    %v3128 = vpop.f32.mrf.mxu0
    %v3129 = vadd.f32 %v983, %v3128
    %v3130 = vpop.f32.mrf.mxu0
    %v3131 = vadd.f32 %v987, %v3130
    %v3132 = vpop.f32.mrf.mxu0
    %v3133 = vadd.f32 %v983, %v3132
    %v3134 = vpop.f32.mrf.mxu0
    %v3135 = vadd.f32 %v987, %v3134
    %3136 = vdwg.mxu0
    %3137 = vmatprep.subr.bf16.mxu0 %v2295
    %3138 = vmatpush1.bf16.msra.mxu0 %v2294
    %3139 = vmatprep.subr.bf16.mxu0 %v2289
    %3140 = vmatpush1.bf16.msra.mxu0 %v2288
    %3141 = vmatprep.subr.bf16.mxu0 %v2283
    %3142 = vmatpush1.bf16.msra.mxu0 %v2282
    %3143 = vmatprep.subr.bf16.mxu0 %v2277
    %3144 = vmatpush1.bf16.msra.mxu0 %v2276
    %3145 = vmatprep.subr.bf16.mxu0 %v2271
    %3146 = vmatpush1.bf16.msra.mxu0 %v2270
    %3147 = vmatprep.subr.bf16.mxu0 %v2265
    %3148 = vmatpush1.bf16.msra.mxu0 %v2264
    %3149 = vmatprep.subr.bf16.mxu0 %v2259
    %3150 = vmatpush1.bf16.msra.mxu0 %v2258
    %3151 = vmatprep.subr.bf16.mxu0 %v2253
    %3152 = vmatpush1.bf16.msra.mxu0 %v2252
    %3153 = vmatprep.subr.bf16.mxu0 %v2343
    %3154 = vmatpush2.bf16.msra.mxu0 %v2342
    %3155 = vmatprep.subr.bf16.mxu0 %v2337
    %3156 = vmatpush2.bf16.msra.mxu0 %v2336
    %3157 = vmatprep.subr.bf16.mxu0 %v2331
    %3158 = vmatpush2.bf16.msra.mxu0 %v2330
    %3159 = vmatprep.subr.bf16.mxu0 %v2325
    %3160 = vmatpush2.bf16.msra.mxu0 %v2324
    %3161 = vmatprep.subr.bf16.mxu0 %v2319
    %3162 = vmatpush2.bf16.msra.mxu0 %v2318
    %3163 = vmatprep.subr.bf16.mxu0 %v2313
    %3164 = vmatpush2.bf16.msra.mxu0 %v2312
    %3165 = vmatprep.subr.bf16.mxu0 %v2307
    %3166 = vmatpush2.bf16.msra.mxu0 %v2306
    %3167 = vmatprep.subr.bf16.mxu0 %v2301
    %3168 = vmatpush2.bf16.msra.mxu0 %v2300
    %3169 = vmatprep.mubr.bf16.mxu0 %v581
    %3170 = vmatmul.mubr.bf16.gmra.mxu0 %v580
    %v3171 = vpop.f32.mrf.mxu0
    %v3172 = vadd.f32 %v3129, %v3171
    %v3173 = vpop.f32.mrf.mxu0
    %v3174 = vadd.f32 %v3131, %v3173
    %v3175 = vpop.f32.mrf.mxu0
    %v3176 = vadd.f32 %v3133, %v3175
    %v3177 = vpop.f32.mrf.mxu0
    %v3178 = vadd.f32 %v3135, %v3177
    %3179 = vdwg.mxu0
    %3180 = vmatprep.subr.bf16.mxu0 %v2391
    %3181 = vmatpush1.bf16.msra.mxu0 %v2390
    %3182 = vmatprep.subr.bf16.mxu0 %v2385
    %3183 = vmatpush1.bf16.msra.mxu0 %v2384
    %3184 = vmatprep.subr.bf16.mxu0 %v2379
    %3185 = vmatpush1.bf16.msra.mxu0 %v2378
    %3186 = vmatprep.subr.bf16.mxu0 %v2373
    %3187 = vmatpush1.bf16.msra.mxu0 %v2372
    %3188 = vmatprep.subr.bf16.mxu0 %v2367
    %3189 = vmatpush1.bf16.msra.mxu0 %v2366
    %3190 = vmatprep.subr.bf16.mxu0 %v2361
    %3191 = vmatpush1.bf16.msra.mxu0 %v2360
    %3192 = vmatprep.subr.bf16.mxu0 %v2355
    %3193 = vmatpush1.bf16.msra.mxu0 %v2354
    %3194 = vmatprep.subr.bf16.mxu0 %v2349
    %3195 = vmatpush1.bf16.msra.mxu0 %v2348
    %3196 = vmatprep.subr.bf16.mxu0 %v2439
    %3197 = vmatpush2.bf16.msra.mxu0 %v2438
    %3198 = vmatprep.subr.bf16.mxu0 %v2433
    %3199 = vmatpush2.bf16.msra.mxu0 %v2432
    %3200 = vmatprep.subr.bf16.mxu0 %v2427
    %3201 = vmatpush2.bf16.msra.mxu0 %v2426
    %3202 = vmatprep.subr.bf16.mxu0 %v2421
    %3203 = vmatpush2.bf16.msra.mxu0 %v2420
    %3204 = vmatprep.subr.bf16.mxu0 %v2415
    %3205 = vmatpush2.bf16.msra.mxu0 %v2414
    %3206 = vmatprep.subr.bf16.mxu0 %v2409
    %3207 = vmatpush2.bf16.msra.mxu0 %v2408
    %3208 = vmatprep.subr.bf16.mxu0 %v2403
    %3209 = vmatpush2.bf16.msra.mxu0 %v2402
    %3210 = vmatprep.subr.bf16.mxu0 %v2397
    %3211 = vmatpush2.bf16.msra.mxu0 %v2396
    %3212 = vmatprep.mubr.bf16.mxu0 %v583
    %3213 = vmatmul.mubr.bf16.gmra.mxu0 %v582
    %v3214 = vpop.f32.mrf.mxu0
    %v3215 = vadd.f32 %v3172, %v3214
    %v3216 = vpop.f32.mrf.mxu0
    %v3217 = vadd.f32 %v3174, %v3216
    %v3218 = vpop.f32.mrf.mxu0
    %v3219 = vadd.f32 %v3176, %v3218
    %v3220 = vpop.f32.mrf.mxu0
    %v3221 = vadd.f32 %v3178, %v3220
    %3222 = vdwg.mxu0
    %3223 = vmatprep.subr.bf16.mxu0 %v2487
    %3224 = vmatpush1.bf16.msra.mxu0 %v2486
    %3225 = vmatprep.subr.bf16.mxu0 %v2481
    %3226 = vmatpush1.bf16.msra.mxu0 %v2480
    %3227 = vmatprep.subr.bf16.mxu0 %v2475
    %3228 = vmatpush1.bf16.msra.mxu0 %v2474
    %3229 = vmatprep.subr.bf16.mxu0 %v2469
    %3230 = vmatpush1.bf16.msra.mxu0 %v2468
    %3231 = vmatprep.subr.bf16.mxu0 %v2463
    %3232 = vmatpush1.bf16.msra.mxu0 %v2462
    %3233 = vmatprep.subr.bf16.mxu0 %v2457
    %3234 = vmatpush1.bf16.msra.mxu0 %v2456
    %3235 = vmatprep.subr.bf16.mxu0 %v2451
    %3236 = vmatpush1.bf16.msra.mxu0 %v2450
    %3237 = vmatprep.subr.bf16.mxu0 %v2445
    %3238 = vmatpush1.bf16.msra.mxu0 %v2444
    %3239 = vmatprep.subr.bf16.mxu0 %v2535
    %3240 = vmatpush2.bf16.msra.mxu0 %v2534
    %3241 = vmatprep.subr.bf16.mxu0 %v2529
    %3242 = vmatpush2.bf16.msra.mxu0 %v2528
    %3243 = vmatprep.subr.bf16.mxu0 %v2523
    %3244 = vmatpush2.bf16.msra.mxu0 %v2522
    %3245 = vmatprep.subr.bf16.mxu0 %v2517
    %3246 = vmatpush2.bf16.msra.mxu0 %v2516
    %3247 = vmatprep.subr.bf16.mxu0 %v2511
    %3248 = vmatpush2.bf16.msra.mxu0 %v2510
    %3249 = vmatprep.subr.bf16.mxu0 %v2505
    %3250 = vmatpush2.bf16.msra.mxu0 %v2504
    %3251 = vmatprep.subr.bf16.mxu0 %v2499
    %3252 = vmatpush2.bf16.msra.mxu0 %v2498
    %3253 = vmatprep.subr.bf16.mxu0 %v2493
    %3254 = vmatpush2.bf16.msra.mxu0 %v2492
    %3255 = vmatprep.mubr.bf16.mxu0 %v585
    %3256 = vmatmul.mubr.bf16.gmra.mxu0 %v584
    %v3257 = vpop.f32.mrf.mxu0
    %v3258 = vadd.f32 %v3215, %v3257
    %v3259 = vpop.f32.mrf.mxu0
    %v3260 = vadd.f32 %v3217, %v3259
    %v3261 = vpop.f32.mrf.mxu0
    %v3262 = vadd.f32 %v3219, %v3261
    %v3263 = vpop.f32.mrf.mxu0
    %v3264 = vadd.f32 %v3221, %v3263
    %3265 = vdwg.mxu0
    %3266 = vmatprep.subr.bf16.mxu0 %v2201
    %3267 = vmatpush1.bf16.msra.mxu0 %v2200
    %3268 = vmatprep.subr.bf16.mxu0 %v2195
    %3269 = vmatpush1.bf16.msra.mxu0 %v2194
    %3270 = vmatprep.subr.bf16.mxu0 %v2189
    %3271 = vmatpush1.bf16.msra.mxu0 %v2188
    %3272 = vmatprep.subr.bf16.mxu0 %v2183
    %3273 = vmatpush1.bf16.msra.mxu0 %v2182
    %3274 = vmatprep.subr.bf16.mxu0 %v2177
    %3275 = vmatpush1.bf16.msra.mxu0 %v2176
    %3276 = vmatprep.subr.bf16.mxu0 %v2171
    %3277 = vmatpush1.bf16.msra.mxu0 %v2170
    %3278 = vmatprep.subr.bf16.mxu0 %v2165
    %3279 = vmatpush1.bf16.msra.mxu0 %v2164
    %3280 = vmatprep.subr.bf16.mxu0 %v2159
    %3281 = vmatpush1.bf16.msra.mxu0 %v2158
    %3282 = vmatprep.subr.bf16.mxu0 %v2249
    %3283 = vmatpush2.bf16.msra.mxu0 %v2248
    %3284 = vmatprep.subr.bf16.mxu0 %v2243
    %3285 = vmatpush2.bf16.msra.mxu0 %v2242
    %3286 = vmatprep.subr.bf16.mxu0 %v2237
    %3287 = vmatpush2.bf16.msra.mxu0 %v2236
    %3288 = vmatprep.subr.bf16.mxu0 %v2231
    %3289 = vmatpush2.bf16.msra.mxu0 %v2230
    %3290 = vmatprep.subr.bf16.mxu0 %v2225
    %3291 = vmatpush2.bf16.msra.mxu0 %v2224
    %3292 = vmatprep.subr.bf16.mxu0 %v2219
    %3293 = vmatpush2.bf16.msra.mxu0 %v2218
    %3294 = vmatprep.subr.bf16.mxu0 %v2213
    %3295 = vmatpush2.bf16.msra.mxu0 %v2212
    %3296 = vmatprep.subr.bf16.mxu0 %v2207
    %3297 = vmatpush2.bf16.msra.mxu0 %v2206
    %3298 = vmatprep.mubr.bf16.mxu0 %v579
    %3299 = vmatmul.mubr.bf16.gmra.mxu0 %v578
    %v3300 = vpop.f32.mrf.mxu0
    %v3301 = vadd.f32 %v991, %v3300
    %v3302 = vpop.f32.mrf.mxu0
    %v3303 = vadd.f32 %v995, %v3302
    %v3304 = vpop.f32.mrf.mxu0
    %v3305 = vadd.f32 %v991, %v3304
    %v3306 = vpop.f32.mrf.mxu0
    %v3307 = vadd.f32 %v995, %v3306
    %3308 = vdwg.mxu0
    %3309 = vmatprep.subr.bf16.mxu0 %v2297
    %3310 = vmatpush1.bf16.msra.mxu0 %v2296
    %3311 = vmatprep.subr.bf16.mxu0 %v2291
    %3312 = vmatpush1.bf16.msra.mxu0 %v2290
    %3313 = vmatprep.subr.bf16.mxu0 %v2285
    %3314 = vmatpush1.bf16.msra.mxu0 %v2284
    %3315 = vmatprep.subr.bf16.mxu0 %v2279
    %3316 = vmatpush1.bf16.msra.mxu0 %v2278
    %3317 = vmatprep.subr.bf16.mxu0 %v2273
    %3318 = vmatpush1.bf16.msra.mxu0 %v2272
    %3319 = vmatprep.subr.bf16.mxu0 %v2267
    %3320 = vmatpush1.bf16.msra.mxu0 %v2266
    %3321 = vmatprep.subr.bf16.mxu0 %v2261
    %3322 = vmatpush1.bf16.msra.mxu0 %v2260
    %3323 = vmatprep.subr.bf16.mxu0 %v2255
    %3324 = vmatpush1.bf16.msra.mxu0 %v2254
    %3325 = vmatprep.subr.bf16.mxu0 %v2345
    %3326 = vmatpush2.bf16.msra.mxu0 %v2344
    %3327 = vmatprep.subr.bf16.mxu0 %v2339
    %3328 = vmatpush2.bf16.msra.mxu0 %v2338
    %3329 = vmatprep.subr.bf16.mxu0 %v2333
    %3330 = vmatpush2.bf16.msra.mxu0 %v2332
    %3331 = vmatprep.subr.bf16.mxu0 %v2327
    %3332 = vmatpush2.bf16.msra.mxu0 %v2326
    %3333 = vmatprep.subr.bf16.mxu0 %v2321
    %3334 = vmatpush2.bf16.msra.mxu0 %v2320
    %3335 = vmatprep.subr.bf16.mxu0 %v2315
    %3336 = vmatpush2.bf16.msra.mxu0 %v2314
    %3337 = vmatprep.subr.bf16.mxu0 %v2309
    %3338 = vmatpush2.bf16.msra.mxu0 %v2308
    %3339 = vmatprep.subr.bf16.mxu0 %v2303
    %3340 = vmatpush2.bf16.msra.mxu0 %v2302
    %3341 = vmatprep.mubr.bf16.mxu0 %v581
    %3342 = vmatmul.mubr.bf16.gmra.mxu0 %v580
    %v3343 = vpop.f32.mrf.mxu0
    %v3344 = vadd.f32 %v3301, %v3343
    %v3345 = vpop.f32.mrf.mxu0
    %v3346 = vadd.f32 %v3303, %v3345
    %v3347 = vpop.f32.mrf.mxu0
    %v3348 = vadd.f32 %v3305, %v3347
    %v3349 = vpop.f32.mrf.mxu0
    %v3350 = vadd.f32 %v3307, %v3349
    %3351 = vdwg.mxu0
    %3352 = vmatprep.subr.bf16.mxu0 %v2393
    %3353 = vmatpush1.bf16.msra.mxu0 %v2392
    %3354 = vmatprep.subr.bf16.mxu0 %v2387
    %3355 = vmatpush1.bf16.msra.mxu0 %v2386
    %3356 = vmatprep.subr.bf16.mxu0 %v2381
    %3357 = vmatpush1.bf16.msra.mxu0 %v2380
    %3358 = vmatprep.subr.bf16.mxu0 %v2375
    %3359 = vmatpush1.bf16.msra.mxu0 %v2374
    %3360 = vmatprep.subr.bf16.mxu0 %v2369
    %3361 = vmatpush1.bf16.msra.mxu0 %v2368
    %3362 = vmatprep.subr.bf16.mxu0 %v2363
    %3363 = vmatpush1.bf16.msra.mxu0 %v2362
    %3364 = vmatprep.subr.bf16.mxu0 %v2357
    %3365 = vmatpush1.bf16.msra.mxu0 %v2356
    %3366 = vmatprep.subr.bf16.mxu0 %v2351
    %3367 = vmatpush1.bf16.msra.mxu0 %v2350
    %3368 = vmatprep.subr.bf16.mxu0 %v2441
    %3369 = vmatpush2.bf16.msra.mxu0 %v2440
    %3370 = vmatprep.subr.bf16.mxu0 %v2435
    %3371 = vmatpush2.bf16.msra.mxu0 %v2434
    %3372 = vmatprep.subr.bf16.mxu0 %v2429
    %3373 = vmatpush2.bf16.msra.mxu0 %v2428
    %3374 = vmatprep.subr.bf16.mxu0 %v2423
    %3375 = vmatpush2.bf16.msra.mxu0 %v2422
    %3376 = vmatprep.subr.bf16.mxu0 %v2417
    %3377 = vmatpush2.bf16.msra.mxu0 %v2416
    %3378 = vmatprep.subr.bf16.mxu0 %v2411
    %3379 = vmatpush2.bf16.msra.mxu0 %v2410
    %3380 = vmatprep.subr.bf16.mxu0 %v2405
    %3381 = vmatpush2.bf16.msra.mxu0 %v2404
    %3382 = vmatprep.subr.bf16.mxu0 %v2399
    %3383 = vmatpush2.bf16.msra.mxu0 %v2398
    %3384 = vmatprep.mubr.bf16.mxu0 %v583
    %3385 = vmatmul.mubr.bf16.gmra.mxu0 %v582
    %v3386 = vpop.f32.mrf.mxu0
    %v3387 = vadd.f32 %v3344, %v3386
    %v3388 = vpop.f32.mrf.mxu0
    %v3389 = vadd.f32 %v3346, %v3388
    %v3390 = vpop.f32.mrf.mxu0
    %v3391 = vadd.f32 %v3348, %v3390
    %v3392 = vpop.f32.mrf.mxu0
    %v3393 = vadd.f32 %v3350, %v3392
    %3394 = vdwg.mxu0
    %3395 = vmatprep.subr.bf16.mxu0 %v2489
    %3396 = vmatpush1.bf16.msra.mxu0 %v2488
    %3397 = vmatprep.subr.bf16.mxu0 %v2483
    %3398 = vmatpush1.bf16.msra.mxu0 %v2482
    %3399 = vmatprep.subr.bf16.mxu0 %v2477
    %3400 = vmatpush1.bf16.msra.mxu0 %v2476
    %3401 = vmatprep.subr.bf16.mxu0 %v2471
    %3402 = vmatpush1.bf16.msra.mxu0 %v2470
    %3403 = vmatprep.subr.bf16.mxu0 %v2465
    %3404 = vmatpush1.bf16.msra.mxu0 %v2464
    %3405 = vmatprep.subr.bf16.mxu0 %v2459
    %3406 = vmatpush1.bf16.msra.mxu0 %v2458
    %3407 = vmatprep.subr.bf16.mxu0 %v2453
    %3408 = vmatpush1.bf16.msra.mxu0 %v2452
    %3409 = vmatprep.subr.bf16.mxu0 %v2447
    %3410 = vmatpush1.bf16.msra.mxu0 %v2446
    %3411 = vmatprep.subr.bf16.mxu0 %v2537
    %3412 = vmatpush2.bf16.msra.mxu0 %v2536
    %3413 = vmatprep.subr.bf16.mxu0 %v2531
    %3414 = vmatpush2.bf16.msra.mxu0 %v2530
    %3415 = vmatprep.subr.bf16.mxu0 %v2525
    %3416 = vmatpush2.bf16.msra.mxu0 %v2524
    %3417 = vmatprep.subr.bf16.mxu0 %v2519
    %3418 = vmatpush2.bf16.msra.mxu0 %v2518
    %3419 = vmatprep.subr.bf16.mxu0 %v2513
    %3420 = vmatpush2.bf16.msra.mxu0 %v2512
    %3421 = vmatprep.subr.bf16.mxu0 %v2507
    %3422 = vmatpush2.bf16.msra.mxu0 %v2506
    %3423 = vmatprep.subr.bf16.mxu0 %v2501
    %3424 = vmatpush2.bf16.msra.mxu0 %v2500
    %3425 = vmatprep.subr.bf16.mxu0 %v2495
    %3426 = vmatpush2.bf16.msra.mxu0 %v2494
    %3427 = vmatprep.mubr.bf16.mxu0 %v585
    %3428 = vmatmul.mubr.bf16.gmra.mxu0 %v584
    %v3429 = vpop.f32.mrf.mxu0
    %v3430 = vadd.f32 %v3387, %v3429
    %v3431 = vpop.f32.mrf.mxu0
    %v3432 = vadd.f32 %v3389, %v3431
    %v3433 = vpop.f32.mrf.mxu0
    %v3434 = vadd.f32 %v3391, %v3433
    %v3435 = vpop.f32.mrf.mxu0
    %v3436 = vadd.f32 %v3393, %v3435
    %3437 = vdwg.mxu0
    %v3438 = vtanh.pop %v3086
    %v3439 = vtanh.pop %v3088
    %v3440 = vtanh.pop %v3258
    %v3441 = vtanh.pop %v3260
    %v3442 = vtanh.pop %v3430
    %v3443 = vtanh.pop %v3432
    %v3444 = vtanh.pop %v3090
    %v3445 = vtanh.pop %v3092
    %v3446 = vtanh.pop %v3262
    %v3447 = vtanh.pop %v3264
    %v3448 = vtanh.pop %v3434
    %v3449 = vtanh.pop %v3436
    %v3450 = vpack.c.bf16 %v3444, %v3438
    %v3451 = vpack.c.bf16 %v3445, %v3439
    %v3452 = vpack.c.bf16 %v3446, %v3440
    %v3453 = vpack.c.bf16 %v3447, %v3441
    %v3454 = vpack.c.bf16 %v3448, %v3442
    %v3455 = vpack.c.bf16 %v3449, %v3443
    %v3456 = vld [vmem:[#allocation6] sm:$0xff]
    %v3457 = vld [vmem:[#allocation6 + $0x8] sm:$0xff]
    %v3458 = vld [vmem:[#allocation6 + $0x10] sm:$0xf]
    %v3459 = vld [vmem:[#allocation6 + $0x14] sm:$0xff]
    %v3460 = vld [vmem:[#allocation6 + $0x1c] sm:$0xff]
    %v3461 = vld [vmem:[#allocation6 + $0x24] sm:$0xf]
    %v3462 = vld [vmem:[#allocation6 + $0x28] sm:$0xff]
    %v3463 = vld [vmem:[#allocation6 + $0x30] sm:$0xff]
    %v3464 = vld [vmem:[#allocation6 + $0x38] sm:$0xf]
    %v3465 = vld [vmem:[#allocation6 + $0x3c] sm:$0xff]
    %v3466 = vld [vmem:[#allocation6 + $0x44] sm:$0xff]
    %v3467 = vld [vmem:[#allocation6 + $0x4c] sm:$0xf]
    %v3468 = vld [vmem:[#allocation6 + $0x50] sm:$0xff]
    %v3469 = vld [vmem:[#allocation6 + $0x58] sm:$0xff]
    %v3470 = vld [vmem:[#allocation6 + $0x60] sm:$0xf]
    %v3471 = vld [vmem:[#allocation6 + $0x64] sm:$0xff]
    %v3472 = vld [vmem:[#allocation6 + $0x6c] sm:$0xff]
    %v3473 = vld [vmem:[#allocation6 + $0x74] sm:$0xf]
    %v3474 = vld [vmem:[#allocation6 + $0x78] sm:$0xff]
    %v3475 = vld [vmem:[#allocation6 + $0x80] sm:$0xff]
    %v3476 = vld [vmem:[#allocation6 + $0x88] sm:$0xf]
    %v3477 = vld [vmem:[#allocation6 + $0x8c] sm:$0xff]
    %v3478 = vld [vmem:[#allocation6 + $0x94] sm:$0xff]
    %v3479 = vld [vmem:[#allocation6 + $0x9c] sm:$0xf]
    %v3480 = vld [vmem:[#allocation6 + $0xa0] sm:$0xff]
    %v3481 = vld [vmem:[#allocation6 + $0xa8] sm:$0xff]
    %v3482 = vld [vmem:[#allocation6 + $0xb0] sm:$0xf]
    %v3483 = vld [vmem:[#allocation6 + $0xb4] sm:$0xff]
    %v3484 = vld [vmem:[#allocation6 + $0xbc] sm:$0xff]
    %v3485 = vld [vmem:[#allocation6 + $0xc4] sm:$0xf]
    %v3486 = vld [vmem:[#allocation6 + $0xc8] sm:$0xff]
    %v3487 = vld [vmem:[#allocation6 + $0xd0] sm:$0xff]
    %v3488 = vld [vmem:[#allocation6 + $0xd8] sm:$0xf]
    %v3489 = vld [vmem:[#allocation6 + $0xdc] sm:$0xff]
    %v3490 = vld [vmem:[#allocation6 + $0xe4] sm:$0xff]
    %v3491 = vld [vmem:[#allocation6 + $0xec] sm:$0xf]
    %v3492 = vld [vmem:[#allocation6 + $0xf0] sm:$0xff]
    %v3493 = vld [vmem:[#allocation6 + $0xf8] sm:$0xff]
    %v3494 = vld [vmem:[#allocation6 + $0x100] sm:$0xf]
    %v3495 = vld [vmem:[#allocation6 + $0x104] sm:$0xff]
    %v3496 = vld [vmem:[#allocation6 + $0x10c] sm:$0xff]
    %v3497 = vld [vmem:[#allocation6 + $0x114] sm:$0xf]
    %v3498 = vld [vmem:[#allocation6 + $0x118] sm:$0xff]
    %v3499 = vld [vmem:[#allocation6 + $0x120] sm:$0xff]
    %v3500 = vld [vmem:[#allocation6 + $0x128] sm:$0xf]
    %v3501 = vld [vmem:[#allocation6 + $0x12c] sm:$0xff]
    %v3502 = vld [vmem:[#allocation6 + $0x134] sm:$0xff]
    %v3503 = vld [vmem:[#allocation6 + $0x13c] sm:$0xf]
    %v3504 = vld [vmem:[#allocation6 + $0x140] sm:$0xff]
    %v3505 = vld [vmem:[#allocation6 + $0x148] sm:$0xff]
    %v3506 = vld [vmem:[#allocation6 + $0x150] sm:$0xf]
    %v3507 = vld [vmem:[#allocation6 + $0x154] sm:$0xff]
    %v3508 = vld [vmem:[#allocation6 + $0x15c] sm:$0xff]
    %v3509 = vld [vmem:[#allocation6 + $0x164] sm:$0xf]
    %v3510 = vld [vmem:[#allocation6 + $0x168] sm:$0xff]
    %v3511 = vld [vmem:[#allocation6 + $0x170] sm:$0xff]
    %v3512 = vld [vmem:[#allocation6 + $0x178] sm:$0xf]
    %v3513 = vld [vmem:[#allocation6 + $0x17c] sm:$0xff]
    %v3514 = vld [vmem:[#allocation6 + $0x184] sm:$0xff]
    %v3515 = vld [vmem:[#allocation6 + $0x18c] sm:$0xf]
    %v3516 = vld [vmem:[#allocation6 + $0x190] sm:$0xff]
    %v3517 = vld [vmem:[#allocation6 + $0x198] sm:$0xff]
    %v3518 = vld [vmem:[#allocation6 + $0x1a0] sm:$0xf]
    %v3519 = vld [vmem:[#allocation6 + $0x1a4] sm:$0xff]
    %v3520 = vld [vmem:[#allocation6 + $0x1ac] sm:$0xff]
    %v3521 = vld [vmem:[#allocation6 + $0x1b4] sm:$0xf]
    %v3522 = vld [vmem:[#allocation6 + $0x1b8] sm:$0xff]
    %v3523 = vld [vmem:[#allocation6 + $0x1c0] sm:$0xff]
    %v3524 = vld [vmem:[#allocation6 + $0x1c8] sm:$0xf]
    %v3525 = vld [vmem:[#allocation6 + $0x1cc] sm:$0xff]
    %v3526 = vld [vmem:[#allocation6 + $0x1d4] sm:$0xff]
    %v3527 = vld [vmem:[#allocation6 + $0x1dc] sm:$0xf]
    %v3528 = vld [vmem:[#allocation6 + $0x1e0] sm:$0xff]
    %v3529 = vld [vmem:[#allocation6 + $0x1e8] sm:$0xff]
    %v3530 = vld [vmem:[#allocation6 + $0x1f0] sm:$0xf]
    %v3531 = vld [vmem:[#allocation6 + $0x1f4] sm:$0xff]
    %v3532 = vld [vmem:[#allocation6 + $0x1fc] sm:$0xff]
    %v3533 = vld [vmem:[#allocation6 + $0x204] sm:$0xf]
    %v3534 = vld [vmem:[#allocation6 + $0x208] sm:$0xff]
    %v3535 = vld [vmem:[#allocation6 + $0x210] sm:$0xff]
    %v3536 = vld [vmem:[#allocation6 + $0x218] sm:$0xf]
    %v3537 = vld [vmem:[#allocation6 + $0x21c] sm:$0xff]
    %v3538 = vld [vmem:[#allocation6 + $0x224] sm:$0xff]
    %v3539 = vld [vmem:[#allocation6 + $0x22c] sm:$0xf]
    %v3540 = vld [vmem:[#allocation6 + $0x230] sm:$0xff]
    %v3541 = vld [vmem:[#allocation6 + $0x238] sm:$0xff]
    %v3542 = vld [vmem:[#allocation6 + $0x240] sm:$0xf]
    %v3543 = vld [vmem:[#allocation6 + $0x244] sm:$0xff]
    %v3544 = vld [vmem:[#allocation6 + $0x24c] sm:$0xff]
    %v3545 = vld [vmem:[#allocation6 + $0x254] sm:$0xf]
    %v3546 = vld [vmem:[#allocation6 + $0x258] sm:$0xff]
    %v3547 = vld [vmem:[#allocation6 + $0x260] sm:$0xff]
    %v3548 = vld [vmem:[#allocation6 + $0x268] sm:$0xf]
    %v3549 = vld [vmem:[#allocation6 + $0x26c] sm:$0xff]
    %v3550 = vld [vmem:[#allocation6 + $0x274] sm:$0xff]
    %v3551 = vld [vmem:[#allocation6 + $0x27c] sm:$0xf]
    %v3552 = vld [vmem:[#allocation6 + $0x280] sm:$0xff]
    %v3553 = vld [vmem:[#allocation6 + $0x288] sm:$0xff]
    %v3554 = vld [vmem:[#allocation6 + $0x290] sm:$0xf]
    %v3555 = vld [vmem:[#allocation6 + $0x294] sm:$0xff]
    %v3556 = vld [vmem:[#allocation6 + $0x29c] sm:$0xff]
    %v3557 = vld [vmem:[#allocation6 + $0x2a4] sm:$0xf]
    %v3558 = vld [vmem:[#allocation6 + $0x2a8] sm:$0xff]
    %v3559 = vld [vmem:[#allocation6 + $0x2b0] sm:$0xff]
    %v3560 = vld [vmem:[#allocation6 + $0x2b8] sm:$0xf]
    %v3561 = vld [vmem:[#allocation6 + $0x2bc] sm:$0xff]
    %v3562 = vld [vmem:[#allocation6 + $0x2c4] sm:$0xff]
    %v3563 = vld [vmem:[#allocation6 + $0x2cc] sm:$0xf]
    %v3564 = vld [vmem:[#allocation6 + $0x2d0] sm:$0xff]
    %v3565 = vld [vmem:[#allocation6 + $0x2d8] sm:$0xff]
    %v3566 = vld [vmem:[#allocation6 + $0x2e0] sm:$0xf]
    %v3567 = vld [vmem:[#allocation6 + $0x2e4] sm:$0xff]
    %v3568 = vld [vmem:[#allocation6 + $0x2ec] sm:$0xff]
    %v3569 = vld [vmem:[#allocation6 + $0x2f4] sm:$0xf]
    %v3570 = vld [vmem:[#allocation6 + $0x2f8] sm:$0xff]
    %v3571 = vld [vmem:[#allocation6 + $0x300] sm:$0xff]
    %v3572 = vld [vmem:[#allocation6 + $0x308] sm:$0xf]
    %v3573 = vld [vmem:[#allocation6 + $0x30c] sm:$0xff]
    %v3574 = vld [vmem:[#allocation6 + $0x314] sm:$0xff]
    %v3575 = vld [vmem:[#allocation6 + $0x31c] sm:$0xf]
    %v3576 = vld [vmem:[#allocation6 + $0x320] sm:$0xff]
    %v3577 = vld [vmem:[#allocation6 + $0x328] sm:$0xff]
    %v3578 = vld [vmem:[#allocation6 + $0x330] sm:$0xf]
    %v3579 = vld [vmem:[#allocation6 + $0x334] sm:$0xff]
    %v3580 = vld [vmem:[#allocation6 + $0x33c] sm:$0xff]
    %v3581 = vld [vmem:[#allocation6 + $0x344] sm:$0xf]
    %v3582 = vld [vmem:[#allocation6 + $0x348] sm:$0xff]
    %v3583 = vld [vmem:[#allocation6 + $0x350] sm:$0xff]
    %v3584 = vld [vmem:[#allocation6 + $0x358] sm:$0xf]
    %v3585 = vld [vmem:[#allocation6 + $0x35c] sm:$0xff]
    %v3586 = vld [vmem:[#allocation6 + $0x364] sm:$0xff]
    %v3587 = vld [vmem:[#allocation6 + $0x36c] sm:$0xf]
    %v3588 = vld [vmem:[#allocation6 + $0x370] sm:$0xff]
    %v3589 = vld [vmem:[#allocation6 + $0x378] sm:$0xff]
    %v3590 = vld [vmem:[#allocation6 + $0x380] sm:$0xf]
    %v3591 = vld [vmem:[#allocation6 + $0x384] sm:$0xff]
    %v3592 = vld [vmem:[#allocation6 + $0x38c] sm:$0xff]
    %v3593 = vld [vmem:[#allocation6 + $0x394] sm:$0xf]
    %v3594 = vld [vmem:[#allocation6 + $0x398] sm:$0xff]
    %v3595 = vld [vmem:[#allocation6 + $0x3a0] sm:$0xff]
    %v3596 = vld [vmem:[#allocation6 + $0x3a8] sm:$0xf]
    %v3597 = vld [vmem:[#allocation6 + $0x3ac] sm:$0xff]
    %v3598 = vld [vmem:[#allocation6 + $0x3b4] sm:$0xff]
    %v3599 = vld [vmem:[#allocation6 + $0x3bc] sm:$0xf]
    %v3600 = vld [vmem:[#allocation6 + $0x3c0] sm:$0xff]
    %v3601 = vld [vmem:[#allocation6 + $0x3c8] sm:$0xff]
    %v3602 = vld [vmem:[#allocation6 + $0x3d0] sm:$0xf]
    %v3603 = vld [vmem:[#allocation6 + $0x3d4] sm:$0xff]
    %v3604 = vld [vmem:[#allocation6 + $0x3dc] sm:$0xff]
    %v3605 = vld [vmem:[#allocation6 + $0x3e4] sm:$0xf]
    %v3606 = vld [vmem:[#allocation6 + $0x3e8] sm:$0xff]
    %v3607 = vld [vmem:[#allocation6 + $0x3f0] sm:$0xff]
    %v3608 = vld [vmem:[#allocation6 + $0x3f8] sm:$0xf]
    %v3609 = vld [vmem:[#allocation6 + $0x3fc] sm:$0xff]
    %v3610 = vld [vmem:[#allocation6 + $0x404] sm:$0xff]
    %v3611 = vld [vmem:[#allocation6 + $0x40c] sm:$0xf]
    %v3612 = vld [vmem:[#allocation6 + $0x410] sm:$0xff]
    %v3613 = vld [vmem:[#allocation6 + $0x418] sm:$0xff]
    %v3614 = vld [vmem:[#allocation6 + $0x420] sm:$0xf]
    %v3615 = vld [vmem:[#allocation6 + $0x424] sm:$0xff]
    %v3616 = vld [vmem:[#allocation6 + $0x42c] sm:$0xff]
    %v3617 = vld [vmem:[#allocation6 + $0x434] sm:$0xf]
    %v3618 = vld [vmem:[#allocation6 + $0x438] sm:$0xff]
    %v3619 = vld [vmem:[#allocation6 + $0x440] sm:$0xff]
    %v3620 = vld [vmem:[#allocation6 + $0x448] sm:$0xf]
    %v3621 = vld [vmem:[#allocation6 + $0x44c] sm:$0xff]
    %v3622 = vld [vmem:[#allocation6 + $0x454] sm:$0xff]
    %v3623 = vld [vmem:[#allocation6 + $0x45c] sm:$0xf]
    %v3624 = vld [vmem:[#allocation6 + $0x460] sm:$0xff]
    %v3625 = vld [vmem:[#allocation6 + $0x468] sm:$0xff]
    %v3626 = vld [vmem:[#allocation6 + $0x470] sm:$0xf]
    %v3627 = vld [vmem:[#allocation6 + $0x474] sm:$0xff]
    %v3628 = vld [vmem:[#allocation6 + $0x47c] sm:$0xff]
    %v3629 = vld [vmem:[#allocation6 + $0x484] sm:$0xf]
    %v3630 = vld [vmem:[#allocation6 + $0x488] sm:$0xff]
    %v3631 = vld [vmem:[#allocation6 + $0x490] sm:$0xff]
    %v3632 = vld [vmem:[#allocation6 + $0x498] sm:$0xf]
    %v3633 = vld [vmem:[#allocation6 + $0x49c] sm:$0xff]
    %v3634 = vld [vmem:[#allocation6 + $0x4a4] sm:$0xff]
    %v3635 = vld [vmem:[#allocation6 + $0x4ac] sm:$0xf]
    %v3636 = vld [vmem:[#allocation6 + $0x4b0] sm:$0xff]
    %v3637 = vld [vmem:[#allocation6 + $0x4b8] sm:$0xff]
    %v3638 = vld [vmem:[#allocation6 + $0x4c0] sm:$0xf]
    %v3639 = vld [vmem:[#allocation6 + $0x4c4] sm:$0xff]
    %v3640 = vld [vmem:[#allocation6 + $0x4cc] sm:$0xff]
    %v3641 = vld [vmem:[#allocation6 + $0x4d4] sm:$0xf]
    %v3642 = vld [vmem:[#allocation6 + $0x4d8] sm:$0xff]
    %v3643 = vld [vmem:[#allocation6 + $0x4e0] sm:$0xff]
    %v3644 = vld [vmem:[#allocation6 + $0x4e8] sm:$0xf]
    %v3645 = vld [vmem:[#allocation6 + $0x4ec] sm:$0xff]
    %v3646 = vld [vmem:[#allocation6 + $0x4f4] sm:$0xff]
    %v3647 = vld [vmem:[#allocation6 + $0x4fc] sm:$0xf]
    %v3648 = vld [vmem:[#allocation6 + $0x500] sm:$0xff]
    %v3649 = vld [vmem:[#allocation6 + $0x508] sm:$0xff]
    %v3650 = vld [vmem:[#allocation6 + $0x510] sm:$0xf]
    %v3651 = vld [vmem:[#allocation6 + $0x514] sm:$0xff]
    %v3652 = vld [vmem:[#allocation6 + $0x51c] sm:$0xff]
    %v3653 = vld [vmem:[#allocation6 + $0x524] sm:$0xf]
    %v3654 = vld [vmem:[#allocation6 + $0x528] sm:$0xff]
    %v3655 = vld [vmem:[#allocation6 + $0x530] sm:$0xff]
    %v3656 = vld [vmem:[#allocation6 + $0x538] sm:$0xf]
    %v3657 = vld [vmem:[#allocation6 + $0x53c] sm:$0xff]
    %v3658 = vld [vmem:[#allocation6 + $0x544] sm:$0xff]
    %v3659 = vld [vmem:[#allocation6 + $0x54c] sm:$0xf]
    %v3660 = vld [vmem:[#allocation6 + $0x550] sm:$0xff]
    %v3661 = vld [vmem:[#allocation6 + $0x558] sm:$0xff]
    %v3662 = vld [vmem:[#allocation6 + $0x560] sm:$0xf]
    %v3663 = vld [vmem:[#allocation6 + $0x564] sm:$0xff]
    %v3664 = vld [vmem:[#allocation6 + $0x56c] sm:$0xff]
    %v3665 = vld [vmem:[#allocation6 + $0x574] sm:$0xf]
    %v3666 = vld [vmem:[#allocation6 + $0x578] sm:$0xff]
    %v3667 = vld [vmem:[#allocation6 + $0x580] sm:$0xff]
    %v3668 = vld [vmem:[#allocation6 + $0x588] sm:$0xf]
    %v3669 = vld [vmem:[#allocation6 + $0x58c] sm:$0xff]
    %v3670 = vld [vmem:[#allocation6 + $0x594] sm:$0xff]
    %v3671 = vld [vmem:[#allocation6 + $0x59c] sm:$0xf]
    %v3672 = vld [vmem:[#allocation6 + $0x5a0] sm:$0xff]
    %v3673 = vld [vmem:[#allocation6 + $0x5a8] sm:$0xff]
    %v3674 = vld [vmem:[#allocation6 + $0x5b0] sm:$0xf]
    %v3675 = vld [vmem:[#allocation6 + $0x5b4] sm:$0xff]
    %v3676 = vld [vmem:[#allocation6 + $0x5bc] sm:$0xff]
    %v3677 = vld [vmem:[#allocation6 + $0x5c4] sm:$0xf]
    %v3678 = vld [vmem:[#allocation6 + $0x5c8] sm:$0xff]
    %v3679 = vld [vmem:[#allocation6 + $0x5d0] sm:$0xff]
    %v3680 = vld [vmem:[#allocation6 + $0x5d8] sm:$0xf]
    %v3681 = vld [vmem:[#allocation6 + $0x5dc] sm:$0xff]
    %v3682 = vld [vmem:[#allocation6 + $0x5e4] sm:$0xff]
    %v3683 = vld [vmem:[#allocation6 + $0x5ec] sm:$0xf]
    %v3684 = vld [vmem:[#allocation6 + $0x5f0] sm:$0xff]
    %v3685 = vld [vmem:[#allocation6 + $0x5f8] sm:$0xff]
    %v3686 = vld [vmem:[#allocation6 + $0x600] sm:$0xf]
    %v3687 = vld [vmem:[#allocation6 + $0x604] sm:$0xff]
    %v3688 = vld [vmem:[#allocation6 + $0x60c] sm:$0xff]
    %v3689 = vld [vmem:[#allocation6 + $0x614] sm:$0xf]
    %v3690 = vld [vmem:[#allocation6 + $0x618] sm:$0xff]
    %v3691 = vld [vmem:[#allocation6 + $0x620] sm:$0xff]
    %v3692 = vld [vmem:[#allocation6 + $0x628] sm:$0xf]
    %v3693 = vld [vmem:[#allocation6 + $0x62c] sm:$0xff]
    %v3694 = vld [vmem:[#allocation6 + $0x634] sm:$0xff]
    %v3695 = vld [vmem:[#allocation6 + $0x63c] sm:$0xf]
    %v3696 = vld [vmem:[#allocation6 + $0x640] sm:$0xff]
    %v3697 = vld [vmem:[#allocation6 + $0x648] sm:$0xff]
    %v3698 = vld [vmem:[#allocation6 + $0x650] sm:$0xf]
    %v3699 = vld [vmem:[#allocation6 + $0x654] sm:$0xff]
    %v3700 = vld [vmem:[#allocation6 + $0x65c] sm:$0xff]
    %v3701 = vld [vmem:[#allocation6 + $0x664] sm:$0xf]
    %v3702 = vld [vmem:[#allocation6 + $0x668] sm:$0xff]
    %v3703 = vld [vmem:[#allocation6 + $0x670] sm:$0xff]
    %v3704 = vld [vmem:[#allocation6 + $0x678] sm:$0xf]
    %v3705 = vld [vmem:[#allocation6 + $0x67c] sm:$0xff]
    %v3706 = vld [vmem:[#allocation6 + $0x684] sm:$0xff]
    %v3707 = vld [vmem:[#allocation6 + $0x68c] sm:$0xf]
    %v3708 = vld [vmem:[#allocation6 + $0x690] sm:$0xff]
    %v3709 = vld [vmem:[#allocation6 + $0x698] sm:$0xff]
    %v3710 = vld [vmem:[#allocation6 + $0x6a0] sm:$0xf]
    %v3711 = vld [vmem:[#allocation6 + $0x6a4] sm:$0xff]
    %v3712 = vld [vmem:[#allocation6 + $0x6ac] sm:$0xff]
    %v3713 = vld [vmem:[#allocation6 + $0x6b4] sm:$0xf]
    %v3714 = vld [vmem:[#allocation6 + $0x6b8] sm:$0xff]
    %v3715 = vld [vmem:[#allocation6 + $0x6c0] sm:$0xff]
    %v3716 = vld [vmem:[#allocation6 + $0x6c8] sm:$0xf]
    %v3717 = vld [vmem:[#allocation6 + $0x6cc] sm:$0xff]
    %v3718 = vld [vmem:[#allocation6 + $0x6d4] sm:$0xff]
    %v3719 = vld [vmem:[#allocation6 + $0x6dc] sm:$0xf]
    %v3720 = vld [vmem:[#allocation6 + $0x6e0] sm:$0xff]
    %v3721 = vld [vmem:[#allocation6 + $0x6e8] sm:$0xff]
    %v3722 = vld [vmem:[#allocation6 + $0x6f0] sm:$0xf]
    %v3723 = vld [vmem:[#allocation6 + $0x6f4] sm:$0xff]
    %v3724 = vld [vmem:[#allocation6 + $0x6fc] sm:$0xff]
    %v3725 = vld [vmem:[#allocation6 + $0x704] sm:$0xf]
    %v3726 = vld [vmem:[#allocation6 + $0x708] sm:$0xff]
    %v3727 = vld [vmem:[#allocation6 + $0x710] sm:$0xff]
    %v3728 = vld [vmem:[#allocation6 + $0x718] sm:$0xf]
    %v3729 = vld [vmem:[#allocation6 + $0x71c] sm:$0xff]
    %v3730 = vld [vmem:[#allocation6 + $0x724] sm:$0xff]
    %v3731 = vld [vmem:[#allocation6 + $0x72c] sm:$0xf]
    %v3732 = vld [vmem:[#allocation6 + $0x730] sm:$0xff]
    %v3733 = vld [vmem:[#allocation6 + $0x738] sm:$0xff]
    %v3734 = vld [vmem:[#allocation6 + $0x740] sm:$0xf]
    %v3735 = vld [vmem:[#allocation6 + $0x744] sm:$0xff]
    %v3736 = vld [vmem:[#allocation6 + $0x74c] sm:$0xff]
    %v3737 = vld [vmem:[#allocation6 + $0x754] sm:$0xf]
    %v3738 = vld [vmem:[#allocation6 + $0x758] sm:$0xff]
    %v3739 = vld [vmem:[#allocation6 + $0x760] sm:$0xff]
    %v3740 = vld [vmem:[#allocation6 + $0x768] sm:$0xf]
    %v3741 = vld [vmem:[#allocation6 + $0x76c] sm:$0xff]
    %v3742 = vld [vmem:[#allocation6 + $0x774] sm:$0xff]
    %v3743 = vld [vmem:[#allocation6 + $0x77c] sm:$0xf]
    %v3744 = vld [vmem:[#allocation19] sm:$0x1f]
    %v3746 = vlaneseq
    %v3747 = vshrl.u32 %v3746, 7
    %v3748 = vsub.s32 0, %v3747
    %v3749 = vrot.slane %v3744, %v3748
    %v3750 = vlaneseq
    %v3751 = vshrl.u32 %v3750, 7
    %v3752 = vsub.s32 1, %v3751
    %v3753 = vrot.slane %v3744, %v3752
    %v3754 = vlaneseq
    %v3755 = vshrl.u32 %v3754, 7
    %v3756 = vsub.s32 2, %v3755
    %v3757 = vrot.slane %v3744, %v3756
    %v3758 = vlaneseq
    %v3759 = vshrl.u32 %v3758, 7
    %v3760 = vsub.s32 3, %v3759
    %v3761 = vrot.slane %v3744, %v3760
    %v3762 = vlaneseq
    %v3763 = vshrl.u32 %v3762, 7
    %v3764 = vsub.s32 4, %v3763
    %v3765 = vrot.slane %v3744, %v3764
    %v4059 = vunpack.c.l.b16 %v3456
    %v4060 = vunpack.c.h.b16 %v3456
    %v4061 = vunpack.c.l.b16 %v3457
    %v4062 = vunpack.c.h.b16 %v3457
    %v4063 = vunpack.c.l.b16 %v3458
    %v4064 = vunpack.c.l.b16 %v3459
    %v4065 = vunpack.c.h.b16 %v3459
    %v4066 = vunpack.c.l.b16 %v3460
    %v4067 = vunpack.c.h.b16 %v3460
    %v4068 = vunpack.c.l.b16 %v3461
    %v4069 = vunpack.c.l.b16 %v3462
    %v4070 = vunpack.c.h.b16 %v3462
    %v4071 = vunpack.c.l.b16 %v3463
    %v4072 = vunpack.c.h.b16 %v3463
    %v4073 = vunpack.c.l.b16 %v3464
    %v4074 = vunpack.c.l.b16 %v3465
    %v4075 = vunpack.c.h.b16 %v3465
    %v4076 = vunpack.c.l.b16 %v3466
    %v4077 = vunpack.c.h.b16 %v3466
    %v4078 = vunpack.c.l.b16 %v3467
    %v4079 = vunpack.c.l.b16 %v3468
    %v4080 = vunpack.c.h.b16 %v3468
    %v4081 = vunpack.c.l.b16 %v3469
    %v4082 = vunpack.c.h.b16 %v3469
    %v4083 = vunpack.c.l.b16 %v3470
    %v4084 = vunpack.c.l.b16 %v3471
    %v4085 = vunpack.c.h.b16 %v3471
    %v4086 = vunpack.c.l.b16 %v3472
    %v4087 = vunpack.c.h.b16 %v3472
    %v4088 = vunpack.c.l.b16 %v3473
    %v4089 = vunpack.c.l.b16 %v3474
    %v4090 = vunpack.c.h.b16 %v3474
    %v4091 = vunpack.c.l.b16 %v3475
    %v4092 = vunpack.c.h.b16 %v3475
    %v4093 = vunpack.c.l.b16 %v3476
    %v4094 = vunpack.c.l.b16 %v3477
    %v4095 = vunpack.c.h.b16 %v3477
    %v4096 = vunpack.c.l.b16 %v3478
    %v4097 = vunpack.c.h.b16 %v3478
    %v4098 = vunpack.c.l.b16 %v3479
    %v4099 = vunpack.c.l.b16 %v3480
    %v4100 = vunpack.c.h.b16 %v3480
    %v4101 = vunpack.c.l.b16 %v3481
    %v4102 = vunpack.c.h.b16 %v3481
    %v4103 = vunpack.c.l.b16 %v3482
    %v4104 = vunpack.c.l.b16 %v3483
    %v4105 = vunpack.c.h.b16 %v3483
    %v4106 = vunpack.c.l.b16 %v3484
    %v4107 = vunpack.c.h.b16 %v3484
    %v4108 = vunpack.c.l.b16 %v3485
    %v4109 = vunpack.c.l.b16 %v3486
    %v4110 = vunpack.c.h.b16 %v3486
    %v4111 = vunpack.c.l.b16 %v3487
    %v4112 = vunpack.c.h.b16 %v3487
    %v4113 = vunpack.c.l.b16 %v3488
    %v4114 = vunpack.c.l.b16 %v3489
    %v4115 = vunpack.c.h.b16 %v3489
    %v4116 = vunpack.c.l.b16 %v3490
    %v4117 = vunpack.c.h.b16 %v3490
    %v4118 = vunpack.c.l.b16 %v3491
    %v4119 = vunpack.c.l.b16 %v3492
    %v4120 = vunpack.c.h.b16 %v3492
    %v4121 = vunpack.c.l.b16 %v3493
    %v4122 = vunpack.c.h.b16 %v3493
    %v4123 = vunpack.c.l.b16 %v3494
    %v4124 = vunpack.c.l.b16 %v3495
    %v4125 = vunpack.c.h.b16 %v3495
    %v4126 = vunpack.c.l.b16 %v3496
    %v4127 = vunpack.c.h.b16 %v3496
    %v4128 = vunpack.c.l.b16 %v3497
    %v4129 = vunpack.c.l.b16 %v3498
    %v4130 = vunpack.c.h.b16 %v3498
    %v4131 = vunpack.c.l.b16 %v3499
    %v4132 = vunpack.c.h.b16 %v3499
    %v4133 = vunpack.c.l.b16 %v3500
    %v4134 = vunpack.c.l.b16 %v3501
    %v4135 = vunpack.c.h.b16 %v3501
    %v4136 = vunpack.c.l.b16 %v3502
    %v4137 = vunpack.c.h.b16 %v3502
    %v4138 = vunpack.c.l.b16 %v3503
    %v4139 = vunpack.c.l.b16 %v3504
    %v4140 = vunpack.c.h.b16 %v3504
    %v4141 = vunpack.c.l.b16 %v3505
    %v4142 = vunpack.c.h.b16 %v3505
    %v4143 = vunpack.c.l.b16 %v3506
    %v4144 = vunpack.c.l.b16 %v3507
    %v4145 = vunpack.c.h.b16 %v3507
    %v4146 = vunpack.c.l.b16 %v3508
    %v4147 = vunpack.c.h.b16 %v3508
    %v4148 = vunpack.c.l.b16 %v3509
    %v4149 = vunpack.c.l.b16 %v3510
    %v4150 = vunpack.c.h.b16 %v3510
    %v4151 = vunpack.c.l.b16 %v3511
    %v4152 = vunpack.c.h.b16 %v3511
    %v4153 = vunpack.c.l.b16 %v3512
    %v4154 = vunpack.c.l.b16 %v3513
    %v4155 = vunpack.c.h.b16 %v3513
    %v4156 = vunpack.c.l.b16 %v3514
    %v4157 = vunpack.c.h.b16 %v3514
    %v4158 = vunpack.c.l.b16 %v3515
    %v4159 = vunpack.c.l.b16 %v3516
    %v4160 = vunpack.c.h.b16 %v3516
    %v4161 = vunpack.c.l.b16 %v3517
    %v4162 = vunpack.c.h.b16 %v3517
    %v4163 = vunpack.c.l.b16 %v3518
    %v4164 = vunpack.c.l.b16 %v3519
    %v4165 = vunpack.c.h.b16 %v3519
    %v4166 = vunpack.c.l.b16 %v3520
    %v4167 = vunpack.c.h.b16 %v3520
    %v4168 = vunpack.c.l.b16 %v3521
    %v4169 = vunpack.c.l.b16 %v3522
    %v4170 = vunpack.c.h.b16 %v3522
    %v4171 = vunpack.c.l.b16 %v3523
    %v4172 = vunpack.c.h.b16 %v3523
    %v4173 = vunpack.c.l.b16 %v3524
    %v4174 = vunpack.c.l.b16 %v3525
    %v4175 = vunpack.c.h.b16 %v3525
    %v4176 = vunpack.c.l.b16 %v3526
    %v4177 = vunpack.c.h.b16 %v3526
    %v4178 = vunpack.c.l.b16 %v3527
    %v4179 = vunpack.c.l.b16 %v3528
    %v4180 = vunpack.c.h.b16 %v3528
    %v4181 = vunpack.c.l.b16 %v3529
    %v4182 = vunpack.c.h.b16 %v3529
    %v4183 = vunpack.c.l.b16 %v3530
    %v4184 = vunpack.c.l.b16 %v3531
    %v4185 = vunpack.c.h.b16 %v3531
    %v4186 = vunpack.c.l.b16 %v3532
    %v4187 = vunpack.c.h.b16 %v3532
    %v4188 = vunpack.c.l.b16 %v3533
    %v4189 = vunpack.c.l.b16 %v3534
    %v4190 = vunpack.c.h.b16 %v3534
    %v4191 = vunpack.c.l.b16 %v3535
    %v4192 = vunpack.c.h.b16 %v3535
    %v4193 = vunpack.c.l.b16 %v3536
    %v4194 = vunpack.c.l.b16 %v3537
    %v4195 = vunpack.c.h.b16 %v3537
    %v4196 = vunpack.c.l.b16 %v3538
    %v4197 = vunpack.c.h.b16 %v3538
    %v4198 = vunpack.c.l.b16 %v3539
    %v4199 = vunpack.c.l.b16 %v3540
    %v4200 = vunpack.c.h.b16 %v3540
    %v4201 = vunpack.c.l.b16 %v3541
    %v4202 = vunpack.c.h.b16 %v3541
    %v4203 = vunpack.c.l.b16 %v3542
    %v4204 = vunpack.c.l.b16 %v3543
    %v4205 = vunpack.c.h.b16 %v3543
    %v4206 = vunpack.c.l.b16 %v3544
    %v4207 = vunpack.c.h.b16 %v3544
    %v4208 = vunpack.c.l.b16 %v3545
    %v4209 = vunpack.c.l.b16 %v3546
    %v4210 = vunpack.c.h.b16 %v3546
    %v4211 = vunpack.c.l.b16 %v3547
    %v4212 = vunpack.c.h.b16 %v3547
    %v4213 = vunpack.c.l.b16 %v3548
    %v4214 = vunpack.c.l.b16 %v3549
    %v4215 = vunpack.c.h.b16 %v3549
    %v4216 = vunpack.c.l.b16 %v3550
    %v4217 = vunpack.c.h.b16 %v3550
    %v4218 = vunpack.c.l.b16 %v3551
    %v4219 = vunpack.c.l.b16 %v3552
    %v4220 = vunpack.c.h.b16 %v3552
    %v4221 = vunpack.c.l.b16 %v3553
    %v4222 = vunpack.c.h.b16 %v3553
    %v4223 = vunpack.c.l.b16 %v3554
    %v4224 = vunpack.c.l.b16 %v3555
    %v4225 = vunpack.c.h.b16 %v3555
    %v4226 = vunpack.c.l.b16 %v3556
    %v4227 = vunpack.c.h.b16 %v3556
    %v4228 = vunpack.c.l.b16 %v3557
    %v4229 = vunpack.c.l.b16 %v3558
    %v4230 = vunpack.c.h.b16 %v3558
    %v4231 = vunpack.c.l.b16 %v3559
    %v4232 = vunpack.c.h.b16 %v3559
    %v4233 = vunpack.c.l.b16 %v3560
    %v4234 = vunpack.c.l.b16 %v3561
    %v4235 = vunpack.c.h.b16 %v3561
    %v4236 = vunpack.c.l.b16 %v3562
    %v4237 = vunpack.c.h.b16 %v3562
    %v4238 = vunpack.c.l.b16 %v3563
    %v4239 = vunpack.c.l.b16 %v3564
    %v4240 = vunpack.c.h.b16 %v3564
    %v4241 = vunpack.c.l.b16 %v3565
    %v4242 = vunpack.c.h.b16 %v3565
    %v4243 = vunpack.c.l.b16 %v3566
    %v4244 = vunpack.c.l.b16 %v3567
    %v4245 = vunpack.c.h.b16 %v3567
    %v4246 = vunpack.c.l.b16 %v3568
    %v4247 = vunpack.c.h.b16 %v3568
    %v4248 = vunpack.c.l.b16 %v3569
    %v4249 = vunpack.c.l.b16 %v3570
    %v4250 = vunpack.c.h.b16 %v3570
    %v4251 = vunpack.c.l.b16 %v3571
    %v4252 = vunpack.c.h.b16 %v3571
    %v4253 = vunpack.c.l.b16 %v3572
    %v4254 = vunpack.c.l.b16 %v3573
    %v4255 = vunpack.c.h.b16 %v3573
    %v4256 = vunpack.c.l.b16 %v3574
    %v4257 = vunpack.c.h.b16 %v3574
    %v4258 = vunpack.c.l.b16 %v3575
    %v4259 = vunpack.c.l.b16 %v3576
    %v4260 = vunpack.c.h.b16 %v3576
    %v4261 = vunpack.c.l.b16 %v3577
    %v4262 = vunpack.c.h.b16 %v3577
    %v4263 = vunpack.c.l.b16 %v3578
    %v4264 = vunpack.c.l.b16 %v3579
    %v4265 = vunpack.c.h.b16 %v3579
    %v4266 = vunpack.c.l.b16 %v3580
    %v4267 = vunpack.c.h.b16 %v3580
    %v4268 = vunpack.c.l.b16 %v3581
    %v4269 = vunpack.c.l.b16 %v3582
    %v4270 = vunpack.c.h.b16 %v3582
    %v4271 = vunpack.c.l.b16 %v3583
    %v4272 = vunpack.c.h.b16 %v3583
    %v4273 = vunpack.c.l.b16 %v3584
    %v4274 = vunpack.c.l.b16 %v3585
    %v4275 = vunpack.c.h.b16 %v3585
    %v4276 = vunpack.c.l.b16 %v3586
    %v4277 = vunpack.c.h.b16 %v3586
    %v4278 = vunpack.c.l.b16 %v3587
    %v4279 = vunpack.c.l.b16 %v3588
    %v4280 = vunpack.c.h.b16 %v3588
    %v4281 = vunpack.c.l.b16 %v3589
    %v4282 = vunpack.c.h.b16 %v3589
    %v4283 = vunpack.c.l.b16 %v3590
    %v4284 = vunpack.c.l.b16 %v3591
    %v4285 = vunpack.c.h.b16 %v3591
    %v4286 = vunpack.c.l.b16 %v3592
    %v4287 = vunpack.c.h.b16 %v3592
    %v4288 = vunpack.c.l.b16 %v3593
    %v4289 = vunpack.c.l.b16 %v3594
    %v4290 = vunpack.c.h.b16 %v3594
    %v4291 = vunpack.c.l.b16 %v3595
    %v4292 = vunpack.c.h.b16 %v3595
    %v4293 = vunpack.c.l.b16 %v3596
    %v4294 = vunpack.c.l.b16 %v3597
    %v4295 = vunpack.c.h.b16 %v3597
    %v4296 = vunpack.c.l.b16 %v3598
    %v4297 = vunpack.c.h.b16 %v3598
    %v4298 = vunpack.c.l.b16 %v3599
    %v4299 = vunpack.c.l.b16 %v3600
    %v4300 = vunpack.c.h.b16 %v3600
    %v4301 = vunpack.c.l.b16 %v3601
    %v4302 = vunpack.c.h.b16 %v3601
    %v4303 = vunpack.c.l.b16 %v3602
    %v4304 = vunpack.c.l.b16 %v3603
    %v4305 = vunpack.c.h.b16 %v3603
    %v4306 = vunpack.c.l.b16 %v3604
    %v4307 = vunpack.c.h.b16 %v3604
    %v4308 = vunpack.c.l.b16 %v3605
    %v4309 = vunpack.c.l.b16 %v3606
    %v4310 = vunpack.c.h.b16 %v3606
    %v4311 = vunpack.c.l.b16 %v3607
    %v4312 = vunpack.c.h.b16 %v3607
    %v4313 = vunpack.c.l.b16 %v3608
    %v4314 = vunpack.c.l.b16 %v3609
    %v4315 = vunpack.c.h.b16 %v3609
    %v4316 = vunpack.c.l.b16 %v3610
    %v4317 = vunpack.c.h.b16 %v3610
    %v4318 = vunpack.c.l.b16 %v3611
    %v4319 = vunpack.c.l.b16 %v3612
    %v4320 = vunpack.c.h.b16 %v3612
    %v4321 = vunpack.c.l.b16 %v3613
    %v4322 = vunpack.c.h.b16 %v3613
    %v4323 = vunpack.c.l.b16 %v3614
    %v4324 = vunpack.c.l.b16 %v3615
    %v4325 = vunpack.c.h.b16 %v3615
    %v4326 = vunpack.c.l.b16 %v3616
    %v4327 = vunpack.c.h.b16 %v3616
    %v4328 = vunpack.c.l.b16 %v3617
    %v4329 = vunpack.c.l.b16 %v3618
    %v4330 = vunpack.c.h.b16 %v3618
    %v4331 = vunpack.c.l.b16 %v3619
    %v4332 = vunpack.c.h.b16 %v3619
    %v4333 = vunpack.c.l.b16 %v3620
    %v4334 = vunpack.c.l.b16 %v3621
    %v4335 = vunpack.c.h.b16 %v3621
    %v4336 = vunpack.c.l.b16 %v3622
    %v4337 = vunpack.c.h.b16 %v3622
    %v4338 = vunpack.c.l.b16 %v3623
    %v4339 = vunpack.c.l.b16 %v3624
    %v4340 = vunpack.c.h.b16 %v3624
    %v4341 = vunpack.c.l.b16 %v3625
    %v4342 = vunpack.c.h.b16 %v3625
    %v4343 = vunpack.c.l.b16 %v3626
    %v4344 = vunpack.c.l.b16 %v3627
    %v4345 = vunpack.c.h.b16 %v3627
    %v4346 = vunpack.c.l.b16 %v3628
    %v4347 = vunpack.c.h.b16 %v3628
    %v4348 = vunpack.c.l.b16 %v3629
    %v4349 = vunpack.c.l.b16 %v3630
    %v4350 = vunpack.c.h.b16 %v3630
    %v4351 = vunpack.c.l.b16 %v3631
    %v4352 = vunpack.c.h.b16 %v3631
    %v4353 = vunpack.c.l.b16 %v3632
    %v4354 = vunpack.c.l.b16 %v3633
    %v4355 = vunpack.c.h.b16 %v3633
    %v4356 = vunpack.c.l.b16 %v3634
    %v4357 = vunpack.c.h.b16 %v3634
    %v4358 = vunpack.c.l.b16 %v3635
    %v4359 = vunpack.c.l.b16 %v3636
    %v4360 = vunpack.c.h.b16 %v3636
    %v4361 = vunpack.c.l.b16 %v3637
    %v4362 = vunpack.c.h.b16 %v3637
    %v4363 = vunpack.c.l.b16 %v3638
    %v4364 = vunpack.c.l.b16 %v3639
    %v4365 = vunpack.c.h.b16 %v3639
    %v4366 = vunpack.c.l.b16 %v3640
    %v4367 = vunpack.c.h.b16 %v3640
    %v4368 = vunpack.c.l.b16 %v3641
    %v4369 = vunpack.c.l.b16 %v3642
    %v4370 = vunpack.c.h.b16 %v3642
    %v4371 = vunpack.c.l.b16 %v3643
    %v4372 = vunpack.c.h.b16 %v3643
    %v4373 = vunpack.c.l.b16 %v3644
    %v4374 = vunpack.c.l.b16 %v3645
    %v4375 = vunpack.c.h.b16 %v3645
    %v4376 = vunpack.c.l.b16 %v3646
    %v4377 = vunpack.c.h.b16 %v3646
    %v4378 = vunpack.c.l.b16 %v3647
    %v4379 = vunpack.c.l.b16 %v3648
    %v4380 = vunpack.c.h.b16 %v3648
    %v4381 = vunpack.c.l.b16 %v3649
    %v4382 = vunpack.c.h.b16 %v3649
    %v4383 = vunpack.c.l.b16 %v3650
    %v4384 = vunpack.c.l.b16 %v3651
    %v4385 = vunpack.c.h.b16 %v3651
    %v4386 = vunpack.c.l.b16 %v3652
    %v4387 = vunpack.c.h.b16 %v3652
    %v4388 = vunpack.c.l.b16 %v3653
    %v4389 = vunpack.c.l.b16 %v3654
    %v4390 = vunpack.c.h.b16 %v3654
    %v4391 = vunpack.c.l.b16 %v3655
    %v4392 = vunpack.c.h.b16 %v3655
    %v4393 = vunpack.c.l.b16 %v3656
    %v4394 = vunpack.c.l.b16 %v3657
    %v4395 = vunpack.c.h.b16 %v3657
    %v4396 = vunpack.c.l.b16 %v3658
    %v4397 = vunpack.c.h.b16 %v3658
    %v4398 = vunpack.c.l.b16 %v3659
    %v4399 = vunpack.c.l.b16 %v3660
    %v4400 = vunpack.c.h.b16 %v3660
    %v4401 = vunpack.c.l.b16 %v3661
    %v4402 = vunpack.c.h.b16 %v3661
    %v4403 = vunpack.c.l.b16 %v3662
    %v4404 = vunpack.c.l.b16 %v3663
    %v4405 = vunpack.c.h.b16 %v3663
    %v4406 = vunpack.c.l.b16 %v3664
    %v4407 = vunpack.c.h.b16 %v3664
    %v4408 = vunpack.c.l.b16 %v3665
    %v4409 = vunpack.c.l.b16 %v3666
    %v4410 = vunpack.c.h.b16 %v3666
    %v4411 = vunpack.c.l.b16 %v3667
    %v4412 = vunpack.c.h.b16 %v3667
    %v4413 = vunpack.c.l.b16 %v3668
    %v4414 = vunpack.c.l.b16 %v3669
    %v4415 = vunpack.c.h.b16 %v3669
    %v4416 = vunpack.c.l.b16 %v3670
    %v4417 = vunpack.c.h.b16 %v3670
    %v4418 = vunpack.c.l.b16 %v3671
    %v4419 = vunpack.c.l.b16 %v3672
    %v4420 = vunpack.c.h.b16 %v3672
    %v4421 = vunpack.c.l.b16 %v3673
    %v4422 = vunpack.c.h.b16 %v3673
    %v4423 = vunpack.c.l.b16 %v3674
    %v4424 = vunpack.c.l.b16 %v3675
    %v4425 = vunpack.c.h.b16 %v3675
    %v4426 = vunpack.c.l.b16 %v3676
    %v4427 = vunpack.c.h.b16 %v3676
    %v4428 = vunpack.c.l.b16 %v3677
    %v4429 = vunpack.c.l.b16 %v3678
    %v4430 = vunpack.c.h.b16 %v3678
    %v4431 = vunpack.c.l.b16 %v3679
    %v4432 = vunpack.c.h.b16 %v3679
    %v4433 = vunpack.c.l.b16 %v3680
    %v4434 = vunpack.c.l.b16 %v3681
    %v4435 = vunpack.c.h.b16 %v3681
    %v4436 = vunpack.c.l.b16 %v3682
    %v4437 = vunpack.c.h.b16 %v3682
    %v4438 = vunpack.c.l.b16 %v3683
    %v4439 = vunpack.c.l.b16 %v3684
    %v4440 = vunpack.c.h.b16 %v3684
    %v4441 = vunpack.c.l.b16 %v3685
    %v4442 = vunpack.c.h.b16 %v3685
    %v4443 = vunpack.c.l.b16 %v3686
    %v4444 = vunpack.c.l.b16 %v3687
    %v4445 = vunpack.c.h.b16 %v3687
    %v4446 = vunpack.c.l.b16 %v3688
    %v4447 = vunpack.c.h.b16 %v3688
    %v4448 = vunpack.c.l.b16 %v3689
    %v4449 = vunpack.c.l.b16 %v3690
    %v4450 = vunpack.c.h.b16 %v3690
    %v4451 = vunpack.c.l.b16 %v3691
    %v4452 = vunpack.c.h.b16 %v3691
    %v4453 = vunpack.c.l.b16 %v3692
    %v4454 = vunpack.c.l.b16 %v3693
    %v4455 = vunpack.c.h.b16 %v3693
    %v4456 = vunpack.c.l.b16 %v3694
    %v4457 = vunpack.c.h.b16 %v3694
    %v4458 = vunpack.c.l.b16 %v3695
    %v4459 = vunpack.c.l.b16 %v3696
    %v4460 = vunpack.c.h.b16 %v3696
    %v4461 = vunpack.c.l.b16 %v3697
    %v4462 = vunpack.c.h.b16 %v3697
    %v4463 = vunpack.c.l.b16 %v3698
    %v4464 = vunpack.c.l.b16 %v3699
    %v4465 = vunpack.c.h.b16 %v3699
    %v4466 = vunpack.c.l.b16 %v3700
    %v4467 = vunpack.c.h.b16 %v3700
    %v4468 = vunpack.c.l.b16 %v3701
    %v4469 = vunpack.c.l.b16 %v3702
    %v4470 = vunpack.c.h.b16 %v3702
    %v4471 = vunpack.c.l.b16 %v3703
    %v4472 = vunpack.c.h.b16 %v3703
    %v4473 = vunpack.c.l.b16 %v3704
    %v4474 = vunpack.c.l.b16 %v3705
    %v4475 = vunpack.c.h.b16 %v3705
    %v4476 = vunpack.c.l.b16 %v3706
    %v4477 = vunpack.c.h.b16 %v3706
    %v4478 = vunpack.c.l.b16 %v3707
    %v4479 = vunpack.c.l.b16 %v3708
    %v4480 = vunpack.c.h.b16 %v3708
    %v4481 = vunpack.c.l.b16 %v3709
    %v4482 = vunpack.c.h.b16 %v3709
    %v4483 = vunpack.c.l.b16 %v3710
    %v4484 = vunpack.c.l.b16 %v3711
    %v4485 = vunpack.c.h.b16 %v3711
    %v4486 = vunpack.c.l.b16 %v3712
    %v4487 = vunpack.c.h.b16 %v3712
    %v4488 = vunpack.c.l.b16 %v3713
    %v4489 = vunpack.c.l.b16 %v3714
    %v4490 = vunpack.c.h.b16 %v3714
    %v4491 = vunpack.c.l.b16 %v3715
    %v4492 = vunpack.c.h.b16 %v3715
    %v4493 = vunpack.c.l.b16 %v3716
    %v4494 = vunpack.c.l.b16 %v3717
    %v4495 = vunpack.c.h.b16 %v3717
    %v4496 = vunpack.c.l.b16 %v3718
    %v4497 = vunpack.c.h.b16 %v3718
    %v4498 = vunpack.c.l.b16 %v3719
    %v4499 = vunpack.c.l.b16 %v3720
    %v4500 = vunpack.c.h.b16 %v3720
    %v4501 = vunpack.c.l.b16 %v3721
    %v4502 = vunpack.c.h.b16 %v3721
    %v4503 = vunpack.c.l.b16 %v3722
    %v4504 = vunpack.c.l.b16 %v3723
    %v4505 = vunpack.c.h.b16 %v3723
    %v4506 = vunpack.c.l.b16 %v3724
    %v4507 = vunpack.c.h.b16 %v3724
    %v4508 = vunpack.c.l.b16 %v3725
    %v4509 = vunpack.c.l.b16 %v3726
    %v4510 = vunpack.c.h.b16 %v3726
    %v4511 = vunpack.c.l.b16 %v3727
    %v4512 = vunpack.c.h.b16 %v3727
    %v4513 = vunpack.c.l.b16 %v3728
    %v4514 = vunpack.c.l.b16 %v3729
    %v4515 = vunpack.c.h.b16 %v3729
    %v4516 = vunpack.c.l.b16 %v3730
    %v4517 = vunpack.c.h.b16 %v3730
    %v4518 = vunpack.c.l.b16 %v3731
    %v4519 = vunpack.c.l.b16 %v3732
    %v4520 = vunpack.c.h.b16 %v3732
    %v4521 = vunpack.c.l.b16 %v3733
    %v4522 = vunpack.c.h.b16 %v3733
    %v4523 = vunpack.c.l.b16 %v3734
    %v4524 = vunpack.c.l.b16 %v3735
    %v4525 = vunpack.c.h.b16 %v3735
    %v4526 = vunpack.c.l.b16 %v3736
    %v4527 = vunpack.c.h.b16 %v3736
    %v4528 = vunpack.c.l.b16 %v3737
    %v4529 = vunpack.c.l.b16 %v3738
    %v4530 = vunpack.c.h.b16 %v3738
    %v4531 = vunpack.c.l.b16 %v3739
    %v4532 = vunpack.c.h.b16 %v3739
    %v4533 = vunpack.c.l.b16 %v3740
    %v4534 = vunpack.c.l.b16 %v3741
    %v4535 = vunpack.c.h.b16 %v3741
    %v4536 = vunpack.c.l.b16 %v3742
    %v4537 = vunpack.c.h.b16 %v3742
    %v4538 = vunpack.c.l.b16 %v3743
    %v4539 = vpack.c.b16 %v4064, %v4059
    %v4540 = vpack.c.b16 %v4065, %v4060
    %v4541 = vpack.c.b16 %v4066, %v4061
    %v4542 = vpack.c.b16 %v4067, %v4062
    %v4543 = vpack.c.b16 %v4068, %v4063
    %v4544 = vpack.c.b16 %v4074, %v4069
    %v4545 = vpack.c.b16 %v4075, %v4070
    %v4546 = vpack.c.b16 %v4076, %v4071
    %v4547 = vpack.c.b16 %v4077, %v4072
    %v4548 = vpack.c.b16 %v4078, %v4073
    %v4549 = vpack.c.b16 %v4084, %v4079
    %v4550 = vpack.c.b16 %v4085, %v4080
    %v4551 = vpack.c.b16 %v4086, %v4081
    %v4552 = vpack.c.b16 %v4087, %v4082
    %v4553 = vpack.c.b16 %v4088, %v4083
    %v4554 = vpack.c.b16 %v4094, %v4089
    %v4555 = vpack.c.b16 %v4095, %v4090
    %v4556 = vpack.c.b16 %v4096, %v4091
    %v4557 = vpack.c.b16 %v4097, %v4092
    %v4558 = vpack.c.b16 %v4098, %v4093
    %v4559 = vpack.c.b16 %v4104, %v4099
    %v4560 = vpack.c.b16 %v4105, %v4100
    %v4561 = vpack.c.b16 %v4106, %v4101
    %v4562 = vpack.c.b16 %v4107, %v4102
    %v4563 = vpack.c.b16 %v4108, %v4103
    %v4564 = vpack.c.b16 %v4114, %v4109
    %v4565 = vpack.c.b16 %v4115, %v4110
    %v4566 = vpack.c.b16 %v4116, %v4111
    %v4567 = vpack.c.b16 %v4117, %v4112
    %v4568 = vpack.c.b16 %v4118, %v4113
    %v4569 = vpack.c.b16 %v4124, %v4119
    %v4570 = vpack.c.b16 %v4125, %v4120
    %v4571 = vpack.c.b16 %v4126, %v4121
    %v4572 = vpack.c.b16 %v4127, %v4122
    %v4573 = vpack.c.b16 %v4128, %v4123
    %v4574 = vpack.c.b16 %v4134, %v4129
    %v4575 = vpack.c.b16 %v4135, %v4130
    %v4576 = vpack.c.b16 %v4136, %v4131
    %v4577 = vpack.c.b16 %v4137, %v4132
    %v4578 = vpack.c.b16 %v4138, %v4133
    %v4579 = vpack.c.b16 %v4144, %v4139
    %v4580 = vpack.c.b16 %v4145, %v4140
    %v4581 = vpack.c.b16 %v4146, %v4141
    %v4582 = vpack.c.b16 %v4147, %v4142
    %v4583 = vpack.c.b16 %v4148, %v4143
    %v4584 = vpack.c.b16 %v4154, %v4149
    %v4585 = vpack.c.b16 %v4155, %v4150
    %v4586 = vpack.c.b16 %v4156, %v4151
    %v4587 = vpack.c.b16 %v4157, %v4152
    %v4588 = vpack.c.b16 %v4158, %v4153
    %v4589 = vpack.c.b16 %v4164, %v4159
    %v4590 = vpack.c.b16 %v4165, %v4160
    %v4591 = vpack.c.b16 %v4166, %v4161
    %v4592 = vpack.c.b16 %v4167, %v4162
    %v4593 = vpack.c.b16 %v4168, %v4163
    %v4594 = vpack.c.b16 %v4174, %v4169
    %v4595 = vpack.c.b16 %v4175, %v4170
    %v4596 = vpack.c.b16 %v4176, %v4171
    %v4597 = vpack.c.b16 %v4177, %v4172
    %v4598 = vpack.c.b16 %v4178, %v4173
    %v4599 = vpack.c.b16 %v4184, %v4179
    %v4600 = vpack.c.b16 %v4185, %v4180
    %v4601 = vpack.c.b16 %v4186, %v4181
    %v4602 = vpack.c.b16 %v4187, %v4182
    %v4603 = vpack.c.b16 %v4188, %v4183
    %v4604 = vpack.c.b16 %v4194, %v4189
    %v4605 = vpack.c.b16 %v4195, %v4190
    %v4606 = vpack.c.b16 %v4196, %v4191
    %v4607 = vpack.c.b16 %v4197, %v4192
    %v4608 = vpack.c.b16 %v4198, %v4193
    %v4609 = vpack.c.b16 %v4204, %v4199
    %v4610 = vpack.c.b16 %v4205, %v4200
    %v4611 = vpack.c.b16 %v4206, %v4201
    %v4612 = vpack.c.b16 %v4207, %v4202
    %v4613 = vpack.c.b16 %v4208, %v4203
    %v4614 = vpack.c.b16 %v4214, %v4209
    %v4615 = vpack.c.b16 %v4215, %v4210
    %v4616 = vpack.c.b16 %v4216, %v4211
    %v4617 = vpack.c.b16 %v4217, %v4212
    %v4618 = vpack.c.b16 %v4218, %v4213
    %v4619 = vpack.c.b16 %v4224, %v4219
    %v4620 = vpack.c.b16 %v4225, %v4220
    %v4621 = vpack.c.b16 %v4226, %v4221
    %v4622 = vpack.c.b16 %v4227, %v4222
    %v4623 = vpack.c.b16 %v4228, %v4223
    %v4624 = vpack.c.b16 %v4234, %v4229
    %v4625 = vpack.c.b16 %v4235, %v4230
    %v4626 = vpack.c.b16 %v4236, %v4231
    %v4627 = vpack.c.b16 %v4237, %v4232
    %v4628 = vpack.c.b16 %v4238, %v4233
    %v4629 = vpack.c.b16 %v4244, %v4239
    %v4630 = vpack.c.b16 %v4245, %v4240
    %v4631 = vpack.c.b16 %v4246, %v4241
    %v4632 = vpack.c.b16 %v4247, %v4242
    %v4633 = vpack.c.b16 %v4248, %v4243
    %v4634 = vpack.c.b16 %v4254, %v4249
    %v4635 = vpack.c.b16 %v4255, %v4250
    %v4636 = vpack.c.b16 %v4256, %v4251
    %v4637 = vpack.c.b16 %v4257, %v4252
    %v4638 = vpack.c.b16 %v4258, %v4253
    %v4639 = vpack.c.b16 %v4264, %v4259
    %v4640 = vpack.c.b16 %v4265, %v4260
    %v4641 = vpack.c.b16 %v4266, %v4261
    %v4642 = vpack.c.b16 %v4267, %v4262
    %v4643 = vpack.c.b16 %v4268, %v4263
    %v4644 = vpack.c.b16 %v4274, %v4269
    %v4645 = vpack.c.b16 %v4275, %v4270
    %v4646 = vpack.c.b16 %v4276, %v4271
    %v4647 = vpack.c.b16 %v4277, %v4272
    %v4648 = vpack.c.b16 %v4278, %v4273
    %v4649 = vpack.c.b16 %v4284, %v4279
    %v4650 = vpack.c.b16 %v4285, %v4280
    %v4651 = vpack.c.b16 %v4286, %v4281
    %v4652 = vpack.c.b16 %v4287, %v4282
    %v4653 = vpack.c.b16 %v4288, %v4283
    %v4654 = vpack.c.b16 %v4294, %v4289
    %v4655 = vpack.c.b16 %v4295, %v4290
    %v4656 = vpack.c.b16 %v4296, %v4291
    %v4657 = vpack.c.b16 %v4297, %v4292
    %v4658 = vpack.c.b16 %v4298, %v4293
    %v4659 = vpack.c.b16 %v4304, %v4299
    %v4660 = vpack.c.b16 %v4305, %v4300
    %v4661 = vpack.c.b16 %v4306, %v4301
    %v4662 = vpack.c.b16 %v4307, %v4302
    %v4663 = vpack.c.b16 %v4308, %v4303
    %v4664 = vpack.c.b16 %v4314, %v4309
    %v4665 = vpack.c.b16 %v4315, %v4310
    %v4666 = vpack.c.b16 %v4316, %v4311
    %v4667 = vpack.c.b16 %v4317, %v4312
    %v4668 = vpack.c.b16 %v4318, %v4313
    %v4669 = vpack.c.b16 %v4324, %v4319
    %v4670 = vpack.c.b16 %v4325, %v4320
    %v4671 = vpack.c.b16 %v4326, %v4321
    %v4672 = vpack.c.b16 %v4327, %v4322
    %v4673 = vpack.c.b16 %v4328, %v4323
    %v4674 = vpack.c.b16 %v4334, %v4329
    %v4675 = vpack.c.b16 %v4335, %v4330
    %v4676 = vpack.c.b16 %v4336, %v4331
    %v4677 = vpack.c.b16 %v4337, %v4332
    %v4678 = vpack.c.b16 %v4338, %v4333
    %v4679 = vpack.c.b16 %v4344, %v4339
    %v4680 = vpack.c.b16 %v4345, %v4340
    %v4681 = vpack.c.b16 %v4346, %v4341
    %v4682 = vpack.c.b16 %v4347, %v4342
    %v4683 = vpack.c.b16 %v4348, %v4343
    %v4684 = vpack.c.b16 %v4354, %v4349
    %v4685 = vpack.c.b16 %v4355, %v4350
    %v4686 = vpack.c.b16 %v4356, %v4351
    %v4687 = vpack.c.b16 %v4357, %v4352
    %v4688 = vpack.c.b16 %v4358, %v4353
    %v4689 = vpack.c.b16 %v4364, %v4359
    %v4690 = vpack.c.b16 %v4365, %v4360
    %v4691 = vpack.c.b16 %v4366, %v4361
    %v4692 = vpack.c.b16 %v4367, %v4362
    %v4693 = vpack.c.b16 %v4368, %v4363
    %v4694 = vpack.c.b16 %v4374, %v4369
    %v4695 = vpack.c.b16 %v4375, %v4370
    %v4696 = vpack.c.b16 %v4376, %v4371
    %v4697 = vpack.c.b16 %v4377, %v4372
    %v4698 = vpack.c.b16 %v4378, %v4373
    %v4699 = vpack.c.b16 %v4384, %v4379
    %v4700 = vpack.c.b16 %v4385, %v4380
    %v4701 = vpack.c.b16 %v4386, %v4381
    %v4702 = vpack.c.b16 %v4387, %v4382
    %v4703 = vpack.c.b16 %v4388, %v4383
    %v4704 = vpack.c.b16 %v4394, %v4389
    %v4705 = vpack.c.b16 %v4395, %v4390
    %v4706 = vpack.c.b16 %v4396, %v4391
    %v4707 = vpack.c.b16 %v4397, %v4392
    %v4708 = vpack.c.b16 %v4398, %v4393
    %v4709 = vpack.c.b16 %v4404, %v4399
    %v4710 = vpack.c.b16 %v4405, %v4400
    %v4711 = vpack.c.b16 %v4406, %v4401
    %v4712 = vpack.c.b16 %v4407, %v4402
    %v4713 = vpack.c.b16 %v4408, %v4403
    %v4714 = vpack.c.b16 %v4414, %v4409
    %v4715 = vpack.c.b16 %v4415, %v4410
    %v4716 = vpack.c.b16 %v4416, %v4411
    %v4717 = vpack.c.b16 %v4417, %v4412
    %v4718 = vpack.c.b16 %v4418, %v4413
    %v4719 = vpack.c.b16 %v4424, %v4419
    %v4720 = vpack.c.b16 %v4425, %v4420
    %v4721 = vpack.c.b16 %v4426, %v4421
    %v4722 = vpack.c.b16 %v4427, %v4422
    %v4723 = vpack.c.b16 %v4428, %v4423
    %v4724 = vpack.c.b16 %v4434, %v4429
    %v4725 = vpack.c.b16 %v4435, %v4430
    %v4726 = vpack.c.b16 %v4436, %v4431
    %v4727 = vpack.c.b16 %v4437, %v4432
    %v4728 = vpack.c.b16 %v4438, %v4433
    %v4729 = vpack.c.b16 %v4444, %v4439
    %v4730 = vpack.c.b16 %v4445, %v4440
    %v4731 = vpack.c.b16 %v4446, %v4441
    %v4732 = vpack.c.b16 %v4447, %v4442
    %v4733 = vpack.c.b16 %v4448, %v4443
    %v4734 = vpack.c.b16 %v4454, %v4449
    %v4735 = vpack.c.b16 %v4455, %v4450
    %v4736 = vpack.c.b16 %v4456, %v4451
    %v4737 = vpack.c.b16 %v4457, %v4452
    %v4738 = vpack.c.b16 %v4458, %v4453
    %v4739 = vpack.c.b16 %v4464, %v4459
    %v4740 = vpack.c.b16 %v4465, %v4460
    %v4741 = vpack.c.b16 %v4466, %v4461
    %v4742 = vpack.c.b16 %v4467, %v4462
    %v4743 = vpack.c.b16 %v4468, %v4463
    %v4744 = vpack.c.b16 %v4474, %v4469
    %v4745 = vpack.c.b16 %v4475, %v4470
    %v4746 = vpack.c.b16 %v4476, %v4471
    %v4747 = vpack.c.b16 %v4477, %v4472
    %v4748 = vpack.c.b16 %v4478, %v4473
    %v4749 = vpack.c.b16 %v4484, %v4479
    %v4750 = vpack.c.b16 %v4485, %v4480
    %v4751 = vpack.c.b16 %v4486, %v4481
    %v4752 = vpack.c.b16 %v4487, %v4482
    %v4753 = vpack.c.b16 %v4488, %v4483
    %v4754 = vpack.c.b16 %v4494, %v4489
    %v4755 = vpack.c.b16 %v4495, %v4490
    %v4756 = vpack.c.b16 %v4496, %v4491
    %v4757 = vpack.c.b16 %v4497, %v4492
    %v4758 = vpack.c.b16 %v4498, %v4493
    %v4759 = vpack.c.b16 %v4504, %v4499
    %v4760 = vpack.c.b16 %v4505, %v4500
    %v4761 = vpack.c.b16 %v4506, %v4501
    %v4762 = vpack.c.b16 %v4507, %v4502
    %v4763 = vpack.c.b16 %v4508, %v4503
    %v4764 = vpack.c.b16 %v4514, %v4509
    %v4765 = vpack.c.b16 %v4515, %v4510
    %v4766 = vpack.c.b16 %v4516, %v4511
    %v4767 = vpack.c.b16 %v4517, %v4512
    %v4768 = vpack.c.b16 %v4518, %v4513
    %v4769 = vpack.c.b16 %v4524, %v4519
    %v4770 = vpack.c.b16 %v4525, %v4520
    %v4771 = vpack.c.b16 %v4526, %v4521
    %v4772 = vpack.c.b16 %v4527, %v4522
    %v4773 = vpack.c.b16 %v4528, %v4523
    %v4774 = vpack.c.b16 %v4534, %v4529
    %v4775 = vpack.c.b16 %v4535, %v4530
    %v4776 = vpack.c.b16 %v4536, %v4531
    %v4777 = vpack.c.b16 %v4537, %v4532
    %v4778 = vpack.c.b16 %v4538, %v4533
    %5019 = vmatprep.subr.bf16.mxu0 %v4575
    %5020 = vmatpush1.bf16.msra.mxu0 %v4574
    %5021 = vmatprep.subr.bf16.mxu0 %v4570
    %5022 = vmatpush1.bf16.msra.mxu0 %v4569
    %5023 = vmatprep.subr.bf16.mxu0 %v4565
    %5024 = vmatpush1.bf16.msra.mxu0 %v4564
    %5025 = vmatprep.subr.bf16.mxu0 %v4560
    %5026 = vmatpush1.bf16.msra.mxu0 %v4559
    %5027 = vmatprep.subr.bf16.mxu0 %v4555
    %5028 = vmatpush1.bf16.msra.mxu0 %v4554
    %5029 = vmatprep.subr.bf16.mxu0 %v4550
    %5030 = vmatpush1.bf16.msra.mxu0 %v4549
    %5031 = vmatprep.subr.bf16.mxu0 %v4545
    %5032 = vmatpush1.bf16.msra.mxu0 %v4544
    %5033 = vmatprep.subr.bf16.mxu0 %v4540
    %5034 = vmatpush1.bf16.msra.mxu0 %v4539
    %5035 = vmatprep.subr.bf16.mxu0 %v4615
    %5036 = vmatpush2.bf16.msra.mxu0 %v4614
    %5037 = vmatprep.subr.bf16.mxu0 %v4610
    %5038 = vmatpush2.bf16.msra.mxu0 %v4609
    %5039 = vmatprep.subr.bf16.mxu0 %v4605
    %5040 = vmatpush2.bf16.msra.mxu0 %v4604
    %5041 = vmatprep.subr.bf16.mxu0 %v4600
    %5042 = vmatpush2.bf16.msra.mxu0 %v4599
    %5043 = vmatprep.subr.bf16.mxu0 %v4595
    %5044 = vmatpush2.bf16.msra.mxu0 %v4594
    %5045 = vmatprep.subr.bf16.mxu0 %v4590
    %5046 = vmatpush2.bf16.msra.mxu0 %v4589
    %5047 = vmatprep.subr.bf16.mxu0 %v4585
    %5048 = vmatpush2.bf16.msra.mxu0 %v4584
    %5049 = vmatprep.subr.bf16.mxu0 %v4580
    %5050 = vmatpush2.bf16.msra.mxu0 %v4579
    %5051 = vmatprep.mubr.bf16.mxu0 %v3451
    %5052 = vmatmul.mubr.bf16.gmra.mxu0 %v3450
    %v5053 = vpop.f32.mrf.mxu0
    %v5054 = vadd.f32 %v3749, %v5053
    %v5055 = vpop.f32.mrf.mxu0
    %v5056 = vadd.f32 %v3753, %v5055
    %v5057 = vpop.f32.mrf.mxu0
    %v5058 = vadd.f32 %v3749, %v5057
    %v5059 = vpop.f32.mrf.mxu0
    %v5060 = vadd.f32 %v3753, %v5059
    %5061 = vdwg.mxu0
    %5062 = vmatprep.subr.bf16.mxu0 %v4655
    %5063 = vmatpush1.bf16.msra.mxu0 %v4654
    %5064 = vmatprep.subr.bf16.mxu0 %v4650
    %5065 = vmatpush1.bf16.msra.mxu0 %v4649
    %5066 = vmatprep.subr.bf16.mxu0 %v4645
    %5067 = vmatpush1.bf16.msra.mxu0 %v4644
    %5068 = vmatprep.subr.bf16.mxu0 %v4640
    %5069 = vmatpush1.bf16.msra.mxu0 %v4639
    %5070 = vmatprep.subr.bf16.mxu0 %v4635
    %5071 = vmatpush1.bf16.msra.mxu0 %v4634
    %5072 = vmatprep.subr.bf16.mxu0 %v4630
    %5073 = vmatpush1.bf16.msra.mxu0 %v4629
    %5074 = vmatprep.subr.bf16.mxu0 %v4625
    %5075 = vmatpush1.bf16.msra.mxu0 %v4624
    %5076 = vmatprep.subr.bf16.mxu0 %v4620
    %5077 = vmatpush1.bf16.msra.mxu0 %v4619
    %5078 = vmatprep.subr.bf16.mxu0 %v4695
    %5079 = vmatpush2.bf16.msra.mxu0 %v4694
    %5080 = vmatprep.subr.bf16.mxu0 %v4690
    %5081 = vmatpush2.bf16.msra.mxu0 %v4689
    %5082 = vmatprep.subr.bf16.mxu0 %v4685
    %5083 = vmatpush2.bf16.msra.mxu0 %v4684
    %5084 = vmatprep.subr.bf16.mxu0 %v4680
    %5085 = vmatpush2.bf16.msra.mxu0 %v4679
    %5086 = vmatprep.subr.bf16.mxu0 %v4675
    %5087 = vmatpush2.bf16.msra.mxu0 %v4674
    %5088 = vmatprep.subr.bf16.mxu0 %v4670
    %5089 = vmatpush2.bf16.msra.mxu0 %v4669
    %5090 = vmatprep.subr.bf16.mxu0 %v4665
    %5091 = vmatpush2.bf16.msra.mxu0 %v4664
    %5092 = vmatprep.subr.bf16.mxu0 %v4660
    %5093 = vmatpush2.bf16.msra.mxu0 %v4659
    %5094 = vmatprep.mubr.bf16.mxu0 %v3453
    %5095 = vmatmul.mubr.bf16.gmra.mxu0 %v3452
    %v5096 = vpop.f32.mrf.mxu0
    %v5097 = vadd.f32 %v5054, %v5096
    %v5098 = vpop.f32.mrf.mxu0
    %v5099 = vadd.f32 %v5056, %v5098
    %v5100 = vpop.f32.mrf.mxu0
    %v5101 = vadd.f32 %v5058, %v5100
    %v5102 = vpop.f32.mrf.mxu0
    %v5103 = vadd.f32 %v5060, %v5102
    %5104 = vdwg.mxu0
    %5105 = vmatprep.subr.bf16.mxu0 %v4735
    %5106 = vmatpush1.bf16.msra.mxu0 %v4734
    %5107 = vmatprep.subr.bf16.mxu0 %v4730
    %5108 = vmatpush1.bf16.msra.mxu0 %v4729
    %5109 = vmatprep.subr.bf16.mxu0 %v4725
    %5110 = vmatpush1.bf16.msra.mxu0 %v4724
    %5111 = vmatprep.subr.bf16.mxu0 %v4720
    %5112 = vmatpush1.bf16.msra.mxu0 %v4719
    %5113 = vmatprep.subr.bf16.mxu0 %v4715
    %5114 = vmatpush1.bf16.msra.mxu0 %v4714
    %5115 = vmatprep.subr.bf16.mxu0 %v4710
    %5116 = vmatpush1.bf16.msra.mxu0 %v4709
    %5117 = vmatprep.subr.bf16.mxu0 %v4705
    %5118 = vmatpush1.bf16.msra.mxu0 %v4704
    %5119 = vmatprep.subr.bf16.mxu0 %v4700
    %5120 = vmatpush1.bf16.msra.mxu0 %v4699
    %5121 = vmatprep.subr.bf16.mxu0 %v4775
    %5122 = vmatpush2.bf16.msra.mxu0 %v4774
    %5123 = vmatprep.subr.bf16.mxu0 %v4770
    %5124 = vmatpush2.bf16.msra.mxu0 %v4769
    %5125 = vmatprep.subr.bf16.mxu0 %v4765
    %5126 = vmatpush2.bf16.msra.mxu0 %v4764
    %5127 = vmatprep.subr.bf16.mxu0 %v4760
    %5128 = vmatpush2.bf16.msra.mxu0 %v4759
    %5129 = vmatprep.subr.bf16.mxu0 %v4755
    %5130 = vmatpush2.bf16.msra.mxu0 %v4754
    %5131 = vmatprep.subr.bf16.mxu0 %v4750
    %5132 = vmatpush2.bf16.msra.mxu0 %v4749
    %5133 = vmatprep.subr.bf16.mxu0 %v4745
    %5134 = vmatpush2.bf16.msra.mxu0 %v4744
    %5135 = vmatprep.subr.bf16.mxu0 %v4740
    %5136 = vmatpush2.bf16.msra.mxu0 %v4739
    %5137 = vmatprep.mubr.bf16.mxu0 %v3455
    %5138 = vmatmul.mubr.bf16.gmra.mxu0 %v3454
    %v5139 = vpop.f32.mrf.mxu0
    %v5140 = vadd.f32 %v5097, %v5139
    %v5141 = vpop.f32.mrf.mxu0
    %v5142 = vadd.f32 %v5099, %v5141
    %v5143 = vpop.f32.mrf.mxu0
    %v5144 = vadd.f32 %v5101, %v5143
    %v5145 = vpop.f32.mrf.mxu0
    %v5146 = vadd.f32 %v5103, %v5145
    %5147 = vdwg.mxu0
    %5148 = vmatprep.subr.bf16.mxu0 %v4577
    %5149 = vmatpush1.bf16.msra.mxu0 %v4576
    %5150 = vmatprep.subr.bf16.mxu0 %v4572
    %5151 = vmatpush1.bf16.msra.mxu0 %v4571
    %5152 = vmatprep.subr.bf16.mxu0 %v4567
    %5153 = vmatpush1.bf16.msra.mxu0 %v4566
    %5154 = vmatprep.subr.bf16.mxu0 %v4562
    %5155 = vmatpush1.bf16.msra.mxu0 %v4561
    %5156 = vmatprep.subr.bf16.mxu0 %v4557
    %5157 = vmatpush1.bf16.msra.mxu0 %v4556
    %5158 = vmatprep.subr.bf16.mxu0 %v4552
    %5159 = vmatpush1.bf16.msra.mxu0 %v4551
    %5160 = vmatprep.subr.bf16.mxu0 %v4547
    %5161 = vmatpush1.bf16.msra.mxu0 %v4546
    %5162 = vmatprep.subr.bf16.mxu0 %v4542
    %5163 = vmatpush1.bf16.msra.mxu0 %v4541
    %5164 = vmatprep.subr.bf16.mxu0 %v4617
    %5165 = vmatpush2.bf16.msra.mxu0 %v4616
    %5166 = vmatprep.subr.bf16.mxu0 %v4612
    %5167 = vmatpush2.bf16.msra.mxu0 %v4611
    %5168 = vmatprep.subr.bf16.mxu0 %v4607
    %5169 = vmatpush2.bf16.msra.mxu0 %v4606
    %5170 = vmatprep.subr.bf16.mxu0 %v4602
    %5171 = vmatpush2.bf16.msra.mxu0 %v4601
    %5172 = vmatprep.subr.bf16.mxu0 %v4597
    %5173 = vmatpush2.bf16.msra.mxu0 %v4596
    %5174 = vmatprep.subr.bf16.mxu0 %v4592
    %5175 = vmatpush2.bf16.msra.mxu0 %v4591
    %5176 = vmatprep.subr.bf16.mxu0 %v4587
    %5177 = vmatpush2.bf16.msra.mxu0 %v4586
    %5178 = vmatprep.subr.bf16.mxu0 %v4582
    %5179 = vmatpush2.bf16.msra.mxu0 %v4581
    %5180 = vmatprep.mubr.bf16.mxu0 %v3451
    %5181 = vmatmul.mubr.bf16.gmra.mxu0 %v3450
    %v5182 = vpop.f32.mrf.mxu0
    %v5183 = vadd.f32 %v3757, %v5182
    %v5184 = vpop.f32.mrf.mxu0
    %v5185 = vadd.f32 %v3761, %v5184
    %v5186 = vpop.f32.mrf.mxu0
    %v5187 = vadd.f32 %v3757, %v5186
    %v5188 = vpop.f32.mrf.mxu0
    %v5189 = vadd.f32 %v3761, %v5188
    %5190 = vdwg.mxu0
    %5191 = vmatprep.subr.bf16.mxu0 %v4657
    %5192 = vmatpush1.bf16.msra.mxu0 %v4656
    %5193 = vmatprep.subr.bf16.mxu0 %v4652
    %5194 = vmatpush1.bf16.msra.mxu0 %v4651
    %5195 = vmatprep.subr.bf16.mxu0 %v4647
    %5196 = vmatpush1.bf16.msra.mxu0 %v4646
    %5197 = vmatprep.subr.bf16.mxu0 %v4642
    %5198 = vmatpush1.bf16.msra.mxu0 %v4641
    %5199 = vmatprep.subr.bf16.mxu0 %v4637
    %5200 = vmatpush1.bf16.msra.mxu0 %v4636
    %5201 = vmatprep.subr.bf16.mxu0 %v4632
    %5202 = vmatpush1.bf16.msra.mxu0 %v4631
    %5203 = vmatprep.subr.bf16.mxu0 %v4627
    %5204 = vmatpush1.bf16.msra.mxu0 %v4626
    %5205 = vmatprep.subr.bf16.mxu0 %v4622
    %5206 = vmatpush1.bf16.msra.mxu0 %v4621
    %5207 = vmatprep.subr.bf16.mxu0 %v4697
    %5208 = vmatpush2.bf16.msra.mxu0 %v4696
    %5209 = vmatprep.subr.bf16.mxu0 %v4692
    %5210 = vmatpush2.bf16.msra.mxu0 %v4691
    %5211 = vmatprep.subr.bf16.mxu0 %v4687
    %5212 = vmatpush2.bf16.msra.mxu0 %v4686
    %5213 = vmatprep.subr.bf16.mxu0 %v4682
    %5214 = vmatpush2.bf16.msra.mxu0 %v4681
    %5215 = vmatprep.subr.bf16.mxu0 %v4677
    %5216 = vmatpush2.bf16.msra.mxu0 %v4676
    %5217 = vmatprep.subr.bf16.mxu0 %v4672
    %5218 = vmatpush2.bf16.msra.mxu0 %v4671
    %5219 = vmatprep.subr.bf16.mxu0 %v4667
    %5220 = vmatpush2.bf16.msra.mxu0 %v4666
    %5221 = vmatprep.subr.bf16.mxu0 %v4662
    %5222 = vmatpush2.bf16.msra.mxu0 %v4661
    %5223 = vmatprep.mubr.bf16.mxu0 %v3453
    %5224 = vmatmul.mubr.bf16.gmra.mxu0 %v3452
    %v5225 = vpop.f32.mrf.mxu0
    %v5226 = vadd.f32 %v5183, %v5225
    %v5227 = vpop.f32.mrf.mxu0
    %v5228 = vadd.f32 %v5185, %v5227
    %v5229 = vpop.f32.mrf.mxu0
    %v5230 = vadd.f32 %v5187, %v5229
    %v5231 = vpop.f32.mrf.mxu0
    %v5232 = vadd.f32 %v5189, %v5231
    %5233 = vdwg.mxu0
    %5234 = vmatprep.subr.bf16.mxu0 %v4737
    %5235 = vmatpush1.bf16.msra.mxu0 %v4736
    %5236 = vmatprep.subr.bf16.mxu0 %v4732
    %5237 = vmatpush1.bf16.msra.mxu0 %v4731
    %5238 = vmatprep.subr.bf16.mxu0 %v4727
    %5239 = vmatpush1.bf16.msra.mxu0 %v4726
    %5240 = vmatprep.subr.bf16.mxu0 %v4722
    %5241 = vmatpush1.bf16.msra.mxu0 %v4721
    %5242 = vmatprep.subr.bf16.mxu0 %v4717
    %5243 = vmatpush1.bf16.msra.mxu0 %v4716
    %5244 = vmatprep.subr.bf16.mxu0 %v4712
    %5245 = vmatpush1.bf16.msra.mxu0 %v4711
    %5246 = vmatprep.subr.bf16.mxu0 %v4707
    %5247 = vmatpush1.bf16.msra.mxu0 %v4706
    %5248 = vmatprep.subr.bf16.mxu0 %v4702
    %5249 = vmatpush1.bf16.msra.mxu0 %v4701
    %5250 = vmatprep.subr.bf16.mxu0 %v4777
    %5251 = vmatpush2.bf16.msra.mxu0 %v4776
    %5252 = vmatprep.subr.bf16.mxu0 %v4772
    %5253 = vmatpush2.bf16.msra.mxu0 %v4771
    %5254 = vmatprep.subr.bf16.mxu0 %v4767
    %5255 = vmatpush2.bf16.msra.mxu0 %v4766
    %5256 = vmatprep.subr.bf16.mxu0 %v4762
    %5257 = vmatpush2.bf16.msra.mxu0 %v4761
    %5258 = vmatprep.subr.bf16.mxu0 %v4757
    %5259 = vmatpush2.bf16.msra.mxu0 %v4756
    %5260 = vmatprep.subr.bf16.mxu0 %v4752
    %5261 = vmatpush2.bf16.msra.mxu0 %v4751
    %5262 = vmatprep.subr.bf16.mxu0 %v4747
    %5263 = vmatpush2.bf16.msra.mxu0 %v4746
    %5264 = vmatprep.subr.bf16.mxu0 %v4742
    %5265 = vmatpush2.bf16.msra.mxu0 %v4741
    %5266 = vmatprep.mubr.bf16.mxu0 %v3455
    %5267 = vmatmul.mubr.bf16.gmra.mxu0 %v3454
    %v5268 = vpop.f32.mrf.mxu0
    %v5269 = vadd.f32 %v5226, %v5268
    %v5270 = vpop.f32.mrf.mxu0
    %v5271 = vadd.f32 %v5228, %v5270
    %v5272 = vpop.f32.mrf.mxu0
    %v5273 = vadd.f32 %v5230, %v5272
    %v5274 = vpop.f32.mrf.mxu0
    %v5275 = vadd.f32 %v5232, %v5274
    %5276 = vdwg.mxu0
    %5277 = vmatprep.subr.bf16.mxu0 0
    %5278 = vmatpush1.bf16.msra.mxu0 %v4578
    %5279 = vmatprep.subr.bf16.mxu0 0
    %5280 = vmatpush1.bf16.msra.mxu0 %v4573
    %5281 = vmatprep.subr.bf16.mxu0 0
    %5282 = vmatpush1.bf16.msra.mxu0 %v4568
    %5283 = vmatprep.subr.bf16.mxu0 0
    %5284 = vmatpush1.bf16.msra.mxu0 %v4563
    %5285 = vmatprep.subr.bf16.mxu0 0
    %5286 = vmatpush1.bf16.msra.mxu0 %v4558
    %5287 = vmatprep.subr.bf16.mxu0 0
    %5288 = vmatpush1.bf16.msra.mxu0 %v4553
    %5289 = vmatprep.subr.bf16.mxu0 0
    %5290 = vmatpush1.bf16.msra.mxu0 %v4548
    %5291 = vmatprep.subr.bf16.mxu0 0
    %5292 = vmatpush1.bf16.msra.mxu0 %v4543
    %5293 = vmatprep.subr.bf16.mxu0 0
    %5294 = vmatpush2.bf16.msra.mxu0 %v4618
    %5295 = vmatprep.subr.bf16.mxu0 0
    %5296 = vmatpush2.bf16.msra.mxu0 %v4613
    %5297 = vmatprep.subr.bf16.mxu0 0
    %5298 = vmatpush2.bf16.msra.mxu0 %v4608
    %5299 = vmatprep.subr.bf16.mxu0 0
    %5300 = vmatpush2.bf16.msra.mxu0 %v4603
    %5301 = vmatprep.subr.bf16.mxu0 0
    %5302 = vmatpush2.bf16.msra.mxu0 %v4598
    %5303 = vmatprep.subr.bf16.mxu0 0
    %5304 = vmatpush2.bf16.msra.mxu0 %v4593
    %5305 = vmatprep.subr.bf16.mxu0 0
    %5306 = vmatpush2.bf16.msra.mxu0 %v4588
    %5307 = vmatprep.subr.bf16.mxu0 0
    %5308 = vmatpush2.bf16.msra.mxu0 %v4583
    %5309 = vmatprep.mubr.bf16.mxu0 %v3451
    %5310 = vmatmul.mubr.bf16.gmra.mxu0 %v3450
    %v5311 = vpop.f32.mrf.mxu0
    %v5312 = vadd.f32 %v3765, %v5311
    %v5313 = vpop.f32.mrf.mxu0
    %v5314 = vpop.f32.mrf.mxu0
    %v5315 = vadd.f32 %v3765, %v5314
    %v5316 = vpop.f32.mrf.mxu0
    %5317 = vdwg.mxu0
    %5318 = vmatprep.subr.bf16.mxu0 0
    %5319 = vmatpush1.bf16.msra.mxu0 %v4658
    %5320 = vmatprep.subr.bf16.mxu0 0
    %5321 = vmatpush1.bf16.msra.mxu0 %v4653
    %5322 = vmatprep.subr.bf16.mxu0 0
    %5323 = vmatpush1.bf16.msra.mxu0 %v4648
    %5324 = vmatprep.subr.bf16.mxu0 0
    %5325 = vmatpush1.bf16.msra.mxu0 %v4643
    %5326 = vmatprep.subr.bf16.mxu0 0
    %5327 = vmatpush1.bf16.msra.mxu0 %v4638
    %5328 = vmatprep.subr.bf16.mxu0 0
    %5329 = vmatpush1.bf16.msra.mxu0 %v4633
    %5330 = vmatprep.subr.bf16.mxu0 0
    %5331 = vmatpush1.bf16.msra.mxu0 %v4628
    %5332 = vmatprep.subr.bf16.mxu0 0
    %5333 = vmatpush1.bf16.msra.mxu0 %v4623
    %5334 = vmatprep.subr.bf16.mxu0 0
    %5335 = vmatpush2.bf16.msra.mxu0 %v4698
    %5336 = vmatprep.subr.bf16.mxu0 0
    %5337 = vmatpush2.bf16.msra.mxu0 %v4693
    %5338 = vmatprep.subr.bf16.mxu0 0
    %5339 = vmatpush2.bf16.msra.mxu0 %v4688
    %5340 = vmatprep.subr.bf16.mxu0 0
    %5341 = vmatpush2.bf16.msra.mxu0 %v4683
    %5342 = vmatprep.subr.bf16.mxu0 0
    %5343 = vmatpush2.bf16.msra.mxu0 %v4678
    %5344 = vmatprep.subr.bf16.mxu0 0
    %5345 = vmatpush2.bf16.msra.mxu0 %v4673
    %5346 = vmatprep.subr.bf16.mxu0 0
    %5347 = vmatpush2.bf16.msra.mxu0 %v4668
    %5348 = vmatprep.subr.bf16.mxu0 0
    %5349 = vmatpush2.bf16.msra.mxu0 %v4663
    %5350 = vmatprep.mubr.bf16.mxu0 %v3453
    %5351 = vmatmul.mubr.bf16.gmra.mxu0 %v3452
    %v5352 = vpop.f32.mrf.mxu0
    %v5353 = vadd.f32 %v5312, %v5352
    %v5354 = vpop.f32.mrf.mxu0
    %v5355 = vpop.f32.mrf.mxu0
    %v5356 = vadd.f32 %v5315, %v5355
    %v5357 = vpop.f32.mrf.mxu0
    %5358 = vdwg.mxu0
    %5359 = vmatprep.subr.bf16.mxu0 0
    %5360 = vmatpush1.bf16.msra.mxu0 %v4738
    %5361 = vmatprep.subr.bf16.mxu0 0
    %5362 = vmatpush1.bf16.msra.mxu0 %v4733
    %5363 = vmatprep.subr.bf16.mxu0 0
    %5364 = vmatpush1.bf16.msra.mxu0 %v4728
    %5365 = vmatprep.subr.bf16.mxu0 0
    %5366 = vmatpush1.bf16.msra.mxu0 %v4723
    %5367 = vmatprep.subr.bf16.mxu0 0
    %5368 = vmatpush1.bf16.msra.mxu0 %v4718
    %5369 = vmatprep.subr.bf16.mxu0 0
    %5370 = vmatpush1.bf16.msra.mxu0 %v4713
    %5371 = vmatprep.subr.bf16.mxu0 0
    %5372 = vmatpush1.bf16.msra.mxu0 %v4708
    %5373 = vmatprep.subr.bf16.mxu0 0
    %5374 = vmatpush1.bf16.msra.mxu0 %v4703
    %5375 = vmatprep.subr.bf16.mxu0 0
    %5376 = vmatpush2.bf16.msra.mxu0 %v4778
    %5377 = vmatprep.subr.bf16.mxu0 0
    %5378 = vmatpush2.bf16.msra.mxu0 %v4773
    %5379 = vmatprep.subr.bf16.mxu0 0
    %5380 = vmatpush2.bf16.msra.mxu0 %v4768
    %5381 = vmatprep.subr.bf16.mxu0 0
    %5382 = vmatpush2.bf16.msra.mxu0 %v4763
    %5383 = vmatprep.subr.bf16.mxu0 0
    %5384 = vmatpush2.bf16.msra.mxu0 %v4758
    %5385 = vmatprep.subr.bf16.mxu0 0
    %5386 = vmatpush2.bf16.msra.mxu0 %v4753
    %5387 = vmatprep.subr.bf16.mxu0 0
    %5388 = vmatpush2.bf16.msra.mxu0 %v4748
    %5389 = vmatprep.subr.bf16.mxu0 0
    %5390 = vmatpush2.bf16.msra.mxu0 %v4743
    %5391 = vmatprep.mubr.bf16.mxu0 %v3455
    %5392 = vmatmul.mubr.bf16.gmra.mxu0 %v3454
    %v5393 = vpop.f32.mrf.mxu0
    %v5394 = vadd.f32 %v5353, %v5393
    %v5395 = vpop.f32.mrf.mxu0
    %v5396 = vpop.f32.mrf.mxu0
    %v5397 = vadd.f32 %v5356, %v5396
    %v5398 = vpop.f32.mrf.mxu0
    %5399 = vdwg.mxu0
    %v5400 = vtanh.pop %v5140
    %v5401 = vtanh.pop %v5142
    %v5402 = vtanh.pop %v5269
    %v5403 = vtanh.pop %v5271
    %v5404 = vtanh.pop %v5394
    %v5405 = vtanh.pop %v5144
    %v5406 = vtanh.pop %v5146
    %v5407 = vtanh.pop %v5273
    %v5408 = vtanh.pop %v5275
    %v5409 = vtanh.pop %v5397
    %v5410 = vpack.c.bf16 %v5405, %v5400
    %v5411 = vpack.c.bf16 %v5406, %v5401
    %v5412 = vpack.c.bf16 %v5407, %v5402
    %v5413 = vpack.c.bf16 %v5408, %v5403
    %v5414 = vpack.c.bf16 %v5409, %v5404
    %v5415 = vld [vmem:[#allocation7] sm:$0xff]
    %v5416 = vld [vmem:[#allocation7 + $0x8] sm:$0xff]
    %v5417 = vld [vmem:[#allocation7 + $0x10] sm:$0xff]
    %v5418 = vld [vmem:[#allocation7 + $0x18] sm:$0xff]
    %v5419 = vld [vmem:[#allocation7 + $0x20] sm:$0xff]
    %v5420 = vld [vmem:[#allocation7 + $0x28] sm:$0xff]
    %v5421 = vld [vmem:[#allocation7 + $0x30] sm:$0xff]
    %v5422 = vld [vmem:[#allocation7 + $0x38] sm:$0xff]
    %v5423 = vld [vmem:[#allocation7 + $0x40] sm:$0xff]
    %v5424 = vld [vmem:[#allocation7 + $0x48] sm:$0xff]
    %v5425 = vld [vmem:[#allocation7 + $0x50] sm:$0xff]
    %v5426 = vld [vmem:[#allocation7 + $0x58] sm:$0xff]
    %v5427 = vld [vmem:[#allocation7 + $0x60] sm:$0xff]
    %v5428 = vld [vmem:[#allocation7 + $0x68] sm:$0xff]
    %v5429 = vld [vmem:[#allocation7 + $0x70] sm:$0xff]
    %v5430 = vld [vmem:[#allocation7 + $0x78] sm:$0xff]
    %v5431 = vld [vmem:[#allocation7 + $0x80] sm:$0xff]
    %v5432 = vld [vmem:[#allocation7 + $0x88] sm:$0xff]
    %v5433 = vld [vmem:[#allocation7 + $0x90] sm:$0xff]
    %v5434 = vld [vmem:[#allocation7 + $0x98] sm:$0xff]
    %v5435 = vld [vmem:[#allocation7 + $0xa0] sm:$0xff]
    %v5436 = vld [vmem:[#allocation7 + $0xa8] sm:$0xff]
    %v5437 = vld [vmem:[#allocation7 + $0xb0] sm:$0xff]
    %v5438 = vld [vmem:[#allocation7 + $0xb8] sm:$0xff]
    %v5439 = vld [vmem:[#allocation7 + $0xc0] sm:$0xff]
    %v5440 = vld [vmem:[#allocation7 + $0xc8] sm:$0xff]
    %v5441 = vld [vmem:[#allocation7 + $0xd0] sm:$0xff]
    %v5442 = vld [vmem:[#allocation7 + $0xd8] sm:$0xff]
    %v5443 = vld [vmem:[#allocation7 + $0xe0] sm:$0xff]
    %v5444 = vld [vmem:[#allocation7 + $0xe8] sm:$0xff]
    %v5445 = vld [vmem:[#allocation7 + $0xf0] sm:$0xff]
    %v5446 = vld [vmem:[#allocation7 + $0xf8] sm:$0xff]
    %v5447 = vld [vmem:[#allocation7 + $0x100] sm:$0xff]
    %v5448 = vld [vmem:[#allocation7 + $0x108] sm:$0xff]
    %v5449 = vld [vmem:[#allocation7 + $0x110] sm:$0xff]
    %v5450 = vld [vmem:[#allocation7 + $0x118] sm:$0xff]
    %v5451 = vld [vmem:[#allocation7 + $0x120] sm:$0xff]
    %v5452 = vld [vmem:[#allocation7 + $0x128] sm:$0xff]
    %v5453 = vld [vmem:[#allocation7 + $0x130] sm:$0xff]
    %v5454 = vld [vmem:[#allocation7 + $0x138] sm:$0xff]
    %v5455 = vld [vmem:[#allocation7 + $0x140] sm:$0xff]
    %v5456 = vld [vmem:[#allocation7 + $0x148] sm:$0xff]
    %v5457 = vld [vmem:[#allocation7 + $0x150] sm:$0xff]
    %v5458 = vld [vmem:[#allocation7 + $0x158] sm:$0xff]
    %v5459 = vld [vmem:[#allocation7 + $0x160] sm:$0xff]
    %v5460 = vld [vmem:[#allocation7 + $0x168] sm:$0xff]
    %v5461 = vld [vmem:[#allocation7 + $0x170] sm:$0xff]
    %v5462 = vld [vmem:[#allocation7 + $0x178] sm:$0xff]
    %v5463 = vld [vmem:[#allocation7 + $0x180] sm:$0xff]
    %v5464 = vld [vmem:[#allocation7 + $0x188] sm:$0xff]
    %v5465 = vld [vmem:[#allocation7 + $0x190] sm:$0xff]
    %v5466 = vld [vmem:[#allocation7 + $0x198] sm:$0xff]
    %v5467 = vld [vmem:[#allocation7 + $0x1a0] sm:$0xff]
    %v5468 = vld [vmem:[#allocation7 + $0x1a8] sm:$0xff]
    %v5469 = vld [vmem:[#allocation7 + $0x1b0] sm:$0xff]
    %v5470 = vld [vmem:[#allocation7 + $0x1b8] sm:$0xff]
    %v5471 = vld [vmem:[#allocation7 + $0x1c0] sm:$0xff]
    %v5472 = vld [vmem:[#allocation7 + $0x1c8] sm:$0xff]
    %v5473 = vld [vmem:[#allocation7 + $0x1d0] sm:$0xff]
    %v5474 = vld [vmem:[#allocation7 + $0x1d8] sm:$0xff]
    %v5475 = vld [vmem:[#allocation7 + $0x1e0] sm:$0xff]
    %v5476 = vld [vmem:[#allocation7 + $0x1e8] sm:$0xff]
    %v5477 = vld [vmem:[#allocation7 + $0x1f0] sm:$0xff]
    %v5478 = vld [vmem:[#allocation7 + $0x1f8] sm:$0xff]
    %v5479 = vld [vmem:[#allocation7 + $0x200] sm:$0xff]
    %v5480 = vld [vmem:[#allocation7 + $0x208] sm:$0xff]
    %v5481 = vld [vmem:[#allocation7 + $0x210] sm:$0xff]
    %v5482 = vld [vmem:[#allocation7 + $0x218] sm:$0xff]
    %v5483 = vld [vmem:[#allocation7 + $0x220] sm:$0xff]
    %v5484 = vld [vmem:[#allocation7 + $0x228] sm:$0xff]
    %v5485 = vld [vmem:[#allocation7 + $0x230] sm:$0xff]
    %v5486 = vld [vmem:[#allocation7 + $0x238] sm:$0xff]
    %v5487 = vld [vmem:[#allocation7 + $0x240] sm:$0xff]
    %v5488 = vld [vmem:[#allocation7 + $0x248] sm:$0xff]
    %v5489 = vld [vmem:[#allocation7 + $0x250] sm:$0xff]
    %v5490 = vld [vmem:[#allocation7 + $0x258] sm:$0xff]
    %v5491 = vld [vmem:[#allocation7 + $0x260] sm:$0xff]
    %v5492 = vld [vmem:[#allocation7 + $0x268] sm:$0xff]
    %v5493 = vld [vmem:[#allocation7 + $0x270] sm:$0xff]
    %v5494 = vld [vmem:[#allocation7 + $0x278] sm:$0xff]
    %v5495 = vld [vmem:[#allocation7 + $0x280] sm:$0xff]
    %v5496 = vld [vmem:[#allocation7 + $0x288] sm:$0xff]
    %v5497 = vld [vmem:[#allocation7 + $0x290] sm:$0xff]
    %v5498 = vld [vmem:[#allocation7 + $0x298] sm:$0xff]
    %v5499 = vld [vmem:[#allocation7 + $0x2a0] sm:$0xff]
    %v5500 = vld [vmem:[#allocation7 + $0x2a8] sm:$0xff]
    %v5501 = vld [vmem:[#allocation7 + $0x2b0] sm:$0xff]
    %v5502 = vld [vmem:[#allocation7 + $0x2b8] sm:$0xff]
    %v5503 = vld [vmem:[#allocation7 + $0x2c0] sm:$0xff]
    %v5504 = vld [vmem:[#allocation7 + $0x2c8] sm:$0xff]
    %v5505 = vld [vmem:[#allocation7 + $0x2d0] sm:$0xff]
    %v5506 = vld [vmem:[#allocation7 + $0x2d8] sm:$0xff]
    %v5507 = vld [vmem:[#allocation7 + $0x2e0] sm:$0xff]
    %v5508 = vld [vmem:[#allocation7 + $0x2e8] sm:$0xff]
    %v5509 = vld [vmem:[#allocation7 + $0x2f0] sm:$0xff]
    %v5510 = vld [vmem:[#allocation7 + $0x2f8] sm:$0xff]
    %v5511 = vld [vmem:[#allocation7 + $0x300] sm:$0xff]
    %v5512 = vld [vmem:[#allocation7 + $0x308] sm:$0xff]
    %v5513 = vld [vmem:[#allocation7 + $0x310] sm:$0xff]
    %v5514 = vld [vmem:[#allocation7 + $0x318] sm:$0xff]
    %v5515 = vld [vmem:[#allocation7 + $0x320] sm:$0xff]
    %v5516 = vld [vmem:[#allocation7 + $0x328] sm:$0xff]
    %v5517 = vld [vmem:[#allocation7 + $0x330] sm:$0xff]
    %v5518 = vld [vmem:[#allocation7 + $0x338] sm:$0xff]
    %v5519 = vld [vmem:[#allocation7 + $0x340] sm:$0xff]
    %v5520 = vld [vmem:[#allocation7 + $0x348] sm:$0xff]
    %v5521 = vld [vmem:[#allocation7 + $0x350] sm:$0xff]
    %v5522 = vld [vmem:[#allocation7 + $0x358] sm:$0xff]
    %v5523 = vld [vmem:[#allocation7 + $0x360] sm:$0xff]
    %v5524 = vld [vmem:[#allocation7 + $0x368] sm:$0xff]
    %v5525 = vld [vmem:[#allocation7 + $0x370] sm:$0xff]
    %v5526 = vld [vmem:[#allocation7 + $0x378] sm:$0xff]
    %v5527 = vld [vmem:[#allocation7 + $0x380] sm:$0xff]
    %v5528 = vld [vmem:[#allocation7 + $0x388] sm:$0xff]
    %v5529 = vld [vmem:[#allocation7 + $0x390] sm:$0xff]
    %v5530 = vld [vmem:[#allocation7 + $0x398] sm:$0xff]
    %v5531 = vld [vmem:[#allocation7 + $0x3a0] sm:$0xff]
    %v5532 = vld [vmem:[#allocation7 + $0x3a8] sm:$0xff]
    %v5533 = vld [vmem:[#allocation7 + $0x3b0] sm:$0xff]
    %v5534 = vld [vmem:[#allocation7 + $0x3b8] sm:$0xff]
    %v5535 = vld [vmem:[#allocation7 + $0x3c0] sm:$0xff]
    %v5536 = vld [vmem:[#allocation7 + $0x3c8] sm:$0xff]
    %v5537 = vld [vmem:[#allocation7 + $0x3d0] sm:$0xff]
    %v5538 = vld [vmem:[#allocation7 + $0x3d8] sm:$0xff]
    %v5539 = vld [vmem:[#allocation7 + $0x3e0] sm:$0xff]
    %v5540 = vld [vmem:[#allocation7 + $0x3e8] sm:$0xff]
    %v5541 = vld [vmem:[#allocation7 + $0x3f0] sm:$0xff]
    %v5542 = vld [vmem:[#allocation7 + $0x3f8] sm:$0xff]
    %v5543 = vld [vmem:[#allocation7 + $0x400] sm:$0xff]
    %v5544 = vld [vmem:[#allocation7 + $0x408] sm:$0xff]
    %v5545 = vld [vmem:[#allocation7 + $0x410] sm:$0xff]
    %v5546 = vld [vmem:[#allocation7 + $0x418] sm:$0xff]
    %v5547 = vld [vmem:[#allocation7 + $0x420] sm:$0xff]
    %v5548 = vld [vmem:[#allocation7 + $0x428] sm:$0xff]
    %v5549 = vld [vmem:[#allocation7 + $0x430] sm:$0xff]
    %v5550 = vld [vmem:[#allocation7 + $0x438] sm:$0xff]
    %v5551 = vld [vmem:[#allocation7 + $0x440] sm:$0xff]
    %v5552 = vld [vmem:[#allocation7 + $0x448] sm:$0xff]
    %v5553 = vld [vmem:[#allocation7 + $0x450] sm:$0xff]
    %v5554 = vld [vmem:[#allocation7 + $0x458] sm:$0xff]
    %v5555 = vld [vmem:[#allocation7 + $0x460] sm:$0xff]
    %v5556 = vld [vmem:[#allocation7 + $0x468] sm:$0xff]
    %v5557 = vld [vmem:[#allocation7 + $0x470] sm:$0xff]
    %v5558 = vld [vmem:[#allocation7 + $0x478] sm:$0xff]
    %v5559 = vld [vmem:[#allocation7 + $0x480] sm:$0xff]
    %v5560 = vld [vmem:[#allocation7 + $0x488] sm:$0xff]
    %v5561 = vld [vmem:[#allocation7 + $0x490] sm:$0xff]
    %v5562 = vld [vmem:[#allocation7 + $0x498] sm:$0xff]
    %v5563 = vld [vmem:[#allocation7 + $0x4a0] sm:$0xff]
    %v5564 = vld [vmem:[#allocation7 + $0x4a8] sm:$0xff]
    %v5565 = vld [vmem:[#allocation7 + $0x4b0] sm:$0xff]
    %v5566 = vld [vmem:[#allocation7 + $0x4b8] sm:$0xff]
    %v5567 = vld [vmem:[#allocation7 + $0x4c0] sm:$0xff]
    %v5568 = vld [vmem:[#allocation7 + $0x4c8] sm:$0xff]
    %v5569 = vld [vmem:[#allocation7 + $0x4d0] sm:$0xff]
    %v5570 = vld [vmem:[#allocation7 + $0x4d8] sm:$0xff]
    %v5571 = vld [vmem:[#allocation7 + $0x4e0] sm:$0xff]
    %v5572 = vld [vmem:[#allocation7 + $0x4e8] sm:$0xff]
    %v5573 = vld [vmem:[#allocation7 + $0x4f0] sm:$0xff]
    %v5574 = vld [vmem:[#allocation7 + $0x4f8] sm:$0xff]
    %v5575 = vld [vmem:[#allocation21] sm:$0xf]
    %v5577 = vlaneseq
    %v5578 = vshrl.u32 %v5577, 7
    %v5579 = vsub.s32 0, %v5578
    %v5580 = vrot.slane %v5575, %v5579
    %v5581 = vlaneseq
    %v5582 = vshrl.u32 %v5581, 7
    %v5583 = vsub.s32 1, %v5582
    %v5584 = vrot.slane %v5575, %v5583
    %v5585 = vlaneseq
    %v5586 = vshrl.u32 %v5585, 7
    %v5587 = vsub.s32 2, %v5586
    %v5588 = vrot.slane %v5575, %v5587
    %v5589 = vlaneseq
    %v5590 = vshrl.u32 %v5589, 7
    %v5591 = vsub.s32 3, %v5590
    %v5592 = vrot.slane %v5575, %v5591
    %v5757 = vunpack.c.l.b16 %v5415
    %v5758 = vunpack.c.h.b16 %v5415
    %v5759 = vunpack.c.l.b16 %v5416
    %v5760 = vunpack.c.h.b16 %v5416
    %v5761 = vunpack.c.l.b16 %v5417
    %v5762 = vunpack.c.h.b16 %v5417
    %v5763 = vunpack.c.l.b16 %v5418
    %v5764 = vunpack.c.h.b16 %v5418
    %v5765 = vunpack.c.l.b16 %v5419
    %v5766 = vunpack.c.h.b16 %v5419
    %v5767 = vunpack.c.l.b16 %v5420
    %v5768 = vunpack.c.h.b16 %v5420
    %v5769 = vunpack.c.l.b16 %v5421
    %v5770 = vunpack.c.h.b16 %v5421
    %v5771 = vunpack.c.l.b16 %v5422
    %v5772 = vunpack.c.h.b16 %v5422
    %v5773 = vunpack.c.l.b16 %v5423
    %v5774 = vunpack.c.h.b16 %v5423
    %v5775 = vunpack.c.l.b16 %v5424
    %v5776 = vunpack.c.h.b16 %v5424
    %v5777 = vunpack.c.l.b16 %v5425
    %v5778 = vunpack.c.h.b16 %v5425
    %v5779 = vunpack.c.l.b16 %v5426
    %v5780 = vunpack.c.h.b16 %v5426
    %v5781 = vunpack.c.l.b16 %v5427
    %v5782 = vunpack.c.h.b16 %v5427
    %v5783 = vunpack.c.l.b16 %v5428
    %v5784 = vunpack.c.h.b16 %v5428
    %v5785 = vunpack.c.l.b16 %v5429
    %v5786 = vunpack.c.h.b16 %v5429
    %v5787 = vunpack.c.l.b16 %v5430
    %v5788 = vunpack.c.h.b16 %v5430
    %v5789 = vunpack.c.l.b16 %v5431
    %v5790 = vunpack.c.h.b16 %v5431
    %v5791 = vunpack.c.l.b16 %v5432
    %v5792 = vunpack.c.h.b16 %v5432
    %v5793 = vunpack.c.l.b16 %v5433
    %v5794 = vunpack.c.h.b16 %v5433
    %v5795 = vunpack.c.l.b16 %v5434
    %v5796 = vunpack.c.h.b16 %v5434
    %v5797 = vunpack.c.l.b16 %v5435
    %v5798 = vunpack.c.h.b16 %v5435
    %v5799 = vunpack.c.l.b16 %v5436
    %v5800 = vunpack.c.h.b16 %v5436
    %v5801 = vunpack.c.l.b16 %v5437
    %v5802 = vunpack.c.h.b16 %v5437
    %v5803 = vunpack.c.l.b16 %v5438
    %v5804 = vunpack.c.h.b16 %v5438
    %v5805 = vunpack.c.l.b16 %v5439
    %v5806 = vunpack.c.h.b16 %v5439
    %v5807 = vunpack.c.l.b16 %v5440
    %v5808 = vunpack.c.h.b16 %v5440
    %v5809 = vunpack.c.l.b16 %v5441
    %v5810 = vunpack.c.h.b16 %v5441
    %v5811 = vunpack.c.l.b16 %v5442
    %v5812 = vunpack.c.h.b16 %v5442
    %v5813 = vunpack.c.l.b16 %v5443
    %v5814 = vunpack.c.h.b16 %v5443
    %v5815 = vunpack.c.l.b16 %v5444
    %v5816 = vunpack.c.h.b16 %v5444
    %v5817 = vunpack.c.l.b16 %v5445
    %v5818 = vunpack.c.h.b16 %v5445
    %v5819 = vunpack.c.l.b16 %v5446
    %v5820 = vunpack.c.h.b16 %v5446
    %v5821 = vunpack.c.l.b16 %v5447
    %v5822 = vunpack.c.h.b16 %v5447
    %v5823 = vunpack.c.l.b16 %v5448
    %v5824 = vunpack.c.h.b16 %v5448
    %v5825 = vunpack.c.l.b16 %v5449
    %v5826 = vunpack.c.h.b16 %v5449
    %v5827 = vunpack.c.l.b16 %v5450
    %v5828 = vunpack.c.h.b16 %v5450
    %v5829 = vunpack.c.l.b16 %v5451
    %v5830 = vunpack.c.h.b16 %v5451
    %v5831 = vunpack.c.l.b16 %v5452
    %v5832 = vunpack.c.h.b16 %v5452
    %v5833 = vunpack.c.l.b16 %v5453
    %v5834 = vunpack.c.h.b16 %v5453
    %v5835 = vunpack.c.l.b16 %v5454
    %v5836 = vunpack.c.h.b16 %v5454
    %v5837 = vunpack.c.l.b16 %v5455
    %v5838 = vunpack.c.h.b16 %v5455
    %v5839 = vunpack.c.l.b16 %v5456
    %v5840 = vunpack.c.h.b16 %v5456
    %v5841 = vunpack.c.l.b16 %v5457
    %v5842 = vunpack.c.h.b16 %v5457
    %v5843 = vunpack.c.l.b16 %v5458
    %v5844 = vunpack.c.h.b16 %v5458
    %v5845 = vunpack.c.l.b16 %v5459
    %v5846 = vunpack.c.h.b16 %v5459
    %v5847 = vunpack.c.l.b16 %v5460
    %v5848 = vunpack.c.h.b16 %v5460
    %v5849 = vunpack.c.l.b16 %v5461
    %v5850 = vunpack.c.h.b16 %v5461
    %v5851 = vunpack.c.l.b16 %v5462
    %v5852 = vunpack.c.h.b16 %v5462
    %v5853 = vunpack.c.l.b16 %v5463
    %v5854 = vunpack.c.h.b16 %v5463
    %v5855 = vunpack.c.l.b16 %v5464
    %v5856 = vunpack.c.h.b16 %v5464
    %v5857 = vunpack.c.l.b16 %v5465
    %v5858 = vunpack.c.h.b16 %v5465
    %v5859 = vunpack.c.l.b16 %v5466
    %v5860 = vunpack.c.h.b16 %v5466
    %v5861 = vunpack.c.l.b16 %v5467
    %v5862 = vunpack.c.h.b16 %v5467
    %v5863 = vunpack.c.l.b16 %v5468
    %v5864 = vunpack.c.h.b16 %v5468
    %v5865 = vunpack.c.l.b16 %v5469
    %v5866 = vunpack.c.h.b16 %v5469
    %v5867 = vunpack.c.l.b16 %v5470
    %v5868 = vunpack.c.h.b16 %v5470
    %v5869 = vunpack.c.l.b16 %v5471
    %v5870 = vunpack.c.h.b16 %v5471
    %v5871 = vunpack.c.l.b16 %v5472
    %v5872 = vunpack.c.h.b16 %v5472
    %v5873 = vunpack.c.l.b16 %v5473
    %v5874 = vunpack.c.h.b16 %v5473
    %v5875 = vunpack.c.l.b16 %v5474
    %v5876 = vunpack.c.h.b16 %v5474
    %v5877 = vunpack.c.l.b16 %v5475
    %v5878 = vunpack.c.h.b16 %v5475
    %v5879 = vunpack.c.l.b16 %v5476
    %v5880 = vunpack.c.h.b16 %v5476
    %v5881 = vunpack.c.l.b16 %v5477
    %v5882 = vunpack.c.h.b16 %v5477
    %v5883 = vunpack.c.l.b16 %v5478
    %v5884 = vunpack.c.h.b16 %v5478
    %v5885 = vunpack.c.l.b16 %v5479
    %v5886 = vunpack.c.h.b16 %v5479
    %v5887 = vunpack.c.l.b16 %v5480
    %v5888 = vunpack.c.h.b16 %v5480
    %v5889 = vunpack.c.l.b16 %v5481
    %v5890 = vunpack.c.h.b16 %v5481
    %v5891 = vunpack.c.l.b16 %v5482
    %v5892 = vunpack.c.h.b16 %v5482
    %v5893 = vunpack.c.l.b16 %v5483
    %v5894 = vunpack.c.h.b16 %v5483
    %v5895 = vunpack.c.l.b16 %v5484
    %v5896 = vunpack.c.h.b16 %v5484
    %v5897 = vunpack.c.l.b16 %v5485
    %v5898 = vunpack.c.h.b16 %v5485
    %v5899 = vunpack.c.l.b16 %v5486
    %v5900 = vunpack.c.h.b16 %v5486
    %v5901 = vunpack.c.l.b16 %v5487
    %v5902 = vunpack.c.h.b16 %v5487
    %v5903 = vunpack.c.l.b16 %v5488
    %v5904 = vunpack.c.h.b16 %v5488
    %v5905 = vunpack.c.l.b16 %v5489
    %v5906 = vunpack.c.h.b16 %v5489
    %v5907 = vunpack.c.l.b16 %v5490
    %v5908 = vunpack.c.h.b16 %v5490
    %v5909 = vunpack.c.l.b16 %v5491
    %v5910 = vunpack.c.h.b16 %v5491
    %v5911 = vunpack.c.l.b16 %v5492
    %v5912 = vunpack.c.h.b16 %v5492
    %v5913 = vunpack.c.l.b16 %v5493
    %v5914 = vunpack.c.h.b16 %v5493
    %v5915 = vunpack.c.l.b16 %v5494
    %v5916 = vunpack.c.h.b16 %v5494
    %v5917 = vunpack.c.l.b16 %v5495
    %v5918 = vunpack.c.h.b16 %v5495
    %v5919 = vunpack.c.l.b16 %v5496
    %v5920 = vunpack.c.h.b16 %v5496
    %v5921 = vunpack.c.l.b16 %v5497
    %v5922 = vunpack.c.h.b16 %v5497
    %v5923 = vunpack.c.l.b16 %v5498
    %v5924 = vunpack.c.h.b16 %v5498
    %v5925 = vunpack.c.l.b16 %v5499
    %v5926 = vunpack.c.h.b16 %v5499
    %v5927 = vunpack.c.l.b16 %v5500
    %v5928 = vunpack.c.h.b16 %v5500
    %v5929 = vunpack.c.l.b16 %v5501
    %v5930 = vunpack.c.h.b16 %v5501
    %v5931 = vunpack.c.l.b16 %v5502
    %v5932 = vunpack.c.h.b16 %v5502
    %v5933 = vunpack.c.l.b16 %v5503
    %v5934 = vunpack.c.h.b16 %v5503
    %v5935 = vunpack.c.l.b16 %v5504
    %v5936 = vunpack.c.h.b16 %v5504
    %v5937 = vunpack.c.l.b16 %v5505
    %v5938 = vunpack.c.h.b16 %v5505
    %v5939 = vunpack.c.l.b16 %v5506
    %v5940 = vunpack.c.h.b16 %v5506
    %v5941 = vunpack.c.l.b16 %v5507
    %v5942 = vunpack.c.h.b16 %v5507
    %v5943 = vunpack.c.l.b16 %v5508
    %v5944 = vunpack.c.h.b16 %v5508
    %v5945 = vunpack.c.l.b16 %v5509
    %v5946 = vunpack.c.h.b16 %v5509
    %v5947 = vunpack.c.l.b16 %v5510
    %v5948 = vunpack.c.h.b16 %v5510
    %v5949 = vunpack.c.l.b16 %v5511
    %v5950 = vunpack.c.h.b16 %v5511
    %v5951 = vunpack.c.l.b16 %v5512
    %v5952 = vunpack.c.h.b16 %v5512
    %v5953 = vunpack.c.l.b16 %v5513
    %v5954 = vunpack.c.h.b16 %v5513
    %v5955 = vunpack.c.l.b16 %v5514
    %v5956 = vunpack.c.h.b16 %v5514
    %v5957 = vunpack.c.l.b16 %v5515
    %v5958 = vunpack.c.h.b16 %v5515
    %v5959 = vunpack.c.l.b16 %v5516
    %v5960 = vunpack.c.h.b16 %v5516
    %v5961 = vunpack.c.l.b16 %v5517
    %v5962 = vunpack.c.h.b16 %v5517
    %v5963 = vunpack.c.l.b16 %v5518
    %v5964 = vunpack.c.h.b16 %v5518
    %v5965 = vunpack.c.l.b16 %v5519
    %v5966 = vunpack.c.h.b16 %v5519
    %v5967 = vunpack.c.l.b16 %v5520
    %v5968 = vunpack.c.h.b16 %v5520
    %v5969 = vunpack.c.l.b16 %v5521
    %v5970 = vunpack.c.h.b16 %v5521
    %v5971 = vunpack.c.l.b16 %v5522
    %v5972 = vunpack.c.h.b16 %v5522
    %v5973 = vunpack.c.l.b16 %v5523
    %v5974 = vunpack.c.h.b16 %v5523
    %v5975 = vunpack.c.l.b16 %v5524
    %v5976 = vunpack.c.h.b16 %v5524
    %v5977 = vunpack.c.l.b16 %v5525
    %v5978 = vunpack.c.h.b16 %v5525
    %v5979 = vunpack.c.l.b16 %v5526
    %v5980 = vunpack.c.h.b16 %v5526
    %v5981 = vunpack.c.l.b16 %v5527
    %v5982 = vunpack.c.h.b16 %v5527
    %v5983 = vunpack.c.l.b16 %v5528
    %v5984 = vunpack.c.h.b16 %v5528
    %v5985 = vunpack.c.l.b16 %v5529
    %v5986 = vunpack.c.h.b16 %v5529
    %v5987 = vunpack.c.l.b16 %v5530
    %v5988 = vunpack.c.h.b16 %v5530
    %v5989 = vunpack.c.l.b16 %v5531
    %v5990 = vunpack.c.h.b16 %v5531
    %v5991 = vunpack.c.l.b16 %v5532
    %v5992 = vunpack.c.h.b16 %v5532
    %v5993 = vunpack.c.l.b16 %v5533
    %v5994 = vunpack.c.h.b16 %v5533
    %v5995 = vunpack.c.l.b16 %v5534
    %v5996 = vunpack.c.h.b16 %v5534
    %v5997 = vunpack.c.l.b16 %v5535
    %v5998 = vunpack.c.h.b16 %v5535
    %v5999 = vunpack.c.l.b16 %v5536
    %v6000 = vunpack.c.h.b16 %v5536
    %v6001 = vunpack.c.l.b16 %v5537
    %v6002 = vunpack.c.h.b16 %v5537
    %v6003 = vunpack.c.l.b16 %v5538
    %v6004 = vunpack.c.h.b16 %v5538
    %v6005 = vunpack.c.l.b16 %v5539
    %v6006 = vunpack.c.h.b16 %v5539
    %v6007 = vunpack.c.l.b16 %v5540
    %v6008 = vunpack.c.h.b16 %v5540
    %v6009 = vunpack.c.l.b16 %v5541
    %v6010 = vunpack.c.h.b16 %v5541
    %v6011 = vunpack.c.l.b16 %v5542
    %v6012 = vunpack.c.h.b16 %v5542
    %v6013 = vunpack.c.l.b16 %v5543
    %v6014 = vunpack.c.h.b16 %v5543
    %v6015 = vunpack.c.l.b16 %v5544
    %v6016 = vunpack.c.h.b16 %v5544
    %v6017 = vunpack.c.l.b16 %v5545
    %v6018 = vunpack.c.h.b16 %v5545
    %v6019 = vunpack.c.l.b16 %v5546
    %v6020 = vunpack.c.h.b16 %v5546
    %v6021 = vunpack.c.l.b16 %v5547
    %v6022 = vunpack.c.h.b16 %v5547
    %v6023 = vunpack.c.l.b16 %v5548
    %v6024 = vunpack.c.h.b16 %v5548
    %v6025 = vunpack.c.l.b16 %v5549
    %v6026 = vunpack.c.h.b16 %v5549
    %v6027 = vunpack.c.l.b16 %v5550
    %v6028 = vunpack.c.h.b16 %v5550
    %v6029 = vunpack.c.l.b16 %v5551
    %v6030 = vunpack.c.h.b16 %v5551
    %v6031 = vunpack.c.l.b16 %v5552
    %v6032 = vunpack.c.h.b16 %v5552
    %v6033 = vunpack.c.l.b16 %v5553
    %v6034 = vunpack.c.h.b16 %v5553
    %v6035 = vunpack.c.l.b16 %v5554
    %v6036 = vunpack.c.h.b16 %v5554
    %v6037 = vunpack.c.l.b16 %v5555
    %v6038 = vunpack.c.h.b16 %v5555
    %v6039 = vunpack.c.l.b16 %v5556
    %v6040 = vunpack.c.h.b16 %v5556
    %v6041 = vunpack.c.l.b16 %v5557
    %v6042 = vunpack.c.h.b16 %v5557
    %v6043 = vunpack.c.l.b16 %v5558
    %v6044 = vunpack.c.h.b16 %v5558
    %v6045 = vunpack.c.l.b16 %v5559
    %v6046 = vunpack.c.h.b16 %v5559
    %v6047 = vunpack.c.l.b16 %v5560
    %v6048 = vunpack.c.h.b16 %v5560
    %v6049 = vunpack.c.l.b16 %v5561
    %v6050 = vunpack.c.h.b16 %v5561
    %v6051 = vunpack.c.l.b16 %v5562
    %v6052 = vunpack.c.h.b16 %v5562
    %v6053 = vunpack.c.l.b16 %v5563
    %v6054 = vunpack.c.h.b16 %v5563
    %v6055 = vunpack.c.l.b16 %v5564
    %v6056 = vunpack.c.h.b16 %v5564
    %v6057 = vunpack.c.l.b16 %v5565
    %v6058 = vunpack.c.h.b16 %v5565
    %v6059 = vunpack.c.l.b16 %v5566
    %v6060 = vunpack.c.h.b16 %v5566
    %v6061 = vunpack.c.l.b16 %v5567
    %v6062 = vunpack.c.h.b16 %v5567
    %v6063 = vunpack.c.l.b16 %v5568
    %v6064 = vunpack.c.h.b16 %v5568
    %v6065 = vunpack.c.l.b16 %v5569
    %v6066 = vunpack.c.h.b16 %v5569
    %v6067 = vunpack.c.l.b16 %v5570
    %v6068 = vunpack.c.h.b16 %v5570
    %v6069 = vunpack.c.l.b16 %v5571
    %v6070 = vunpack.c.h.b16 %v5571
    %v6071 = vunpack.c.l.b16 %v5572
    %v6072 = vunpack.c.h.b16 %v5572
    %v6073 = vunpack.c.l.b16 %v5573
    %v6074 = vunpack.c.h.b16 %v5573
    %v6075 = vunpack.c.l.b16 %v5574
    %v6076 = vunpack.c.h.b16 %v5574
    %v6077 = vpack.c.b16 %v5761, %v5757
    %v6078 = vpack.c.b16 %v5762, %v5758
    %v6079 = vpack.c.b16 %v5763, %v5759
    %v6080 = vpack.c.b16 %v5764, %v5760
    %v6081 = vpack.c.b16 %v5769, %v5765
    %v6082 = vpack.c.b16 %v5770, %v5766
    %v6083 = vpack.c.b16 %v5771, %v5767
    %v6084 = vpack.c.b16 %v5772, %v5768
    %v6085 = vpack.c.b16 %v5777, %v5773
    %v6086 = vpack.c.b16 %v5778, %v5774
    %v6087 = vpack.c.b16 %v5779, %v5775
    %v6088 = vpack.c.b16 %v5780, %v5776
    %v6089 = vpack.c.b16 %v5785, %v5781
    %v6090 = vpack.c.b16 %v5786, %v5782
    %v6091 = vpack.c.b16 %v5787, %v5783
    %v6092 = vpack.c.b16 %v5788, %v5784
    %v6093 = vpack.c.b16 %v5793, %v5789
    %v6094 = vpack.c.b16 %v5794, %v5790
    %v6095 = vpack.c.b16 %v5795, %v5791
    %v6096 = vpack.c.b16 %v5796, %v5792
    %v6097 = vpack.c.b16 %v5801, %v5797
    %v6098 = vpack.c.b16 %v5802, %v5798
    %v6099 = vpack.c.b16 %v5803, %v5799
    %v6100 = vpack.c.b16 %v5804, %v5800
    %v6101 = vpack.c.b16 %v5809, %v5805
    %v6102 = vpack.c.b16 %v5810, %v5806
    %v6103 = vpack.c.b16 %v5811, %v5807
    %v6104 = vpack.c.b16 %v5812, %v5808
    %v6105 = vpack.c.b16 %v5817, %v5813
    %v6106 = vpack.c.b16 %v5818, %v5814
    %v6107 = vpack.c.b16 %v5819, %v5815
    %v6108 = vpack.c.b16 %v5820, %v5816
    %v6109 = vpack.c.b16 %v5825, %v5821
    %v6110 = vpack.c.b16 %v5826, %v5822
    %v6111 = vpack.c.b16 %v5827, %v5823
    %v6112 = vpack.c.b16 %v5828, %v5824
    %v6113 = vpack.c.b16 %v5833, %v5829
    %v6114 = vpack.c.b16 %v5834, %v5830
    %v6115 = vpack.c.b16 %v5835, %v5831
    %v6116 = vpack.c.b16 %v5836, %v5832
    %v6117 = vpack.c.b16 %v5841, %v5837
    %v6118 = vpack.c.b16 %v5842, %v5838
    %v6119 = vpack.c.b16 %v5843, %v5839
    %v6120 = vpack.c.b16 %v5844, %v5840
    %v6121 = vpack.c.b16 %v5849, %v5845
    %v6122 = vpack.c.b16 %v5850, %v5846
    %v6123 = vpack.c.b16 %v5851, %v5847
    %v6124 = vpack.c.b16 %v5852, %v5848
    %v6125 = vpack.c.b16 %v5857, %v5853
    %v6126 = vpack.c.b16 %v5858, %v5854
    %v6127 = vpack.c.b16 %v5859, %v5855
    %v6128 = vpack.c.b16 %v5860, %v5856
    %v6129 = vpack.c.b16 %v5865, %v5861
    %v6130 = vpack.c.b16 %v5866, %v5862
    %v6131 = vpack.c.b16 %v5867, %v5863
    %v6132 = vpack.c.b16 %v5868, %v5864
    %v6133 = vpack.c.b16 %v5873, %v5869
    %v6134 = vpack.c.b16 %v5874, %v5870
    %v6135 = vpack.c.b16 %v5875, %v5871
    %v6136 = vpack.c.b16 %v5876, %v5872
    %v6137 = vpack.c.b16 %v5881, %v5877
    %v6138 = vpack.c.b16 %v5882, %v5878
    %v6139 = vpack.c.b16 %v5883, %v5879
    %v6140 = vpack.c.b16 %v5884, %v5880
    %v6141 = vpack.c.b16 %v5889, %v5885
    %v6142 = vpack.c.b16 %v5890, %v5886
    %v6143 = vpack.c.b16 %v5891, %v5887
    %v6144 = vpack.c.b16 %v5892, %v5888
    %v6145 = vpack.c.b16 %v5897, %v5893
    %v6146 = vpack.c.b16 %v5898, %v5894
    %v6147 = vpack.c.b16 %v5899, %v5895
    %v6148 = vpack.c.b16 %v5900, %v5896
    %v6149 = vpack.c.b16 %v5905, %v5901
    %v6150 = vpack.c.b16 %v5906, %v5902
    %v6151 = vpack.c.b16 %v5907, %v5903
    %v6152 = vpack.c.b16 %v5908, %v5904
    %v6153 = vpack.c.b16 %v5913, %v5909
    %v6154 = vpack.c.b16 %v5914, %v5910
    %v6155 = vpack.c.b16 %v5915, %v5911
    %v6156 = vpack.c.b16 %v5916, %v5912
    %v6157 = vpack.c.b16 %v5921, %v5917
    %v6158 = vpack.c.b16 %v5922, %v5918
    %v6159 = vpack.c.b16 %v5923, %v5919
    %v6160 = vpack.c.b16 %v5924, %v5920
    %v6161 = vpack.c.b16 %v5929, %v5925
    %v6162 = vpack.c.b16 %v5930, %v5926
    %v6163 = vpack.c.b16 %v5931, %v5927
    %v6164 = vpack.c.b16 %v5932, %v5928
    %v6165 = vpack.c.b16 %v5937, %v5933
    %v6166 = vpack.c.b16 %v5938, %v5934
    %v6167 = vpack.c.b16 %v5939, %v5935
    %v6168 = vpack.c.b16 %v5940, %v5936
    %v6169 = vpack.c.b16 %v5945, %v5941
    %v6170 = vpack.c.b16 %v5946, %v5942
    %v6171 = vpack.c.b16 %v5947, %v5943
    %v6172 = vpack.c.b16 %v5948, %v5944
    %v6173 = vpack.c.b16 %v5953, %v5949
    %v6174 = vpack.c.b16 %v5954, %v5950
    %v6175 = vpack.c.b16 %v5955, %v5951
    %v6176 = vpack.c.b16 %v5956, %v5952
    %v6177 = vpack.c.b16 %v5961, %v5957
    %v6178 = vpack.c.b16 %v5962, %v5958
    %v6179 = vpack.c.b16 %v5963, %v5959
    %v6180 = vpack.c.b16 %v5964, %v5960
    %v6181 = vpack.c.b16 %v5969, %v5965
    %v6182 = vpack.c.b16 %v5970, %v5966
    %v6183 = vpack.c.b16 %v5971, %v5967
    %v6184 = vpack.c.b16 %v5972, %v5968
    %v6185 = vpack.c.b16 %v5977, %v5973
    %v6186 = vpack.c.b16 %v5978, %v5974
    %v6187 = vpack.c.b16 %v5979, %v5975
    %v6188 = vpack.c.b16 %v5980, %v5976
    %v6189 = vpack.c.b16 %v5985, %v5981
    %v6190 = vpack.c.b16 %v5986, %v5982
    %v6191 = vpack.c.b16 %v5987, %v5983
    %v6192 = vpack.c.b16 %v5988, %v5984
    %v6193 = vpack.c.b16 %v5993, %v5989
    %v6194 = vpack.c.b16 %v5994, %v5990
    %v6195 = vpack.c.b16 %v5995, %v5991
    %v6196 = vpack.c.b16 %v5996, %v5992
    %v6197 = vpack.c.b16 %v6001, %v5997
    %v6198 = vpack.c.b16 %v6002, %v5998
    %v6199 = vpack.c.b16 %v6003, %v5999
    %v6200 = vpack.c.b16 %v6004, %v6000
    %v6201 = vpack.c.b16 %v6009, %v6005
    %v6202 = vpack.c.b16 %v6010, %v6006
    %v6203 = vpack.c.b16 %v6011, %v6007
    %v6204 = vpack.c.b16 %v6012, %v6008
    %v6205 = vpack.c.b16 %v6017, %v6013
    %v6206 = vpack.c.b16 %v6018, %v6014
    %v6207 = vpack.c.b16 %v6019, %v6015
    %v6208 = vpack.c.b16 %v6020, %v6016
    %v6209 = vpack.c.b16 %v6025, %v6021
    %v6210 = vpack.c.b16 %v6026, %v6022
    %v6211 = vpack.c.b16 %v6027, %v6023
    %v6212 = vpack.c.b16 %v6028, %v6024
    %v6213 = vpack.c.b16 %v6033, %v6029
    %v6214 = vpack.c.b16 %v6034, %v6030
    %v6215 = vpack.c.b16 %v6035, %v6031
    %v6216 = vpack.c.b16 %v6036, %v6032
    %v6217 = vpack.c.b16 %v6041, %v6037
    %v6218 = vpack.c.b16 %v6042, %v6038
    %v6219 = vpack.c.b16 %v6043, %v6039
    %v6220 = vpack.c.b16 %v6044, %v6040
    %v6221 = vpack.c.b16 %v6049, %v6045
    %v6222 = vpack.c.b16 %v6050, %v6046
    %v6223 = vpack.c.b16 %v6051, %v6047
    %v6224 = vpack.c.b16 %v6052, %v6048
    %v6225 = vpack.c.b16 %v6057, %v6053
    %v6226 = vpack.c.b16 %v6058, %v6054
    %v6227 = vpack.c.b16 %v6059, %v6055
    %v6228 = vpack.c.b16 %v6060, %v6056
    %v6229 = vpack.c.b16 %v6065, %v6061
    %v6230 = vpack.c.b16 %v6066, %v6062
    %v6231 = vpack.c.b16 %v6067, %v6063
    %v6232 = vpack.c.b16 %v6068, %v6064
    %v6233 = vpack.c.b16 %v6073, %v6069
    %v6234 = vpack.c.b16 %v6074, %v6070
    %v6235 = vpack.c.b16 %v6075, %v6071
    %v6236 = vpack.c.b16 %v6076, %v6072
    %6397 = vmatprep.subr.bf16.mxu0 %v6106
    %6398 = vmatpush1.bf16.msra.mxu0 %v6105
    %6399 = vmatprep.subr.bf16.mxu0 %v6102
    %6400 = vmatpush1.bf16.msra.mxu0 %v6101
    %6401 = vmatprep.subr.bf16.mxu0 %v6098
    %6402 = vmatpush1.bf16.msra.mxu0 %v6097
    %6403 = vmatprep.subr.bf16.mxu0 %v6094
    %6404 = vmatpush1.bf16.msra.mxu0 %v6093
    %6405 = vmatprep.subr.bf16.mxu0 %v6090
    %6406 = vmatpush1.bf16.msra.mxu0 %v6089
    %6407 = vmatprep.subr.bf16.mxu0 %v6086
    %6408 = vmatpush1.bf16.msra.mxu0 %v6085
    %6409 = vmatprep.subr.bf16.mxu0 %v6082
    %6410 = vmatpush1.bf16.msra.mxu0 %v6081
    %6411 = vmatprep.subr.bf16.mxu0 %v6078
    %6412 = vmatpush1.bf16.msra.mxu0 %v6077
    %6413 = vmatprep.subr.bf16.mxu0 %v6138
    %6414 = vmatpush2.bf16.msra.mxu0 %v6137
    %6415 = vmatprep.subr.bf16.mxu0 %v6134
    %6416 = vmatpush2.bf16.msra.mxu0 %v6133
    %6417 = vmatprep.subr.bf16.mxu0 %v6130
    %6418 = vmatpush2.bf16.msra.mxu0 %v6129
    %6419 = vmatprep.subr.bf16.mxu0 %v6126
    %6420 = vmatpush2.bf16.msra.mxu0 %v6125
    %6421 = vmatprep.subr.bf16.mxu0 %v6122
    %6422 = vmatpush2.bf16.msra.mxu0 %v6121
    %6423 = vmatprep.subr.bf16.mxu0 %v6118
    %6424 = vmatpush2.bf16.msra.mxu0 %v6117
    %6425 = vmatprep.subr.bf16.mxu0 %v6114
    %6426 = vmatpush2.bf16.msra.mxu0 %v6113
    %6427 = vmatprep.subr.bf16.mxu0 %v6110
    %6428 = vmatpush2.bf16.msra.mxu0 %v6109
    %6429 = vmatprep.mubr.bf16.mxu0 %v5411
    %6430 = vmatmul.mubr.bf16.gmra.mxu0 %v5410
    %v6431 = vpop.f32.mrf.mxu0
    %v6432 = vadd.f32 %v5580, %v6431
    %v6433 = vpop.f32.mrf.mxu0
    %v6434 = vadd.f32 %v5584, %v6433
    %v6435 = vpop.f32.mrf.mxu0
    %v6436 = vadd.f32 %v5580, %v6435
    %v6437 = vpop.f32.mrf.mxu0
    %v6438 = vadd.f32 %v5584, %v6437
    %6439 = vdwg.mxu0
    %6440 = vmatprep.subr.bf16.mxu0 %v6170
    %6441 = vmatpush1.bf16.msra.mxu0 %v6169
    %6442 = vmatprep.subr.bf16.mxu0 %v6166
    %6443 = vmatpush1.bf16.msra.mxu0 %v6165
    %6444 = vmatprep.subr.bf16.mxu0 %v6162
    %6445 = vmatpush1.bf16.msra.mxu0 %v6161
    %6446 = vmatprep.subr.bf16.mxu0 %v6158
    %6447 = vmatpush1.bf16.msra.mxu0 %v6157
    %6448 = vmatprep.subr.bf16.mxu0 %v6154
    %6449 = vmatpush1.bf16.msra.mxu0 %v6153
    %6450 = vmatprep.subr.bf16.mxu0 %v6150
    %6451 = vmatpush1.bf16.msra.mxu0 %v6149
    %6452 = vmatprep.subr.bf16.mxu0 %v6146
    %6453 = vmatpush1.bf16.msra.mxu0 %v6145
    %6454 = vmatprep.subr.bf16.mxu0 %v6142
    %6455 = vmatpush1.bf16.msra.mxu0 %v6141
    %6456 = vmatprep.subr.bf16.mxu0 %v6202
    %6457 = vmatpush2.bf16.msra.mxu0 %v6201
    %6458 = vmatprep.subr.bf16.mxu0 %v6198
    %6459 = vmatpush2.bf16.msra.mxu0 %v6197
    %6460 = vmatprep.subr.bf16.mxu0 %v6194
    %6461 = vmatpush2.bf16.msra.mxu0 %v6193
    %6462 = vmatprep.subr.bf16.mxu0 %v6190
    %6463 = vmatpush2.bf16.msra.mxu0 %v6189
    %6464 = vmatprep.subr.bf16.mxu0 %v6186
    %6465 = vmatpush2.bf16.msra.mxu0 %v6185
    %6466 = vmatprep.subr.bf16.mxu0 %v6182
    %6467 = vmatpush2.bf16.msra.mxu0 %v6181
    %6468 = vmatprep.subr.bf16.mxu0 %v6178
    %6469 = vmatpush2.bf16.msra.mxu0 %v6177
    %6470 = vmatprep.subr.bf16.mxu0 %v6174
    %6471 = vmatpush2.bf16.msra.mxu0 %v6173
    %6472 = vmatprep.mubr.bf16.mxu0 %v5413
    %6473 = vmatmul.mubr.bf16.gmra.mxu0 %v5412
    %v6474 = vpop.f32.mrf.mxu0
    %v6475 = vadd.f32 %v6432, %v6474
    %v6476 = vpop.f32.mrf.mxu0
    %v6477 = vadd.f32 %v6434, %v6476
    %v6478 = vpop.f32.mrf.mxu0
    %v6479 = vadd.f32 %v6436, %v6478
    %v6480 = vpop.f32.mrf.mxu0
    %v6481 = vadd.f32 %v6438, %v6480
    %6482 = vdwg.mxu0
    %6483 = vmatprep.subr.bf16.mxu0 %v6234
    %6484 = vmatpush1.bf16.msra.mxu0 %v6233
    %6485 = vmatprep.subr.bf16.mxu0 %v6230
    %6486 = vmatpush1.bf16.msra.mxu0 %v6229
    %6487 = vmatprep.subr.bf16.mxu0 %v6226
    %6488 = vmatpush1.bf16.msra.mxu0 %v6225
    %6489 = vmatprep.subr.bf16.mxu0 %v6222
    %6490 = vmatpush1.bf16.msra.mxu0 %v6221
    %6491 = vmatprep.subr.bf16.mxu0 %v6218
    %6492 = vmatpush1.bf16.msra.mxu0 %v6217
    %6493 = vmatprep.subr.bf16.mxu0 %v6214
    %6494 = vmatpush1.bf16.msra.mxu0 %v6213
    %6495 = vmatprep.subr.bf16.mxu0 %v6210
    %6496 = vmatpush1.bf16.msra.mxu0 %v6209
    %6497 = vmatprep.subr.bf16.mxu0 %v6206
    %6498 = vmatpush1.bf16.msra.mxu0 %v6205
    %6499 = vmatprep.subr.bf16.mxu0 0
    %6500 = vmatpush2.bf16.msra.mxu0 0
    %6501 = vmatprep.subr.bf16.mxu0 0
    %6502 = vmatpush2.bf16.msra.mxu0 0
    %6503 = vmatprep.subr.bf16.mxu0 0
    %6504 = vmatpush2.bf16.msra.mxu0 0
    %6505 = vmatprep.subr.bf16.mxu0 0
    %6506 = vmatpush2.bf16.msra.mxu0 0
    %6507 = vmatprep.subr.bf16.mxu0 0
    %6508 = vmatpush2.bf16.msra.mxu0 0
    %6509 = vmatprep.subr.bf16.mxu0 0
    %6510 = vmatpush2.bf16.msra.mxu0 0
    %6511 = vmatprep.subr.bf16.mxu0 0
    %6512 = vmatpush2.bf16.msra.mxu0 0
    %6513 = vmatprep.subr.bf16.mxu0 0
    %6514 = vmatpush2.bf16.msra.mxu0 0
    %6515 = vmatprep.mubr.bf16.mxu0 0
    %6516 = vmatmul.mubr.bf16.gmra.mxu0 %v5414
    %v6517 = vpop.f32.mrf.mxu0
    %v6518 = vadd.f32 %v6475, %v6517
    %v6519 = vpop.f32.mrf.mxu0
    %v6520 = vadd.f32 %v6477, %v6519
    %v6521 = vpop.f32.mrf.mxu0
    %v6522 = vadd.f32 %v6479, %v6521
    %v6523 = vpop.f32.mrf.mxu0
    %v6524 = vadd.f32 %v6481, %v6523
    %6525 = vdwg.mxu0
    %6526 = vmatprep.subr.bf16.mxu0 %v6108
    %6527 = vmatpush1.bf16.msra.mxu0 %v6107
    %6528 = vmatprep.subr.bf16.mxu0 %v6104
    %6529 = vmatpush1.bf16.msra.mxu0 %v6103
    %6530 = vmatprep.subr.bf16.mxu0 %v6100
    %6531 = vmatpush1.bf16.msra.mxu0 %v6099
    %6532 = vmatprep.subr.bf16.mxu0 %v6096
    %6533 = vmatpush1.bf16.msra.mxu0 %v6095
    %6534 = vmatprep.subr.bf16.mxu0 %v6092
    %6535 = vmatpush1.bf16.msra.mxu0 %v6091
    %6536 = vmatprep.subr.bf16.mxu0 %v6088
    %6537 = vmatpush1.bf16.msra.mxu0 %v6087
    %6538 = vmatprep.subr.bf16.mxu0 %v6084
    %6539 = vmatpush1.bf16.msra.mxu0 %v6083
    %6540 = vmatprep.subr.bf16.mxu0 %v6080
    %6541 = vmatpush1.bf16.msra.mxu0 %v6079
    %6542 = vmatprep.subr.bf16.mxu0 %v6140
    %6543 = vmatpush2.bf16.msra.mxu0 %v6139
    %6544 = vmatprep.subr.bf16.mxu0 %v6136
    %6545 = vmatpush2.bf16.msra.mxu0 %v6135
    %6546 = vmatprep.subr.bf16.mxu0 %v6132
    %6547 = vmatpush2.bf16.msra.mxu0 %v6131
    %6548 = vmatprep.subr.bf16.mxu0 %v6128
    %6549 = vmatpush2.bf16.msra.mxu0 %v6127
    %6550 = vmatprep.subr.bf16.mxu0 %v6124
    %6551 = vmatpush2.bf16.msra.mxu0 %v6123
    %6552 = vmatprep.subr.bf16.mxu0 %v6120
    %6553 = vmatpush2.bf16.msra.mxu0 %v6119
    %6554 = vmatprep.subr.bf16.mxu0 %v6116
    %6555 = vmatpush2.bf16.msra.mxu0 %v6115
    %6556 = vmatprep.subr.bf16.mxu0 %v6112
    %6557 = vmatpush2.bf16.msra.mxu0 %v6111
    %6558 = vmatprep.mubr.bf16.mxu0 %v5411
    %6559 = vmatmul.mubr.bf16.gmra.mxu0 %v5410
    %v6560 = vpop.f32.mrf.mxu0
    %v6561 = vadd.f32 %v5588, %v6560
    %v6562 = vpop.f32.mrf.mxu0
    %v6563 = vadd.f32 %v5592, %v6562
    %v6564 = vpop.f32.mrf.mxu0
    %v6565 = vadd.f32 %v5588, %v6564
    %v6566 = vpop.f32.mrf.mxu0
    %v6567 = vadd.f32 %v5592, %v6566
    %6568 = vdwg.mxu0
    %6569 = vmatprep.subr.bf16.mxu0 %v6172
    %6570 = vmatpush1.bf16.msra.mxu0 %v6171
    %6571 = vmatprep.subr.bf16.mxu0 %v6168
    %6572 = vmatpush1.bf16.msra.mxu0 %v6167
    %6573 = vmatprep.subr.bf16.mxu0 %v6164
    %6574 = vmatpush1.bf16.msra.mxu0 %v6163
    %6575 = vmatprep.subr.bf16.mxu0 %v6160
    %6576 = vmatpush1.bf16.msra.mxu0 %v6159
    %6577 = vmatprep.subr.bf16.mxu0 %v6156
    %6578 = vmatpush1.bf16.msra.mxu0 %v6155
    %6579 = vmatprep.subr.bf16.mxu0 %v6152
    %6580 = vmatpush1.bf16.msra.mxu0 %v6151
    %6581 = vmatprep.subr.bf16.mxu0 %v6148
    %6582 = vmatpush1.bf16.msra.mxu0 %v6147
    %6583 = vmatprep.subr.bf16.mxu0 %v6144
    %6584 = vmatpush1.bf16.msra.mxu0 %v6143
    %6585 = vmatprep.subr.bf16.mxu0 %v6204
    %6586 = vmatpush2.bf16.msra.mxu0 %v6203
    %6587 = vmatprep.subr.bf16.mxu0 %v6200
    %6588 = vmatpush2.bf16.msra.mxu0 %v6199
    %6589 = vmatprep.subr.bf16.mxu0 %v6196
    %6590 = vmatpush2.bf16.msra.mxu0 %v6195
    %6591 = vmatprep.subr.bf16.mxu0 %v6192
    %6592 = vmatpush2.bf16.msra.mxu0 %v6191
    %6593 = vmatprep.subr.bf16.mxu0 %v6188
    %6594 = vmatpush2.bf16.msra.mxu0 %v6187
    %6595 = vmatprep.subr.bf16.mxu0 %v6184
    %6596 = vmatpush2.bf16.msra.mxu0 %v6183
    %6597 = vmatprep.subr.bf16.mxu0 %v6180
    %6598 = vmatpush2.bf16.msra.mxu0 %v6179
    %6599 = vmatprep.subr.bf16.mxu0 %v6176
    %6600 = vmatpush2.bf16.msra.mxu0 %v6175
    %6601 = vmatprep.mubr.bf16.mxu0 %v5413
    %6602 = vmatmul.mubr.bf16.gmra.mxu0 %v5412
    %v6603 = vpop.f32.mrf.mxu0
    %v6604 = vadd.f32 %v6561, %v6603
    %v6605 = vpop.f32.mrf.mxu0
    %v6606 = vadd.f32 %v6563, %v6605
    %v6607 = vpop.f32.mrf.mxu0
    %v6608 = vadd.f32 %v6565, %v6607
    %v6609 = vpop.f32.mrf.mxu0
    %v6610 = vadd.f32 %v6567, %v6609
    %6611 = vdwg.mxu0
    %6612 = vmatprep.subr.bf16.mxu0 %v6236
    %6613 = vmatpush1.bf16.msra.mxu0 %v6235
    %6614 = vmatprep.subr.bf16.mxu0 %v6232
    %6615 = vmatpush1.bf16.msra.mxu0 %v6231
    %6616 = vmatprep.subr.bf16.mxu0 %v6228
    %6617 = vmatpush1.bf16.msra.mxu0 %v6227
    %6618 = vmatprep.subr.bf16.mxu0 %v6224
    %6619 = vmatpush1.bf16.msra.mxu0 %v6223
    %6620 = vmatprep.subr.bf16.mxu0 %v6220
    %6621 = vmatpush1.bf16.msra.mxu0 %v6219
    %6622 = vmatprep.subr.bf16.mxu0 %v6216
    %6623 = vmatpush1.bf16.msra.mxu0 %v6215
    %6624 = vmatprep.subr.bf16.mxu0 %v6212
    %6625 = vmatpush1.bf16.msra.mxu0 %v6211
    %6626 = vmatprep.subr.bf16.mxu0 %v6208
    %6627 = vmatpush1.bf16.msra.mxu0 %v6207
    %6628 = vmatprep.subr.bf16.mxu0 0
    %6629 = vmatpush2.bf16.msra.mxu0 0
    %6630 = vmatprep.subr.bf16.mxu0 0
    %6631 = vmatpush2.bf16.msra.mxu0 0
    %6632 = vmatprep.subr.bf16.mxu0 0
    %6633 = vmatpush2.bf16.msra.mxu0 0
    %6634 = vmatprep.subr.bf16.mxu0 0
    %6635 = vmatpush2.bf16.msra.mxu0 0
    %6636 = vmatprep.subr.bf16.mxu0 0
    %6637 = vmatpush2.bf16.msra.mxu0 0
    %6638 = vmatprep.subr.bf16.mxu0 0
    %6639 = vmatpush2.bf16.msra.mxu0 0
    %6640 = vmatprep.subr.bf16.mxu0 0
    %6641 = vmatpush2.bf16.msra.mxu0 0
    %6642 = vmatprep.subr.bf16.mxu0 0
    %6643 = vmatpush2.bf16.msra.mxu0 0
    %6644 = vmatprep.mubr.bf16.mxu0 0
    %6645 = vmatmul.mubr.bf16.gmra.mxu0 %v5414
    %v6646 = vpop.f32.mrf.mxu0
    %v6647 = vadd.f32 %v6604, %v6646
    %v6648 = vpop.f32.mrf.mxu0
    %v6649 = vadd.f32 %v6606, %v6648
    %v6650 = vpop.f32.mrf.mxu0
    %v6651 = vadd.f32 %v6608, %v6650
    %v6652 = vpop.f32.mrf.mxu0
    %v6653 = vadd.f32 %v6610, %v6652
    %6654 = vdwg.mxu0
    %v6655 = vtanh.pop %v6518
    %v6656 = vtanh.pop %v6520
    %v6657 = vtanh.pop %v6647
    %v6658 = vtanh.pop %v6649
    %v6659 = vtanh.pop %v6522
    %v6660 = vtanh.pop %v6524
    %v6661 = vtanh.pop %v6651
    %v6662 = vtanh.pop %v6653
    %v6663 = vpack.c.bf16 %v6659, %v6655
    %v6664 = vpack.c.bf16 %v6660, %v6656
    %v6665 = vpack.c.bf16 %v6661, %v6657
    %v6666 = vpack.c.bf16 %v6662, %v6658
    %v6667 = vld [vmem:[#allocation9] sm:$0xff]
    %v6668 = vld [vmem:[#allocation9 + $0x8] sm:$0xff]
    %v6669 = vld [vmem:[#allocation9 + $0x10] sm:$0xff]
    %v6670 = vld [vmem:[#allocation9 + $0x18] sm:$0xff]
    %v6671 = vld [vmem:[#allocation9 + $0x20] sm:$0xff]
    %v6672 = vld [vmem:[#allocation9 + $0x28] sm:$0xff]
    %v6673 = vld [vmem:[#allocation9 + $0x30] sm:$0xff]
    %v6674 = vld [vmem:[#allocation9 + $0x38] sm:$0xff]
    %v6675 = vld [vmem:[#allocation9 + $0x40] sm:$0xff]
    %v6676 = vld [vmem:[#allocation9 + $0x48] sm:$0xff]
    %v6677 = vld [vmem:[#allocation9 + $0x50] sm:$0xff]
    %v6678 = vld [vmem:[#allocation9 + $0x58] sm:$0xff]
    %v6679 = vld [vmem:[#allocation9 + $0x60] sm:$0xff]
    %v6680 = vld [vmem:[#allocation9 + $0x68] sm:$0xff]
    %v6681 = vld [vmem:[#allocation9 + $0x70] sm:$0xff]
    %v6682 = vld [vmem:[#allocation9 + $0x78] sm:$0xff]
    %v6683 = vld [vmem:[#allocation9 + $0x80] sm:$0xff]
    %v6684 = vld [vmem:[#allocation9 + $0x88] sm:$0xff]
    %v6685 = vld [vmem:[#allocation9 + $0x90] sm:$0xff]
    %v6686 = vld [vmem:[#allocation9 + $0x98] sm:$0xff]
    %v6687 = vld [vmem:[#allocation9 + $0xa0] sm:$0xff]
    %v6688 = vld [vmem:[#allocation9 + $0xa8] sm:$0xff]
    %v6689 = vld [vmem:[#allocation9 + $0xb0] sm:$0xff]
    %v6690 = vld [vmem:[#allocation9 + $0xb8] sm:$0xff]
    %v6691 = vld [vmem:[#allocation9 + $0xc0] sm:$0xff]
    %v6692 = vld [vmem:[#allocation9 + $0xc8] sm:$0xff]
    %v6693 = vld [vmem:[#allocation9 + $0xd0] sm:$0xff]
    %v6694 = vld [vmem:[#allocation9 + $0xd8] sm:$0xff]
    %v6695 = vld [vmem:[#allocation9 + $0xe0] sm:$0xff]
    %v6696 = vld [vmem:[#allocation9 + $0xe8] sm:$0xff]
    %v6697 = vld [vmem:[#allocation9 + $0xf0] sm:$0xff]
    %v6698 = vld [vmem:[#allocation9 + $0xf8] sm:$0xff]
    %v6699 = vld [vmem:[#allocation9 + $0x100] sm:$0xff]
    %v6700 = vld [vmem:[#allocation9 + $0x108] sm:$0xff]
    %v6701 = vld [vmem:[#allocation9 + $0x110] sm:$0xff]
    %v6702 = vld [vmem:[#allocation9 + $0x118] sm:$0xff]
    %v6703 = vld [vmem:[#allocation9 + $0x120] sm:$0xff]
    %v6704 = vld [vmem:[#allocation9 + $0x128] sm:$0xff]
    %v6705 = vld [vmem:[#allocation9 + $0x130] sm:$0xff]
    %v6706 = vld [vmem:[#allocation9 + $0x138] sm:$0xff]
    %v6707 = vld [vmem:[#allocation9 + $0x140] sm:$0xff]
    %v6708 = vld [vmem:[#allocation9 + $0x148] sm:$0xff]
    %v6709 = vld [vmem:[#allocation9 + $0x150] sm:$0xff]
    %v6710 = vld [vmem:[#allocation9 + $0x158] sm:$0xff]
    %v6711 = vld [vmem:[#allocation9 + $0x160] sm:$0xff]
    %v6712 = vld [vmem:[#allocation9 + $0x168] sm:$0xff]
    %v6713 = vld [vmem:[#allocation9 + $0x170] sm:$0xff]
    %v6714 = vld [vmem:[#allocation9 + $0x178] sm:$0xff]
    %v6715 = vld [vmem:[#allocation9 + $0x180] sm:$0xff]
    %v6716 = vld [vmem:[#allocation9 + $0x188] sm:$0xff]
    %v6717 = vld [vmem:[#allocation9 + $0x190] sm:$0xff]
    %v6718 = vld [vmem:[#allocation9 + $0x198] sm:$0xff]
    %v6719 = vld [vmem:[#allocation9 + $0x1a0] sm:$0xff]
    %v6720 = vld [vmem:[#allocation9 + $0x1a8] sm:$0xff]
    %v6721 = vld [vmem:[#allocation9 + $0x1b0] sm:$0xff]
    %v6722 = vld [vmem:[#allocation9 + $0x1b8] sm:$0xff]
    %v6723 = vld [vmem:[#allocation9 + $0x1c0] sm:$0xff]
    %v6724 = vld [vmem:[#allocation9 + $0x1c8] sm:$0xff]
    %v6725 = vld [vmem:[#allocation9 + $0x1d0] sm:$0xff]
    %v6726 = vld [vmem:[#allocation9 + $0x1d8] sm:$0xff]
    %v6727 = vld [vmem:[#allocation9 + $0x1e0] sm:$0xff]
    %v6728 = vld [vmem:[#allocation9 + $0x1e8] sm:$0xff]
    %v6729 = vld [vmem:[#allocation9 + $0x1f0] sm:$0xff]
    %v6730 = vld [vmem:[#allocation9 + $0x1f8] sm:$0xff]
    %v6731 = vld [vmem:[#allocation22] sm:$0x3]
    %v6733 = vlaneseq
    %v6734 = vshrl.u32 %v6733, 7
    %v6735 = vsub.s32 0, %v6734
    %v6736 = vrot.slane %v6731, %v6735
    %v6737 = vlaneseq
    %v6738 = vshrl.u32 %v6737, 7
    %v6739 = vsub.s32 1, %v6738
    %v6740 = vrot.slane %v6731, %v6739
    %v6807 = vunpack.c.l.b16 %v6667
    %v6808 = vunpack.c.h.b16 %v6667
    %v6809 = vunpack.c.l.b16 %v6668
    %v6810 = vunpack.c.h.b16 %v6668
    %v6811 = vunpack.c.l.b16 %v6669
    %v6812 = vunpack.c.h.b16 %v6669
    %v6813 = vunpack.c.l.b16 %v6670
    %v6814 = vunpack.c.h.b16 %v6670
    %v6815 = vunpack.c.l.b16 %v6671
    %v6816 = vunpack.c.h.b16 %v6671
    %v6817 = vunpack.c.l.b16 %v6672
    %v6818 = vunpack.c.h.b16 %v6672
    %v6819 = vunpack.c.l.b16 %v6673
    %v6820 = vunpack.c.h.b16 %v6673
    %v6821 = vunpack.c.l.b16 %v6674
    %v6822 = vunpack.c.h.b16 %v6674
    %v6823 = vunpack.c.l.b16 %v6675
    %v6824 = vunpack.c.h.b16 %v6675
    %v6825 = vunpack.c.l.b16 %v6676
    %v6826 = vunpack.c.h.b16 %v6676
    %v6827 = vunpack.c.l.b16 %v6677
    %v6828 = vunpack.c.h.b16 %v6677
    %v6829 = vunpack.c.l.b16 %v6678
    %v6830 = vunpack.c.h.b16 %v6678
    %v6831 = vunpack.c.l.b16 %v6679
    %v6832 = vunpack.c.h.b16 %v6679
    %v6833 = vunpack.c.l.b16 %v6680
    %v6834 = vunpack.c.h.b16 %v6680
    %v6835 = vunpack.c.l.b16 %v6681
    %v6836 = vunpack.c.h.b16 %v6681
    %v6837 = vunpack.c.l.b16 %v6682
    %v6838 = vunpack.c.h.b16 %v6682
    %v6839 = vunpack.c.l.b16 %v6683
    %v6840 = vunpack.c.h.b16 %v6683
    %v6841 = vunpack.c.l.b16 %v6684
    %v6842 = vunpack.c.h.b16 %v6684
    %v6843 = vunpack.c.l.b16 %v6685
    %v6844 = vunpack.c.h.b16 %v6685
    %v6845 = vunpack.c.l.b16 %v6686
    %v6846 = vunpack.c.h.b16 %v6686
    %v6847 = vunpack.c.l.b16 %v6687
    %v6848 = vunpack.c.h.b16 %v6687
    %v6849 = vunpack.c.l.b16 %v6688
    %v6850 = vunpack.c.h.b16 %v6688
    %v6851 = vunpack.c.l.b16 %v6689
    %v6852 = vunpack.c.h.b16 %v6689
    %v6853 = vunpack.c.l.b16 %v6690
    %v6854 = vunpack.c.h.b16 %v6690
    %v6855 = vunpack.c.l.b16 %v6691
    %v6856 = vunpack.c.h.b16 %v6691
    %v6857 = vunpack.c.l.b16 %v6692
    %v6858 = vunpack.c.h.b16 %v6692
    %v6859 = vunpack.c.l.b16 %v6693
    %v6860 = vunpack.c.h.b16 %v6693
    %v6861 = vunpack.c.l.b16 %v6694
    %v6862 = vunpack.c.h.b16 %v6694
    %v6863 = vunpack.c.l.b16 %v6695
    %v6864 = vunpack.c.h.b16 %v6695
    %v6865 = vunpack.c.l.b16 %v6696
    %v6866 = vunpack.c.h.b16 %v6696
    %v6867 = vunpack.c.l.b16 %v6697
    %v6868 = vunpack.c.h.b16 %v6697
    %v6869 = vunpack.c.l.b16 %v6698
    %v6870 = vunpack.c.h.b16 %v6698
    %v6871 = vunpack.c.l.b16 %v6699
    %v6872 = vunpack.c.h.b16 %v6699
    %v6873 = vunpack.c.l.b16 %v6700
    %v6874 = vunpack.c.h.b16 %v6700
    %v6875 = vunpack.c.l.b16 %v6701
    %v6876 = vunpack.c.h.b16 %v6701
    %v6877 = vunpack.c.l.b16 %v6702
    %v6878 = vunpack.c.h.b16 %v6702
    %v6879 = vunpack.c.l.b16 %v6703
    %v6880 = vunpack.c.h.b16 %v6703
    %v6881 = vunpack.c.l.b16 %v6704
    %v6882 = vunpack.c.h.b16 %v6704
    %v6883 = vunpack.c.l.b16 %v6705
    %v6884 = vunpack.c.h.b16 %v6705
    %v6885 = vunpack.c.l.b16 %v6706
    %v6886 = vunpack.c.h.b16 %v6706
    %v6887 = vunpack.c.l.b16 %v6707
    %v6888 = vunpack.c.h.b16 %v6707
    %v6889 = vunpack.c.l.b16 %v6708
    %v6890 = vunpack.c.h.b16 %v6708
    %v6891 = vunpack.c.l.b16 %v6709
    %v6892 = vunpack.c.h.b16 %v6709
    %v6893 = vunpack.c.l.b16 %v6710
    %v6894 = vunpack.c.h.b16 %v6710
    %v6895 = vunpack.c.l.b16 %v6711
    %v6896 = vunpack.c.h.b16 %v6711
    %v6897 = vunpack.c.l.b16 %v6712
    %v6898 = vunpack.c.h.b16 %v6712
    %v6899 = vunpack.c.l.b16 %v6713
    %v6900 = vunpack.c.h.b16 %v6713
    %v6901 = vunpack.c.l.b16 %v6714
    %v6902 = vunpack.c.h.b16 %v6714
    %v6903 = vunpack.c.l.b16 %v6715
    %v6904 = vunpack.c.h.b16 %v6715
    %v6905 = vunpack.c.l.b16 %v6716
    %v6906 = vunpack.c.h.b16 %v6716
    %v6907 = vunpack.c.l.b16 %v6717
    %v6908 = vunpack.c.h.b16 %v6717
    %v6909 = vunpack.c.l.b16 %v6718
    %v6910 = vunpack.c.h.b16 %v6718
    %v6911 = vunpack.c.l.b16 %v6719
    %v6912 = vunpack.c.h.b16 %v6719
    %v6913 = vunpack.c.l.b16 %v6720
    %v6914 = vunpack.c.h.b16 %v6720
    %v6915 = vunpack.c.l.b16 %v6721
    %v6916 = vunpack.c.h.b16 %v6721
    %v6917 = vunpack.c.l.b16 %v6722
    %v6918 = vunpack.c.h.b16 %v6722
    %v6919 = vunpack.c.l.b16 %v6723
    %v6920 = vunpack.c.h.b16 %v6723
    %v6921 = vunpack.c.l.b16 %v6724
    %v6922 = vunpack.c.h.b16 %v6724
    %v6923 = vunpack.c.l.b16 %v6725
    %v6924 = vunpack.c.h.b16 %v6725
    %v6925 = vunpack.c.l.b16 %v6726
    %v6926 = vunpack.c.h.b16 %v6726
    %v6927 = vunpack.c.l.b16 %v6727
    %v6928 = vunpack.c.h.b16 %v6727
    %v6929 = vunpack.c.l.b16 %v6728
    %v6930 = vunpack.c.h.b16 %v6728
    %v6931 = vunpack.c.l.b16 %v6729
    %v6932 = vunpack.c.h.b16 %v6729
    %v6933 = vunpack.c.l.b16 %v6730
    %v6934 = vunpack.c.h.b16 %v6730
    %v6935 = vpack.c.b16 %v6809, %v6807
    %v6936 = vpack.c.b16 %v6810, %v6808
    %v6937 = vpack.c.b16 %v6813, %v6811
    %v6938 = vpack.c.b16 %v6814, %v6812
    %v6939 = vpack.c.b16 %v6817, %v6815
    %v6940 = vpack.c.b16 %v6818, %v6816
    %v6941 = vpack.c.b16 %v6821, %v6819
    %v6942 = vpack.c.b16 %v6822, %v6820
    %v6943 = vpack.c.b16 %v6825, %v6823
    %v6944 = vpack.c.b16 %v6826, %v6824
    %v6945 = vpack.c.b16 %v6829, %v6827
    %v6946 = vpack.c.b16 %v6830, %v6828
    %v6947 = vpack.c.b16 %v6833, %v6831
    %v6948 = vpack.c.b16 %v6834, %v6832
    %v6949 = vpack.c.b16 %v6837, %v6835
    %v6950 = vpack.c.b16 %v6838, %v6836
    %v6951 = vpack.c.b16 %v6841, %v6839
    %v6952 = vpack.c.b16 %v6842, %v6840
    %v6953 = vpack.c.b16 %v6845, %v6843
    %v6954 = vpack.c.b16 %v6846, %v6844
    %v6955 = vpack.c.b16 %v6849, %v6847
    %v6956 = vpack.c.b16 %v6850, %v6848
    %v6957 = vpack.c.b16 %v6853, %v6851
    %v6958 = vpack.c.b16 %v6854, %v6852
    %v6959 = vpack.c.b16 %v6857, %v6855
    %v6960 = vpack.c.b16 %v6858, %v6856
    %v6961 = vpack.c.b16 %v6861, %v6859
    %v6962 = vpack.c.b16 %v6862, %v6860
    %v6963 = vpack.c.b16 %v6865, %v6863
    %v6964 = vpack.c.b16 %v6866, %v6864
    %v6965 = vpack.c.b16 %v6869, %v6867
    %v6966 = vpack.c.b16 %v6870, %v6868
    %v6967 = vpack.c.b16 %v6873, %v6871
    %v6968 = vpack.c.b16 %v6874, %v6872
    %v6969 = vpack.c.b16 %v6877, %v6875
    %v6970 = vpack.c.b16 %v6878, %v6876
    %v6971 = vpack.c.b16 %v6881, %v6879
    %v6972 = vpack.c.b16 %v6882, %v6880
    %v6973 = vpack.c.b16 %v6885, %v6883
    %v6974 = vpack.c.b16 %v6886, %v6884
    %v6975 = vpack.c.b16 %v6889, %v6887
    %v6976 = vpack.c.b16 %v6890, %v6888
    %v6977 = vpack.c.b16 %v6893, %v6891
    %v6978 = vpack.c.b16 %v6894, %v6892
    %v6979 = vpack.c.b16 %v6897, %v6895
    %v6980 = vpack.c.b16 %v6898, %v6896
    %v6981 = vpack.c.b16 %v6901, %v6899
    %v6982 = vpack.c.b16 %v6902, %v6900
    %v6983 = vpack.c.b16 %v6905, %v6903
    %v6984 = vpack.c.b16 %v6906, %v6904
    %v6985 = vpack.c.b16 %v6909, %v6907
    %v6986 = vpack.c.b16 %v6910, %v6908
    %v6987 = vpack.c.b16 %v6913, %v6911
    %v6988 = vpack.c.b16 %v6914, %v6912
    %v6989 = vpack.c.b16 %v6917, %v6915
    %v6990 = vpack.c.b16 %v6918, %v6916
    %v6991 = vpack.c.b16 %v6921, %v6919
    %v6992 = vpack.c.b16 %v6922, %v6920
    %v6993 = vpack.c.b16 %v6925, %v6923
    %v6994 = vpack.c.b16 %v6926, %v6924
    %v6995 = vpack.c.b16 %v6929, %v6927
    %v6996 = vpack.c.b16 %v6930, %v6928
    %v6997 = vpack.c.b16 %v6933, %v6931
    %v6998 = vpack.c.b16 %v6934, %v6932
    %7063 = vmatprep.subr.bf16.mxu0 %v6950
    %7064 = vmatpush1.bf16.msra.mxu0 %v6949
    %7065 = vmatprep.subr.bf16.mxu0 %v6948
    %7066 = vmatpush1.bf16.msra.mxu0 %v6947
    %7067 = vmatprep.subr.bf16.mxu0 %v6946
    %7068 = vmatpush1.bf16.msra.mxu0 %v6945
    %7069 = vmatprep.subr.bf16.mxu0 %v6944
    %7070 = vmatpush1.bf16.msra.mxu0 %v6943
    %7071 = vmatprep.subr.bf16.mxu0 %v6942
    %7072 = vmatpush1.bf16.msra.mxu0 %v6941
    %7073 = vmatprep.subr.bf16.mxu0 %v6940
    %7074 = vmatpush1.bf16.msra.mxu0 %v6939
    %7075 = vmatprep.subr.bf16.mxu0 %v6938
    %7076 = vmatpush1.bf16.msra.mxu0 %v6937
    %7077 = vmatprep.subr.bf16.mxu0 %v6936
    %7078 = vmatpush1.bf16.msra.mxu0 %v6935
    %7079 = vmatprep.subr.bf16.mxu0 %v6966
    %7080 = vmatpush2.bf16.msra.mxu0 %v6965
    %7081 = vmatprep.subr.bf16.mxu0 %v6964
    %7082 = vmatpush2.bf16.msra.mxu0 %v6963
    %7083 = vmatprep.subr.bf16.mxu0 %v6962
    %7084 = vmatpush2.bf16.msra.mxu0 %v6961
    %7085 = vmatprep.subr.bf16.mxu0 %v6960
    %7086 = vmatpush2.bf16.msra.mxu0 %v6959
    %7087 = vmatprep.subr.bf16.mxu0 %v6958
    %7088 = vmatpush2.bf16.msra.mxu0 %v6957
    %7089 = vmatprep.subr.bf16.mxu0 %v6956
    %7090 = vmatpush2.bf16.msra.mxu0 %v6955
    %7091 = vmatprep.subr.bf16.mxu0 %v6954
    %7092 = vmatpush2.bf16.msra.mxu0 %v6953
    %7093 = vmatprep.subr.bf16.mxu0 %v6952
    %7094 = vmatpush2.bf16.msra.mxu0 %v6951
    %7095 = vmatprep.mubr.bf16.mxu0 %v6664
    %7096 = vmatmul.mubr.bf16.gmra.mxu0 %v6663
    %v7097 = vpop.f32.mrf.mxu0
    %v7098 = vadd.f32 %v6736, %v7097
    %v7099 = vpop.f32.mrf.mxu0
    %v7100 = vadd.f32 %v6740, %v7099
    %v7101 = vpop.f32.mrf.mxu0
    %v7102 = vadd.f32 %v6736, %v7101
    %v7103 = vpop.f32.mrf.mxu0
    %v7104 = vadd.f32 %v6740, %v7103
    %7105 = vdwg.mxu0
    %7106 = vmatprep.subr.bf16.mxu0 %v6982
    %7107 = vmatpush1.bf16.msra.mxu0 %v6981
    %7108 = vmatprep.subr.bf16.mxu0 %v6980
    %7109 = vmatpush1.bf16.msra.mxu0 %v6979
    %7110 = vmatprep.subr.bf16.mxu0 %v6978
    %7111 = vmatpush1.bf16.msra.mxu0 %v6977
    %7112 = vmatprep.subr.bf16.mxu0 %v6976
    %7113 = vmatpush1.bf16.msra.mxu0 %v6975
    %7114 = vmatprep.subr.bf16.mxu0 %v6974
    %7115 = vmatpush1.bf16.msra.mxu0 %v6973
    %7116 = vmatprep.subr.bf16.mxu0 %v6972
    %7117 = vmatpush1.bf16.msra.mxu0 %v6971
    %7118 = vmatprep.subr.bf16.mxu0 %v6970
    %7119 = vmatpush1.bf16.msra.mxu0 %v6969
    %7120 = vmatprep.subr.bf16.mxu0 %v6968
    %7121 = vmatpush1.bf16.msra.mxu0 %v6967
    %7122 = vmatprep.subr.bf16.mxu0 %v6998
    %7123 = vmatpush2.bf16.msra.mxu0 %v6997
    %7124 = vmatprep.subr.bf16.mxu0 %v6996
    %7125 = vmatpush2.bf16.msra.mxu0 %v6995
    %7126 = vmatprep.subr.bf16.mxu0 %v6994
    %7127 = vmatpush2.bf16.msra.mxu0 %v6993
    %7128 = vmatprep.subr.bf16.mxu0 %v6992
    %7129 = vmatpush2.bf16.msra.mxu0 %v6991
    %7130 = vmatprep.subr.bf16.mxu0 %v6990
    %7131 = vmatpush2.bf16.msra.mxu0 %v6989
    %7132 = vmatprep.subr.bf16.mxu0 %v6988
    %7133 = vmatpush2.bf16.msra.mxu0 %v6987
    %7134 = vmatprep.subr.bf16.mxu0 %v6986
    %7135 = vmatpush2.bf16.msra.mxu0 %v6985
    %7136 = vmatprep.subr.bf16.mxu0 %v6984
    %7137 = vmatpush2.bf16.msra.mxu0 %v6983
    %7138 = vmatprep.mubr.bf16.mxu0 %v6666
    %7139 = vmatmul.mubr.bf16.gmra.mxu0 %v6665
    %v7140 = vpop.f32.mrf.mxu0
    %v7141 = vadd.f32 %v7098, %v7140
    %v7142 = vpop.f32.mrf.mxu0
    %v7143 = vadd.f32 %v7100, %v7142
    %v7144 = vpop.f32.mrf.mxu0
    %v7145 = vadd.f32 %v7102, %v7144
    %v7146 = vpop.f32.mrf.mxu0
    %v7147 = vadd.f32 %v7104, %v7146
    %7148 = vdwg.mxu0
    %v7149 = vtanh.pop %v7141
    %v7150 = vtanh.pop %v7143
    %v7151 = vtanh.pop %v7145
    %v7152 = vtanh.pop %v7147
    %v7153 = vpack.c.bf16 %v7151, %v7149
    %v7154 = vpack.c.bf16 %v7152, %v7150
    %v7155 = vld [vmem:[#allocation10] sm:$0xf]
    %v7156 = vld [vmem:[#allocation10 + $0x4] sm:$0xf]
    %v7157 = vld [vmem:[#allocation10 + $0x8] sm:$0xf]
    %v7158 = vld [vmem:[#allocation10 + $0xc] sm:$0xf]
    %v7159 = vld [vmem:[#allocation10 + $0x10] sm:$0xf]
    %v7160 = vld [vmem:[#allocation10 + $0x14] sm:$0xf]
    %v7161 = vld [vmem:[#allocation10 + $0x18] sm:$0xf]
    %v7162 = vld [vmem:[#allocation10 + $0x1c] sm:$0xf]
    %v7163 = vld [vmem:[#allocation10 + $0x20] sm:$0xf]
    %v7164 = vld [vmem:[#allocation10 + $0x24] sm:$0xf]
    %v7165 = vld [vmem:[#allocation10 + $0x28] sm:$0xf]
    %v7166 = vld [vmem:[#allocation10 + $0x2c] sm:$0xf]
    %v7167 = vld [vmem:[#allocation10 + $0x30] sm:$0xf]
    %v7168 = vld [vmem:[#allocation10 + $0x34] sm:$0xf]
    %v7169 = vld [vmem:[#allocation10 + $0x38] sm:$0xf]
    %v7170 = vld [vmem:[#allocation10 + $0x3c] sm:$0xf]
    %v7171 = vld [vmem:[#allocation10 + $0x40] sm:$0xf]
    %v7172 = vld [vmem:[#allocation10 + $0x44] sm:$0xf]
    %v7173 = vld [vmem:[#allocation10 + $0x48] sm:$0xf]
    %v7174 = vld [vmem:[#allocation10 + $0x4c] sm:$0xf]
    %v7175 = vld [vmem:[#allocation10 + $0x50] sm:$0xf]
    %v7176 = vld [vmem:[#allocation10 + $0x54] sm:$0xf]
    %v7177 = vld [vmem:[#allocation10 + $0x58] sm:$0xf]
    %v7178 = vld [vmem:[#allocation10 + $0x5c] sm:$0xf]
    %v7179 = vld [vmem:[#allocation10 + $0x60] sm:$0xf]
    %v7180 = vld [vmem:[#allocation10 + $0x64] sm:$0xf]
    %v7181 = vld [vmem:[#allocation10 + $0x68] sm:$0xf]
    %v7182 = vld [vmem:[#allocation10 + $0x6c] sm:$0xf]
    %v7183 = vld [vmem:[#allocation10 + $0x70] sm:$0xf]
    %v7184 = vld [vmem:[#allocation10 + $0x74] sm:$0xf]
    %v7185 = vld [vmem:[#allocation10 + $0x78] sm:$0xf]
    %v7186 = vld [vmem:[#allocation10 + $0x7c] sm:$0xf]
    %v7187 = vld [vmem:[#allocation24] sm:$0x1]
    %v7189 = vlaneseq
    %v7190 = vshrl.u32 %v7189, 7
    %v7191 = vsub.s32 0, %v7190
    %v7192 = vrot.slane %v7187, %v7191
    %v7226 = vunpack.c.l.b16 %v7155
    %v7227 = vunpack.c.l.b16 %v7156
    %v7228 = vunpack.c.l.b16 %v7157
    %v7229 = vunpack.c.l.b16 %v7158
    %v7230 = vunpack.c.l.b16 %v7159
    %v7231 = vunpack.c.l.b16 %v7160
    %v7232 = vunpack.c.l.b16 %v7161
    %v7233 = vunpack.c.l.b16 %v7162
    %v7234 = vunpack.c.l.b16 %v7163
    %v7235 = vunpack.c.l.b16 %v7164
    %v7236 = vunpack.c.l.b16 %v7165
    %v7237 = vunpack.c.l.b16 %v7166
    %v7238 = vunpack.c.l.b16 %v7167
    %v7239 = vunpack.c.l.b16 %v7168
    %v7240 = vunpack.c.l.b16 %v7169
    %v7241 = vunpack.c.l.b16 %v7170
    %v7242 = vunpack.c.l.b16 %v7171
    %v7243 = vunpack.c.l.b16 %v7172
    %v7244 = vunpack.c.l.b16 %v7173
    %v7245 = vunpack.c.l.b16 %v7174
    %v7246 = vunpack.c.l.b16 %v7175
    %v7247 = vunpack.c.l.b16 %v7176
    %v7248 = vunpack.c.l.b16 %v7177
    %v7249 = vunpack.c.l.b16 %v7178
    %v7250 = vunpack.c.l.b16 %v7179
    %v7251 = vunpack.c.l.b16 %v7180
    %v7252 = vunpack.c.l.b16 %v7181
    %v7253 = vunpack.c.l.b16 %v7182
    %v7254 = vunpack.c.l.b16 %v7183
    %v7255 = vunpack.c.l.b16 %v7184
    %v7256 = vunpack.c.l.b16 %v7185
    %v7257 = vunpack.c.l.b16 %v7186
    %v7258 = vpack.c.b16 %v7227, %v7226
    %v7259 = vpack.c.b16 %v7229, %v7228
    %v7260 = vpack.c.b16 %v7231, %v7230
    %v7261 = vpack.c.b16 %v7233, %v7232
    %v7262 = vpack.c.b16 %v7235, %v7234
    %v7263 = vpack.c.b16 %v7237, %v7236
    %v7264 = vpack.c.b16 %v7239, %v7238
    %v7265 = vpack.c.b16 %v7241, %v7240
    %v7266 = vpack.c.b16 %v7243, %v7242
    %v7267 = vpack.c.b16 %v7245, %v7244
    %v7268 = vpack.c.b16 %v7247, %v7246
    %v7269 = vpack.c.b16 %v7249, %v7248
    %v7270 = vpack.c.b16 %v7251, %v7250
    %v7271 = vpack.c.b16 %v7253, %v7252
    %v7272 = vpack.c.b16 %v7255, %v7254
    %v7273 = vpack.c.b16 %v7257, %v7256
    %7290 = vmatprep.subr.bf16.mxu0 0
    %7291 = vmatpush1.bf16.msra.mxu0 %v7265
    %7292 = vmatprep.subr.bf16.mxu0 0
    %7293 = vmatpush1.bf16.msra.mxu0 %v7264
    %7294 = vmatprep.subr.bf16.mxu0 0
    %7295 = vmatpush1.bf16.msra.mxu0 %v7263
    %7296 = vmatprep.subr.bf16.mxu0 0
    %7297 = vmatpush1.bf16.msra.mxu0 %v7262
    %7298 = vmatprep.subr.bf16.mxu0 0
    %7299 = vmatpush1.bf16.msra.mxu0 %v7261
    %7300 = vmatprep.subr.bf16.mxu0 0
    %7301 = vmatpush1.bf16.msra.mxu0 %v7260
    %7302 = vmatprep.subr.bf16.mxu0 0
    %7303 = vmatpush1.bf16.msra.mxu0 %v7259
    %7304 = vmatprep.subr.bf16.mxu0 0
    %7305 = vmatpush1.bf16.msra.mxu0 %v7258
    %7306 = vmatprep.subr.bf16.mxu0 0
    %7307 = vmatpush2.bf16.msra.mxu0 %v7273
    %7308 = vmatprep.subr.bf16.mxu0 0
    %7309 = vmatpush2.bf16.msra.mxu0 %v7272
    %7310 = vmatprep.subr.bf16.mxu0 0
    %7311 = vmatpush2.bf16.msra.mxu0 %v7271
    %7312 = vmatprep.subr.bf16.mxu0 0
    %7313 = vmatpush2.bf16.msra.mxu0 %v7270
    %7314 = vmatprep.subr.bf16.mxu0 0
    %7315 = vmatpush2.bf16.msra.mxu0 %v7269
    %7316 = vmatprep.subr.bf16.mxu0 0
    %7317 = vmatpush2.bf16.msra.mxu0 %v7268
    %7318 = vmatprep.subr.bf16.mxu0 0
    %7319 = vmatpush2.bf16.msra.mxu0 %v7267
    %7320 = vmatprep.subr.bf16.mxu0 0
    %7321 = vmatpush2.bf16.msra.mxu0 %v7266
    %7322 = vmatprep.mubr.bf16.mxu0 %v7154
    %7323 = vmatmul.mubr.bf16.gmra.mxu0 %v7153
    %v7324 = vpop.f32.mrf.mxu0
    %v7325 = vadd.f32 %v7192, %v7324
    %v7326 = vpop.f32.mrf.mxu0
    %v7327 = vpop.f32.mrf.mxu0
    %v7328 = vadd.f32 %v7192, %v7327
    %v7329 = vpop.f32.mrf.mxu0
    %7330 = vdwg.mxu0
    %v7331 = vtanh.pop %v7325
    %v7332 = vtanh.pop %v7328
    %v7333 = vpack.c.bf16 %v7332, %v7331
    %v7334 = vld [vmem:[#allocation12] sm:$0xf]
    %v7335 = vld [vmem:[#allocation12 + $0x4] sm:$0xf]
    %v7336 = vld [vmem:[#allocation12 + $0x8] sm:$0xf]
    %v7337 = vld [vmem:[#allocation12 + $0xc] sm:$0xf]
    %v7338 = vld [vmem:[#allocation12 + $0x10] sm:$0xf]
    %v7339 = vld [vmem:[#allocation12 + $0x14] sm:$0xf]
    %v7340 = vld [vmem:[#allocation12 + $0x18] sm:$0xf]
    %v7341 = vld [vmem:[#allocation12 + $0x1c] sm:$0xf]
    %v7342 = vld [vmem:[#allocation12 + $0x20] sm:$0xf]
    %v7343 = vld [vmem:[#allocation12 + $0x24] sm:$0xf]
    %v7344 = vld [vmem:[#allocation12 + $0x28] sm:$0xf]
    %v7345 = vld [vmem:[#allocation12 + $0x2c] sm:$0xf]
    %v7346 = vld [vmem:[#allocation12 + $0x30] sm:$0xf]
    %v7347 = vld [vmem:[#allocation12 + $0x34] sm:$0xf]
    %v7348 = vld [vmem:[#allocation12 + $0x38] sm:$0xf]
    %v7349 = vld [vmem:[#allocation12 + $0x3c] sm:$0xf]
    %v7350 = vld [vmem:[#allocation25] sm:$0x1]
    %v7352 = vlaneseq
    %v7353 = vshrl.u32 %v7352, 7
    %v7354 = vsub.s32 0, %v7353
    %v7355 = vrot.slane %v7350, %v7354
    %v7373 = vunpack.c.l.b16 %v7334
    %v7374 = vunpack.c.l.b16 %v7335
    %v7375 = vunpack.c.l.b16 %v7336
    %v7376 = vunpack.c.l.b16 %v7337
    %v7377 = vunpack.c.l.b16 %v7338
    %v7378 = vunpack.c.l.b16 %v7339
    %v7379 = vunpack.c.l.b16 %v7340
    %v7380 = vunpack.c.l.b16 %v7341
    %v7381 = vunpack.c.l.b16 %v7342
    %v7382 = vunpack.c.l.b16 %v7343
    %v7383 = vunpack.c.l.b16 %v7344
    %v7384 = vunpack.c.l.b16 %v7345
    %v7385 = vunpack.c.l.b16 %v7346
    %v7386 = vunpack.c.l.b16 %v7347
    %v7387 = vunpack.c.l.b16 %v7348
    %v7388 = vunpack.c.l.b16 %v7349
    %v7389 = vpack.c.b16 %v7374, %v7373
    %v7390 = vpack.c.b16 %v7376, %v7375
    %v7391 = vpack.c.b16 %v7378, %v7377
    %v7392 = vpack.c.b16 %v7380, %v7379
    %v7393 = vpack.c.b16 %v7382, %v7381
    %v7394 = vpack.c.b16 %v7384, %v7383
    %v7395 = vpack.c.b16 %v7386, %v7385
    %v7396 = vpack.c.b16 %v7388, %v7387
    %7405 = vmatprep.subr.bf16.mxu0 0
    %7406 = vmatpush1.bf16.msra.mxu0 %v7396
    %7407 = vmatprep.subr.bf16.mxu0 0
    %7408 = vmatpush1.bf16.msra.mxu0 %v7395
    %7409 = vmatprep.subr.bf16.mxu0 0
    %7410 = vmatpush1.bf16.msra.mxu0 %v7394
    %7411 = vmatprep.subr.bf16.mxu0 0
    %7412 = vmatpush1.bf16.msra.mxu0 %v7393
    %7413 = vmatprep.subr.bf16.mxu0 0
    %7414 = vmatpush1.bf16.msra.mxu0 %v7392
    %7415 = vmatprep.subr.bf16.mxu0 0
    %7416 = vmatpush1.bf16.msra.mxu0 %v7391
    %7417 = vmatprep.subr.bf16.mxu0 0
    %7418 = vmatpush1.bf16.msra.mxu0 %v7390
    %7419 = vmatprep.subr.bf16.mxu0 0
    %7420 = vmatpush1.bf16.msra.mxu0 %v7389
    %7421 = vmatprep.subr.bf16.mxu0 0
    %7422 = vmatpush2.bf16.msra.mxu0 0
    %7423 = vmatprep.subr.bf16.mxu0 0
    %7424 = vmatpush2.bf16.msra.mxu0 0
    %7425 = vmatprep.subr.bf16.mxu0 0
    %7426 = vmatpush2.bf16.msra.mxu0 0
    %7427 = vmatprep.subr.bf16.mxu0 0
    %7428 = vmatpush2.bf16.msra.mxu0 0
    %7429 = vmatprep.subr.bf16.mxu0 0
    %7430 = vmatpush2.bf16.msra.mxu0 0
    %7431 = vmatprep.subr.bf16.mxu0 0
    %7432 = vmatpush2.bf16.msra.mxu0 0
    %7433 = vmatprep.subr.bf16.mxu0 0
    %7434 = vmatpush2.bf16.msra.mxu0 0
    %7435 = vmatprep.subr.bf16.mxu0 0
    %7436 = vmatpush2.bf16.msra.mxu0 0
    %7437 = vmatprep.mubr.bf16.mxu0 0
    %7438 = vmatmul.mubr.bf16.gmra.mxu0 %v7333
    %v7439 = vpop.f32.mrf.mxu0
    %v7440 = vadd.f32 %v7355, %v7439
    %v7441 = vpop.f32.mrf.mxu0
    %v7442 = vpop.f32.mrf.mxu0
    %v7443 = vadd.f32 %v7355, %v7442
    %v7444 = vpop.f32.mrf.mxu0
    %7445 = vdwg.mxu0
    %v7446 = vtanh.pop %v7440
    %v7447 = vtanh.pop %v7443
    %v7448 = vpack.c.bf16 %v7447, %v7446
    %v7449 = vld [vmem:[#allocation13] sm:$0xf]
    %v7450 = vld [vmem:[#allocation13 + $0x4] sm:$0xf]
    %v7451 = vld [vmem:[#allocation13 + $0x8] sm:$0xf]
    %v7452 = vld [vmem:[#allocation13 + $0xc] sm:$0xf]
    %v7453 = vld [vmem:[#allocation13 + $0x10] sm:$0xf]
    %v7454 = vld [vmem:[#allocation13 + $0x14] sm:$0xf]
    %v7455 = vld [vmem:[#allocation13 + $0x18] sm:$0xf]
    %v7456 = vld [vmem:[#allocation13 + $0x1c] sm:$0xf]
    %v7457 = vld [vmem:[#allocation13 + $0x20] sm:$0xf]
    %v7458 = vld [vmem:[#allocation13 + $0x24] sm:$0xf]
    %v7459 = vld [vmem:[#allocation13 + $0x28] sm:$0xf]
    %v7460 = vld [vmem:[#allocation13 + $0x2c] sm:$0xf]
    %v7461 = vld [vmem:[#allocation13 + $0x30] sm:$0xf]
    %v7462 = vld [vmem:[#allocation13 + $0x34] sm:$0xf]
    %v7463 = vld [vmem:[#allocation13 + $0x38] sm:$0xf]
    %v7464 = vld [vmem:[#allocation13 + $0x3c] sm:$0xf]
    %v7465 = vld [vmem:[#allocation27] sm:$0x1]
    %v7467 = vlaneseq
    %v7468 = vshrl.u32 %v7467, 7
    %v7469 = vsub.s32 0, %v7468
    %v7470 = vrot.slane %v7465, %v7469
    %v7488 = vunpack.c.l.b16 %v7449
    %v7489 = vunpack.c.l.b16 %v7450
    %v7490 = vunpack.c.l.b16 %v7451
    %v7491 = vunpack.c.l.b16 %v7452
    %v7492 = vunpack.c.l.b16 %v7453
    %v7493 = vunpack.c.l.b16 %v7454
    %v7494 = vunpack.c.l.b16 %v7455
    %v7495 = vunpack.c.l.b16 %v7456
    %v7496 = vunpack.c.l.b16 %v7457
    %v7497 = vunpack.c.l.b16 %v7458
    %v7498 = vunpack.c.l.b16 %v7459
    %v7499 = vunpack.c.l.b16 %v7460
    %v7500 = vunpack.c.l.b16 %v7461
    %v7501 = vunpack.c.l.b16 %v7462
    %v7502 = vunpack.c.l.b16 %v7463
    %v7503 = vunpack.c.l.b16 %v7464
    %v7504 = vpack.c.b16 %v7489, %v7488
    %v7505 = vpack.c.b16 %v7491, %v7490
    %v7506 = vpack.c.b16 %v7493, %v7492
    %v7507 = vpack.c.b16 %v7495, %v7494
    %v7508 = vpack.c.b16 %v7497, %v7496
    %v7509 = vpack.c.b16 %v7499, %v7498
    %v7510 = vpack.c.b16 %v7501, %v7500
    %v7511 = vpack.c.b16 %v7503, %v7502
    %7520 = vmatprep.subr.bf16.mxu0 0
    %7521 = vmatpush1.bf16.msra.mxu0 %v7511
    %7522 = vmatprep.subr.bf16.mxu0 0
    %7523 = vmatpush1.bf16.msra.mxu0 %v7510
    %7524 = vmatprep.subr.bf16.mxu0 0
    %7525 = vmatpush1.bf16.msra.mxu0 %v7509
    %7526 = vmatprep.subr.bf16.mxu0 0
    %7527 = vmatpush1.bf16.msra.mxu0 %v7508
    %7528 = vmatprep.subr.bf16.mxu0 0
    %7529 = vmatpush1.bf16.msra.mxu0 %v7507
    %7530 = vmatprep.subr.bf16.mxu0 0
    %7531 = vmatpush1.bf16.msra.mxu0 %v7506
    %7532 = vmatprep.subr.bf16.mxu0 0
    %7533 = vmatpush1.bf16.msra.mxu0 %v7505
    %7534 = vmatprep.subr.bf16.mxu0 0
    %7535 = vmatpush1.bf16.msra.mxu0 %v7504
    %7536 = vmatprep.subr.bf16.mxu0 0
    %7537 = vmatpush2.bf16.msra.mxu0 0
    %7538 = vmatprep.subr.bf16.mxu0 0
    %7539 = vmatpush2.bf16.msra.mxu0 0
    %7540 = vmatprep.subr.bf16.mxu0 0
    %7541 = vmatpush2.bf16.msra.mxu0 0
    %7542 = vmatprep.subr.bf16.mxu0 0
    %7543 = vmatpush2.bf16.msra.mxu0 0
    %7544 = vmatprep.subr.bf16.mxu0 0
    %7545 = vmatpush2.bf16.msra.mxu0 0
    %7546 = vmatprep.subr.bf16.mxu0 0
    %7547 = vmatpush2.bf16.msra.mxu0 0
    %7548 = vmatprep.subr.bf16.mxu0 0
    %7549 = vmatpush2.bf16.msra.mxu0 0
    %7550 = vmatprep.subr.bf16.mxu0 0
    %7551 = vmatpush2.bf16.msra.mxu0 0
    %7552 = vmatprep.mubr.bf16.mxu0 0
    %7553 = vmatmul.mubr.bf16.gmra.mxu0 %v7448
    %v7554 = vpop.f32.mrf.mxu0
    %v7555 = vadd.f32 %v7470, %v7554
    %v7556 = vpop.f32.mrf.mxu0
    %v7557 = vpop.f32.mrf.mxu0
    %v7558 = vadd.f32 %v7470, %v7557
    %v7559 = vpop.f32.mrf.mxu0
    %7560 = vdwg.mxu0
    %v7561 = vtanh.pop %v7555
    %v7562 = vtanh.pop %v7558
    %v7563 = vpack.c.bf16 %v7562, %v7561
    %v7564 = vld [vmem:[#allocation15] sm:$0xf]
    %v7565 = vld [vmem:[#allocation15 + $0x4] sm:$0xf]
    %v7566 = vld [vmem:[#allocation15 + $0x8] sm:$0xf]
    %v7567 = vld [vmem:[#allocation15 + $0xc] sm:$0xf]
    %v7568 = vld [vmem:[#allocation15 + $0x10] sm:$0xf]
    %v7569 = vld [vmem:[#allocation15 + $0x14] sm:$0xf]
    %v7570 = vld [vmem:[#allocation15 + $0x18] sm:$0xf]
    %v7571 = vld [vmem:[#allocation15 + $0x1c] sm:$0xf]
    %v7572 = vld [vmem:[#allocation15 + $0x20] sm:$0xf]
    %v7573 = vld [vmem:[#allocation15 + $0x24] sm:$0xf]
    %v7574 = vld [vmem:[#allocation15 + $0x28] sm:$0xf]
    %v7575 = vld [vmem:[#allocation15 + $0x2c] sm:$0xf]
    %v7576 = vld [vmem:[#allocation15 + $0x30] sm:$0xf]
    %v7577 = vld [vmem:[#allocation15 + $0x34] sm:$0xf]
    %v7578 = vld [vmem:[#allocation15 + $0x38] sm:$0xf]
    %v7579 = vld [vmem:[#allocation15 + $0x3c] sm:$0xf]
    %v7580 = vld [vmem:[#allocation28] sm:$0x1]
    %v7582 = vlaneseq
    %v7583 = vshrl.u32 %v7582, 7
    %v7584 = vsub.s32 0, %v7583
    %v7585 = vrot.slane %v7580, %v7584
    %v7603 = vunpack.c.l.b16 %v7564
    %v7604 = vunpack.c.l.b16 %v7565
    %v7605 = vunpack.c.l.b16 %v7566
    %v7606 = vunpack.c.l.b16 %v7567
    %v7607 = vunpack.c.l.b16 %v7568
    %v7608 = vunpack.c.l.b16 %v7569
    %v7609 = vunpack.c.l.b16 %v7570
    %v7610 = vunpack.c.l.b16 %v7571
    %v7611 = vunpack.c.l.b16 %v7572
    %v7612 = vunpack.c.l.b16 %v7573
    %v7613 = vunpack.c.l.b16 %v7574
    %v7614 = vunpack.c.l.b16 %v7575
    %v7615 = vunpack.c.l.b16 %v7576
    %v7616 = vunpack.c.l.b16 %v7577
    %v7617 = vunpack.c.l.b16 %v7578
    %v7618 = vunpack.c.l.b16 %v7579
    %v7619 = vpack.c.b16 %v7604, %v7603
    %v7620 = vpack.c.b16 %v7606, %v7605
    %v7621 = vpack.c.b16 %v7608, %v7607
    %v7622 = vpack.c.b16 %v7610, %v7609
    %v7623 = vpack.c.b16 %v7612, %v7611
    %v7624 = vpack.c.b16 %v7614, %v7613
    %v7625 = vpack.c.b16 %v7616, %v7615
    %v7626 = vpack.c.b16 %v7618, %v7617
    %7635 = vmatprep.subr.bf16.mxu0 0
    %7636 = vmatpush1.bf16.msra.mxu0 %v7626
    %7637 = vmatprep.subr.bf16.mxu0 0
    %7638 = vmatpush1.bf16.msra.mxu0 %v7625
    %7639 = vmatprep.subr.bf16.mxu0 0
    %7640 = vmatpush1.bf16.msra.mxu0 %v7624
    %7641 = vmatprep.subr.bf16.mxu0 0
    %7642 = vmatpush1.bf16.msra.mxu0 %v7623
    %7643 = vmatprep.subr.bf16.mxu0 0
    %7644 = vmatpush1.bf16.msra.mxu0 %v7622
    %7645 = vmatprep.subr.bf16.mxu0 0
    %7646 = vmatpush1.bf16.msra.mxu0 %v7621
    %7647 = vmatprep.subr.bf16.mxu0 0
    %7648 = vmatpush1.bf16.msra.mxu0 %v7620
    %7649 = vmatprep.subr.bf16.mxu0 0
    %7650 = vmatpush1.bf16.msra.mxu0 %v7619
    %7651 = vmatprep.subr.bf16.mxu0 0
    %7652 = vmatpush2.bf16.msra.mxu0 0
    %7653 = vmatprep.subr.bf16.mxu0 0
    %7654 = vmatpush2.bf16.msra.mxu0 0
    %7655 = vmatprep.subr.bf16.mxu0 0
    %7656 = vmatpush2.bf16.msra.mxu0 0
    %7657 = vmatprep.subr.bf16.mxu0 0
    %7658 = vmatpush2.bf16.msra.mxu0 0
    %7659 = vmatprep.subr.bf16.mxu0 0
    %7660 = vmatpush2.bf16.msra.mxu0 0
    %7661 = vmatprep.subr.bf16.mxu0 0
    %7662 = vmatpush2.bf16.msra.mxu0 0
    %7663 = vmatprep.subr.bf16.mxu0 0
    %7664 = vmatpush2.bf16.msra.mxu0 0
    %7665 = vmatprep.subr.bf16.mxu0 0
    %7666 = vmatpush2.bf16.msra.mxu0 0
    %7667 = vmatprep.mubr.bf16.mxu0 0
    %7668 = vmatmul.mubr.bf16.gmra.mxu0 %v7563
    %v7669 = vpop.f32.mrf.mxu0
    %v7670 = vadd.f32 %v7585, %v7669
    %v7671 = vpop.f32.mrf.mxu0
    %v7672 = vpop.f32.mrf.mxu0
    %v7673 = vadd.f32 %v7585, %v7672
    %v7674 = vpop.f32.mrf.mxu0
    %7675 = vdwg.mxu0
    %7676 = vst [vmem:[%s19] sm:$0xff] %v7670
    %7677 = vst [vmem:[%s19 + $0x8] sm:$0xff] %v7673
    // Predicated region
    $region150: #{_jitted.1} parent=1 // pred_check
      _
    $region151: #{_jitted.1} parent=1 // pred_check_branch
      %7679 = sbr.rel (0) target = $region153
    $region152: #{_jitted.1} parent=1 // pred_region
      _
    $region153: #{_jitted.1} parent=1 // pred_fallthru
      _
    // Predicated region
    $region154: #{_jitted.1} parent=1 // pred_check
      _
    $region155: #{_jitted.1} parent=1 // pred_check_branch
      %7681 = sbr.rel (0) target = $region157
    $region156: #{_jitted.1} parent=1 // pred_region
      _
    $region157: #{_jitted.1} parent=1 // pred_fallthru
      _
    %7682 = vsyncpa [#allocation3], 1
    %7683 = vsyncpa [#allocation5], 1
    %7684 = vsyncpa [#allocation8], 1
    %7685 = vsyncpa [#allocation11], 1
    %7686 = vsyncpa [#allocation14], 1
    %7687 = vsyncpa [#allocation17], 1
    %7688 = vsyncpa [#allocation20], 1
    %7689 = vsyncpa [#allocation23], 1
    %7690 = vsyncpa [#allocation26], 1
    %7691 = vsyncpa [#allocation29], 1

</llo_original>
